<compile_context>
chip_gen: v7x
topology: tpu7x:2x2x1
jax: 0.10.0
libtpu: 0.0.40
codegen_flags: <defaults>
</compile_context>

<pallas_src>
import numpy as np
import jax
import jax.numpy as jnp
from jax import lax
from jax.experimental import pallas as pl
from jax.experimental.pallas import tpu as pltpu


def residual_block_kernel(x_ref, w1_ref, s1_ref, b1_ref,
                          w2_ref, s2_ref, b2_ref, alpha_ref,
                          out_ref, pad_s, acc_s):
    # x_ref   : (1, H, W, C)   un-padded input block (also the residual branch)
    # w*_ref  : (9, C, C)      3x3 taps flattened, (tap, Cin, Cout)
    # s*/b*   : (1, C)         folded BN scale / (conv-bias+BN) shift
    # alpha   : (1, C)         PReLU slope broadcast per channel
    # pad_s   : (H+2, W+2, C)  persistent VMEM scratch holding the halo'd image
    # acc_s   : (H*W, C)       f32 VMEM accumulator
    _, H, W, C = out_ref.shape

    # Zero only the 1-pixel halo border (interior is fully overwritten every step).
    zrow = jnp.zeros((1, W + 2, C), jnp.float32)
    zcol = jnp.zeros((H + 2, 1, C), jnp.float32)
    pad_s[0:1, :, :] = zrow
    pad_s[H + 1:H + 2, :, :] = zrow
    pad_s[:, 0:1, :] = zcol
    pad_s[:, W + 1:W + 2, :] = zcol

    # ---- conv1 (3x3, stride 1, pad 1) as 9 shifted matmuls ----
    pad_s[1:H + 1, 1:W + 1, :] = x_ref[0].astype(jnp.float32)
    for k in range(9):
        dy, dx = k // 3, k % 3
        patch = pad_s[dy:dy + H, dx:dx + W, :].reshape(H * W, C)
        t = jnp.dot(patch, w1_ref[k], preferred_element_type=jnp.float32)
        if k == 0:
            acc_s[...] = t          # init from tap 0 (no zero-fill)
        else:
            acc_s[...] += t

    # fused conv-bias + BatchNorm1 (eval), then PReLU
    y = acc_s[...] * s1_ref[0] + b1_ref[0]
    y = jnp.where(y > 0, y, alpha_ref[0] * y)

    # ---- conv2 (3x3) + BatchNorm2 : reuse the same padded scratch ----
    pad_s[1:H + 1, 1:W + 1, :] = y.reshape(H, W, C)
    for k in range(9):
        dy, dx = k // 3, k % 3
        patch = pad_s[dy:dy + H, dx:dx + W, :].reshape(H * W, C)
        t = jnp.dot(patch, w2_ref[k], preferred_element_type=jnp.float32)
        if k == 0:
            acc_s[...] = t
        else:
            acc_s[...] += t

    z = acc_s[...] * s2_ref[0] + b2_ref[0]

    # residual add (re-read x from the resident VMEM input block; keeps live ranges short)
    out_ref[0] = (x_ref[0].astype(jnp.float32)
                  + z.reshape(H, W, C)).astype(out_ref.dtype)


def residual_block(x_nchw, params, eps=1e-5):
    (w1, b1, g1, be1, m1, v1, alpha, w2, b2, g2, be2, m2, v2) = params
    N, C, H, W = x_nchw.shape

    # lane-dense channel axis: pad C up to a multiple of 128
    Cp = ((C + 127) // 128) * 128
    pc = Cp - C

    # NCHW -> NHWC (single un-padded input stream; halo is built in-kernel)
    x = jnp.transpose(x_nchw, (0, 2, 3, 1))
    if pc:
        x = jnp.pad(x, ((0, 0), (0, 0), (0, 0), (0, pc)))

    # (Cout, Cin, kh, kw) -> (kh*kw, Cin, Cout), zero-padded to Cp
    def prep_w(w):
        wk = jnp.transpose(w, (2, 3, 1, 0)).reshape(9, C, C)
        if pc:
            wk = jnp.pad(wk, ((0, 0), (0, pc), (0, pc)))
        return wk

    # fold BN (eval) + conv bias:  s*(conv + b - m) + beta = s*conv + (s*(b-m)+beta)
    s1 = g1 / jnp.sqrt(v1 + eps)
    bb1 = (b1 - m1) * s1 + be1
    s2 = g2 / jnp.sqrt(v2 + eps)
    bb2 = (b2 - m2) * s2 + be2
    # nn.PReLU() default has a single shared slope; also supports per-channel slopes.
    alpha_vec = jnp.broadcast_to(alpha.reshape(-1), (C,))

    def prep_c(v):
        v = v.reshape(1, C)
        if pc:
            v = jnp.pad(v, ((0, 0), (0, pc)))   # padded channels: scale/bias/alpha = 0
        return v

    w1k, w2k = prep_w(w1), prep_w(w2)

    # VMEM sizing (double-buffered in/out blocks + weights + scratches), never below 32 MiB.
    blk = H * W * Cp * 4
    wbytes = 9 * Cp * Cp * 4
    scratch = (H + 2) * (W + 2) * Cp * 4 + H * W * Cp * 4
    vmem_est = 2 * 2 * blk + 2 * 2 * wbytes + scratch + (2 << 20)
    vmem_limit = int(max(vmem_est, 32 * 1024 * 1024))

    kern = pl.pallas_call(
        residual_block_kernel,
        out_shape=jax.ShapeDtypeStruct((N, H, W, Cp), x.dtype),
        grid_spec=pltpu.PrefetchScalarGridSpec(
            num_scalar_prefetch=0,
            grid=(N,),
            in_specs=[
                pl.BlockSpec((1, H, W, Cp), lambda n: (n, 0, 0, 0)),
                pl.BlockSpec((9, Cp, Cp), lambda n: (0, 0, 0)),
                pl.BlockSpec((1, Cp), lambda n: (0, 0)),
                pl.BlockSpec((1, Cp), lambda n: (0, 0)),
                pl.BlockSpec((9, Cp, Cp), lambda n: (0, 0, 0)),
                pl.BlockSpec((1, Cp), lambda n: (0, 0)),
                pl.BlockSpec((1, Cp), lambda n: (0, 0)),
                pl.BlockSpec((1, Cp), lambda n: (0, 0)),
            ],
            out_specs=pl.BlockSpec((1, H, W, Cp), lambda n: (n, 0, 0, 0)),
            scratch_shapes=[
                pltpu.VMEM((H + 2, W + 2, Cp), jnp.float32),
                pltpu.VMEM((H * W, Cp), jnp.float32),
            ],
        ),
        compiler_params=pltpu.CompilerParams(
            dimension_semantics=("parallel",),
            vmem_limit_bytes=vmem_limit,
        ),
    )
    out_nhwc = kern(x, w1k, prep_c(s1), prep_c(bb1),
                    w2k, prep_c(s2), prep_c(bb2), prep_c(alpha_vec))
    out_nhwc = out_nhwc[..., :C]                       # drop lane-padding channels
    return jnp.transpose(out_nhwc, (0, 3, 1, 2))       # back to NCHW


def ref_forward(x, params, eps=1e-5):
    """Pure-JAX reference mirroring the PyTorch module (BN in eval mode)."""
    (w1, b1, g1, be1, m1, v1, alpha, w2, b2, g2, be2, m2, v2) = params

    def conv(inp, w, b):
        y = lax.conv_general_dilated(inp, w, (1, 1), 'SAME',
                                     dimension_numbers=('NCHW', 'OIHW', 'NCHW'))
        return y + b[None, :, None, None]

    def bn(inp, g, be, m, v):
        return (g[None, :, None, None] * (inp - m[None, :, None, None])
                / jnp.sqrt(v[None, :, None, None] + eps) + be[None, :, None, None])

    a = alpha.reshape(-1)[0]
    y = bn(conv(x, w1, b1), g1, be1, m1, v1)
    y = jnp.where(y > 0, y, a * y)
    y = bn(conv(y, w2, b2), g2, be2, m2, v2)
    return x + y


if __name__ == "__main__":
    N, C, H, W = 2, 4, 16, 16
    key = jax.random.PRNGKey(0)
    ks = jax.random.split(key, 12)

    w1 = jax.random.normal(ks[0], (C, C, 3, 3), jnp.float32) * 0.1
    b1 = jax.random.normal(ks[1], (C,), jnp.float32) * 0.1
    g1 = jax.random.uniform(ks[2], (C,), jnp.float32, 0.5, 1.5)
    be1 = jax.random.normal(ks[3], (C,), jnp.float32) * 0.1
    m1 = jax.random.normal(ks[4], (C,), jnp.float32) * 0.1
    v1 = jax.random.uniform(ks[5], (C,), jnp.float32, 0.5, 1.5)
    alpha = jnp.asarray([0.25], jnp.float32)  # nn.PReLU() default init (single slope)
    w2 = jax.random.normal(ks[6], (C, C, 3, 3), jnp.float32) * 0.1
    b2 = jax.random.normal(ks[7], (C,), jnp.float32) * 0.1
    g2 = jax.random.uniform(ks[8], (C,), jnp.float32, 0.5, 1.5)
    be2 = jax.random.normal(ks[9], (C,), jnp.float32) * 0.1
    m2 = jax.random.normal(ks[10], (C,), jnp.float32) * 0.1
    v2 = jax.random.uniform(ks[11], (C,), jnp.float32, 0.5, 1.5)

    params = (w1, b1, g1, be1, m1, v1, alpha, w2, b2, g2, be2, m2, v2)
    x = jax.random.normal(jax.random.PRNGKey(42), (N, C, H, W), jnp.float32)

    out = jax.block_until_ready(residual_block(x, params))
    ref = jax.block_until_ready(ref_forward(x, params))

    np.testing.assert_allclose(np.asarray(out), np.asarray(ref), rtol=1e-4, atol=1e-4)
    print("KERNEL_OK")
</pallas_src>

<mosaic_0001>
module attributes {stable_mosaic.version = 11 : i64} {
  func.func @residual_block_kernel(%arg0: i32, %arg1: memref<1x16x16x128xf32, #tpu.memory_space<vmem>>, %arg2: memref<9x128x128xf32, #tpu.memory_space<vmem>>, %arg3: memref<1x128xf32, #tpu.memory_space<vmem>>, %arg4: memref<1x128xf32, #tpu.memory_space<vmem>>, %arg5: memref<9x128x128xf32, #tpu.memory_space<vmem>>, %arg6: memref<1x128xf32, #tpu.memory_space<vmem>>, %arg7: memref<1x128xf32, #tpu.memory_space<vmem>>, %arg8: memref<1x128xf32, #tpu.memory_space<vmem>>, %arg9: memref<1x16x16x128xf32, #tpu.memory_space<vmem>>, %arg10: memref<18x18x128xf32, #tpu.memory_space<vmem>>, %arg11: memref<256x128xf32, #tpu.memory_space<vmem>>) attributes {dimension_semantics = [#tpu.dimension_semantics<parallel>], iteration_bounds = array<i64: 2>, scalar_prefetch = 0 : i64, scratch_operands = 2 : i64, tpu.core_type = #tpu.core_type<tc>, window_params = [{transform_indices = @transform_0, window_bounds = array<i64: 1, 16, 16, 128>}, {pipeline_mode = #tpu.pipeline_mode<synchronous>, transform_indices = @transform_1, window_bounds = array<i64: 9, 128, 128>}, {pipeline_mode = #tpu.pipeline_mode<synchronous>, transform_indices = @transform_2, window_bounds = array<i64: 1, 128>}, {pipeline_mode = #tpu.pipeline_mode<synchronous>, transform_indices = @transform_3, window_bounds = array<i64: 1, 128>}, {pipeline_mode = #tpu.pipeline_mode<synchronous>, transform_indices = @transform_4, window_bounds = array<i64: 9, 128, 128>}, {pipeline_mode = #tpu.pipeline_mode<synchronous>, transform_indices = @transform_5, window_bounds = array<i64: 1, 128>}, {pipeline_mode = #tpu.pipeline_mode<synchronous>, transform_indices = @transform_6, window_bounds = array<i64: 1, 128>}, {pipeline_mode = #tpu.pipeline_mode<synchronous>, transform_indices = @transform_7, window_bounds = array<i64: 1, 128>}, {transform_indices = @transform_8, window_bounds = array<i64: 1, 16, 16, 128>}]} {
    %cst = arith.constant 0.000000e+00 : f32
    %0 = vector.broadcast %cst : f32 to vector<1x18x128xf32>
    %cst_0 = arith.constant 0.000000e+00 : f32
    %1 = vector.broadcast %cst_0 : f32 to vector<18x1x128xf32>
    %c0 = arith.constant 0 : index
    %c0_1 = arith.constant 0 : index
    %c0_2 = arith.constant 0 : index
    %2 = vector.load %arg10[%c0, %c0_1, %c0_2] : memref<18x18x128xf32, #tpu.memory_space<vmem>>, vector<1x18x128xf32>
    tpu.vector_store %arg10[%c0, %c0_1, %c0_2], %0 {strides = array<i32>} : memref<18x18x128xf32, #tpu.memory_space<vmem>>, vector<1x18x128xf32>,
    %c17 = arith.constant 17 : index
    %c0_3 = arith.constant 0 : index
    %c0_4 = arith.constant 0 : index
    %3 = vector.load %arg10[%c17, %c0_3, %c0_4] : memref<18x18x128xf32, #tpu.memory_space<vmem>>, vector<1x18x128xf32>
    tpu.vector_store %arg10[%c17, %c0_3, %c0_4], %0 {strides = array<i32>} : memref<18x18x128xf32, #tpu.memory_space<vmem>>, vector<1x18x128xf32>,
    %c0_5 = arith.constant 0 : index
    %c0_6 = arith.constant 0 : index
    %c0_7 = arith.constant 0 : index
    %4 = vector.load %arg10[%c0_5, %c0_6, %c0_7] : memref<18x18x128xf32, #tpu.memory_space<vmem>>, vector<18x1x128xf32>
    tpu.vector_store %arg10[%c0_5, %c0_6, %c0_7], %1 {strides = array<i32>} : memref<18x18x128xf32, #tpu.memory_space<vmem>>, vector<18x1x128xf32>,
    %c0_8 = arith.constant 0 : index
    %c17_9 = arith.constant 17 : index
    %c0_10 = arith.constant 0 : index
    %5 = vector.load %arg10[%c0_8, %c17_9, %c0_10] : memref<18x18x128xf32, #tpu.memory_space<vmem>>, vector<18x1x128xf32>
    tpu.vector_store %arg10[%c0_8, %c17_9, %c0_10], %1 {strides = array<i32>} : memref<18x18x128xf32, #tpu.memory_space<vmem>>, vector<18x1x128xf32>,
    %c0_11 = arith.constant 0 : index
    %c0_12 = arith.constant 0 : index
    %c0_13 = arith.constant 0 : index
    %c0_14 = arith.constant 0 : index
    %6 = vector.load %arg1[%c0_11, %c0_12, %c0_13, %c0_14] : memref<1x16x16x128xf32, #tpu.memory_space<vmem>>, vector<1x16x16x128xf32>
    %7 = vector.shape_cast %6 : vector<1x16x16x128xf32> to vector<16x16x128xf32>
    %c1 = arith.constant 1 : index
    %c1_15 = arith.constant 1 : index
    %c0_16 = arith.constant 0 : index
    %8 = vector.load %arg10[%c1, %c1_15, %c0_16] : memref<18x18x128xf32, #tpu.memory_space<vmem>>, vector<16x16x128xf32>
    tpu.vector_store %arg10[%c1, %c1_15, %c0_16], %7 {strides = array<i32>} : memref<18x18x128xf32, #tpu.memory_space<vmem>>, vector<16x16x128xf32>,
    %c0_17 = arith.constant 0 : index
    %c0_18 = arith.constant 0 : index
    %c0_19 = arith.constant 0 : index
    %9 = vector.load %arg10[%c0_17, %c0_18, %c0_19] : memref<18x18x128xf32, #tpu.memory_space<vmem>>, vector<16x16x128xf32>
    %10 = vector.shape_cast %9 : vector<16x16x128xf32> to vector<256x128xf32>
    %c0_20 = arith.constant 0 : index
    %c0_21 = arith.constant 0 : index
    %c0_22 = arith.constant 0 : index
    %11 = vector.load %arg2[%c0_20, %c0_21, %c0_22] : memref<9x128x128xf32, #tpu.memory_space<vmem>>, vector<1x128x128xf32>
    %12 = vector.shape_cast %11 : vector<1x128x128xf32> to vector<128x128xf32>
    %cst_23 = arith.constant dense<0.000000e+00> : vector<256x128xf32>
    %13 = tpu.matmul %10, %12, %cst_23 {dimension_numbers = #tpu.dot_dimension_numbers<[1], [0], [0], [1], [0, 0, 1, 1], [], []>} : vector<256x128xf32>, vector<128x128xf32>, vector<256x128xf32> -> vector<256x128xf32>
    %c0_24 = arith.constant 0 : index
    %c0_25 = arith.constant 0 : index
    %14 = vector.load %arg11[%c0_24, %c0_25] : memref<256x128xf32, #tpu.memory_space<vmem>>, vector<256x128xf32>
    tpu.vector_store %arg11[%c0_24, %c0_25], %13 {strides = array<i32>} : memref<256x128xf32, #tpu.memory_space<vmem>>, vector<256x128xf32>,
    %c0_26 = arith.constant 0 : index
    %c1_27 = arith.constant 1 : index
    %c0_28 = arith.constant 0 : index
    %15 = vector.load %arg10[%c0_26, %c1_27, %c0_28] : memref<18x18x128xf32, #tpu.memory_space<vmem>>, vector<16x16x128xf32>
    %16 = vector.shape_cast %15 : vector<16x16x128xf32> to vector<256x128xf32>
    %c1_29 = arith.constant 1 : index
    %c0_30 = arith.constant 0 : index
    %c0_31 = arith.constant 0 : index
    %17 = vector.load %arg2[%c1_29, %c0_30, %c0_31] : memref<9x128x128xf32, #tpu.memory_space<vmem>>, vector<1x128x128xf32>
    %18 = vector.shape_cast %17 : vector<1x128x128xf32> to vector<128x128xf32>
    %cst_32 = arith.constant dense<0.000000e+00> : vector<256x128xf32>
    %19 = tpu.matmul %16, %18, %cst_32 {dimension_numbers = #tpu.dot_dimension_numbers<[1], [0], [0], [1], [0, 0, 1, 1], [], []>} : vector<256x128xf32>, vector<128x128xf32>, vector<256x128xf32> -> vector<256x128xf32>
    %c0_33 = arith.constant 0 : index
    %c0_34 = arith.constant 0 : index
    %20 = vector.load %arg11[%c0_33, %c0_34] : memref<256x128xf32, #tpu.memory_space<vmem>>, vector<256x128xf32>
    %21 = arith.addf %20, %19 : vector<256x128xf32>
    %c0_35 = arith.constant 0 : index
    %c0_36 = arith.constant 0 : index
    %22 = vector.load %arg11[%c0_35, %c0_36] : memref<256x128xf32, #tpu.memory_space<vmem>>, vector<256x128xf32>
    tpu.vector_store %arg11[%c0_35, %c0_36], %21 {strides = array<i32>} : memref<256x128xf32, #tpu.memory_space<vmem>>, vector<256x128xf32>,
    %c0_37 = arith.constant 0 : index
    %c2 = arith.constant 2 : index
    %c0_38 = arith.constant 0 : index
    %23 = vector.load %arg10[%c0_37, %c2, %c0_38] : memref<18x18x128xf32, #tpu.memory_space<vmem>>, vector<16x16x128xf32>
    %24 = vector.shape_cast %23 : vector<16x16x128xf32> to vector<256x128xf32>
    %c2_39 = arith.constant 2 : index
    %c0_40 = arith.constant 0 : index
    %c0_41 = arith.constant 0 : index
    %25 = vector.load %arg2[%c2_39, %c0_40, %c0_41] : memref<9x128x128xf32, #tpu.memory_space<vmem>>, vector<1x128x128xf32>
    %26 = vector.shape_cast %25 : vector<1x128x128xf32> to vector<128x128xf32>
    %cst_42 = arith.constant dense<0.000000e+00> : vector<256x128xf32>
    %27 = tpu.matmul %24, %26, %cst_42 {dimension_numbers = #tpu.dot_dimension_numbers<[1], [0], [0], [1], [0, 0, 1, 1], [], []>} : vector<256x128xf32>, vector<128x128xf32>, vector<256x128xf32> -> vector<256x128xf32>
    %c0_43 = arith.constant 0 : index
    %c0_44 = arith.constant 0 : index
    %28 = vector.load %arg11[%c0_43, %c0_44] : memref<256x128xf32, #tpu.memory_space<vmem>>, vector<256x128xf32>
    %29 = arith.addf %28, %27 : vector<256x128xf32>
    %c0_45 = arith.constant 0 : index
    %c0_46 = arith.constant 0 : index
    %30 = vector.load %arg11[%c0_45, %c0_46] : memref<256x128xf32, #tpu.memory_space<vmem>>, vector<256x128xf32>
    tpu.vector_store %arg11[%c0_45, %c0_46], %29 {strides = array<i32>} : memref<256x128xf32, #tpu.memory_space<vmem>>, vector<256x128xf32>,
    %c1_47 = arith.constant 1 : index
    %c0_48 = arith.constant 0 : index
    %c0_49 = arith.constant 0 : index
    %31 = vector.load %arg10[%c1_47, %c0_48, %c0_49] : memref<18x18x128xf32, #tpu.memory_space<vmem>>, vector<16x16x128xf32>
    %32 = vector.shape_cast %31 : vector<16x16x128xf32> to vector<256x128xf32>
    %c3 = arith.constant 3 : index
    %c0_50 = arith.constant 0 : index
    %c0_51 = arith.constant 0 : index
    %33 = vector.load %arg2[%c3, %c0_50, %c0_51] : memref<9x128x128xf32, #tpu.memory_space<vmem>>, vector<1x128x128xf32>
    %34 = vector.shape_cast %33 : vector<1x128x128xf32> to vector<128x128xf32>
    %cst_52 = arith.constant dense<0.000000e+00> : vector<256x128xf32>
    %35 = tpu.matmul %32, %34, %cst_52 {dimension_numbers = #tpu.dot_dimension_numbers<[1], [0], [0], [1], [0, 0, 1, 1], [], []>} : vector<256x128xf32>, vector<128x128xf32>, vector<256x128xf32> -> vector<256x128xf32>
    %c0_53 = arith.constant 0 : index
    %c0_54 = arith.constant 0 : index
    %36 = vector.load %arg11[%c0_53, %c0_54] : memref<256x128xf32, #tpu.memory_space<vmem>>, vector<256x128xf32>
    %37 = arith.addf %36, %35 : vector<256x128xf32>
    %c0_55 = arith.constant 0 : index
    %c0_56 = arith.constant 0 : index
    %38 = vector.load %arg11[%c0_55, %c0_56] : memref<256x128xf32, #tpu.memory_space<vmem>>, vector<256x128xf32>
    tpu.vector_store %arg11[%c0_55, %c0_56], %37 {strides = array<i32>} : memref<256x128xf32, #tpu.memory_space<vmem>>, vector<256x128xf32>,
    %c1_57 = arith.constant 1 : index
    %c1_58 = arith.constant 1 : index
    %c0_59 = arith.constant 0 : index
    %39 = vector.load %arg10[%c1_57, %c1_58, %c0_59] : memref<18x18x128xf32, #tpu.memory_space<vmem>>, vector<16x16x128xf32>
    %40 = vector.shape_cast %39 : vector<16x16x128xf32> to vector<256x128xf32>
    %c4 = arith.constant 4 : index
    %c0_60 = arith.constant 0 : index
    %c0_61 = arith.constant 0 : index
    %41 = vector.load %arg2[%c4, %c0_60, %c0_61] : memref<9x128x128xf32, #tpu.memory_space<vmem>>, vector<1x128x128xf32>
    %42 = vector.shape_cast %41 : vector<1x128x128xf32> to vector<128x128xf32>
    %cst_62 = arith.constant dense<0.000000e+00> : vector<256x128xf32>
    %43 = tpu.matmul %40, %42, %cst_62 {dimension_numbers = #tpu.dot_dimension_numbers<[1], [0], [0], [1], [0, 0, 1, 1], [], []>} : vector<256x128xf32>, vector<128x128xf32>, vector<256x128xf32> -> vector<256x128xf32>
    %c0_63 = arith.constant 0 : index
    %c0_64 = arith.constant 0 : index
    %44 = vector.load %arg11[%c0_63, %c0_64] : memref<256x128xf32, #tpu.memory_space<vmem>>, vector<256x128xf32>
    %45 = arith.addf %44, %43 : vector<256x128xf32>
    %c0_65 = arith.constant 0 : index
    %c0_66 = arith.constant 0 : index
    %46 = vector.load %arg11[%c0_65, %c0_66] : memref<256x128xf32, #tpu.memory_space<vmem>>, vector<256x128xf32>
    tpu.vector_store %arg11[%c0_65, %c0_66], %45 {strides = array<i32>} : memref<256x128xf32, #tpu.memory_space<vmem>>, vector<256x128xf32>,
    %c1_67 = arith.constant 1 : index
    %c2_68 = arith.constant 2 : index
    %c0_69 = arith.constant 0 : index
    %47 = vector.load %arg10[%c1_67, %c2_68, %c0_69] : memref<18x18x128xf32, #tpu.memory_space<vmem>>, vector<16x16x128xf32>
    %48 = vector.shape_cast %47 : vector<16x16x128xf32> to vector<256x128xf32>
    %c5 = arith.constant 5 : index
    %c0_70 = arith.constant 0 : index
    %c0_71 = arith.constant 0 : index
    %49 = vector.load %arg2[%c5, %c0_70, %c0_71] : memref<9x128x128xf32, #tpu.memory_space<vmem>>, vector<1x128x128xf32>
    %50 = vector.shape_cast %49 : vector<1x128x128xf32> to vector<128x128xf32>
    %cst_72 = arith.constant dense<0.000000e+00> : vector<256x128xf32>
    %51 = tpu.matmul %48, %50, %cst_72 {dimension_numbers = #tpu.dot_dimension_numbers<[1], [0], [0], [1], [0, 0, 1, 1], [], []>} : vector<256x128xf32>, vector<128x128xf32>, vector<256x128xf32> -> vector<256x128xf32>
    %c0_73 = arith.constant 0 : index
    %c0_74 = arith.constant 0 : index
    %52 = vector.load %arg11[%c0_73, %c0_74] : memref<256x128xf32, #tpu.memory_space<vmem>>, vector<256x128xf32>
    %53 = arith.addf %52, %51 : vector<256x128xf32>
    %c0_75 = arith.constant 0 : index
    %c0_76 = arith.constant 0 : index
    %54 = vector.load %arg11[%c0_75, %c0_76] : memref<256x128xf32, #tpu.memory_space<vmem>>, vector<256x128xf32>
    tpu.vector_store %arg11[%c0_75, %c0_76], %53 {strides = array<i32>} : memref<256x128xf32, #tpu.memory_space<vmem>>, vector<256x128xf32>,
    %c2_77 = arith.constant 2 : index
    %c0_78 = arith.constant 0 : index
    %c0_79 = arith.constant 0 : index
    %55 = vector.load %arg10[%c2_77, %c0_78, %c0_79] : memref<18x18x128xf32, #tpu.memory_space<vmem>>, vector<16x16x128xf32>
    %56 = vector.shape_cast %55 : vector<16x16x128xf32> to vector<256x128xf32>
    %c6 = arith.constant 6 : index
    %c0_80 = arith.constant 0 : index
    %c0_81 = arith.constant 0 : index
    %57 = vector.load %arg2[%c6, %c0_80, %c0_81] : memref<9x128x128xf32, #tpu.memory_space<vmem>>, vector<1x128x128xf32>
    %58 = vector.shape_cast %57 : vector<1x128x128xf32> to vector<128x128xf32>
    %cst_82 = arith.constant dense<0.000000e+00> : vector<256x128xf32>
    %59 = tpu.matmul %56, %58, %cst_82 {dimension_numbers = #tpu.dot_dimension_numbers<[1], [0], [0], [1], [0, 0, 1, 1], [], []>} : vector<256x128xf32>, vector<128x128xf32>, vector<256x128xf32> -> vector<256x128xf32>
    %c0_83 = arith.constant 0 : index
    %c0_84 = arith.constant 0 : index
    %60 = vector.load %arg11[%c0_83, %c0_84] : memref<256x128xf32, #tpu.memory_space<vmem>>, vector<256x128xf32>
    %61 = arith.addf %60, %59 : vector<256x128xf32>
    %c0_85 = arith.constant 0 : index
    %c0_86 = arith.constant 0 : index
    %62 = vector.load %arg11[%c0_85, %c0_86] : memref<256x128xf32, #tpu.memory_space<vmem>>, vector<256x128xf32>
    tpu.vector_store %arg11[%c0_85, %c0_86], %61 {strides = array<i32>} : memref<256x128xf32, #tpu.memory_space<vmem>>, vector<256x128xf32>,
    %c2_87 = arith.constant 2 : index
    %c1_88 = arith.constant 1 : index
    %c0_89 = arith.constant 0 : index
    %63 = vector.load %arg10[%c2_87, %c1_88, %c0_89] : memref<18x18x128xf32, #tpu.memory_space<vmem>>, vector<16x16x128xf32>
    %64 = vector.shape_cast %63 : vector<16x16x128xf32> to vector<256x128xf32>
    %c7 = arith.constant 7 : index
    %c0_90 = arith.constant 0 : index
    %c0_91 = arith.constant 0 : index
    %65 = vector.load %arg2[%c7, %c0_90, %c0_91] : memref<9x128x128xf32, #tpu.memory_space<vmem>>, vector<1x128x128xf32>
    %66 = vector.shape_cast %65 : vector<1x128x128xf32> to vector<128x128xf32>
    %cst_92 = arith.constant dense<0.000000e+00> : vector<256x128xf32>
    %67 = tpu.matmul %64, %66, %cst_92 {dimension_numbers = #tpu.dot_dimension_numbers<[1], [0], [0], [1], [0, 0, 1, 1], [], []>} : vector<256x128xf32>, vector<128x128xf32>, vector<256x128xf32> -> vector<256x128xf32>
    %c0_93 = arith.constant 0 : index
    %c0_94 = arith.constant 0 : index
    %68 = vector.load %arg11[%c0_93, %c0_94] : memref<256x128xf32, #tpu.memory_space<vmem>>, vector<256x128xf32>
    %69 = arith.addf %68, %67 : vector<256x128xf32>
    %c0_95 = arith.constant 0 : index
    %c0_96 = arith.constant 0 : index
    %70 = vector.load %arg11[%c0_95, %c0_96] : memref<256x128xf32, #tpu.memory_space<vmem>>, vector<256x128xf32>
    tpu.vector_store %arg11[%c0_95, %c0_96], %69 {strides = array<i32>} : memref<256x128xf32, #tpu.memory_space<vmem>>, vector<256x128xf32>,
    %c2_97 = arith.constant 2 : index
    %c2_98 = arith.constant 2 : index
    %c0_99 = arith.constant 0 : index
    %71 = vector.load %arg10[%c2_97, %c2_98, %c0_99] : memref<18x18x128xf32, #tpu.memory_space<vmem>>, vector<16x16x128xf32>
    %72 = vector.shape_cast %71 : vector<16x16x128xf32> to vector<256x128xf32>
    %c8 = arith.constant 8 : index
    %c0_100 = arith.constant 0 : index
    %c0_101 = arith.constant 0 : index
    %73 = vector.load %arg2[%c8, %c0_100, %c0_101] : memref<9x128x128xf32, #tpu.memory_space<vmem>>, vector<1x128x128xf32>
    %74 = vector.shape_cast %73 : vector<1x128x128xf32> to vector<128x128xf32>
    %cst_102 = arith.constant dense<0.000000e+00> : vector<256x128xf32>
    %75 = tpu.matmul %72, %74, %cst_102 {dimension_numbers = #tpu.dot_dimension_numbers<[1], [0], [0], [1], [0, 0, 1, 1], [], []>} : vector<256x128xf32>, vector<128x128xf32>, vector<256x128xf32> -> vector<256x128xf32>
    %c0_103 = arith.constant 0 : index
    %c0_104 = arith.constant 0 : index
    %76 = vector.load %arg11[%c0_103, %c0_104] : memref<256x128xf32, #tpu.memory_space<vmem>>, vector<256x128xf32>
    %77 = arith.addf %76, %75 : vector<256x128xf32>
    %c0_105 = arith.constant 0 : index
    %c0_106 = arith.constant 0 : index
    %78 = vector.load %arg11[%c0_105, %c0_106] : memref<256x128xf32, #tpu.memory_space<vmem>>, vector<256x128xf32>
    tpu.vector_store %arg11[%c0_105, %c0_106], %77 {strides = array<i32>} : memref<256x128xf32, #tpu.memory_space<vmem>>, vector<256x128xf32>,
    %c0_107 = arith.constant 0 : index
    %c0_108 = arith.constant 0 : index
    %79 = vector.load %arg11[%c0_107, %c0_108] : memref<256x128xf32, #tpu.memory_space<vmem>>, vector<256x128xf32>
    %c0_109 = arith.constant 0 : index
    %c0_110 = arith.constant 0 : index
    %80 = vector.load %arg3[%c0_109, %c0_110] : memref<1x128xf32, #tpu.memory_space<vmem>>, vector<1x128xf32>
    %81 = vector.shape_cast %80 : vector<1x128xf32> to vector<128xf32>
    %82 = vector.shape_cast %81 : vector<128xf32> to vector<1x128xf32>
    %83 = vector.broadcast %82 : vector<1x128xf32> to vector<256x128xf32>
    %84 = arith.mulf %79, %83 : vector<256x128xf32>
    %c0_111 = arith.constant 0 : index
    %c0_112 = arith.constant 0 : index
    %85 = vector.load %arg4[%c0_111, %c0_112] : memref<1x128xf32, #tpu.memory_space<vmem>>, vector<1x128xf32>
    %86 = vector.shape_cast %85 : vector<1x128xf32> to vector<128xf32>
    %87 = vector.shape_cast %86 : vector<128xf32> to vector<1x128xf32>
    %88 = vector.broadcast %87 : vector<1x128xf32> to vector<256x128xf32>
    %89 = arith.addf %84, %88 : vector<256x128xf32>
    %cst_113 = arith.constant 0.000000e+00 : f32
    %90 = vector.broadcast %cst_113 : f32 to vector<256x128xf32>
    %91 = arith.cmpf ogt, %89, %90 : vector<256x128xf32>
    %c0_114 = arith.constant 0 : index
    %c0_115 = arith.constant 0 : index
    %92 = vector.load %arg8[%c0_114, %c0_115] : memref<1x128xf32, #tpu.memory_space<vmem>>, vector<1x128xf32>
    %93 = vector.shape_cast %92 : vector<1x128xf32> to vector<128xf32>
    %94 = vector.shape_cast %93 : vector<128xf32> to vector<1x128xf32>
    %95 = vector.broadcast %94 : vector<1x128xf32> to vector<256x128xf32>
    %96 = arith.mulf %95, %89 : vector<256x128xf32>
    %97 = arith.select %91, %89, %96 : vector<256x128xi1>, vector<256x128xf32>
    %98 = vector.shape_cast %97 : vector<256x128xf32> to vector<16x16x128xf32>
    %c1_116 = arith.constant 1 : index
    %c1_117 = arith.constant 1 : index
    %c0_118 = arith.constant 0 : index
    %99 = vector.load %arg10[%c1_116, %c1_117, %c0_118] : memref<18x18x128xf32, #tpu.memory_space<vmem>>, vector<16x16x128xf32>
    tpu.vector_store %arg10[%c1_116, %c1_117, %c0_118], %98 {strides = array<i32>} : memref<18x18x128xf32, #tpu.memory_space<vmem>>, vector<16x16x128xf32>,
    %c0_119 = arith.constant 0 : index
    %c0_120 = arith.constant 0 : index
    %c0_121 = arith.constant 0 : index
    %100 = vector.load %arg10[%c0_119, %c0_120, %c0_121] : memref<18x18x128xf32, #tpu.memory_space<vmem>>, vector<16x16x128xf32>
    %101 = vector.shape_cast %100 : vector<16x16x128xf32> to vector<256x128xf32>
    %c0_122 = arith.constant 0 : index
    %c0_123 = arith.constant 0 : index
    %c0_124 = arith.constant 0 : index
    %102 = vector.load %arg5[%c0_122, %c0_123, %c0_124] : memref<9x128x128xf32, #tpu.memory_space<vmem>>, vector<1x128x128xf32>
    %103 = vector.shape_cast %102 : vector<1x128x128xf32> to vector<128x128xf32>
    %cst_125 = arith.constant dense<0.000000e+00> : vector<256x128xf32>
    %104 = tpu.matmul %101, %103, %cst_125 {dimension_numbers = #tpu.dot_dimension_numbers<[1], [0], [0], [1], [0, 0, 1, 1], [], []>} : vector<256x128xf32>, vector<128x128xf32>, vector<256x128xf32> -> vector<256x128xf32>
    %c0_126 = arith.constant 0 : index
    %c0_127 = arith.constant 0 : index
    %105 = vector.load %arg11[%c0_126, %c0_127] : memref<256x128xf32, #tpu.memory_space<vmem>>, vector<256x128xf32>
    tpu.vector_store %arg11[%c0_126, %c0_127], %104 {strides = array<i32>} : memref<256x128xf32, #tpu.memory_space<vmem>>, vector<256x128xf32>,
    %c0_128 = arith.constant 0 : index
    %c1_129 = arith.constant 1 : index
    %c0_130 = arith.constant 0 : index
    %106 = vector.load %arg10[%c0_128, %c1_129, %c0_130] : memref<18x18x128xf32, #tpu.memory_space<vmem>>, vector<16x16x128xf32>
    %107 = vector.shape_cast %106 : vector<16x16x128xf32> to vector<256x128xf32>
    %c1_131 = arith.constant 1 : index
    %c0_132 = arith.constant 0 : index
    %c0_133 = arith.constant 0 : index
    %108 = vector.load %arg5[%c1_131, %c0_132, %c0_133] : memref<9x128x128xf32, #tpu.memory_space<vmem>>, vector<1x128x128xf32>
    %109 = vector.shape_cast %108 : vector<1x128x128xf32> to vector<128x128xf32>
    %cst_134 = arith.constant dense<0.000000e+00> : vector<256x128xf32>
    %110 = tpu.matmul %107, %109, %cst_134 {dimension_numbers = #tpu.dot_dimension_numbers<[1], [0], [0], [1], [0, 0, 1, 1], [], []>} : vector<256x128xf32>, vector<128x128xf32>, vector<256x128xf32> -> vector<256x128xf32>
    %c0_135 = arith.constant 0 : index
    %c0_136 = arith.constant 0 : index
    %111 = vector.load %arg11[%c0_135, %c0_136] : memref<256x128xf32, #tpu.memory_space<vmem>>, vector<256x128xf32>
    %112 = arith.addf %111, %110 : vector<256x128xf32>
    %c0_137 = arith.constant 0 : index
    %c0_138 = arith.constant 0 : index
    %113 = vector.load %arg11[%c0_137, %c0_138] : memref<256x128xf32, #tpu.memory_space<vmem>>, vector<256x128xf32>
    tpu.vector_store %arg11[%c0_137, %c0_138], %112 {strides = array<i32>} : memref<256x128xf32, #tpu.memory_space<vmem>>, vector<256x128xf32>,
    %c0_139 = arith.constant 0 : index
    %c2_140 = arith.constant 2 : index
    %c0_141 = arith.constant 0 : index
    %114 = vector.load %arg10[%c0_139, %c2_140, %c0_141] : memref<18x18x128xf32, #tpu.memory_space<vmem>>, vector<16x16x128xf32>
    %115 = vector.shape_cast %114 : vector<16x16x128xf32> to vector<256x128xf32>
    %c2_142 = arith.constant 2 : index
    %c0_143 = arith.constant 0 : index
    %c0_144 = arith.constant 0 : index
    %116 = vector.load %arg5[%c2_142, %c0_143, %c0_144] : memref<9x128x128xf32, #tpu.memory_space<vmem>>, vector<1x128x128xf32>
    %117 = vector.shape_cast %116 : vector<1x128x128xf32> to vector<128x128xf32>
    %cst_145 = arith.constant dense<0.000000e+00> : vector<256x128xf32>
    %118 = tpu.matmul %115, %117, %cst_145 {dimension_numbers = #tpu.dot_dimension_numbers<[1], [0], [0], [1], [0, 0, 1, 1], [], []>} : vector<256x128xf32>, vector<128x128xf32>, vector<256x128xf32> -> vector<256x128xf32>
    %c0_146 = arith.constant 0 : index
    %c0_147 = arith.constant 0 : index
    %119 = vector.load %arg11[%c0_146, %c0_147] : memref<256x128xf32, #tpu.memory_space<vmem>>, vector<256x128xf32>
    %120 = arith.addf %119, %118 : vector<256x128xf32>
    %c0_148 = arith.constant 0 : index
    %c0_149 = arith.constant 0 : index
    %121 = vector.load %arg11[%c0_148, %c0_149] : memref<256x128xf32, #tpu.memory_space<vmem>>, vector<256x128xf32>
    tpu.vector_store %arg11[%c0_148, %c0_149], %120 {strides = array<i32>} : memref<256x128xf32, #tpu.memory_space<vmem>>, vector<256x128xf32>,
    %c1_150 = arith.constant 1 : index
    %c0_151 = arith.constant 0 : index
    %c0_152 = arith.constant 0 : index
    %122 = vector.load %arg10[%c1_150, %c0_151, %c0_152] : memref<18x18x128xf32, #tpu.memory_space<vmem>>, vector<16x16x128xf32>
    %123 = vector.shape_cast %122 : vector<16x16x128xf32> to vector<256x128xf32>
    %c3_153 = arith.constant 3 : index
    %c0_154 = arith.constant 0 : index
    %c0_155 = arith.constant 0 : index
    %124 = vector.load %arg5[%c3_153, %c0_154, %c0_155] : memref<9x128x128xf32, #tpu.memory_space<vmem>>, vector<1x128x128xf32>
    %125 = vector.shape_cast %124 : vector<1x128x128xf32> to vector<128x128xf32>
    %cst_156 = arith.constant dense<0.000000e+00> : vector<256x128xf32>
    %126 = tpu.matmul %123, %125, %cst_156 {dimension_numbers = #tpu.dot_dimension_numbers<[1], [0], [0], [1], [0, 0, 1, 1], [], []>} : vector<256x128xf32>, vector<128x128xf32>, vector<256x128xf32> -> vector<256x128xf32>
    %c0_157 = arith.constant 0 : index
    %c0_158 = arith.constant 0 : index
    %127 = vector.load %arg11[%c0_157, %c0_158] : memref<256x128xf32, #tpu.memory_space<vmem>>, vector<256x128xf32>
    %128 = arith.addf %127, %126 : vector<256x128xf32>
    %c0_159 = arith.constant 0 : index
    %c0_160 = arith.constant 0 : index
    %129 = vector.load %arg11[%c0_159, %c0_160] : memref<256x128xf32, #tpu.memory_space<vmem>>, vector<256x128xf32>
    tpu.vector_store %arg11[%c0_159, %c0_160], %128 {strides = array<i32>} : memref<256x128xf32, #tpu.memory_space<vmem>>, vector<256x128xf32>,
    %c1_161 = arith.constant 1 : index
    %c1_162 = arith.constant 1 : index
    %c0_163 = arith.constant 0 : index
    %130 = vector.load %arg10[%c1_161, %c1_162, %c0_163] : memref<18x18x128xf32, #tpu.memory_space<vmem>>, vector<16x16x128xf32>
    %131 = vector.shape_cast %130 : vector<16x16x128xf32> to vector<256x128xf32>
    %c4_164 = arith.constant 4 : index
    %c0_165 = arith.constant 0 : index
    %c0_166 = arith.constant 0 : index
    %132 = vector.load %arg5[%c4_164, %c0_165, %c0_166] : memref<9x128x128xf32, #tpu.memory_space<vmem>>, vector<1x128x128xf32>
    %133 = vector.shape_cast %132 : vector<1x128x128xf32> to vector<128x128xf32>
    %cst_167 = arith.constant dense<0.000000e+00> : vector<256x128xf32>
    %134 = tpu.matmul %131, %133, %cst_167 {dimension_numbers = #tpu.dot_dimension_numbers<[1], [0], [0], [1], [0, 0, 1, 1], [], []>} : vector<256x128xf32>, vector<128x128xf32>, vector<256x128xf32> -> vector<256x128xf32>
    %c0_168 = arith.constant 0 : index
    %c0_169 = arith.constant 0 : index
    %135 = vector.load %arg11[%c0_168, %c0_169] : memref<256x128xf32, #tpu.memory_space<vmem>>, vector<256x128xf32>
    %136 = arith.addf %135, %134 : vector<256x128xf32>
    %c0_170 = arith.constant 0 : index
    %c0_171 = arith.constant 0 : index
    %137 = vector.load %arg11[%c0_170, %c0_171] : memref<256x128xf32, #tpu.memory_space<vmem>>, vector<256x128xf32>
    tpu.vector_store %arg11[%c0_170, %c0_171], %136 {strides = array<i32>} : memref<256x128xf32, #tpu.memory_space<vmem>>, vector<256x128xf32>,
    %c1_172 = arith.constant 1 : index
    %c2_173 = arith.constant 2 : index
    %c0_174 = arith.constant 0 : index
    %138 = vector.load %arg10[%c1_172, %c2_173, %c0_174] : memref<18x18x128xf32, #tpu.memory_space<vmem>>, vector<16x16x128xf32>
    %139 = vector.shape_cast %138 : vector<16x16x128xf32> to vector<256x128xf32>
    %c5_175 = arith.constant 5 : index
    %c0_176 = arith.constant 0 : index
    %c0_177 = arith.constant 0 : index
    %140 = vector.load %arg5[%c5_175, %c0_176, %c0_177] : memref<9x128x128xf32, #tpu.memory_space<vmem>>, vector<1x128x128xf32>
    %141 = vector.shape_cast %140 : vector<1x128x128xf32> to vector<128x128xf32>
    %cst_178 = arith.constant dense<0.000000e+00> : vector<256x128xf32>
    %142 = tpu.matmul %139, %141, %cst_178 {dimension_numbers = #tpu.dot_dimension_numbers<[1], [0], [0], [1], [0, 0, 1, 1], [], []>} : vector<256x128xf32>, vector<128x128xf32>, vector<256x128xf32> -> vector<256x128xf32>
    %c0_179 = arith.constant 0 : index
    %c0_180 = arith.constant 0 : index
    %143 = vector.load %arg11[%c0_179, %c0_180] : memref<256x128xf32, #tpu.memory_space<vmem>>, vector<256x128xf32>
    %144 = arith.addf %143, %142 : vector<256x128xf32>
    %c0_181 = arith.constant 0 : index
    %c0_182 = arith.constant 0 : index
    %145 = vector.load %arg11[%c0_181, %c0_182] : memref<256x128xf32, #tpu.memory_space<vmem>>, vector<256x128xf32>
    tpu.vector_store %arg11[%c0_181, %c0_182], %144 {strides = array<i32>} : memref<256x128xf32, #tpu.memory_space<vmem>>, vector<256x128xf32>,
    %c2_183 = arith.constant 2 : index
    %c0_184 = arith.constant 0 : index
    %c0_185 = arith.constant 0 : index
    %146 = vector.load %arg10[%c2_183, %c0_184, %c0_185] : memref<18x18x128xf32, #tpu.memory_space<vmem>>, vector<16x16x128xf32>
    %147 = vector.shape_cast %146 : vector<16x16x128xf32> to vector<256x128xf32>
    %c6_186 = arith.constant 6 : index
    %c0_187 = arith.constant 0 : index
    %c0_188 = arith.constant 0 : index
    %148 = vector.load %arg5[%c6_186, %c0_187, %c0_188] : memref<9x128x128xf32, #tpu.memory_space<vmem>>, vector<1x128x128xf32>
    %149 = vector.shape_cast %148 : vector<1x128x128xf32> to vector<128x128xf32>
    %cst_189 = arith.constant dense<0.000000e+00> : vector<256x128xf32>
    %150 = tpu.matmul %147, %149, %cst_189 {dimension_numbers = #tpu.dot_dimension_numbers<[1], [0], [0], [1], [0, 0, 1, 1], [], []>} : vector<256x128xf32>, vector<128x128xf32>, vector<256x128xf32> -> vector<256x128xf32>
    %c0_190 = arith.constant 0 : index
    %c0_191 = arith.constant 0 : index
    %151 = vector.load %arg11[%c0_190, %c0_191] : memref<256x128xf32, #tpu.memory_space<vmem>>, vector<256x128xf32>
    %152 = arith.addf %151, %150 : vector<256x128xf32>
    %c0_192 = arith.constant 0 : index
    %c0_193 = arith.constant 0 : index
    %153 = vector.load %arg11[%c0_192, %c0_193] : memref<256x128xf32, #tpu.memory_space<vmem>>, vector<256x128xf32>
    tpu.vector_store %arg11[%c0_192, %c0_193], %152 {strides = array<i32>} : memref<256x128xf32, #tpu.memory_space<vmem>>, vector<256x128xf32>,
    %c2_194 = arith.constant 2 : index
    %c1_195 = arith.constant 1 : index
    %c0_196 = arith.constant 0 : index
    %154 = vector.load %arg10[%c2_194, %c1_195, %c0_196] : memref<18x18x128xf32, #tpu.memory_space<vmem>>, vector<16x16x128xf32>
    %155 = vector.shape_cast %154 : vector<16x16x128xf32> to vector<256x128xf32>
    %c7_197 = arith.constant 7 : index
    %c0_198 = arith.constant 0 : index
    %c0_199 = arith.constant 0 : index
    %156 = vector.load %arg5[%c7_197, %c0_198, %c0_199] : memref<9x128x128xf32, #tpu.memory_space<vmem>>, vector<1x128x128xf32>
    %157 = vector.shape_cast %156 : vector<1x128x128xf32> to vector<128x128xf32>
    %cst_200 = arith.constant dense<0.000000e+00> : vector<256x128xf32>
    %158 = tpu.matmul %155, %157, %cst_200 {dimension_numbers = #tpu.dot_dimension_numbers<[1], [0], [0], [1], [0, 0, 1, 1], [], []>} : vector<256x128xf32>, vector<128x128xf32>, vector<256x128xf32> -> vector<256x128xf32>
    %c0_201 = arith.constant 0 : index
    %c0_202 = arith.constant 0 : index
    %159 = vector.load %arg11[%c0_201, %c0_202] : memref<256x128xf32, #tpu.memory_space<vmem>>, vector<256x128xf32>
    %160 = arith.addf %159, %158 : vector<256x128xf32>
    %c0_203 = arith.constant 0 : index
    %c0_204 = arith.constant 0 : index
    %161 = vector.load %arg11[%c0_203, %c0_204] : memref<256x128xf32, #tpu.memory_space<vmem>>, vector<256x128xf32>
    tpu.vector_store %arg11[%c0_203, %c0_204], %160 {strides = array<i32>} : memref<256x128xf32, #tpu.memory_space<vmem>>, vector<256x128xf32>,
    %c2_205 = arith.constant 2 : index
    %c2_206 = arith.constant 2 : index
    %c0_207 = arith.constant 0 : index
    %162 = vector.load %arg10[%c2_205, %c2_206, %c0_207] : memref<18x18x128xf32, #tpu.memory_space<vmem>>, vector<16x16x128xf32>
    %163 = vector.shape_cast %162 : vector<16x16x128xf32> to vector<256x128xf32>
    %c8_208 = arith.constant 8 : index
    %c0_209 = arith.constant 0 : index
    %c0_210 = arith.constant 0 : index
    %164 = vector.load %arg5[%c8_208, %c0_209, %c0_210] : memref<9x128x128xf32, #tpu.memory_space<vmem>>, vector<1x128x128xf32>
    %165 = vector.shape_cast %164 : vector<1x128x128xf32> to vector<128x128xf32>
    %cst_211 = arith.constant dense<0.000000e+00> : vector<256x128xf32>
    %166 = tpu.matmul %163, %165, %cst_211 {dimension_numbers = #tpu.dot_dimension_numbers<[1], [0], [0], [1], [0, 0, 1, 1], [], []>} : vector<256x128xf32>, vector<128x128xf32>, vector<256x128xf32> -> vector<256x128xf32>
    %c0_212 = arith.constant 0 : index
    %c0_213 = arith.constant 0 : index
    %167 = vector.load %arg11[%c0_212, %c0_213] : memref<256x128xf32, #tpu.memory_space<vmem>>, vector<256x128xf32>
    %168 = arith.addf %167, %166 : vector<256x128xf32>
    %c0_214 = arith.constant 0 : index
    %c0_215 = arith.constant 0 : index
    %169 = vector.load %arg11[%c0_214, %c0_215] : memref<256x128xf32, #tpu.memory_space<vmem>>, vector<256x128xf32>
    tpu.vector_store %arg11[%c0_214, %c0_215], %168 {strides = array<i32>} : memref<256x128xf32, #tpu.memory_space<vmem>>, vector<256x128xf32>,
    %c0_216 = arith.constant 0 : index
    %c0_217 = arith.constant 0 : index
    %170 = vector.load %arg11[%c0_216, %c0_217] : memref<256x128xf32, #tpu.memory_space<vmem>>, vector<256x128xf32>
    %c0_218 = arith.constant 0 : index
    %c0_219 = arith.constant 0 : index
    %171 = vector.load %arg6[%c0_218, %c0_219] : memref<1x128xf32, #tpu.memory_space<vmem>>, vector<1x128xf32>
    %172 = vector.shape_cast %171 : vector<1x128xf32> to vector<128xf32>
    %173 = vector.shape_cast %172 : vector<128xf32> to vector<1x128xf32>
    %174 = vector.broadcast %173 : vector<1x128xf32> to vector<256x128xf32>
    %175 = arith.mulf %170, %174 : vector<256x128xf32>
    %c0_220 = arith.constant 0 : index
    %c0_221 = arith.constant 0 : index
    %176 = vector.load %arg7[%c0_220, %c0_221] : memref<1x128xf32, #tpu.memory_space<vmem>>, vector<1x128xf32>
    %177 = vector.shape_cast %176 : vector<1x128xf32> to vector<128xf32>
    %178 = vector.shape_cast %177 : vector<128xf32> to vector<1x128xf32>
    %179 = vector.broadcast %178 : vector<1x128xf32> to vector<256x128xf32>
    %180 = arith.addf %175, %179 : vector<256x128xf32>
    %c0_222 = arith.constant 0 : index
    %c0_223 = arith.constant 0 : index
    %c0_224 = arith.constant 0 : index
    %c0_225 = arith.constant 0 : index
    %181 = vector.load %arg1[%c0_222, %c0_223, %c0_224, %c0_225] : memref<1x16x16x128xf32, #tpu.memory_space<vmem>>, vector<1x16x16x128xf32>
    %182 = vector.shape_cast %181 : vector<1x16x16x128xf32> to vector<16x16x128xf32>
    %183 = vector.shape_cast %180 : vector<256x128xf32> to vector<16x16x128xf32>
    %184 = arith.addf %182, %183 : vector<16x16x128xf32>
    %c0_226 = arith.constant 0 : index
    %c0_227 = arith.constant 0 : index
    %c0_228 = arith.constant 0 : index
    %c0_229 = arith.constant 0 : index
    %185 = vector.load %arg9[%c0_226, %c0_227, %c0_228, %c0_229] : memref<1x16x16x128xf32, #tpu.memory_space<vmem>>, vector<1x16x16x128xf32>
    %186 = vector.shape_cast %185 : vector<1x16x16x128xf32> to vector<16x16x128xf32>
    %187 = vector.shape_cast %184 : vector<16x16x128xf32> to vector<1x16x16x128xf32>
    tpu.vector_store %arg9[%c0_226, %c0_227, %c0_228, %c0_229], %187 {strides = array<i32>} : memref<1x16x16x128xf32, #tpu.memory_space<vmem>>, vector<1x16x16x128xf32>,
    return
  }
  func.func @transform_0(%arg0: i32) -> (i32, i32, i32, i32) {
    %c0_i32 = arith.constant 0 : i32
    %c0_i32_0 = arith.constant 0 : i32
    %c0_i32_1 = arith.constant 0 : i32
    %c0_i32_2 = arith.constant 0 : i32
    return %arg0, %c0_i32, %c0_i32_0, %c0_i32_1 : i32, i32, i32, i32
  }
  func.func @transform_1(%arg0: i32) -> (i32, i32, i32) {
    %c0_i32 = arith.constant 0 : i32
    %c0_i32_0 = arith.constant 0 : i32
    %c0_i32_1 = arith.constant 0 : i32
    %c0_i32_2 = arith.constant 0 : i32
    return %c0_i32, %c0_i32_0, %c0_i32_1 : i32, i32, i32
  }
  func.func @transform_2(%arg0: i32) -> (i32, i32) {
    %c0_i32 = arith.constant 0 : i32
    %c0_i32_0 = arith.constant 0 : i32
    %c0_i32_1 = arith.constant 0 : i32
    return %c0_i32, %c0_i32_0 : i32, i32
  }
  func.func @transform_3(%arg0: i32) -> (i32, i32) {
    %c0_i32 = arith.constant 0 : i32
    %c0_i32_0 = arith.constant 0 : i32
    %c0_i32_1 = arith.constant 0 : i32
    return %c0_i32, %c0_i32_0 : i32, i32
  }
  func.func @transform_4(%arg0: i32) -> (i32, i32, i32) {
    %c0_i32 = arith.constant 0 : i32
    %c0_i32_0 = arith.constant 0 : i32
    %c0_i32_1 = arith.constant 0 : i32
    %c0_i32_2 = arith.constant 0 : i32
    return %c0_i32, %c0_i32_0, %c0_i32_1 : i32, i32, i32
  }
  func.func @transform_5(%arg0: i32) -> (i32, i32) {
    %c0_i32 = arith.constant 0 : i32
    %c0_i32_0 = arith.constant 0 : i32
    %c0_i32_1 = arith.constant 0 : i32
    return %c0_i32, %c0_i32_0 : i32, i32
  }
  func.func @transform_6(%arg0: i32) -> (i32, i32) {
    %c0_i32 = arith.constant 0 : i32
    %c0_i32_0 = arith.constant 0 : i32
    %c0_i32_1 = arith.constant 0 : i32
    return %c0_i32, %c0_i32_0 : i32, i32
  }
  func.func @transform_7(%arg0: i32) -> (i32, i32) {
    %c0_i32 = arith.constant 0 : i32
    %c0_i32_0 = arith.constant 0 : i32
    %c0_i32_1 = arith.constant 0 : i32
    return %c0_i32, %c0_i32_0 : i32, i32
  }
  func.func @transform_8(%arg0: i32) -> (i32, i32, i32, i32) {
    %c0_i32 = arith.constant 0 : i32
    %c0_i32_0 = arith.constant 0 : i32
    %c0_i32_1 = arith.constant 0 : i32
    %c0_i32_2 = arith.constant 0 : i32
    return %arg0, %c0_i32, %c0_i32_0, %c0_i32_1 : i32, i32, i32, i32
  }
}

</mosaic_0001>

<llo_original>
// kernel: tpu_custom_call.1
$region0: #{tpu_custom_call.1}
  #allocation0 [shape = 'u32[]', space=smem, size = 0x4, offset = 0x4, fixed_abs, tag = 'smem constant byte address 0x4 - core index']
  #allocation1 [shape = 'u32[144,128]{1,0:T(1,128)}', space=vmem, size = 0x12000, scoped, tag = 'internal scratch']
  #allocation2 [shape = 'f32[18,18,128]{2,1,0:T(8,128)}', space=vmem, size = 0x36000, scoped, tag = 'scratch operand']
  #allocation3 [shape = 'f32[256,128]{1,0:T(8,128)}', space=vmem, size = 0x20000, scoped, tag = 'scratch operand']
  %s0 = inlined_call_operand.hbm [shape: f32[2,16,16,128], index: 0, kind: input, shape index: {}]
  %s1 = inlined_call_operand.hbm [shape: f32[9,128,128], index: 1, kind: input, shape index: {}]
  %s2 = inlined_call_operand.vmem [shape: f32[1,128], index: 2, kind: input, shape index: {}]
  %s3 = inlined_call_operand.vmem [shape: f32[1,128], index: 3, kind: input, shape index: {}]
  %s4 = inlined_call_operand.hbm [shape: f32[9,128,128], index: 4, kind: input, shape index: {}]
  %s5 = inlined_call_operand.vmem [shape: f32[1,128], index: 5, kind: input, shape index: {}]
  %s6 = inlined_call_operand.vmem [shape: f32[1,128], index: 6, kind: input, shape index: {}]
  %s7 = inlined_call_operand.vmem [shape: f32[1,128], index: 7, kind: input, shape index: {}]
  %s8 = inlined_call_operand.hbm [shape: f32[2,16,16,128], index: 8, kind: output, shape index: {}]
  %s9 = sld [smem:[#allocation0]]
  $region77: #{tpu_custom_call.1} parent=0
    _
  %s11 = ssub.s32 1, %s9
  %s12 = scalar_select 0, %s11, %s9
  $region1: #{tpu_custom_call.1} parent=0
    #allocation4 [shape = 'u8[262144]{0}', space=vmem, size = 0x40000, scoped, tag = 'input window, operand 0']
    #allocation5 [shape = 's32[2]{0}', space=sflag, size = 0x8, scoped, tag = 'scoped memory for tpu_custom_call.1']
    #allocation6 [shape = 's32[2]{0}', space=sflag, size = 0x8, scoped, tag = 'scoped memory for tpu_custom_call.1']
    #allocation7 [shape = 'u8[589824]{0}', space=vmem, size = 0x90000, scoped, tag = 'input window, operand 1, single buffered']
    #allocation8 [shape = 's32[1]{0}', space=sflag, size = 0x4, scoped, tag = 'scoped memory for tpu_custom_call.1']
    #allocation9 [shape = 'u8[589824]{0}', space=vmem, size = 0x90000, scoped, tag = 'input window, operand 4, single buffered']
    #allocation10 [shape = 'u8[262144]{0}', space=vmem, size = 0x40000, scoped, tag = 'output window, operand 0']
    %13 = vsyncpa [#allocation5], 0
    %s14 = scalar_lea.sflag [#allocation5], 1
    %15 = vsyncpa %s14, 0
    %16 = vsyncpa [#allocation8], 0
    %17 = vsyncpa [#allocation6], 0
    %s18 = scalar_lea.sflag [#allocation6], 1
    %19 = vsyncpa %s18, 0
    loop: start=0, step=1, limit=4
    $region2: #{tpu_custom_call.1} parent=1 // loop_pre_header
      _
    $region3: #{tpu_custom_call.1} parent=1 // loop_header
      %s21 = sphi 0, %s25
      %p22 = scmp.ge.s32.totalorder %s21, 4
      %s31 = sphi 0, %s33
      %s34 = sphi 0, %s31
      %s35 = sphi 0, %s34
      %s51 = sphi 0, %s35
      %s55 = sphi 0, %s55
      %s57 = sphi 0, %s55
      %s58 = sphi 0, %s57
      %s72 = sphi 0, %s58
      %s76 = sphi 0, %s76
      %s78 = sphi 0, %s76
      %s79 = sphi 0, %s78
      %s93 = sphi 0, %s79
      %s97 = sphi 0, %s97
      %s99 = sphi 0, %s97
      %s100 = sphi 0, %s99
      %s114 = sphi 0, %s100
      %s118 = sphi 0, %s118
      %s120 = sphi 0, %s118
      %s121 = sphi 0, %s120
      %s135 = sphi 0, %s121
      %s139 = sphi 0, %s139
      %s141 = sphi 0, %s139
      %s142 = sphi 0, %s141
      %s156 = sphi 0, %s142
      %s160 = sphi 0, %s160
      %s162 = sphi 0, %s160
      %s163 = sphi 0, %s162
      %s177 = sphi 0, %s163
      %s181 = sphi 0, %s181
      %s183 = sphi 0, %s181
      %s184 = sphi 0, %s183
      %s198 = sphi 0, %s184
      %s204 = sphi 0, %s206
      %s207 = sphi 0, %s204
      %s208 = sphi 0, %s207
      %s224 = sphi 0, %s208
    $region4: #{tpu_custom_call.1} parent=1 // loop_header_branch
      %24 = sbr.rel (%p22) target = $region8
    $region5: #{tpu_custom_call.1} parent=1 // loop_body
      %s26 = ssub.s32 %s21, 1
      %s27 = ssub.s32 %s21, 2
      %s28 = sadd.s32 %s21, 1
      %s29 = ssub.s32 %s21, %s28
      %p30 = scmp.eq.s32.totalorder %s29, 0
      %s32 = sadd.s32 %s31, 1
      %s33 = scalar_select %p30, %s31, %s32
      %p36 = pneg %p30
      %p37 = scmp.eq.s32.totalorder %s21, 1
      %p38 = por %p36, %p37
      %p39 = scmp.ne.s32.totalorder %s31, %s34
      %p40 = scmp.eq.s32.totalorder %s21, 0
      %p41 = por %p39, %p40
      %p42 = scmp.ne.s32.totalorder %s31, %s34
      %p43 = scmp.eq.s32.totalorder %s26, 1
      %p44 = por %p42, %p43
      %p45 = scmp.ne.s32.totalorder %s34, %s35
      %p46 = scmp.eq.s32.totalorder %s26, 0
      %p47 = por %p45, %p46
      %p48 = scmp.ne.s32.totalorder %s34, %s35
      %p49 = scmp.eq.s32.totalorder %s27, 1
      %p50 = por %p48, %p49
      %p52 = scmp.ne.s32.totalorder %s35, %s51
      %p53 = scmp.eq.s32.totalorder %s27, 0
      %p54 = por %p52, %p53
      %s56 = sadd.s32 %s55, 1
      %p59 = scmp.eq.s32.totalorder %s21, 1
      %p60 = scmp.ne.s32.totalorder %s55, %s57
      %p61 = scmp.eq.s32.totalorder %s21, 0
      %p62 = por %p60, %p61
      %p63 = scmp.ne.s32.totalorder %s55, %s57
      %p64 = scmp.eq.s32.totalorder %s26, 1
      %p65 = por %p63, %p64
      %p66 = scmp.ne.s32.totalorder %s57, %s58
      %p67 = scmp.eq.s32.totalorder %s26, 0
      %p68 = por %p66, %p67
      %p69 = scmp.ne.s32.totalorder %s57, %s58
      %p70 = scmp.eq.s32.totalorder %s27, 1
      %p71 = por %p69, %p70
      %p73 = scmp.ne.s32.totalorder %s58, %s72
      %p74 = scmp.eq.s32.totalorder %s27, 0
      %p75 = por %p73, %p74
      %s77 = sadd.s32 %s76, 1
      %p80 = scmp.eq.s32.totalorder %s21, 1
      %p81 = scmp.ne.s32.totalorder %s76, %s78
      %p82 = scmp.eq.s32.totalorder %s21, 0
      %p83 = por %p81, %p82
      %p84 = scmp.ne.s32.totalorder %s76, %s78
      %p85 = scmp.eq.s32.totalorder %s26, 1
      %p86 = por %p84, %p85
      %p87 = scmp.ne.s32.totalorder %s78, %s79
      %p88 = scmp.eq.s32.totalorder %s26, 0
      %p89 = por %p87, %p88
      %p90 = scmp.ne.s32.totalorder %s78, %s79
      %p91 = scmp.eq.s32.totalorder %s27, 1
      %p92 = por %p90, %p91
      %p94 = scmp.ne.s32.totalorder %s79, %s93
      %p95 = scmp.eq.s32.totalorder %s27, 0
      %p96 = por %p94, %p95
      %s98 = sadd.s32 %s97, 1
      %p101 = scmp.eq.s32.totalorder %s21, 1
      %p102 = scmp.ne.s32.totalorder %s97, %s99
      %p103 = scmp.eq.s32.totalorder %s21, 0
      %p104 = por %p102, %p103
      %p105 = scmp.ne.s32.totalorder %s97, %s99
      %p106 = scmp.eq.s32.totalorder %s26, 1
      %p107 = por %p105, %p106
      %p108 = scmp.ne.s32.totalorder %s99, %s100
      %p109 = scmp.eq.s32.totalorder %s26, 0
      %p110 = por %p108, %p109
      %p111 = scmp.ne.s32.totalorder %s99, %s100
      %p112 = scmp.eq.s32.totalorder %s27, 1
      %p113 = por %p111, %p112
      %p115 = scmp.ne.s32.totalorder %s100, %s114
      %p116 = scmp.eq.s32.totalorder %s27, 0
      %p117 = por %p115, %p116
      %s119 = sadd.s32 %s118, 1
      %p122 = scmp.eq.s32.totalorder %s21, 1
      %p123 = scmp.ne.s32.totalorder %s118, %s120
      %p124 = scmp.eq.s32.totalorder %s21, 0
      %p125 = por %p123, %p124
      %p126 = scmp.ne.s32.totalorder %s118, %s120
      %p127 = scmp.eq.s32.totalorder %s26, 1
      %p128 = por %p126, %p127
      %p129 = scmp.ne.s32.totalorder %s120, %s121
      %p130 = scmp.eq.s32.totalorder %s26, 0
      %p131 = por %p129, %p130
      %p132 = scmp.ne.s32.totalorder %s120, %s121
      %p133 = scmp.eq.s32.totalorder %s27, 1
      %p134 = por %p132, %p133
      %p136 = scmp.ne.s32.totalorder %s121, %s135
      %p137 = scmp.eq.s32.totalorder %s27, 0
      %p138 = por %p136, %p137
      %s140 = sadd.s32 %s139, 1
      %p143 = scmp.eq.s32.totalorder %s21, 1
      %p144 = scmp.ne.s32.totalorder %s139, %s141
      %p145 = scmp.eq.s32.totalorder %s21, 0
      %p146 = por %p144, %p145
      %p147 = scmp.ne.s32.totalorder %s139, %s141
      %p148 = scmp.eq.s32.totalorder %s26, 1
      %p149 = por %p147, %p148
      %p150 = scmp.ne.s32.totalorder %s141, %s142
      %p151 = scmp.eq.s32.totalorder %s26, 0
      %p152 = por %p150, %p151
      %p153 = scmp.ne.s32.totalorder %s141, %s142
      %p154 = scmp.eq.s32.totalorder %s27, 1
      %p155 = por %p153, %p154
      %p157 = scmp.ne.s32.totalorder %s142, %s156
      %p158 = scmp.eq.s32.totalorder %s27, 0
      %p159 = por %p157, %p158
      %s161 = sadd.s32 %s160, 1
      %p164 = scmp.eq.s32.totalorder %s21, 1
      %p165 = scmp.ne.s32.totalorder %s160, %s162
      %p166 = scmp.eq.s32.totalorder %s21, 0
      %p167 = por %p165, %p166
      %p168 = scmp.ne.s32.totalorder %s160, %s162
      %p169 = scmp.eq.s32.totalorder %s26, 1
      %p170 = por %p168, %p169
      %p171 = scmp.ne.s32.totalorder %s162, %s163
      %p172 = scmp.eq.s32.totalorder %s26, 0
      %p173 = por %p171, %p172
      %p174 = scmp.ne.s32.totalorder %s162, %s163
      %p175 = scmp.eq.s32.totalorder %s27, 1
      %p176 = por %p174, %p175
      %p178 = scmp.ne.s32.totalorder %s163, %s177
      %p179 = scmp.eq.s32.totalorder %s27, 0
      %p180 = por %p178, %p179
      %s182 = sadd.s32 %s181, 1
      %p185 = scmp.eq.s32.totalorder %s21, 1
      %p186 = scmp.ne.s32.totalorder %s181, %s183
      %p187 = scmp.eq.s32.totalorder %s21, 0
      %p188 = por %p186, %p187
      %p189 = scmp.ne.s32.totalorder %s181, %s183
      %p190 = scmp.eq.s32.totalorder %s26, 1
      %p191 = por %p189, %p190
      %p192 = scmp.ne.s32.totalorder %s183, %s184
      %p193 = scmp.eq.s32.totalorder %s26, 0
      %p194 = por %p192, %p193
      %p195 = scmp.ne.s32.totalorder %s183, %s184
      %p196 = scmp.eq.s32.totalorder %s27, 1
      %p197 = por %p195, %p196
      %p199 = scmp.ne.s32.totalorder %s184, %s198
      %p200 = scmp.eq.s32.totalorder %s27, 0
      %p201 = por %p199, %p200
      %s202 = ssub.s32 %s21, %s28
      %p203 = scmp.eq.s32.totalorder %s202, 0
      %s205 = sadd.s32 %s204, 1
      %s206 = scalar_select %p203, %s204, %s205
      %p209 = pneg %p203
      %p210 = scmp.eq.s32.totalorder %s21, 1
      %p211 = por %p209, %p210
      %p212 = scmp.ne.s32.totalorder %s204, %s207
      %p213 = scmp.eq.s32.totalorder %s21, 0
      %p214 = por %p212, %p213
      %p215 = scmp.ne.s32.totalorder %s204, %s207
      %p216 = scmp.eq.s32.totalorder %s26, 1
      %p217 = por %p215, %p216
      %p218 = scmp.ne.s32.totalorder %s207, %s208
      %p219 = scmp.eq.s32.totalorder %s26, 0
      %p220 = por %p218, %p219
      %p221 = scmp.ne.s32.totalorder %s207, %s208
      %p222 = scmp.eq.s32.totalorder %s27, 1
      %p223 = por %p221, %p222
      %p225 = scmp.ne.s32.totalorder %s208, %s224
      %p226 = scmp.eq.s32.totalorder %s27, 0
      %p227 = por %p225, %p226
      %p228 = scmp.le.s32.totalorder 1, %s21
      %p229 = scmp.lt.s32.totalorder %s21, 3
      %p230 = pnand %p228, %p229
      %p231 = pneg %p230
      // Predicated region
      $region9: #{tpu_custom_call.1} parent=5 // pred_check
        _
      $region10: #{tpu_custom_call.1} parent=5 // pred_check_branch
        %233 = sbr.rel (%p230) target = $region12
      $region11: #{tpu_custom_call.1} parent=5 // pred_region
        %s234 = ssub.s32 %s21, 1
        // Predicated region
        $region13: #{tpu_custom_call.1} parent=11 // pred_check
          %p235 = pneg %p68
        $region14: #{tpu_custom_call.1} parent=11 // pred_check_branch
          %237 = sbr.rel (%p235) target = $region16
        $region15: #{tpu_custom_call.1} parent=11 // pred_region
          %s239 = ssub.s32 18432, 18432
          %240 = vsyncadd [#allocation8], %s239
          %s241 = sshll.u32 [#allocation7], 4
          %s242 = int_to_ptr.vmem [resolvable:$true] %s241
          %247 = dma.hbm_to_vmem [thread:$0]  %s1, 18432, %s242, [#allocation8], 128, 128, 8
        $region16: #{tpu_custom_call.1} parent=11 // pred_fallthru
          _
        // Predicated region
        $region17: #{tpu_custom_call.1} parent=11 // pred_check
          %p248 = pneg %p89
        $region18: #{tpu_custom_call.1} parent=11 // pred_check_branch
          %250 = sbr.rel (%p248) target = $region20
        $region19: #{tpu_custom_call.1} parent=11 // pred_region
          _
        $region20: #{tpu_custom_call.1} parent=11 // pred_fallthru
          _
        // Predicated region
        $region21: #{tpu_custom_call.1} parent=11 // pred_check
          %p251 = pneg %p110
        $region22: #{tpu_custom_call.1} parent=11 // pred_check_branch
          %253 = sbr.rel (%p251) target = $region24
        $region23: #{tpu_custom_call.1} parent=11 // pred_region
          _
        $region24: #{tpu_custom_call.1} parent=11 // pred_fallthru
          _
        // Predicated region
        $region25: #{tpu_custom_call.1} parent=11 // pred_check
          %p254 = pneg %p131
        $region26: #{tpu_custom_call.1} parent=11 // pred_check_branch
          %256 = sbr.rel (%p254) target = $region28
        $region27: #{tpu_custom_call.1} parent=11 // pred_region
          %s258 = ssub.s32 18432, 18432
          %259 = vsyncadd [#allocation8], %s258
          %s260 = sshll.u32 [#allocation9], 4
          %s261 = int_to_ptr.vmem [resolvable:$true] %s260
          %266 = dma.hbm_to_vmem [thread:$0]  %s4, 18432, %s261, [#allocation8], 128, 128, 8
        $region28: #{tpu_custom_call.1} parent=11 // pred_fallthru
          _
        // Predicated region
        $region29: #{tpu_custom_call.1} parent=11 // pred_check
          %p267 = pneg %p152
        $region30: #{tpu_custom_call.1} parent=11 // pred_check_branch
          %269 = sbr.rel (%p267) target = $region32
        $region31: #{tpu_custom_call.1} parent=11 // pred_region
          _
        $region32: #{tpu_custom_call.1} parent=11 // pred_fallthru
          _
        // Predicated region
        $region33: #{tpu_custom_call.1} parent=11 // pred_check
          %p270 = pneg %p173
        $region34: #{tpu_custom_call.1} parent=11 // pred_check_branch
          %272 = sbr.rel (%p270) target = $region36
        $region35: #{tpu_custom_call.1} parent=11 // pred_region
          _
        $region36: #{tpu_custom_call.1} parent=11 // pred_fallthru
          _
        // Predicated region
        $region37: #{tpu_custom_call.1} parent=11 // pred_check
          %p273 = pneg %p194
        $region38: #{tpu_custom_call.1} parent=11 // pred_check_branch
          %275 = sbr.rel (%p273) target = $region40
        $region39: #{tpu_custom_call.1} parent=11 // pred_region
          _
        $region40: #{tpu_custom_call.1} parent=11 // pred_fallthru
          _
      $region12: #{tpu_custom_call.1} parent=5 // pred_fallthru
        _
      %p276 = scmp.lt.s32.totalorder %s21, 2
      // Predicated region
      $region41: #{tpu_custom_call.1} parent=5 // pred_check
        %p277 = pneg %p276
      $region42: #{tpu_custom_call.1} parent=5 // pred_check_branch
        %279 = sbr.rel (%p277) target = $region44
      $region43: #{tpu_custom_call.1} parent=5 // pred_region
        // Predicated region
        $region45: #{tpu_custom_call.1} parent=43 // pred_check
          %p280 = pneg %p41
        $region46: #{tpu_custom_call.1} parent=43 // pred_check_branch
          %282 = sbr.rel (%p280) target = $region48
        $region47: #{tpu_custom_call.1} parent=43 // pred_region
          %s283 = sand.u32 %s31, 1
          %s284 = scalar_lea.sflag [#allocation5], %s283
          %s285 = sand.u32 %s31, 1
          %s286 = smul.addr %s285, 256
          %s287 = scalar_lea.vmem [#allocation4], %s286
          %s289 = ssub.s32 4096, 4096
          %290 = vsyncadd %s284, %s289
          %s291 = smul.addr %s21, 32
          %s292 = smul.addr %s291, 128
          %s293 = scalar_lea.hbm %s0, %s292
          %s294 = sshll.u32 %s287, 4
          %s295 = int_to_ptr.vmem [resolvable:$true] %s294
          %300 = dma.hbm_to_vmem [thread:$0]  %s293, 4096, %s295, %s284, 128, 128, 8
        $region48: #{tpu_custom_call.1} parent=43 // pred_fallthru
          _
      $region44: #{tpu_custom_call.1} parent=5 // pred_fallthru
        _
      %p301 = scmp.le.s32.totalorder 1, %s21
      %p302 = scmp.lt.s32.totalorder %s21, 3
      %p303 = pnand %p301, %p302
      %p304 = pneg %p303
      // Predicated region
      $region49: #{tpu_custom_call.1} parent=5 // pred_check
        _
      $region50: #{tpu_custom_call.1} parent=5 // pred_check_branch
        %306 = sbr.rel (%p303) target = $region52
      $region51: #{tpu_custom_call.1} parent=5 // pred_region
        %s307 = ssub.s32 %s21, 1
        %s308 = sand.u32 %s34, 1
        %s309 = scalar_lea.sflag [#allocation5], %s308
        %s310 = sand.u32 %s34, 1
        %s311 = smul.addr %s310, 256
        %s312 = scalar_lea.vmem [#allocation4], %s311
        // Predicated region
        $region53: #{tpu_custom_call.1} parent=51 // pred_check
          %p313 = pneg %p47
        $region54: #{tpu_custom_call.1} parent=51 // pred_check_branch
          %315 = sbr.rel (%p313) target = $region56
        $region55: #{tpu_custom_call.1} parent=51 // pred_region
          %316 = dma.done %s309, 4096
        $region56: #{tpu_custom_call.1} parent=51 // pred_fallthru
          _
        // Predicated region
        $region57: #{tpu_custom_call.1} parent=51 // pred_check
          %p317 = pneg %p68
        $region58: #{tpu_custom_call.1} parent=51 // pred_check_branch
          %319 = sbr.rel (%p317) target = $region60
        $region59: #{tpu_custom_call.1} parent=51 // pred_region
          %320 = dma.done [#allocation8], 18432
        $region60: #{tpu_custom_call.1} parent=51 // pred_fallthru
          _
        // Predicated region
        $region61: #{tpu_custom_call.1} parent=51 // pred_check
          %p321 = pneg %p131
        $region62: #{tpu_custom_call.1} parent=51 // pred_check_branch
          %323 = sbr.rel (%p321) target = $region64
        $region63: #{tpu_custom_call.1} parent=51 // pred_region
          %324 = dma.done [#allocation8], 18432
        $region64: #{tpu_custom_call.1} parent=51 // pred_fallthru
          _
        %s325 = sand.u32 %s34, 1
        %s326 = scalar_lea.sflag [#allocation5], %s325
        %s327 = sand.u32 %s34, 1
        %s328 = smul.addr %s327, 256
        %s329 = scalar_lea.vmem [#allocation4], %s328
        %p330 = pneg %p47
        %p331 = pneg %p44
        %p332 = pneg %p68
        %p333 = pneg %p65
        %p334 = pneg %p89
        %p335 = pneg %p86
        %p336 = pneg %p110
        %p337 = pneg %p107
        %p338 = pneg %p131
        %p339 = pneg %p128
        %p340 = pneg %p152
        %p341 = pneg %p149
        %p342 = pneg %p173
        %p343 = pneg %p170
        %p344 = pneg %p194
        %p345 = pneg %p191
        %p346 = pneg %p220
        %p347 = pneg %p217
        %s348 = sand.u32 %s207, 1
        %s349 = scalar_lea.sflag [#allocation6], %s348
        %s350 = sand.u32 %s207, 1
        %s351 = smul.addr %s350, 256
        %s352 = scalar_lea.vmem [#allocation10], %s351
        %353 = vst [vmem:[#allocation2] sm:$0xff] 0.0
        %354 = vst [vmem:[#allocation2 + $0x8] sm:$0xff] 0.0
        %355 = vst [vmem:[#allocation2 + $0x10] sm:$0x3] 0.0
        %s356 = scalar_lea.vmem [#allocation2], 408
        %357 = vst [vmem:[%s356] sm:$0xff] 0.0
        %358 = vst [vmem:[%s356 + $0x8] sm:$0xff] 0.0
        %359 = vst [vmem:[%s356 + $0x10] sm:$0x3] 0.0
        %360 = vst [vmem:[#allocation2] sm:$0x1] 0.0
        %361 = vst [vmem:[#allocation2 + $0x18] sm:$0x1] 0.0
        %362 = vst [vmem:[#allocation2 + $0x30] sm:$0x1] 0.0
        %363 = vst [vmem:[#allocation2 + $0x48] sm:$0x1] 0.0
        %364 = vst [vmem:[#allocation2 + $0x60] sm:$0x1] 0.0
        %365 = vst [vmem:[#allocation2 + $0x78] sm:$0x1] 0.0
        %366 = vst [vmem:[#allocation2 + $0x90] sm:$0x1] 0.0
        %367 = vst [vmem:[#allocation2 + $0xa8] sm:$0x1] 0.0
        %368 = vst [vmem:[#allocation2 + $0xc0] sm:$0x1] 0.0
        %369 = vst [vmem:[#allocation2 + $0xd8] sm:$0x1] 0.0
        %370 = vst [vmem:[#allocation2 + $0xf0] sm:$0x1] 0.0
        %371 = vst [vmem:[#allocation2 + $0x108] sm:$0x1] 0.0
        %372 = vst [vmem:[#allocation2 + $0x120] sm:$0x1] 0.0
        %373 = vst [vmem:[#allocation2 + $0x138] sm:$0x1] 0.0
        %374 = vst [vmem:[#allocation2 + $0x150] sm:$0x1] 0.0
        %375 = vst [vmem:[#allocation2 + $0x168] sm:$0x1] 0.0
        %376 = vst [vmem:[#allocation2 + $0x180] sm:$0x1] 0.0
        %377 = vst [vmem:[#allocation2 + $0x198] sm:$0x1] 0.0
        %378 = vst [vmem:[#allocation2 + $0x11] sm:$0x1] 0.0
        %379 = vst [vmem:[#allocation2 + $0x29] sm:$0x1] 0.0
        %380 = vst [vmem:[#allocation2 + $0x41] sm:$0x1] 0.0
        %381 = vst [vmem:[#allocation2 + $0x59] sm:$0x1] 0.0
        %382 = vst [vmem:[#allocation2 + $0x71] sm:$0x1] 0.0
        %383 = vst [vmem:[#allocation2 + $0x89] sm:$0x1] 0.0
        %384 = vst [vmem:[#allocation2 + $0xa1] sm:$0x1] 0.0
        %385 = vst [vmem:[#allocation2 + $0xb9] sm:$0x1] 0.0
        %386 = vst [vmem:[#allocation2 + $0xd1] sm:$0x1] 0.0
        %387 = vst [vmem:[#allocation2 + $0xe9] sm:$0x1] 0.0
        %388 = vst [vmem:[#allocation2 + $0x101] sm:$0x1] 0.0
        %389 = vst [vmem:[#allocation2 + $0x119] sm:$0x1] 0.0
        %390 = vst [vmem:[#allocation2 + $0x131] sm:$0x1] 0.0
        %391 = vst [vmem:[#allocation2 + $0x149] sm:$0x1] 0.0
        %392 = vst [vmem:[#allocation2 + $0x161] sm:$0x1] 0.0
        %393 = vst [vmem:[#allocation2 + $0x179] sm:$0x1] 0.0
        %394 = vst [vmem:[#allocation2 + $0x191] sm:$0x1] 0.0
        %395 = vst [vmem:[#allocation2 + $0x1a9] sm:$0x1] 0.0
        %v396 = vld [vmem:[%s312] sm:$0xff]
        %v397 = vld [vmem:[%s312 + $0x8] sm:$0xff]
        %v398 = vld [vmem:[%s312 + $0x10] sm:$0xff]
        %v399 = vld [vmem:[%s312 + $0x18] sm:$0xff]
        %v400 = vld [vmem:[%s312 + $0x20] sm:$0xff]
        %v401 = vld [vmem:[%s312 + $0x28] sm:$0xff]
        %v402 = vld [vmem:[%s312 + $0x30] sm:$0xff]
        %v403 = vld [vmem:[%s312 + $0x38] sm:$0xff]
        %v404 = vld [vmem:[%s312 + $0x40] sm:$0xff]
        %v405 = vld [vmem:[%s312 + $0x48] sm:$0xff]
        %v406 = vld [vmem:[%s312 + $0x50] sm:$0xff]
        %v407 = vld [vmem:[%s312 + $0x58] sm:$0xff]
        %v408 = vld [vmem:[%s312 + $0x60] sm:$0xff]
        %v409 = vld [vmem:[%s312 + $0x68] sm:$0xff]
        %v410 = vld [vmem:[%s312 + $0x70] sm:$0xff]
        %v411 = vld [vmem:[%s312 + $0x78] sm:$0xff]
        %v412 = vld [vmem:[%s312 + $0x80] sm:$0xff]
        %v413 = vld [vmem:[%s312 + $0x88] sm:$0xff]
        %v414 = vld [vmem:[%s312 + $0x90] sm:$0xff]
        %v415 = vld [vmem:[%s312 + $0x98] sm:$0xff]
        %v416 = vld [vmem:[%s312 + $0xa0] sm:$0xff]
        %v417 = vld [vmem:[%s312 + $0xa8] sm:$0xff]
        %v418 = vld [vmem:[%s312 + $0xb0] sm:$0xff]
        %v419 = vld [vmem:[%s312 + $0xb8] sm:$0xff]
        %v420 = vld [vmem:[%s312 + $0xc0] sm:$0xff]
        %v421 = vld [vmem:[%s312 + $0xc8] sm:$0xff]
        %v422 = vld [vmem:[%s312 + $0xd0] sm:$0xff]
        %v423 = vld [vmem:[%s312 + $0xd8] sm:$0xff]
        %v424 = vld [vmem:[%s312 + $0xe0] sm:$0xff]
        %v425 = vld [vmem:[%s312 + $0xe8] sm:$0xff]
        %v426 = vld [vmem:[%s312 + $0xf0] sm:$0xff]
        %v427 = vld [vmem:[%s312 + $0xf8] sm:$0xff]
        %s428 = scalar_lea.vmem [#allocation2], 24
        %429 = vst [vmem:[%s428 + $0x1] sm:$0xff] %v396
        %430 = vst [vmem:[%s428 + $0x9] sm:$0xff] %v397
        %431 = vst [vmem:[%s428 + $0x19] sm:$0xff] %v398
        %432 = vst [vmem:[%s428 + $0x21] sm:$0xff] %v399
        %433 = vst [vmem:[%s428 + $0x31] sm:$0xff] %v400
        %434 = vst [vmem:[%s428 + $0x39] sm:$0xff] %v401
        %435 = vst [vmem:[%s428 + $0x49] sm:$0xff] %v402
        %436 = vst [vmem:[%s428 + $0x51] sm:$0xff] %v403
        %437 = vst [vmem:[%s428 + $0x61] sm:$0xff] %v404
        %438 = vst [vmem:[%s428 + $0x69] sm:$0xff] %v405
        %439 = vst [vmem:[%s428 + $0x79] sm:$0xff] %v406
        %440 = vst [vmem:[%s428 + $0x81] sm:$0xff] %v407
        %441 = vst [vmem:[%s428 + $0x91] sm:$0xff] %v408
        %442 = vst [vmem:[%s428 + $0x99] sm:$0xff] %v409
        %443 = vst [vmem:[%s428 + $0xa9] sm:$0xff] %v410
        %444 = vst [vmem:[%s428 + $0xb1] sm:$0xff] %v411
        %445 = vst [vmem:[%s428 + $0xc1] sm:$0xff] %v412
        %446 = vst [vmem:[%s428 + $0xc9] sm:$0xff] %v413
        %447 = vst [vmem:[%s428 + $0xd9] sm:$0xff] %v414
        %448 = vst [vmem:[%s428 + $0xe1] sm:$0xff] %v415
        %449 = vst [vmem:[%s428 + $0xf1] sm:$0xff] %v416
        %450 = vst [vmem:[%s428 + $0xf9] sm:$0xff] %v417
        %451 = vst [vmem:[%s428 + $0x109] sm:$0xff] %v418
        %452 = vst [vmem:[%s428 + $0x111] sm:$0xff] %v419
        %453 = vst [vmem:[%s428 + $0x121] sm:$0xff] %v420
        %454 = vst [vmem:[%s428 + $0x129] sm:$0xff] %v421
        %455 = vst [vmem:[%s428 + $0x139] sm:$0xff] %v422
        %456 = vst [vmem:[%s428 + $0x141] sm:$0xff] %v423
        %457 = vst [vmem:[%s428 + $0x151] sm:$0xff] %v424
        %458 = vst [vmem:[%s428 + $0x159] sm:$0xff] %v425
        %459 = vst [vmem:[%s428 + $0x169] sm:$0xff] %v426
        %460 = vst [vmem:[%s428 + $0x171] sm:$0xff] %v427
        %v461 = vld [vmem:[#allocation2] sm:$0xff]
        %v462 = vld [vmem:[#allocation2 + $0x8] sm:$0xff]
        %v463 = vld [vmem:[#allocation2 + $0x18] sm:$0xff]
        %v464 = vld [vmem:[#allocation2 + $0x20] sm:$0xff]
        %v465 = vld [vmem:[#allocation2 + $0x30] sm:$0xff]
        %v466 = vld [vmem:[#allocation2 + $0x38] sm:$0xff]
        %v467 = vld [vmem:[#allocation2 + $0x48] sm:$0xff]
        %v468 = vld [vmem:[#allocation2 + $0x50] sm:$0xff]
        %v469 = vld [vmem:[#allocation2 + $0x60] sm:$0xff]
        %v470 = vld [vmem:[#allocation2 + $0x68] sm:$0xff]
        %v471 = vld [vmem:[#allocation2 + $0x78] sm:$0xff]
        %v472 = vld [vmem:[#allocation2 + $0x80] sm:$0xff]
        %v473 = vld [vmem:[#allocation2 + $0x90] sm:$0xff]
        %v474 = vld [vmem:[#allocation2 + $0x98] sm:$0xff]
        %v475 = vld [vmem:[#allocation2 + $0xa8] sm:$0xff]
        %v476 = vld [vmem:[#allocation2 + $0xb0] sm:$0xff]
        %v477 = vld [vmem:[#allocation2 + $0xc0] sm:$0xff]
        %v478 = vld [vmem:[#allocation2 + $0xc8] sm:$0xff]
        %v479 = vld [vmem:[#allocation2 + $0xd8] sm:$0xff]
        %v480 = vld [vmem:[#allocation2 + $0xe0] sm:$0xff]
        %v481 = vld [vmem:[#allocation2 + $0xf0] sm:$0xff]
        %v482 = vld [vmem:[#allocation2 + $0xf8] sm:$0xff]
        %v483 = vld [vmem:[#allocation2 + $0x108] sm:$0xff]
        %v484 = vld [vmem:[#allocation2 + $0x110] sm:$0xff]
        %v485 = vld [vmem:[#allocation2 + $0x120] sm:$0xff]
        %v486 = vld [vmem:[#allocation2 + $0x128] sm:$0xff]
        %v487 = vld [vmem:[#allocation2 + $0x138] sm:$0xff]
        %v488 = vld [vmem:[#allocation2 + $0x140] sm:$0xff]
        %v489 = vld [vmem:[#allocation2 + $0x150] sm:$0xff]
        %v490 = vld [vmem:[#allocation2 + $0x158] sm:$0xff]
        %v491 = vld [vmem:[#allocation2 + $0x168] sm:$0xff]
        %v492 = vld [vmem:[#allocation2 + $0x170] sm:$0xff]
        %v493 = vld [vmem:[#allocation7] sm:$0xff]
        %v494 = vld [vmem:[#allocation7 + $0x8] sm:$0xff]
        %v495 = vld [vmem:[#allocation7 + $0x10] sm:$0xff]
        %v496 = vld [vmem:[#allocation7 + $0x18] sm:$0xff]
        %v497 = vld [vmem:[#allocation7 + $0x20] sm:$0xff]
        %v498 = vld [vmem:[#allocation7 + $0x28] sm:$0xff]
        %v499 = vld [vmem:[#allocation7 + $0x30] sm:$0xff]
        %v500 = vld [vmem:[#allocation7 + $0x38] sm:$0xff]
        %v501 = vld [vmem:[#allocation7 + $0x40] sm:$0xff]
        %v502 = vld [vmem:[#allocation7 + $0x48] sm:$0xff]
        %v503 = vld [vmem:[#allocation7 + $0x50] sm:$0xff]
        %v504 = vld [vmem:[#allocation7 + $0x58] sm:$0xff]
        %v505 = vld [vmem:[#allocation7 + $0x60] sm:$0xff]
        %v506 = vld [vmem:[#allocation7 + $0x68] sm:$0xff]
        %v507 = vld [vmem:[#allocation7 + $0x70] sm:$0xff]
        %v508 = vld [vmem:[#allocation7 + $0x78] sm:$0xff]
        %509 = vmatprep.subr.mxu0 0.0
        %510 = vmatpush1.msra.mxu0 %v493
        %511 = vmatprep.subr.mxu0 0.0
        %512 = vmatpush1.msra.mxu0 %v494
        %513 = vmatprep.subr.mxu0 0.0
        %514 = vmatpush1.msra.mxu0 %v495
        %515 = vmatprep.subr.mxu0 0.0
        %516 = vmatpush1.msra.mxu0 %v496
        %517 = vmatprep.subr.mxu0 0.0
        %518 = vmatpush1.msra.mxu0 %v497
        %519 = vmatprep.subr.mxu0 0.0
        %520 = vmatpush1.msra.mxu0 %v498
        %521 = vmatprep.subr.mxu0 0.0
        %522 = vmatpush1.msra.mxu0 %v499
        %523 = vmatprep.subr.mxu0 0.0
        %524 = vmatpush1.msra.mxu0 %v500
        %525 = vmatprep.subr.mxu0 0.0
        %526 = vmatpush1.msra.mxu0 %v501
        %527 = vmatprep.subr.mxu0 0.0
        %528 = vmatpush1.msra.mxu0 %v502
        %529 = vmatprep.subr.mxu0 0.0
        %530 = vmatpush1.msra.mxu0 %v503
        %531 = vmatprep.subr.mxu0 0.0
        %532 = vmatpush1.msra.mxu0 %v504
        %533 = vmatprep.subr.mxu0 0.0
        %534 = vmatpush1.msra.mxu0 %v505
        %535 = vmatprep.subr.mxu0 0.0
        %536 = vmatpush1.msra.mxu0 %v506
        %537 = vmatprep.subr.mxu0 0.0
        %538 = vmatpush1.msra.mxu0 %v507
        %539 = vmatprep.subr.mxu0 0.0
        %540 = vmatpush1.msra.mxu0 %v508
        %541 = vmatprep.subr.mxu0 0.0
        %542 = vmatpush1.msra.mxu0 0.0
        %543 = vmatprep.subr.mxu0 0.0
        %544 = vmatpush1.msra.mxu0 0.0
        %545 = vmatprep.subr.mxu0 0.0
        %546 = vmatpush1.msra.mxu0 0.0
        %547 = vmatprep.subr.mxu0 0.0
        %548 = vmatpush1.msra.mxu0 0.0
        %549 = vmatprep.subr.mxu0 0.0
        %550 = vmatpush1.msra.mxu0 0.0
        %551 = vmatprep.subr.mxu0 0.0
        %552 = vmatpush1.msra.mxu0 0.0
        %553 = vmatprep.subr.mxu0 0.0
        %554 = vmatpush1.msra.mxu0 0.0
        %555 = vmatprep.subr.mxu0 0.0
        %556 = vmatpush1.msra.mxu0 0.0
        %557 = vmatprep.subr.mxu0 0.0
        %558 = vmatpush1.msra.mxu0 0.0
        %559 = vmatprep.subr.mxu0 0.0
        %560 = vmatpush1.msra.mxu0 0.0
        %561 = vmatprep.subr.mxu0 0.0
        %562 = vmatpush1.msra.mxu0 0.0
        %563 = vmatprep.subr.mxu0 0.0
        %564 = vmatpush1.msra.mxu0 0.0
        %565 = vmatprep.subr.mxu0 0.0
        %566 = vmatpush1.msra.mxu0 0.0
        %567 = vmatprep.subr.mxu0 0.0
        %568 = vmatpush1.msra.mxu0 0.0
        %569 = vmatprep.subr.mxu0 0.0
        %570 = vmatpush1.msra.mxu0 0.0
        %571 = vmatprep.subr.mxu0 0.0
        %572 = vmatpush1.msra.mxu0 0.0
        %573 = vmatprep.mubr.f32.mxu0 0.0
        %574 = vmatmul.mubr.f32.gmra.mrb[0].mxu0 %v461
        %v575 = vpop.f32.mrb[0].mxu0
        %v576 = vadd.f32 0.0, %v575
        %v577 = vpop.f32.mrb[0].mxu0
        %578 = vmatprep.mubr.f32.mxu0 0.0
        %579 = vmatmul.mubr.f32.gmra.mrb[0].mxu0 %v462
        %v580 = vpop.f32.mrb[0].mxu0
        %v581 = vadd.f32 0.0, %v580
        %v582 = vpop.f32.mrb[0].mxu0
        %583 = vmatprep.mubr.f32.mxu0 0.0
        %584 = vmatmul.mubr.f32.gmra.mrb[0].mxu0 %v463
        %v585 = vpop.f32.mrb[0].mxu0
        %v586 = vadd.f32 0.0, %v585
        %v587 = vpop.f32.mrb[0].mxu0
        %588 = vmatprep.mubr.f32.mxu0 0.0
        %589 = vmatmul.mubr.f32.gmra.mrb[0].mxu0 %v464
        %v590 = vpop.f32.mrb[0].mxu0
        %v591 = vadd.f32 0.0, %v590
        %v592 = vpop.f32.mrb[0].mxu0
        %593 = vmatprep.mubr.f32.mxu0 0.0
        %594 = vmatmul.mubr.f32.gmra.mrb[0].mxu0 %v465
        %v595 = vpop.f32.mrb[0].mxu0
        %v596 = vadd.f32 0.0, %v595
        %v597 = vpop.f32.mrb[0].mxu0
        %598 = vmatprep.mubr.f32.mxu0 0.0
        %599 = vmatmul.mubr.f32.gmra.mrb[0].mxu0 %v466
        %v600 = vpop.f32.mrb[0].mxu0
        %v601 = vadd.f32 0.0, %v600
        %v602 = vpop.f32.mrb[0].mxu0
        %603 = vmatprep.mubr.f32.mxu0 0.0
        %604 = vmatmul.mubr.f32.gmra.mrb[0].mxu0 %v467
        %v605 = vpop.f32.mrb[0].mxu0
        %v606 = vadd.f32 0.0, %v605
        %v607 = vpop.f32.mrb[0].mxu0
        %608 = vmatprep.mubr.f32.mxu0 0.0
        %609 = vmatmul.mubr.f32.gmra.mrb[0].mxu0 %v468
        %v610 = vpop.f32.mrb[0].mxu0
        %v611 = vadd.f32 0.0, %v610
        %v612 = vpop.f32.mrb[0].mxu0
        %613 = vmatprep.mubr.f32.mxu0 0.0
        %614 = vmatmul.mubr.f32.gmra.mrb[0].mxu0 %v469
        %v615 = vpop.f32.mrb[0].mxu0
        %v616 = vadd.f32 0.0, %v615
        %v617 = vpop.f32.mrb[0].mxu0
        %618 = vmatprep.mubr.f32.mxu0 0.0
        %619 = vmatmul.mubr.f32.gmra.mrb[0].mxu0 %v470
        %v620 = vpop.f32.mrb[0].mxu0
        %v621 = vadd.f32 0.0, %v620
        %v622 = vpop.f32.mrb[0].mxu0
        %623 = vmatprep.mubr.f32.mxu0 0.0
        %624 = vmatmul.mubr.f32.gmra.mrb[0].mxu0 %v471
        %v625 = vpop.f32.mrb[0].mxu0
        %v626 = vadd.f32 0.0, %v625
        %v627 = vpop.f32.mrb[0].mxu0
        %628 = vmatprep.mubr.f32.mxu0 0.0
        %629 = vmatmul.mubr.f32.gmra.mrb[0].mxu0 %v472
        %v630 = vpop.f32.mrb[0].mxu0
        %v631 = vadd.f32 0.0, %v630
        %v632 = vpop.f32.mrb[0].mxu0
        %633 = vmatprep.mubr.f32.mxu0 0.0
        %634 = vmatmul.mubr.f32.gmra.mrb[0].mxu0 %v473
        %v635 = vpop.f32.mrb[0].mxu0
        %v636 = vadd.f32 0.0, %v635
        %v637 = vpop.f32.mrb[0].mxu0
        %638 = vmatprep.mubr.f32.mxu0 0.0
        %639 = vmatmul.mubr.f32.gmra.mrb[0].mxu0 %v474
        %v640 = vpop.f32.mrb[0].mxu0
        %v641 = vadd.f32 0.0, %v640
        %v642 = vpop.f32.mrb[0].mxu0
        %643 = vmatprep.mubr.f32.mxu0 0.0
        %644 = vmatmul.mubr.f32.gmra.mrb[0].mxu0 %v475
        %v645 = vpop.f32.mrb[0].mxu0
        %v646 = vadd.f32 0.0, %v645
        %v647 = vpop.f32.mrb[0].mxu0
        %648 = vmatprep.mubr.f32.mxu0 0.0
        %649 = vmatmul.mubr.f32.gmra.mrb[0].mxu0 %v476
        %v650 = vpop.f32.mrb[0].mxu0
        %v651 = vadd.f32 0.0, %v650
        %v652 = vpop.f32.mrb[0].mxu0
        %653 = vmatprep.mubr.f32.mxu0 0.0
        %654 = vmatmul.mubr.f32.gmra.mrb[0].mxu0 %v477
        %v655 = vpop.f32.mrb[0].mxu0
        %v656 = vadd.f32 0.0, %v655
        %v657 = vpop.f32.mrb[0].mxu0
        %658 = vmatprep.mubr.f32.mxu0 0.0
        %659 = vmatmul.mubr.f32.gmra.mrb[0].mxu0 %v478
        %v660 = vpop.f32.mrb[0].mxu0
        %v661 = vadd.f32 0.0, %v660
        %v662 = vpop.f32.mrb[0].mxu0
        %663 = vmatprep.mubr.f32.mxu0 0.0
        %664 = vmatmul.mubr.f32.gmra.mrb[0].mxu0 %v479
        %v665 = vpop.f32.mrb[0].mxu0
        %v666 = vadd.f32 0.0, %v665
        %v667 = vpop.f32.mrb[0].mxu0
        %668 = vmatprep.mubr.f32.mxu0 0.0
        %669 = vmatmul.mubr.f32.gmra.mrb[0].mxu0 %v480
        %v670 = vpop.f32.mrb[0].mxu0
        %v671 = vadd.f32 0.0, %v670
        %v672 = vpop.f32.mrb[0].mxu0
        %673 = vmatprep.mubr.f32.mxu0 0.0
        %674 = vmatmul.mubr.f32.gmra.mrb[0].mxu0 %v481
        %v675 = vpop.f32.mrb[0].mxu0
        %v676 = vadd.f32 0.0, %v675
        %v677 = vpop.f32.mrb[0].mxu0
        %678 = vmatprep.mubr.f32.mxu0 0.0
        %679 = vmatmul.mubr.f32.gmra.mrb[0].mxu0 %v482
        %v680 = vpop.f32.mrb[0].mxu0
        %v681 = vadd.f32 0.0, %v680
        %v682 = vpop.f32.mrb[0].mxu0
        %683 = vmatprep.mubr.f32.mxu0 0.0
        %684 = vmatmul.mubr.f32.gmra.mrb[0].mxu0 %v483
        %v685 = vpop.f32.mrb[0].mxu0
        %v686 = vadd.f32 0.0, %v685
        %v687 = vpop.f32.mrb[0].mxu0
        %688 = vmatprep.mubr.f32.mxu0 0.0
        %689 = vmatmul.mubr.f32.gmra.mrb[0].mxu0 %v484
        %v690 = vpop.f32.mrb[0].mxu0
        %v691 = vadd.f32 0.0, %v690
        %v692 = vpop.f32.mrb[0].mxu0
        %693 = vmatprep.mubr.f32.mxu0 0.0
        %694 = vmatmul.mubr.f32.gmra.mrb[0].mxu0 %v485
        %v695 = vpop.f32.mrb[0].mxu0
        %v696 = vadd.f32 0.0, %v695
        %v697 = vpop.f32.mrb[0].mxu0
        %698 = vmatprep.mubr.f32.mxu0 0.0
        %699 = vmatmul.mubr.f32.gmra.mrb[0].mxu0 %v486
        %v700 = vpop.f32.mrb[0].mxu0
        %v701 = vadd.f32 0.0, %v700
        %v702 = vpop.f32.mrb[0].mxu0
        %703 = vmatprep.mubr.f32.mxu0 0.0
        %704 = vmatmul.mubr.f32.gmra.mrb[0].mxu0 %v487
        %v705 = vpop.f32.mrb[0].mxu0
        %v706 = vadd.f32 0.0, %v705
        %v707 = vpop.f32.mrb[0].mxu0
        %708 = vmatprep.mubr.f32.mxu0 0.0
        %709 = vmatmul.mubr.f32.gmra.mrb[0].mxu0 %v488
        %v710 = vpop.f32.mrb[0].mxu0
        %v711 = vadd.f32 0.0, %v710
        %v712 = vpop.f32.mrb[0].mxu0
        %713 = vmatprep.mubr.f32.mxu0 0.0
        %714 = vmatmul.mubr.f32.gmra.mrb[0].mxu0 %v489
        %v715 = vpop.f32.mrb[0].mxu0
        %v716 = vadd.f32 0.0, %v715
        %v717 = vpop.f32.mrb[0].mxu0
        %718 = vmatprep.mubr.f32.mxu0 0.0
        %719 = vmatmul.mubr.f32.gmra.mrb[0].mxu0 %v490
        %v720 = vpop.f32.mrb[0].mxu0
        %v721 = vadd.f32 0.0, %v720
        %v722 = vpop.f32.mrb[0].mxu0
        %723 = vmatprep.mubr.f32.mxu0 0.0
        %724 = vmatmul.mubr.f32.gmra.mrb[0].mxu0 %v491
        %v725 = vpop.f32.mrb[0].mxu0
        %v726 = vadd.f32 0.0, %v725
        %v727 = vpop.f32.mrb[0].mxu0
        %728 = vmatprep.mubr.f32.mxu0 0.0
        %729 = vmatmul.mubr.f32.gmra.mrb[0].mxu0 %v492
        %v730 = vpop.f32.mrb[0].mxu0
        %v731 = vadd.f32 0.0, %v730
        %v732 = vpop.f32.mrb[0].mxu0
        %733 = vdwg.mxu0
        %734 = vst [vmem:[#allocation3] sm:$0xff] %v576
        %735 = vst [vmem:[#allocation3 + $0x8] sm:$0xff] %v581
        %736 = vst [vmem:[#allocation3 + $0x10] sm:$0xff] %v586
        %737 = vst [vmem:[#allocation3 + $0x18] sm:$0xff] %v591
        %738 = vst [vmem:[#allocation3 + $0x20] sm:$0xff] %v596
        %739 = vst [vmem:[#allocation3 + $0x28] sm:$0xff] %v601
        %740 = vst [vmem:[#allocation3 + $0x30] sm:$0xff] %v606
        %741 = vst [vmem:[#allocation3 + $0x38] sm:$0xff] %v611
        %742 = vst [vmem:[#allocation3 + $0x40] sm:$0xff] %v616
        %743 = vst [vmem:[#allocation3 + $0x48] sm:$0xff] %v621
        %744 = vst [vmem:[#allocation3 + $0x50] sm:$0xff] %v626
        %745 = vst [vmem:[#allocation3 + $0x58] sm:$0xff] %v631
        %746 = vst [vmem:[#allocation3 + $0x60] sm:$0xff] %v636
        %747 = vst [vmem:[#allocation3 + $0x68] sm:$0xff] %v641
        %748 = vst [vmem:[#allocation3 + $0x70] sm:$0xff] %v646
        %749 = vst [vmem:[#allocation3 + $0x78] sm:$0xff] %v651
        %750 = vst [vmem:[#allocation3 + $0x80] sm:$0xff] %v656
        %751 = vst [vmem:[#allocation3 + $0x88] sm:$0xff] %v661
        %752 = vst [vmem:[#allocation3 + $0x90] sm:$0xff] %v666
        %753 = vst [vmem:[#allocation3 + $0x98] sm:$0xff] %v671
        %754 = vst [vmem:[#allocation3 + $0xa0] sm:$0xff] %v676
        %755 = vst [vmem:[#allocation3 + $0xa8] sm:$0xff] %v681
        %756 = vst [vmem:[#allocation3 + $0xb0] sm:$0xff] %v686
        %757 = vst [vmem:[#allocation3 + $0xb8] sm:$0xff] %v691
        %758 = vst [vmem:[#allocation3 + $0xc0] sm:$0xff] %v696
        %759 = vst [vmem:[#allocation3 + $0xc8] sm:$0xff] %v701
        %760 = vst [vmem:[#allocation3 + $0xd0] sm:$0xff] %v706
        %761 = vst [vmem:[#allocation3 + $0xd8] sm:$0xff] %v711
        %762 = vst [vmem:[#allocation3 + $0xe0] sm:$0xff] %v716
        %763 = vst [vmem:[#allocation3 + $0xe8] sm:$0xff] %v721
        %764 = vst [vmem:[#allocation3 + $0xf0] sm:$0xff] %v726
        %765 = vst [vmem:[#allocation3 + $0xf8] sm:$0xff] %v731
        %v766 = vld [vmem:[#allocation2 + $0x1] sm:$0xff]
        %v767 = vld [vmem:[#allocation2 + $0x9] sm:$0xff]
        %v768 = vld [vmem:[#allocation2 + $0x19] sm:$0xff]
        %v769 = vld [vmem:[#allocation2 + $0x21] sm:$0xff]
        %v770 = vld [vmem:[#allocation2 + $0x31] sm:$0xff]
        %v771 = vld [vmem:[#allocation2 + $0x39] sm:$0xff]
        %v772 = vld [vmem:[#allocation2 + $0x49] sm:$0xff]
        %v773 = vld [vmem:[#allocation2 + $0x51] sm:$0xff]
        %v774 = vld [vmem:[#allocation2 + $0x61] sm:$0xff]
        %v775 = vld [vmem:[#allocation2 + $0x69] sm:$0xff]
        %v776 = vld [vmem:[#allocation2 + $0x79] sm:$0xff]
        %v777 = vld [vmem:[#allocation2 + $0x81] sm:$0xff]
        %v778 = vld [vmem:[#allocation2 + $0x91] sm:$0xff]
        %v779 = vld [vmem:[#allocation2 + $0x99] sm:$0xff]
        %v780 = vld [vmem:[#allocation2 + $0xa9] sm:$0xff]
        %v781 = vld [vmem:[#allocation2 + $0xb1] sm:$0xff]
        %v782 = vld [vmem:[#allocation2 + $0xc1] sm:$0xff]
        %v783 = vld [vmem:[#allocation2 + $0xc9] sm:$0xff]
        %v784 = vld [vmem:[#allocation2 + $0xd9] sm:$0xff]
        %v785 = vld [vmem:[#allocation2 + $0xe1] sm:$0xff]
        %v786 = vld [vmem:[#allocation2 + $0xf1] sm:$0xff]
        %v787 = vld [vmem:[#allocation2 + $0xf9] sm:$0xff]
        %v788 = vld [vmem:[#allocation2 + $0x109] sm:$0xff]
        %v789 = vld [vmem:[#allocation2 + $0x111] sm:$0xff]
        %v790 = vld [vmem:[#allocation2 + $0x121] sm:$0xff]
        %v791 = vld [vmem:[#allocation2 + $0x129] sm:$0xff]
        %v792 = vld [vmem:[#allocation2 + $0x139] sm:$0xff]
        %v793 = vld [vmem:[#allocation2 + $0x141] sm:$0xff]
        %v794 = vld [vmem:[#allocation2 + $0x151] sm:$0xff]
        %v795 = vld [vmem:[#allocation2 + $0x159] sm:$0xff]
        %v796 = vld [vmem:[#allocation2 + $0x169] sm:$0xff]
        %v797 = vld [vmem:[#allocation2 + $0x171] sm:$0xff]
        %s798 = scalar_lea.vmem [#allocation7], 128
        %v799 = vld [vmem:[%s798] sm:$0xff]
        %v800 = vld [vmem:[%s798 + $0x8] sm:$0xff]
        %v801 = vld [vmem:[%s798 + $0x10] sm:$0xff]
        %v802 = vld [vmem:[%s798 + $0x18] sm:$0xff]
        %v803 = vld [vmem:[%s798 + $0x20] sm:$0xff]
        %v804 = vld [vmem:[%s798 + $0x28] sm:$0xff]
        %v805 = vld [vmem:[%s798 + $0x30] sm:$0xff]
        %v806 = vld [vmem:[%s798 + $0x38] sm:$0xff]
        %v807 = vld [vmem:[%s798 + $0x40] sm:$0xff]
        %v808 = vld [vmem:[%s798 + $0x48] sm:$0xff]
        %v809 = vld [vmem:[%s798 + $0x50] sm:$0xff]
        %v810 = vld [vmem:[%s798 + $0x58] sm:$0xff]
        %v811 = vld [vmem:[%s798 + $0x60] sm:$0xff]
        %v812 = vld [vmem:[%s798 + $0x68] sm:$0xff]
        %v813 = vld [vmem:[%s798 + $0x70] sm:$0xff]
        %v814 = vld [vmem:[%s798 + $0x78] sm:$0xff]
        %815 = vmatprep.subr.mxu0 0.0
        %816 = vmatpush1.msra.mxu0 %v799
        %817 = vmatprep.subr.mxu0 0.0
        %818 = vmatpush1.msra.mxu0 %v800
        %819 = vmatprep.subr.mxu0 0.0
        %820 = vmatpush1.msra.mxu0 %v801
        %821 = vmatprep.subr.mxu0 0.0
        %822 = vmatpush1.msra.mxu0 %v802
        %823 = vmatprep.subr.mxu0 0.0
        %824 = vmatpush1.msra.mxu0 %v803
        %825 = vmatprep.subr.mxu0 0.0
        %826 = vmatpush1.msra.mxu0 %v804
        %827 = vmatprep.subr.mxu0 0.0
        %828 = vmatpush1.msra.mxu0 %v805
        %829 = vmatprep.subr.mxu0 0.0
        %830 = vmatpush1.msra.mxu0 %v806
        %831 = vmatprep.subr.mxu0 0.0
        %832 = vmatpush1.msra.mxu0 %v807
        %833 = vmatprep.subr.mxu0 0.0
        %834 = vmatpush1.msra.mxu0 %v808
        %835 = vmatprep.subr.mxu0 0.0
        %836 = vmatpush1.msra.mxu0 %v809
        %837 = vmatprep.subr.mxu0 0.0
        %838 = vmatpush1.msra.mxu0 %v810
        %839 = vmatprep.subr.mxu0 0.0
        %840 = vmatpush1.msra.mxu0 %v811
        %841 = vmatprep.subr.mxu0 0.0
        %842 = vmatpush1.msra.mxu0 %v812
        %843 = vmatprep.subr.mxu0 0.0
        %844 = vmatpush1.msra.mxu0 %v813
        %845 = vmatprep.subr.mxu0 0.0
        %846 = vmatpush1.msra.mxu0 %v814
        %847 = vmatprep.subr.mxu0 0.0
        %848 = vmatpush1.msra.mxu0 0.0
        %849 = vmatprep.subr.mxu0 0.0
        %850 = vmatpush1.msra.mxu0 0.0
        %851 = vmatprep.subr.mxu0 0.0
        %852 = vmatpush1.msra.mxu0 0.0
        %853 = vmatprep.subr.mxu0 0.0
        %854 = vmatpush1.msra.mxu0 0.0
        %855 = vmatprep.subr.mxu0 0.0
        %856 = vmatpush1.msra.mxu0 0.0
        %857 = vmatprep.subr.mxu0 0.0
        %858 = vmatpush1.msra.mxu0 0.0
        %859 = vmatprep.subr.mxu0 0.0
        %860 = vmatpush1.msra.mxu0 0.0
        %861 = vmatprep.subr.mxu0 0.0
        %862 = vmatpush1.msra.mxu0 0.0
        %863 = vmatprep.subr.mxu0 0.0
        %864 = vmatpush1.msra.mxu0 0.0
        %865 = vmatprep.subr.mxu0 0.0
        %866 = vmatpush1.msra.mxu0 0.0
        %867 = vmatprep.subr.mxu0 0.0
        %868 = vmatpush1.msra.mxu0 0.0
        %869 = vmatprep.subr.mxu0 0.0
        %870 = vmatpush1.msra.mxu0 0.0
        %871 = vmatprep.subr.mxu0 0.0
        %872 = vmatpush1.msra.mxu0 0.0
        %873 = vmatprep.subr.mxu0 0.0
        %874 = vmatpush1.msra.mxu0 0.0
        %875 = vmatprep.subr.mxu0 0.0
        %876 = vmatpush1.msra.mxu0 0.0
        %877 = vmatprep.subr.mxu0 0.0
        %878 = vmatpush1.msra.mxu0 0.0
        %879 = vmatprep.mubr.f32.mxu0 0.0
        %880 = vmatmul.mubr.f32.gmra.mrb[0].mxu0 %v766
        %v881 = vpop.f32.mrb[0].mxu0
        %v882 = vadd.f32 0.0, %v881
        %v883 = vpop.f32.mrb[0].mxu0
        %884 = vmatprep.mubr.f32.mxu0 0.0
        %885 = vmatmul.mubr.f32.gmra.mrb[0].mxu0 %v767
        %v886 = vpop.f32.mrb[0].mxu0
        %v887 = vadd.f32 0.0, %v886
        %v888 = vpop.f32.mrb[0].mxu0
        %889 = vmatprep.mubr.f32.mxu0 0.0
        %890 = vmatmul.mubr.f32.gmra.mrb[0].mxu0 %v768
        %v891 = vpop.f32.mrb[0].mxu0
        %v892 = vadd.f32 0.0, %v891
        %v893 = vpop.f32.mrb[0].mxu0
        %894 = vmatprep.mubr.f32.mxu0 0.0
        %895 = vmatmul.mubr.f32.gmra.mrb[0].mxu0 %v769
        %v896 = vpop.f32.mrb[0].mxu0
        %v897 = vadd.f32 0.0, %v896
        %v898 = vpop.f32.mrb[0].mxu0
        %899 = vmatprep.mubr.f32.mxu0 0.0
        %900 = vmatmul.mubr.f32.gmra.mrb[0].mxu0 %v770
        %v901 = vpop.f32.mrb[0].mxu0
        %v902 = vadd.f32 0.0, %v901
        %v903 = vpop.f32.mrb[0].mxu0
        %904 = vmatprep.mubr.f32.mxu0 0.0
        %905 = vmatmul.mubr.f32.gmra.mrb[0].mxu0 %v771
        %v906 = vpop.f32.mrb[0].mxu0
        %v907 = vadd.f32 0.0, %v906
        %v908 = vpop.f32.mrb[0].mxu0
        %909 = vmatprep.mubr.f32.mxu0 0.0
        %910 = vmatmul.mubr.f32.gmra.mrb[0].mxu0 %v772
        %v911 = vpop.f32.mrb[0].mxu0
        %v912 = vadd.f32 0.0, %v911
        %v913 = vpop.f32.mrb[0].mxu0
        %914 = vmatprep.mubr.f32.mxu0 0.0
        %915 = vmatmul.mubr.f32.gmra.mrb[0].mxu0 %v773
        %v916 = vpop.f32.mrb[0].mxu0
        %v917 = vadd.f32 0.0, %v916
        %v918 = vpop.f32.mrb[0].mxu0
        %919 = vmatprep.mubr.f32.mxu0 0.0
        %920 = vmatmul.mubr.f32.gmra.mrb[0].mxu0 %v774
        %v921 = vpop.f32.mrb[0].mxu0
        %v922 = vadd.f32 0.0, %v921
        %v923 = vpop.f32.mrb[0].mxu0
        %924 = vmatprep.mubr.f32.mxu0 0.0
        %925 = vmatmul.mubr.f32.gmra.mrb[0].mxu0 %v775
        %v926 = vpop.f32.mrb[0].mxu0
        %v927 = vadd.f32 0.0, %v926
        %v928 = vpop.f32.mrb[0].mxu0
        %929 = vmatprep.mubr.f32.mxu0 0.0
        %930 = vmatmul.mubr.f32.gmra.mrb[0].mxu0 %v776
        %v931 = vpop.f32.mrb[0].mxu0
        %v932 = vadd.f32 0.0, %v931
        %v933 = vpop.f32.mrb[0].mxu0
        %934 = vmatprep.mubr.f32.mxu0 0.0
        %935 = vmatmul.mubr.f32.gmra.mrb[0].mxu0 %v777
        %v936 = vpop.f32.mrb[0].mxu0
        %v937 = vadd.f32 0.0, %v936
        %v938 = vpop.f32.mrb[0].mxu0
        %939 = vmatprep.mubr.f32.mxu0 0.0
        %940 = vmatmul.mubr.f32.gmra.mrb[0].mxu0 %v778
        %v941 = vpop.f32.mrb[0].mxu0
        %v942 = vadd.f32 0.0, %v941
        %v943 = vpop.f32.mrb[0].mxu0
        %944 = vmatprep.mubr.f32.mxu0 0.0
        %945 = vmatmul.mubr.f32.gmra.mrb[0].mxu0 %v779
        %v946 = vpop.f32.mrb[0].mxu0
        %v947 = vadd.f32 0.0, %v946
        %v948 = vpop.f32.mrb[0].mxu0
        %949 = vmatprep.mubr.f32.mxu0 0.0
        %950 = vmatmul.mubr.f32.gmra.mrb[0].mxu0 %v780
        %v951 = vpop.f32.mrb[0].mxu0
        %v952 = vadd.f32 0.0, %v951
        %v953 = vpop.f32.mrb[0].mxu0
        %954 = vmatprep.mubr.f32.mxu0 0.0
        %955 = vmatmul.mubr.f32.gmra.mrb[0].mxu0 %v781
        %v956 = vpop.f32.mrb[0].mxu0
        %v957 = vadd.f32 0.0, %v956
        %v958 = vpop.f32.mrb[0].mxu0
        %959 = vmatprep.mubr.f32.mxu0 0.0
        %960 = vmatmul.mubr.f32.gmra.mrb[0].mxu0 %v782
        %v961 = vpop.f32.mrb[0].mxu0
        %v962 = vadd.f32 0.0, %v961
        %v963 = vpop.f32.mrb[0].mxu0
        %964 = vmatprep.mubr.f32.mxu0 0.0
        %965 = vmatmul.mubr.f32.gmra.mrb[0].mxu0 %v783
        %v966 = vpop.f32.mrb[0].mxu0
        %v967 = vadd.f32 0.0, %v966
        %v968 = vpop.f32.mrb[0].mxu0
        %969 = vmatprep.mubr.f32.mxu0 0.0
        %970 = vmatmul.mubr.f32.gmra.mrb[0].mxu0 %v784
        %v971 = vpop.f32.mrb[0].mxu0
        %v972 = vadd.f32 0.0, %v971
        %v973 = vpop.f32.mrb[0].mxu0
        %974 = vmatprep.mubr.f32.mxu0 0.0
        %975 = vmatmul.mubr.f32.gmra.mrb[0].mxu0 %v785
        %v976 = vpop.f32.mrb[0].mxu0
        %v977 = vadd.f32 0.0, %v976
        %v978 = vpop.f32.mrb[0].mxu0
        %979 = vmatprep.mubr.f32.mxu0 0.0
        %980 = vmatmul.mubr.f32.gmra.mrb[0].mxu0 %v786
        %v981 = vpop.f32.mrb[0].mxu0
        %v982 = vadd.f32 0.0, %v981
        %v983 = vpop.f32.mrb[0].mxu0
        %984 = vmatprep.mubr.f32.mxu0 0.0
        %985 = vmatmul.mubr.f32.gmra.mrb[0].mxu0 %v787
        %v986 = vpop.f32.mrb[0].mxu0
        %v987 = vadd.f32 0.0, %v986
        %v988 = vpop.f32.mrb[0].mxu0
        %989 = vmatprep.mubr.f32.mxu0 0.0
        %990 = vmatmul.mubr.f32.gmra.mrb[0].mxu0 %v788
        %v991 = vpop.f32.mrb[0].mxu0
        %v992 = vadd.f32 0.0, %v991
        %v993 = vpop.f32.mrb[0].mxu0
        %994 = vmatprep.mubr.f32.mxu0 0.0
        %995 = vmatmul.mubr.f32.gmra.mrb[0].mxu0 %v789
        %v996 = vpop.f32.mrb[0].mxu0
        %v997 = vadd.f32 0.0, %v996
        %v998 = vpop.f32.mrb[0].mxu0
        %999 = vmatprep.mubr.f32.mxu0 0.0
        %1000 = vmatmul.mubr.f32.gmra.mrb[0].mxu0 %v790
        %v1001 = vpop.f32.mrb[0].mxu0
        %v1002 = vadd.f32 0.0, %v1001
        %v1003 = vpop.f32.mrb[0].mxu0
        %1004 = vmatprep.mubr.f32.mxu0 0.0
        %1005 = vmatmul.mubr.f32.gmra.mrb[0].mxu0 %v791
        %v1006 = vpop.f32.mrb[0].mxu0
        %v1007 = vadd.f32 0.0, %v1006
        %v1008 = vpop.f32.mrb[0].mxu0
        %1009 = vmatprep.mubr.f32.mxu0 0.0
        %1010 = vmatmul.mubr.f32.gmra.mrb[0].mxu0 %v792
        %v1011 = vpop.f32.mrb[0].mxu0
        %v1012 = vadd.f32 0.0, %v1011
        %v1013 = vpop.f32.mrb[0].mxu0
        %1014 = vmatprep.mubr.f32.mxu0 0.0
        %1015 = vmatmul.mubr.f32.gmra.mrb[0].mxu0 %v793
        %v1016 = vpop.f32.mrb[0].mxu0
        %v1017 = vadd.f32 0.0, %v1016
        %v1018 = vpop.f32.mrb[0].mxu0
        %1019 = vmatprep.mubr.f32.mxu0 0.0
        %1020 = vmatmul.mubr.f32.gmra.mrb[0].mxu0 %v794
        %v1021 = vpop.f32.mrb[0].mxu0
        %v1022 = vadd.f32 0.0, %v1021
        %v1023 = vpop.f32.mrb[0].mxu0
        %1024 = vmatprep.mubr.f32.mxu0 0.0
        %1025 = vmatmul.mubr.f32.gmra.mrb[0].mxu0 %v795
        %v1026 = vpop.f32.mrb[0].mxu0
        %v1027 = vadd.f32 0.0, %v1026
        %v1028 = vpop.f32.mrb[0].mxu0
        %1029 = vmatprep.mubr.f32.mxu0 0.0
        %1030 = vmatmul.mubr.f32.gmra.mrb[0].mxu0 %v796
        %v1031 = vpop.f32.mrb[0].mxu0
        %v1032 = vadd.f32 0.0, %v1031
        %v1033 = vpop.f32.mrb[0].mxu0
        %1034 = vmatprep.mubr.f32.mxu0 0.0
        %1035 = vmatmul.mubr.f32.gmra.mrb[0].mxu0 %v797
        %v1036 = vpop.f32.mrb[0].mxu0
        %v1037 = vadd.f32 0.0, %v1036
        %v1038 = vpop.f32.mrb[0].mxu0
        %1039 = vdwg.mxu0
        %v1040 = vld [vmem:[#allocation3] sm:$0xff]
        %v1041 = vld [vmem:[#allocation3 + $0x8] sm:$0xff]
        %v1042 = vld [vmem:[#allocation3 + $0x10] sm:$0xff]
        %v1043 = vld [vmem:[#allocation3 + $0x18] sm:$0xff]
        %v1044 = vld [vmem:[#allocation3 + $0x20] sm:$0xff]
        %v1045 = vld [vmem:[#allocation3 + $0x28] sm:$0xff]
        %v1046 = vld [vmem:[#allocation3 + $0x30] sm:$0xff]
        %v1047 = vld [vmem:[#allocation3 + $0x38] sm:$0xff]
        %v1048 = vld [vmem:[#allocation3 + $0x40] sm:$0xff]
        %v1049 = vld [vmem:[#allocation3 + $0x48] sm:$0xff]
        %v1050 = vld [vmem:[#allocation3 + $0x50] sm:$0xff]
        %v1051 = vld [vmem:[#allocation3 + $0x58] sm:$0xff]
        %v1052 = vld [vmem:[#allocation3 + $0x60] sm:$0xff]
        %v1053 = vld [vmem:[#allocation3 + $0x68] sm:$0xff]
        %v1054 = vld [vmem:[#allocation3 + $0x70] sm:$0xff]
        %v1055 = vld [vmem:[#allocation3 + $0x78] sm:$0xff]
        %v1056 = vld [vmem:[#allocation3 + $0x80] sm:$0xff]
        %v1057 = vld [vmem:[#allocation3 + $0x88] sm:$0xff]
        %v1058 = vld [vmem:[#allocation3 + $0x90] sm:$0xff]
        %v1059 = vld [vmem:[#allocation3 + $0x98] sm:$0xff]
        %v1060 = vld [vmem:[#allocation3 + $0xa0] sm:$0xff]
        %v1061 = vld [vmem:[#allocation3 + $0xa8] sm:$0xff]
        %v1062 = vld [vmem:[#allocation3 + $0xb0] sm:$0xff]
        %v1063 = vld [vmem:[#allocation3 + $0xb8] sm:$0xff]
        %v1064 = vld [vmem:[#allocation3 + $0xc0] sm:$0xff]
        %v1065 = vld [vmem:[#allocation3 + $0xc8] sm:$0xff]
        %v1066 = vld [vmem:[#allocation3 + $0xd0] sm:$0xff]
        %v1067 = vld [vmem:[#allocation3 + $0xd8] sm:$0xff]
        %v1068 = vld [vmem:[#allocation3 + $0xe0] sm:$0xff]
        %v1069 = vld [vmem:[#allocation3 + $0xe8] sm:$0xff]
        %v1070 = vld [vmem:[#allocation3 + $0xf0] sm:$0xff]
        %v1071 = vld [vmem:[#allocation3 + $0xf8] sm:$0xff]
        %v1072 = vadd.f32 %v1040, %v882
        %v1073 = vadd.f32 %v1041, %v887
        %v1074 = vadd.f32 %v1042, %v892
        %v1075 = vadd.f32 %v1043, %v897
        %v1076 = vadd.f32 %v1044, %v902
        %v1077 = vadd.f32 %v1045, %v907
        %v1078 = vadd.f32 %v1046, %v912
        %v1079 = vadd.f32 %v1047, %v917
        %v1080 = vadd.f32 %v1048, %v922
        %v1081 = vadd.f32 %v1049, %v927
        %v1082 = vadd.f32 %v1050, %v932
        %v1083 = vadd.f32 %v1051, %v937
        %v1084 = vadd.f32 %v1052, %v942
        %v1085 = vadd.f32 %v1053, %v947
        %v1086 = vadd.f32 %v1054, %v952
        %v1087 = vadd.f32 %v1055, %v957
        %v1088 = vadd.f32 %v1056, %v962
        %v1089 = vadd.f32 %v1057, %v967
        %v1090 = vadd.f32 %v1058, %v972
        %v1091 = vadd.f32 %v1059, %v977
        %v1092 = vadd.f32 %v1060, %v982
        %v1093 = vadd.f32 %v1061, %v987
        %v1094 = vadd.f32 %v1062, %v992
        %v1095 = vadd.f32 %v1063, %v997
        %v1096 = vadd.f32 %v1064, %v1002
        %v1097 = vadd.f32 %v1065, %v1007
        %v1098 = vadd.f32 %v1066, %v1012
        %v1099 = vadd.f32 %v1067, %v1017
        %v1100 = vadd.f32 %v1068, %v1022
        %v1101 = vadd.f32 %v1069, %v1027
        %v1102 = vadd.f32 %v1070, %v1032
        %v1103 = vadd.f32 %v1071, %v1037
        %1104 = vst [vmem:[#allocation3] sm:$0xff] %v1072
        %1105 = vst [vmem:[#allocation3 + $0x8] sm:$0xff] %v1073
        %1106 = vst [vmem:[#allocation3 + $0x10] sm:$0xff] %v1074
        %1107 = vst [vmem:[#allocation3 + $0x18] sm:$0xff] %v1075
        %1108 = vst [vmem:[#allocation3 + $0x20] sm:$0xff] %v1076
        %1109 = vst [vmem:[#allocation3 + $0x28] sm:$0xff] %v1077
        %1110 = vst [vmem:[#allocation3 + $0x30] sm:$0xff] %v1078
        %1111 = vst [vmem:[#allocation3 + $0x38] sm:$0xff] %v1079
        %1112 = vst [vmem:[#allocation3 + $0x40] sm:$0xff] %v1080
        %1113 = vst [vmem:[#allocation3 + $0x48] sm:$0xff] %v1081
        %1114 = vst [vmem:[#allocation3 + $0x50] sm:$0xff] %v1082
        %1115 = vst [vmem:[#allocation3 + $0x58] sm:$0xff] %v1083
        %1116 = vst [vmem:[#allocation3 + $0x60] sm:$0xff] %v1084
        %1117 = vst [vmem:[#allocation3 + $0x68] sm:$0xff] %v1085
        %1118 = vst [vmem:[#allocation3 + $0x70] sm:$0xff] %v1086
        %1119 = vst [vmem:[#allocation3 + $0x78] sm:$0xff] %v1087
        %1120 = vst [vmem:[#allocation3 + $0x80] sm:$0xff] %v1088
        %1121 = vst [vmem:[#allocation3 + $0x88] sm:$0xff] %v1089
        %1122 = vst [vmem:[#allocation3 + $0x90] sm:$0xff] %v1090
        %1123 = vst [vmem:[#allocation3 + $0x98] sm:$0xff] %v1091
        %1124 = vst [vmem:[#allocation3 + $0xa0] sm:$0xff] %v1092
        %1125 = vst [vmem:[#allocation3 + $0xa8] sm:$0xff] %v1093
        %1126 = vst [vmem:[#allocation3 + $0xb0] sm:$0xff] %v1094
        %1127 = vst [vmem:[#allocation3 + $0xb8] sm:$0xff] %v1095
        %1128 = vst [vmem:[#allocation3 + $0xc0] sm:$0xff] %v1096
        %1129 = vst [vmem:[#allocation3 + $0xc8] sm:$0xff] %v1097
        %1130 = vst [vmem:[#allocation3 + $0xd0] sm:$0xff] %v1098
        %1131 = vst [vmem:[#allocation3 + $0xd8] sm:$0xff] %v1099
        %1132 = vst [vmem:[#allocation3 + $0xe0] sm:$0xff] %v1100
        %1133 = vst [vmem:[#allocation3 + $0xe8] sm:$0xff] %v1101
        %1134 = vst [vmem:[#allocation3 + $0xf0] sm:$0xff] %v1102
        %1135 = vst [vmem:[#allocation3 + $0xf8] sm:$0xff] %v1103
        %v1136 = vld [vmem:[#allocation2 + $0x2] sm:$0xff]
        %v1137 = vld [vmem:[#allocation2 + $0xa] sm:$0xff]
        %v1138 = vld [vmem:[#allocation2 + $0x1a] sm:$0xff]
        %v1139 = vld [vmem:[#allocation2 + $0x22] sm:$0xff]
        %v1140 = vld [vmem:[#allocation2 + $0x32] sm:$0xff]
        %v1141 = vld [vmem:[#allocation2 + $0x3a] sm:$0xff]
        %v1142 = vld [vmem:[#allocation2 + $0x4a] sm:$0xff]
        %v1143 = vld [vmem:[#allocation2 + $0x52] sm:$0xff]
        %v1144 = vld [vmem:[#allocation2 + $0x62] sm:$0xff]
        %v1145 = vld [vmem:[#allocation2 + $0x6a] sm:$0xff]
        %v1146 = vld [vmem:[#allocation2 + $0x7a] sm:$0xff]
        %v1147 = vld [vmem:[#allocation2 + $0x82] sm:$0xff]
        %v1148 = vld [vmem:[#allocation2 + $0x92] sm:$0xff]
        %v1149 = vld [vmem:[#allocation2 + $0x9a] sm:$0xff]
        %v1150 = vld [vmem:[#allocation2 + $0xaa] sm:$0xff]
        %v1151 = vld [vmem:[#allocation2 + $0xb2] sm:$0xff]
        %v1152 = vld [vmem:[#allocation2 + $0xc2] sm:$0xff]
        %v1153 = vld [vmem:[#allocation2 + $0xca] sm:$0xff]
        %v1154 = vld [vmem:[#allocation2 + $0xda] sm:$0xff]
        %v1155 = vld [vmem:[#allocation2 + $0xe2] sm:$0xff]
        %v1156 = vld [vmem:[#allocation2 + $0xf2] sm:$0xff]
        %v1157 = vld [vmem:[#allocation2 + $0xfa] sm:$0xff]
        %v1158 = vld [vmem:[#allocation2 + $0x10a] sm:$0xff]
        %v1159 = vld [vmem:[#allocation2 + $0x112] sm:$0xff]
        %v1160 = vld [vmem:[#allocation2 + $0x122] sm:$0xff]
        %v1161 = vld [vmem:[#allocation2 + $0x12a] sm:$0xff]
        %v1162 = vld [vmem:[#allocation2 + $0x13a] sm:$0xff]
        %v1163 = vld [vmem:[#allocation2 + $0x142] sm:$0xff]
        %v1164 = vld [vmem:[#allocation2 + $0x152] sm:$0xff]
        %v1165 = vld [vmem:[#allocation2 + $0x15a] sm:$0xff]
        %v1166 = vld [vmem:[#allocation2 + $0x16a] sm:$0xff]
        %v1167 = vld [vmem:[#allocation2 + $0x172] sm:$0xff]
        %s1168 = scalar_lea.vmem [#allocation7], 256
        %v1169 = vld [vmem:[%s1168] sm:$0xff]
        %v1170 = vld [vmem:[%s1168 + $0x8] sm:$0xff]
        %v1171 = vld [vmem:[%s1168 + $0x10] sm:$0xff]
        %v1172 = vld [vmem:[%s1168 + $0x18] sm:$0xff]
        %v1173 = vld [vmem:[%s1168 + $0x20] sm:$0xff]
        %v1174 = vld [vmem:[%s1168 + $0x28] sm:$0xff]
        %v1175 = vld [vmem:[%s1168 + $0x30] sm:$0xff]
        %v1176 = vld [vmem:[%s1168 + $0x38] sm:$0xff]
        %v1177 = vld [vmem:[%s1168 + $0x40] sm:$0xff]
        %v1178 = vld [vmem:[%s1168 + $0x48] sm:$0xff]
        %v1179 = vld [vmem:[%s1168 + $0x50] sm:$0xff]
        %v1180 = vld [vmem:[%s1168 + $0x58] sm:$0xff]
        %v1181 = vld [vmem:[%s1168 + $0x60] sm:$0xff]
        %v1182 = vld [vmem:[%s1168 + $0x68] sm:$0xff]
        %v1183 = vld [vmem:[%s1168 + $0x70] sm:$0xff]
        %v1184 = vld [vmem:[%s1168 + $0x78] sm:$0xff]
        %1185 = vmatprep.subr.mxu0 0.0
        %1186 = vmatpush1.msra.mxu0 %v1169
        %1187 = vmatprep.subr.mxu0 0.0
        %1188 = vmatpush1.msra.mxu0 %v1170
        %1189 = vmatprep.subr.mxu0 0.0
        %1190 = vmatpush1.msra.mxu0 %v1171
        %1191 = vmatprep.subr.mxu0 0.0
        %1192 = vmatpush1.msra.mxu0 %v1172
        %1193 = vmatprep.subr.mxu0 0.0
        %1194 = vmatpush1.msra.mxu0 %v1173
        %1195 = vmatprep.subr.mxu0 0.0
        %1196 = vmatpush1.msra.mxu0 %v1174
        %1197 = vmatprep.subr.mxu0 0.0
        %1198 = vmatpush1.msra.mxu0 %v1175
        %1199 = vmatprep.subr.mxu0 0.0
        %1200 = vmatpush1.msra.mxu0 %v1176
        %1201 = vmatprep.subr.mxu0 0.0
        %1202 = vmatpush1.msra.mxu0 %v1177
        %1203 = vmatprep.subr.mxu0 0.0
        %1204 = vmatpush1.msra.mxu0 %v1178
        %1205 = vmatprep.subr.mxu0 0.0
        %1206 = vmatpush1.msra.mxu0 %v1179
        %1207 = vmatprep.subr.mxu0 0.0
        %1208 = vmatpush1.msra.mxu0 %v1180
        %1209 = vmatprep.subr.mxu0 0.0
        %1210 = vmatpush1.msra.mxu0 %v1181
        %1211 = vmatprep.subr.mxu0 0.0
        %1212 = vmatpush1.msra.mxu0 %v1182
        %1213 = vmatprep.subr.mxu0 0.0
        %1214 = vmatpush1.msra.mxu0 %v1183
        %1215 = vmatprep.subr.mxu0 0.0
        %1216 = vmatpush1.msra.mxu0 %v1184
        %1217 = vmatprep.subr.mxu0 0.0
        %1218 = vmatpush1.msra.mxu0 0.0
        %1219 = vmatprep.subr.mxu0 0.0
        %1220 = vmatpush1.msra.mxu0 0.0
        %1221 = vmatprep.subr.mxu0 0.0
        %1222 = vmatpush1.msra.mxu0 0.0
        %1223 = vmatprep.subr.mxu0 0.0
        %1224 = vmatpush1.msra.mxu0 0.0
        %1225 = vmatprep.subr.mxu0 0.0
        %1226 = vmatpush1.msra.mxu0 0.0
        %1227 = vmatprep.subr.mxu0 0.0
        %1228 = vmatpush1.msra.mxu0 0.0
        %1229 = vmatprep.subr.mxu0 0.0
        %1230 = vmatpush1.msra.mxu0 0.0
        %1231 = vmatprep.subr.mxu0 0.0
        %1232 = vmatpush1.msra.mxu0 0.0
        %1233 = vmatprep.subr.mxu0 0.0
        %1234 = vmatpush1.msra.mxu0 0.0
        %1235 = vmatprep.subr.mxu0 0.0
        %1236 = vmatpush1.msra.mxu0 0.0
        %1237 = vmatprep.subr.mxu0 0.0
        %1238 = vmatpush1.msra.mxu0 0.0
        %1239 = vmatprep.subr.mxu0 0.0
        %1240 = vmatpush1.msra.mxu0 0.0
        %1241 = vmatprep.subr.mxu0 0.0
        %1242 = vmatpush1.msra.mxu0 0.0
        %1243 = vmatprep.subr.mxu0 0.0
        %1244 = vmatpush1.msra.mxu0 0.0
        %1245 = vmatprep.subr.mxu0 0.0
        %1246 = vmatpush1.msra.mxu0 0.0
        %1247 = vmatprep.subr.mxu0 0.0
        %1248 = vmatpush1.msra.mxu0 0.0
        %1249 = vmatprep.mubr.f32.mxu0 0.0
        %1250 = vmatmul.mubr.f32.gmra.mrb[0].mxu0 %v1136
        %v1251 = vpop.f32.mrb[0].mxu0
        %v1252 = vadd.f32 0.0, %v1251
        %v1253 = vpop.f32.mrb[0].mxu0
        %1254 = vmatprep.mubr.f32.mxu0 0.0
        %1255 = vmatmul.mubr.f32.gmra.mrb[0].mxu0 %v1137
        %v1256 = vpop.f32.mrb[0].mxu0
        %v1257 = vadd.f32 0.0, %v1256
        %v1258 = vpop.f32.mrb[0].mxu0
        %1259 = vmatprep.mubr.f32.mxu0 0.0
        %1260 = vmatmul.mubr.f32.gmra.mrb[0].mxu0 %v1138
        %v1261 = vpop.f32.mrb[0].mxu0
        %v1262 = vadd.f32 0.0, %v1261
        %v1263 = vpop.f32.mrb[0].mxu0
        %1264 = vmatprep.mubr.f32.mxu0 0.0
        %1265 = vmatmul.mubr.f32.gmra.mrb[0].mxu0 %v1139
        %v1266 = vpop.f32.mrb[0].mxu0
        %v1267 = vadd.f32 0.0, %v1266
        %v1268 = vpop.f32.mrb[0].mxu0
        %1269 = vmatprep.mubr.f32.mxu0 0.0
        %1270 = vmatmul.mubr.f32.gmra.mrb[0].mxu0 %v1140
        %v1271 = vpop.f32.mrb[0].mxu0
        %v1272 = vadd.f32 0.0, %v1271
        %v1273 = vpop.f32.mrb[0].mxu0
        %1274 = vmatprep.mubr.f32.mxu0 0.0
        %1275 = vmatmul.mubr.f32.gmra.mrb[0].mxu0 %v1141
        %v1276 = vpop.f32.mrb[0].mxu0
        %v1277 = vadd.f32 0.0, %v1276
        %v1278 = vpop.f32.mrb[0].mxu0
        %1279 = vmatprep.mubr.f32.mxu0 0.0
        %1280 = vmatmul.mubr.f32.gmra.mrb[0].mxu0 %v1142
        %v1281 = vpop.f32.mrb[0].mxu0
        %v1282 = vadd.f32 0.0, %v1281
        %v1283 = vpop.f32.mrb[0].mxu0
        %1284 = vmatprep.mubr.f32.mxu0 0.0
        %1285 = vmatmul.mubr.f32.gmra.mrb[0].mxu0 %v1143
        %v1286 = vpop.f32.mrb[0].mxu0
        %v1287 = vadd.f32 0.0, %v1286
        %v1288 = vpop.f32.mrb[0].mxu0
        %1289 = vmatprep.mubr.f32.mxu0 0.0
        %1290 = vmatmul.mubr.f32.gmra.mrb[0].mxu0 %v1144
        %v1291 = vpop.f32.mrb[0].mxu0
        %v1292 = vadd.f32 0.0, %v1291
        %v1293 = vpop.f32.mrb[0].mxu0
        %1294 = vmatprep.mubr.f32.mxu0 0.0
        %1295 = vmatmul.mubr.f32.gmra.mrb[0].mxu0 %v1145
        %v1296 = vpop.f32.mrb[0].mxu0
        %v1297 = vadd.f32 0.0, %v1296
        %v1298 = vpop.f32.mrb[0].mxu0
        %1299 = vmatprep.mubr.f32.mxu0 0.0
        %1300 = vmatmul.mubr.f32.gmra.mrb[0].mxu0 %v1146
        %v1301 = vpop.f32.mrb[0].mxu0
        %v1302 = vadd.f32 0.0, %v1301
        %v1303 = vpop.f32.mrb[0].mxu0
        %1304 = vmatprep.mubr.f32.mxu0 0.0
        %1305 = vmatmul.mubr.f32.gmra.mrb[0].mxu0 %v1147
        %v1306 = vpop.f32.mrb[0].mxu0
        %v1307 = vadd.f32 0.0, %v1306
        %v1308 = vpop.f32.mrb[0].mxu0
        %1309 = vmatprep.mubr.f32.mxu0 0.0
        %1310 = vmatmul.mubr.f32.gmra.mrb[0].mxu0 %v1148
        %v1311 = vpop.f32.mrb[0].mxu0
        %v1312 = vadd.f32 0.0, %v1311
        %v1313 = vpop.f32.mrb[0].mxu0
        %1314 = vmatprep.mubr.f32.mxu0 0.0
        %1315 = vmatmul.mubr.f32.gmra.mrb[0].mxu0 %v1149
        %v1316 = vpop.f32.mrb[0].mxu0
        %v1317 = vadd.f32 0.0, %v1316
        %v1318 = vpop.f32.mrb[0].mxu0
        %1319 = vmatprep.mubr.f32.mxu0 0.0
        %1320 = vmatmul.mubr.f32.gmra.mrb[0].mxu0 %v1150
        %v1321 = vpop.f32.mrb[0].mxu0
        %v1322 = vadd.f32 0.0, %v1321
        %v1323 = vpop.f32.mrb[0].mxu0
        %1324 = vmatprep.mubr.f32.mxu0 0.0
        %1325 = vmatmul.mubr.f32.gmra.mrb[0].mxu0 %v1151
        %v1326 = vpop.f32.mrb[0].mxu0
        %v1327 = vadd.f32 0.0, %v1326
        %v1328 = vpop.f32.mrb[0].mxu0
        %1329 = vmatprep.mubr.f32.mxu0 0.0
        %1330 = vmatmul.mubr.f32.gmra.mrb[0].mxu0 %v1152
        %v1331 = vpop.f32.mrb[0].mxu0
        %v1332 = vadd.f32 0.0, %v1331
        %v1333 = vpop.f32.mrb[0].mxu0
        %1334 = vmatprep.mubr.f32.mxu0 0.0
        %1335 = vmatmul.mubr.f32.gmra.mrb[0].mxu0 %v1153
        %v1336 = vpop.f32.mrb[0].mxu0
        %v1337 = vadd.f32 0.0, %v1336
        %v1338 = vpop.f32.mrb[0].mxu0
        %1339 = vmatprep.mubr.f32.mxu0 0.0
        %1340 = vmatmul.mubr.f32.gmra.mrb[0].mxu0 %v1154
        %v1341 = vpop.f32.mrb[0].mxu0
        %v1342 = vadd.f32 0.0, %v1341
        %v1343 = vpop.f32.mrb[0].mxu0
        %1344 = vmatprep.mubr.f32.mxu0 0.0
        %1345 = vmatmul.mubr.f32.gmra.mrb[0].mxu0 %v1155
        %v1346 = vpop.f32.mrb[0].mxu0
        %v1347 = vadd.f32 0.0, %v1346
        %v1348 = vpop.f32.mrb[0].mxu0
        %1349 = vmatprep.mubr.f32.mxu0 0.0
        %1350 = vmatmul.mubr.f32.gmra.mrb[0].mxu0 %v1156
        %v1351 = vpop.f32.mrb[0].mxu0
        %v1352 = vadd.f32 0.0, %v1351
        %v1353 = vpop.f32.mrb[0].mxu0
        %1354 = vmatprep.mubr.f32.mxu0 0.0
        %1355 = vmatmul.mubr.f32.gmra.mrb[0].mxu0 %v1157
        %v1356 = vpop.f32.mrb[0].mxu0
        %v1357 = vadd.f32 0.0, %v1356
        %v1358 = vpop.f32.mrb[0].mxu0
        %1359 = vmatprep.mubr.f32.mxu0 0.0
        %1360 = vmatmul.mubr.f32.gmra.mrb[0].mxu0 %v1158
        %v1361 = vpop.f32.mrb[0].mxu0
        %v1362 = vadd.f32 0.0, %v1361
        %v1363 = vpop.f32.mrb[0].mxu0
        %1364 = vmatprep.mubr.f32.mxu0 0.0
        %1365 = vmatmul.mubr.f32.gmra.mrb[0].mxu0 %v1159
        %v1366 = vpop.f32.mrb[0].mxu0
        %v1367 = vadd.f32 0.0, %v1366
        %v1368 = vpop.f32.mrb[0].mxu0
        %1369 = vmatprep.mubr.f32.mxu0 0.0
        %1370 = vmatmul.mubr.f32.gmra.mrb[0].mxu0 %v1160
        %v1371 = vpop.f32.mrb[0].mxu0
        %v1372 = vadd.f32 0.0, %v1371
        %v1373 = vpop.f32.mrb[0].mxu0
        %1374 = vmatprep.mubr.f32.mxu0 0.0
        %1375 = vmatmul.mubr.f32.gmra.mrb[0].mxu0 %v1161
        %v1376 = vpop.f32.mrb[0].mxu0
        %v1377 = vadd.f32 0.0, %v1376
        %v1378 = vpop.f32.mrb[0].mxu0
        %1379 = vmatprep.mubr.f32.mxu0 0.0
        %1380 = vmatmul.mubr.f32.gmra.mrb[0].mxu0 %v1162
        %v1381 = vpop.f32.mrb[0].mxu0
        %v1382 = vadd.f32 0.0, %v1381
        %v1383 = vpop.f32.mrb[0].mxu0
        %1384 = vmatprep.mubr.f32.mxu0 0.0
        %1385 = vmatmul.mubr.f32.gmra.mrb[0].mxu0 %v1163
        %v1386 = vpop.f32.mrb[0].mxu0
        %v1387 = vadd.f32 0.0, %v1386
        %v1388 = vpop.f32.mrb[0].mxu0
        %1389 = vmatprep.mubr.f32.mxu0 0.0
        %1390 = vmatmul.mubr.f32.gmra.mrb[0].mxu0 %v1164
        %v1391 = vpop.f32.mrb[0].mxu0
        %v1392 = vadd.f32 0.0, %v1391
        %v1393 = vpop.f32.mrb[0].mxu0
        %1394 = vmatprep.mubr.f32.mxu0 0.0
        %1395 = vmatmul.mubr.f32.gmra.mrb[0].mxu0 %v1165
        %v1396 = vpop.f32.mrb[0].mxu0
        %v1397 = vadd.f32 0.0, %v1396
        %v1398 = vpop.f32.mrb[0].mxu0
        %1399 = vmatprep.mubr.f32.mxu0 0.0
        %1400 = vmatmul.mubr.f32.gmra.mrb[0].mxu0 %v1166
        %v1401 = vpop.f32.mrb[0].mxu0
        %v1402 = vadd.f32 0.0, %v1401
        %v1403 = vpop.f32.mrb[0].mxu0
        %1404 = vmatprep.mubr.f32.mxu0 0.0
        %1405 = vmatmul.mubr.f32.gmra.mrb[0].mxu0 %v1167
        %v1406 = vpop.f32.mrb[0].mxu0
        %v1407 = vadd.f32 0.0, %v1406
        %v1408 = vpop.f32.mrb[0].mxu0
        %1409 = vdwg.mxu0
        %v1410 = vld [vmem:[#allocation3] sm:$0xff]
        %v1411 = vld [vmem:[#allocation3 + $0x8] sm:$0xff]
        %v1412 = vld [vmem:[#allocation3 + $0x10] sm:$0xff]
        %v1413 = vld [vmem:[#allocation3 + $0x18] sm:$0xff]
        %v1414 = vld [vmem:[#allocation3 + $0x20] sm:$0xff]
        %v1415 = vld [vmem:[#allocation3 + $0x28] sm:$0xff]
        %v1416 = vld [vmem:[#allocation3 + $0x30] sm:$0xff]
        %v1417 = vld [vmem:[#allocation3 + $0x38] sm:$0xff]
        %v1418 = vld [vmem:[#allocation3 + $0x40] sm:$0xff]
        %v1419 = vld [vmem:[#allocation3 + $0x48] sm:$0xff]
        %v1420 = vld [vmem:[#allocation3 + $0x50] sm:$0xff]
        %v1421 = vld [vmem:[#allocation3 + $0x58] sm:$0xff]
        %v1422 = vld [vmem:[#allocation3 + $0x60] sm:$0xff]
        %v1423 = vld [vmem:[#allocation3 + $0x68] sm:$0xff]
        %v1424 = vld [vmem:[#allocation3 + $0x70] sm:$0xff]
        %v1425 = vld [vmem:[#allocation3 + $0x78] sm:$0xff]
        %v1426 = vld [vmem:[#allocation3 + $0x80] sm:$0xff]
        %v1427 = vld [vmem:[#allocation3 + $0x88] sm:$0xff]
        %v1428 = vld [vmem:[#allocation3 + $0x90] sm:$0xff]
        %v1429 = vld [vmem:[#allocation3 + $0x98] sm:$0xff]
        %v1430 = vld [vmem:[#allocation3 + $0xa0] sm:$0xff]
        %v1431 = vld [vmem:[#allocation3 + $0xa8] sm:$0xff]
        %v1432 = vld [vmem:[#allocation3 + $0xb0] sm:$0xff]
        %v1433 = vld [vmem:[#allocation3 + $0xb8] sm:$0xff]
        %v1434 = vld [vmem:[#allocation3 + $0xc0] sm:$0xff]
        %v1435 = vld [vmem:[#allocation3 + $0xc8] sm:$0xff]
        %v1436 = vld [vmem:[#allocation3 + $0xd0] sm:$0xff]
        %v1437 = vld [vmem:[#allocation3 + $0xd8] sm:$0xff]
        %v1438 = vld [vmem:[#allocation3 + $0xe0] sm:$0xff]
        %v1439 = vld [vmem:[#allocation3 + $0xe8] sm:$0xff]
        %v1440 = vld [vmem:[#allocation3 + $0xf0] sm:$0xff]
        %v1441 = vld [vmem:[#allocation3 + $0xf8] sm:$0xff]
        %v1442 = vadd.f32 %v1410, %v1252
        %v1443 = vadd.f32 %v1411, %v1257
        %v1444 = vadd.f32 %v1412, %v1262
        %v1445 = vadd.f32 %v1413, %v1267
        %v1446 = vadd.f32 %v1414, %v1272
        %v1447 = vadd.f32 %v1415, %v1277
        %v1448 = vadd.f32 %v1416, %v1282
        %v1449 = vadd.f32 %v1417, %v1287
        %v1450 = vadd.f32 %v1418, %v1292
        %v1451 = vadd.f32 %v1419, %v1297
        %v1452 = vadd.f32 %v1420, %v1302
        %v1453 = vadd.f32 %v1421, %v1307
        %v1454 = vadd.f32 %v1422, %v1312
        %v1455 = vadd.f32 %v1423, %v1317
        %v1456 = vadd.f32 %v1424, %v1322
        %v1457 = vadd.f32 %v1425, %v1327
        %v1458 = vadd.f32 %v1426, %v1332
        %v1459 = vadd.f32 %v1427, %v1337
        %v1460 = vadd.f32 %v1428, %v1342
        %v1461 = vadd.f32 %v1429, %v1347
        %v1462 = vadd.f32 %v1430, %v1352
        %v1463 = vadd.f32 %v1431, %v1357
        %v1464 = vadd.f32 %v1432, %v1362
        %v1465 = vadd.f32 %v1433, %v1367
        %v1466 = vadd.f32 %v1434, %v1372
        %v1467 = vadd.f32 %v1435, %v1377
        %v1468 = vadd.f32 %v1436, %v1382
        %v1469 = vadd.f32 %v1437, %v1387
        %v1470 = vadd.f32 %v1438, %v1392
        %v1471 = vadd.f32 %v1439, %v1397
        %v1472 = vadd.f32 %v1440, %v1402
        %v1473 = vadd.f32 %v1441, %v1407
        %1474 = vst [vmem:[#allocation3] sm:$0xff] %v1442
        %1475 = vst [vmem:[#allocation3 + $0x8] sm:$0xff] %v1443
        %1476 = vst [vmem:[#allocation3 + $0x10] sm:$0xff] %v1444
        %1477 = vst [vmem:[#allocation3 + $0x18] sm:$0xff] %v1445
        %1478 = vst [vmem:[#allocation3 + $0x20] sm:$0xff] %v1446
        %1479 = vst [vmem:[#allocation3 + $0x28] sm:$0xff] %v1447
        %1480 = vst [vmem:[#allocation3 + $0x30] sm:$0xff] %v1448
        %1481 = vst [vmem:[#allocation3 + $0x38] sm:$0xff] %v1449
        %1482 = vst [vmem:[#allocation3 + $0x40] sm:$0xff] %v1450
        %1483 = vst [vmem:[#allocation3 + $0x48] sm:$0xff] %v1451
        %1484 = vst [vmem:[#allocation3 + $0x50] sm:$0xff] %v1452
        %1485 = vst [vmem:[#allocation3 + $0x58] sm:$0xff] %v1453
        %1486 = vst [vmem:[#allocation3 + $0x60] sm:$0xff] %v1454
        %1487 = vst [vmem:[#allocation3 + $0x68] sm:$0xff] %v1455
        %1488 = vst [vmem:[#allocation3 + $0x70] sm:$0xff] %v1456
        %1489 = vst [vmem:[#allocation3 + $0x78] sm:$0xff] %v1457
        %1490 = vst [vmem:[#allocation3 + $0x80] sm:$0xff] %v1458
        %1491 = vst [vmem:[#allocation3 + $0x88] sm:$0xff] %v1459
        %1492 = vst [vmem:[#allocation3 + $0x90] sm:$0xff] %v1460
        %1493 = vst [vmem:[#allocation3 + $0x98] sm:$0xff] %v1461
        %1494 = vst [vmem:[#allocation3 + $0xa0] sm:$0xff] %v1462
        %1495 = vst [vmem:[#allocation3 + $0xa8] sm:$0xff] %v1463
        %1496 = vst [vmem:[#allocation3 + $0xb0] sm:$0xff] %v1464
        %1497 = vst [vmem:[#allocation3 + $0xb8] sm:$0xff] %v1465
        %1498 = vst [vmem:[#allocation3 + $0xc0] sm:$0xff] %v1466
        %1499 = vst [vmem:[#allocation3 + $0xc8] sm:$0xff] %v1467
        %1500 = vst [vmem:[#allocation3 + $0xd0] sm:$0xff] %v1468
        %1501 = vst [vmem:[#allocation3 + $0xd8] sm:$0xff] %v1469
        %1502 = vst [vmem:[#allocation3 + $0xe0] sm:$0xff] %v1470
        %1503 = vst [vmem:[#allocation3 + $0xe8] sm:$0xff] %v1471
        %1504 = vst [vmem:[#allocation3 + $0xf0] sm:$0xff] %v1472
        %1505 = vst [vmem:[#allocation3 + $0xf8] sm:$0xff] %v1473
        %v1506 = vld [vmem:[%s428] sm:$0xff]
        %v1507 = vld [vmem:[%s428 + $0x8] sm:$0xff]
        %v1508 = vld [vmem:[%s428 + $0x18] sm:$0xff]
        %v1509 = vld [vmem:[%s428 + $0x20] sm:$0xff]
        %v1510 = vld [vmem:[%s428 + $0x30] sm:$0xff]
        %v1511 = vld [vmem:[%s428 + $0x38] sm:$0xff]
        %v1512 = vld [vmem:[%s428 + $0x48] sm:$0xff]
        %v1513 = vld [vmem:[%s428 + $0x50] sm:$0xff]
        %v1514 = vld [vmem:[%s428 + $0x60] sm:$0xff]
        %v1515 = vld [vmem:[%s428 + $0x68] sm:$0xff]
        %v1516 = vld [vmem:[%s428 + $0x78] sm:$0xff]
        %v1517 = vld [vmem:[%s428 + $0x80] sm:$0xff]
        %v1518 = vld [vmem:[%s428 + $0x90] sm:$0xff]
        %v1519 = vld [vmem:[%s428 + $0x98] sm:$0xff]
        %v1520 = vld [vmem:[%s428 + $0xa8] sm:$0xff]
        %v1521 = vld [vmem:[%s428 + $0xb0] sm:$0xff]
        %v1522 = vld [vmem:[%s428 + $0xc0] sm:$0xff]
        %v1523 = vld [vmem:[%s428 + $0xc8] sm:$0xff]
        %v1524 = vld [vmem:[%s428 + $0xd8] sm:$0xff]
        %v1525 = vld [vmem:[%s428 + $0xe0] sm:$0xff]
        %v1526 = vld [vmem:[%s428 + $0xf0] sm:$0xff]
        %v1527 = vld [vmem:[%s428 + $0xf8] sm:$0xff]
        %v1528 = vld [vmem:[%s428 + $0x108] sm:$0xff]
        %v1529 = vld [vmem:[%s428 + $0x110] sm:$0xff]
        %v1530 = vld [vmem:[%s428 + $0x120] sm:$0xff]
        %v1531 = vld [vmem:[%s428 + $0x128] sm:$0xff]
        %v1532 = vld [vmem:[%s428 + $0x138] sm:$0xff]
        %v1533 = vld [vmem:[%s428 + $0x140] sm:$0xff]
        %v1534 = vld [vmem:[%s428 + $0x150] sm:$0xff]
        %v1535 = vld [vmem:[%s428 + $0x158] sm:$0xff]
        %v1536 = vld [vmem:[%s428 + $0x168] sm:$0xff]
        %v1537 = vld [vmem:[%s428 + $0x170] sm:$0xff]
        %s1538 = scalar_lea.vmem [#allocation7], 384
        %v1539 = vld [vmem:[%s1538] sm:$0xff]
        %v1540 = vld [vmem:[%s1538 + $0x8] sm:$0xff]
        %v1541 = vld [vmem:[%s1538 + $0x10] sm:$0xff]
        %v1542 = vld [vmem:[%s1538 + $0x18] sm:$0xff]
        %v1543 = vld [vmem:[%s1538 + $0x20] sm:$0xff]
        %v1544 = vld [vmem:[%s1538 + $0x28] sm:$0xff]
        %v1545 = vld [vmem:[%s1538 + $0x30] sm:$0xff]
        %v1546 = vld [vmem:[%s1538 + $0x38] sm:$0xff]
        %v1547 = vld [vmem:[%s1538 + $0x40] sm:$0xff]
        %v1548 = vld [vmem:[%s1538 + $0x48] sm:$0xff]
        %v1549 = vld [vmem:[%s1538 + $0x50] sm:$0xff]
        %v1550 = vld [vmem:[%s1538 + $0x58] sm:$0xff]
        %v1551 = vld [vmem:[%s1538 + $0x60] sm:$0xff]
        %v1552 = vld [vmem:[%s1538 + $0x68] sm:$0xff]
        %v1553 = vld [vmem:[%s1538 + $0x70] sm:$0xff]
        %v1554 = vld [vmem:[%s1538 + $0x78] sm:$0xff]
        %1555 = vmatprep.subr.mxu0 0.0
        %1556 = vmatpush1.msra.mxu0 %v1539
        %1557 = vmatprep.subr.mxu0 0.0
        %1558 = vmatpush1.msra.mxu0 %v1540
        %1559 = vmatprep.subr.mxu0 0.0
        %1560 = vmatpush1.msra.mxu0 %v1541
        %1561 = vmatprep.subr.mxu0 0.0
        %1562 = vmatpush1.msra.mxu0 %v1542
        %1563 = vmatprep.subr.mxu0 0.0
        %1564 = vmatpush1.msra.mxu0 %v1543
        %1565 = vmatprep.subr.mxu0 0.0
        %1566 = vmatpush1.msra.mxu0 %v1544
        %1567 = vmatprep.subr.mxu0 0.0
        %1568 = vmatpush1.msra.mxu0 %v1545
        %1569 = vmatprep.subr.mxu0 0.0
        %1570 = vmatpush1.msra.mxu0 %v1546
        %1571 = vmatprep.subr.mxu0 0.0
        %1572 = vmatpush1.msra.mxu0 %v1547
        %1573 = vmatprep.subr.mxu0 0.0
        %1574 = vmatpush1.msra.mxu0 %v1548
        %1575 = vmatprep.subr.mxu0 0.0
        %1576 = vmatpush1.msra.mxu0 %v1549
        %1577 = vmatprep.subr.mxu0 0.0
        %1578 = vmatpush1.msra.mxu0 %v1550
        %1579 = vmatprep.subr.mxu0 0.0
        %1580 = vmatpush1.msra.mxu0 %v1551
        %1581 = vmatprep.subr.mxu0 0.0
        %1582 = vmatpush1.msra.mxu0 %v1552
        %1583 = vmatprep.subr.mxu0 0.0
        %1584 = vmatpush1.msra.mxu0 %v1553
        %1585 = vmatprep.subr.mxu0 0.0
        %1586 = vmatpush1.msra.mxu0 %v1554
        %1587 = vmatprep.subr.mxu0 0.0
        %1588 = vmatpush1.msra.mxu0 0.0
        %1589 = vmatprep.subr.mxu0 0.0
        %1590 = vmatpush1.msra.mxu0 0.0
        %1591 = vmatprep.subr.mxu0 0.0
        %1592 = vmatpush1.msra.mxu0 0.0
        %1593 = vmatprep.subr.mxu0 0.0
        %1594 = vmatpush1.msra.mxu0 0.0
        %1595 = vmatprep.subr.mxu0 0.0
        %1596 = vmatpush1.msra.mxu0 0.0
        %1597 = vmatprep.subr.mxu0 0.0
        %1598 = vmatpush1.msra.mxu0 0.0
        %1599 = vmatprep.subr.mxu0 0.0
        %1600 = vmatpush1.msra.mxu0 0.0
        %1601 = vmatprep.subr.mxu0 0.0
        %1602 = vmatpush1.msra.mxu0 0.0
        %1603 = vmatprep.subr.mxu0 0.0
        %1604 = vmatpush1.msra.mxu0 0.0
        %1605 = vmatprep.subr.mxu0 0.0
        %1606 = vmatpush1.msra.mxu0 0.0
        %1607 = vmatprep.subr.mxu0 0.0
        %1608 = vmatpush1.msra.mxu0 0.0
        %1609 = vmatprep.subr.mxu0 0.0
        %1610 = vmatpush1.msra.mxu0 0.0
        %1611 = vmatprep.subr.mxu0 0.0
        %1612 = vmatpush1.msra.mxu0 0.0
        %1613 = vmatprep.subr.mxu0 0.0
        %1614 = vmatpush1.msra.mxu0 0.0
        %1615 = vmatprep.subr.mxu0 0.0
        %1616 = vmatpush1.msra.mxu0 0.0
        %1617 = vmatprep.subr.mxu0 0.0
        %1618 = vmatpush1.msra.mxu0 0.0
        %1619 = vmatprep.mubr.f32.mxu0 0.0
        %1620 = vmatmul.mubr.f32.gmra.mrb[0].mxu0 %v1506
        %v1621 = vpop.f32.mrb[0].mxu0
        %v1622 = vadd.f32 0.0, %v1621
        %v1623 = vpop.f32.mrb[0].mxu0
        %1624 = vmatprep.mubr.f32.mxu0 0.0
        %1625 = vmatmul.mubr.f32.gmra.mrb[0].mxu0 %v1507
        %v1626 = vpop.f32.mrb[0].mxu0
        %v1627 = vadd.f32 0.0, %v1626
        %v1628 = vpop.f32.mrb[0].mxu0
        %1629 = vmatprep.mubr.f32.mxu0 0.0
        %1630 = vmatmul.mubr.f32.gmra.mrb[0].mxu0 %v1508
        %v1631 = vpop.f32.mrb[0].mxu0
        %v1632 = vadd.f32 0.0, %v1631
        %v1633 = vpop.f32.mrb[0].mxu0
        %1634 = vmatprep.mubr.f32.mxu0 0.0
        %1635 = vmatmul.mubr.f32.gmra.mrb[0].mxu0 %v1509
        %v1636 = vpop.f32.mrb[0].mxu0
        %v1637 = vadd.f32 0.0, %v1636
        %v1638 = vpop.f32.mrb[0].mxu0
        %1639 = vmatprep.mubr.f32.mxu0 0.0
        %1640 = vmatmul.mubr.f32.gmra.mrb[0].mxu0 %v1510
        %v1641 = vpop.f32.mrb[0].mxu0
        %v1642 = vadd.f32 0.0, %v1641
        %v1643 = vpop.f32.mrb[0].mxu0
        %1644 = vmatprep.mubr.f32.mxu0 0.0
        %1645 = vmatmul.mubr.f32.gmra.mrb[0].mxu0 %v1511
        %v1646 = vpop.f32.mrb[0].mxu0
        %v1647 = vadd.f32 0.0, %v1646
        %v1648 = vpop.f32.mrb[0].mxu0
        %1649 = vmatprep.mubr.f32.mxu0 0.0
        %1650 = vmatmul.mubr.f32.gmra.mrb[0].mxu0 %v1512
        %v1651 = vpop.f32.mrb[0].mxu0
        %v1652 = vadd.f32 0.0, %v1651
        %v1653 = vpop.f32.mrb[0].mxu0
        %1654 = vmatprep.mubr.f32.mxu0 0.0
        %1655 = vmatmul.mubr.f32.gmra.mrb[0].mxu0 %v1513
        %v1656 = vpop.f32.mrb[0].mxu0
        %v1657 = vadd.f32 0.0, %v1656
        %v1658 = vpop.f32.mrb[0].mxu0
        %1659 = vmatprep.mubr.f32.mxu0 0.0
        %1660 = vmatmul.mubr.f32.gmra.mrb[0].mxu0 %v1514
        %v1661 = vpop.f32.mrb[0].mxu0
        %v1662 = vadd.f32 0.0, %v1661
        %v1663 = vpop.f32.mrb[0].mxu0
        %1664 = vmatprep.mubr.f32.mxu0 0.0
        %1665 = vmatmul.mubr.f32.gmra.mrb[0].mxu0 %v1515
        %v1666 = vpop.f32.mrb[0].mxu0
        %v1667 = vadd.f32 0.0, %v1666
        %v1668 = vpop.f32.mrb[0].mxu0
        %1669 = vmatprep.mubr.f32.mxu0 0.0
        %1670 = vmatmul.mubr.f32.gmra.mrb[0].mxu0 %v1516
        %v1671 = vpop.f32.mrb[0].mxu0
        %v1672 = vadd.f32 0.0, %v1671
        %v1673 = vpop.f32.mrb[0].mxu0
        %1674 = vmatprep.mubr.f32.mxu0 0.0
        %1675 = vmatmul.mubr.f32.gmra.mrb[0].mxu0 %v1517
        %v1676 = vpop.f32.mrb[0].mxu0
        %v1677 = vadd.f32 0.0, %v1676
        %v1678 = vpop.f32.mrb[0].mxu0
        %1679 = vmatprep.mubr.f32.mxu0 0.0
        %1680 = vmatmul.mubr.f32.gmra.mrb[0].mxu0 %v1518
        %v1681 = vpop.f32.mrb[0].mxu0
        %v1682 = vadd.f32 0.0, %v1681
        %v1683 = vpop.f32.mrb[0].mxu0
        %1684 = vmatprep.mubr.f32.mxu0 0.0
        %1685 = vmatmul.mubr.f32.gmra.mrb[0].mxu0 %v1519
        %v1686 = vpop.f32.mrb[0].mxu0
        %v1687 = vadd.f32 0.0, %v1686
        %v1688 = vpop.f32.mrb[0].mxu0
        %1689 = vmatprep.mubr.f32.mxu0 0.0
        %1690 = vmatmul.mubr.f32.gmra.mrb[0].mxu0 %v1520
        %v1691 = vpop.f32.mrb[0].mxu0
        %v1692 = vadd.f32 0.0, %v1691
        %v1693 = vpop.f32.mrb[0].mxu0
        %1694 = vmatprep.mubr.f32.mxu0 0.0
        %1695 = vmatmul.mubr.f32.gmra.mrb[0].mxu0 %v1521
        %v1696 = vpop.f32.mrb[0].mxu0
        %v1697 = vadd.f32 0.0, %v1696
        %v1698 = vpop.f32.mrb[0].mxu0
        %1699 = vmatprep.mubr.f32.mxu0 0.0
        %1700 = vmatmul.mubr.f32.gmra.mrb[0].mxu0 %v1522
        %v1701 = vpop.f32.mrb[0].mxu0
        %v1702 = vadd.f32 0.0, %v1701
        %v1703 = vpop.f32.mrb[0].mxu0
        %1704 = vmatprep.mubr.f32.mxu0 0.0
        %1705 = vmatmul.mubr.f32.gmra.mrb[0].mxu0 %v1523
        %v1706 = vpop.f32.mrb[0].mxu0
        %v1707 = vadd.f32 0.0, %v1706
        %v1708 = vpop.f32.mrb[0].mxu0
        %1709 = vmatprep.mubr.f32.mxu0 0.0
        %1710 = vmatmul.mubr.f32.gmra.mrb[0].mxu0 %v1524
        %v1711 = vpop.f32.mrb[0].mxu0
        %v1712 = vadd.f32 0.0, %v1711
        %v1713 = vpop.f32.mrb[0].mxu0
        %1714 = vmatprep.mubr.f32.mxu0 0.0
        %1715 = vmatmul.mubr.f32.gmra.mrb[0].mxu0 %v1525
        %v1716 = vpop.f32.mrb[0].mxu0
        %v1717 = vadd.f32 0.0, %v1716
        %v1718 = vpop.f32.mrb[0].mxu0
        %1719 = vmatprep.mubr.f32.mxu0 0.0
        %1720 = vmatmul.mubr.f32.gmra.mrb[0].mxu0 %v1526
        %v1721 = vpop.f32.mrb[0].mxu0
        %v1722 = vadd.f32 0.0, %v1721
        %v1723 = vpop.f32.mrb[0].mxu0
        %1724 = vmatprep.mubr.f32.mxu0 0.0
        %1725 = vmatmul.mubr.f32.gmra.mrb[0].mxu0 %v1527
        %v1726 = vpop.f32.mrb[0].mxu0
        %v1727 = vadd.f32 0.0, %v1726
        %v1728 = vpop.f32.mrb[0].mxu0
        %1729 = vmatprep.mubr.f32.mxu0 0.0
        %1730 = vmatmul.mubr.f32.gmra.mrb[0].mxu0 %v1528
        %v1731 = vpop.f32.mrb[0].mxu0
        %v1732 = vadd.f32 0.0, %v1731
        %v1733 = vpop.f32.mrb[0].mxu0
        %1734 = vmatprep.mubr.f32.mxu0 0.0
        %1735 = vmatmul.mubr.f32.gmra.mrb[0].mxu0 %v1529
        %v1736 = vpop.f32.mrb[0].mxu0
        %v1737 = vadd.f32 0.0, %v1736
        %v1738 = vpop.f32.mrb[0].mxu0
        %1739 = vmatprep.mubr.f32.mxu0 0.0
        %1740 = vmatmul.mubr.f32.gmra.mrb[0].mxu0 %v1530
        %v1741 = vpop.f32.mrb[0].mxu0
        %v1742 = vadd.f32 0.0, %v1741
        %v1743 = vpop.f32.mrb[0].mxu0
        %1744 = vmatprep.mubr.f32.mxu0 0.0
        %1745 = vmatmul.mubr.f32.gmra.mrb[0].mxu0 %v1531
        %v1746 = vpop.f32.mrb[0].mxu0
        %v1747 = vadd.f32 0.0, %v1746
        %v1748 = vpop.f32.mrb[0].mxu0
        %1749 = vmatprep.mubr.f32.mxu0 0.0
        %1750 = vmatmul.mubr.f32.gmra.mrb[0].mxu0 %v1532
        %v1751 = vpop.f32.mrb[0].mxu0
        %v1752 = vadd.f32 0.0, %v1751
        %v1753 = vpop.f32.mrb[0].mxu0
        %1754 = vmatprep.mubr.f32.mxu0 0.0
        %1755 = vmatmul.mubr.f32.gmra.mrb[0].mxu0 %v1533
        %v1756 = vpop.f32.mrb[0].mxu0
        %v1757 = vadd.f32 0.0, %v1756
        %v1758 = vpop.f32.mrb[0].mxu0
        %1759 = vmatprep.mubr.f32.mxu0 0.0
        %1760 = vmatmul.mubr.f32.gmra.mrb[0].mxu0 %v1534
        %v1761 = vpop.f32.mrb[0].mxu0
        %v1762 = vadd.f32 0.0, %v1761
        %v1763 = vpop.f32.mrb[0].mxu0
        %1764 = vmatprep.mubr.f32.mxu0 0.0
        %1765 = vmatmul.mubr.f32.gmra.mrb[0].mxu0 %v1535
        %v1766 = vpop.f32.mrb[0].mxu0
        %v1767 = vadd.f32 0.0, %v1766
        %v1768 = vpop.f32.mrb[0].mxu0
        %1769 = vmatprep.mubr.f32.mxu0 0.0
        %1770 = vmatmul.mubr.f32.gmra.mrb[0].mxu0 %v1536
        %v1771 = vpop.f32.mrb[0].mxu0
        %v1772 = vadd.f32 0.0, %v1771
        %v1773 = vpop.f32.mrb[0].mxu0
        %1774 = vmatprep.mubr.f32.mxu0 0.0
        %1775 = vmatmul.mubr.f32.gmra.mrb[0].mxu0 %v1537
        %v1776 = vpop.f32.mrb[0].mxu0
        %v1777 = vadd.f32 0.0, %v1776
        %v1778 = vpop.f32.mrb[0].mxu0
        %1779 = vdwg.mxu0
        %v1780 = vld [vmem:[#allocation3] sm:$0xff]
        %v1781 = vld [vmem:[#allocation3 + $0x8] sm:$0xff]
        %v1782 = vld [vmem:[#allocation3 + $0x10] sm:$0xff]
        %v1783 = vld [vmem:[#allocation3 + $0x18] sm:$0xff]
        %v1784 = vld [vmem:[#allocation3 + $0x20] sm:$0xff]
        %v1785 = vld [vmem:[#allocation3 + $0x28] sm:$0xff]
        %v1786 = vld [vmem:[#allocation3 + $0x30] sm:$0xff]
        %v1787 = vld [vmem:[#allocation3 + $0x38] sm:$0xff]
        %v1788 = vld [vmem:[#allocation3 + $0x40] sm:$0xff]
        %v1789 = vld [vmem:[#allocation3 + $0x48] sm:$0xff]
        %v1790 = vld [vmem:[#allocation3 + $0x50] sm:$0xff]
        %v1791 = vld [vmem:[#allocation3 + $0x58] sm:$0xff]
        %v1792 = vld [vmem:[#allocation3 + $0x60] sm:$0xff]
        %v1793 = vld [vmem:[#allocation3 + $0x68] sm:$0xff]
        %v1794 = vld [vmem:[#allocation3 + $0x70] sm:$0xff]
        %v1795 = vld [vmem:[#allocation3 + $0x78] sm:$0xff]
        %v1796 = vld [vmem:[#allocation3 + $0x80] sm:$0xff]
        %v1797 = vld [vmem:[#allocation3 + $0x88] sm:$0xff]
        %v1798 = vld [vmem:[#allocation3 + $0x90] sm:$0xff]
        %v1799 = vld [vmem:[#allocation3 + $0x98] sm:$0xff]
        %v1800 = vld [vmem:[#allocation3 + $0xa0] sm:$0xff]
        %v1801 = vld [vmem:[#allocation3 + $0xa8] sm:$0xff]
        %v1802 = vld [vmem:[#allocation3 + $0xb0] sm:$0xff]
        %v1803 = vld [vmem:[#allocation3 + $0xb8] sm:$0xff]
        %v1804 = vld [vmem:[#allocation3 + $0xc0] sm:$0xff]
        %v1805 = vld [vmem:[#allocation3 + $0xc8] sm:$0xff]
        %v1806 = vld [vmem:[#allocation3 + $0xd0] sm:$0xff]
        %v1807 = vld [vmem:[#allocation3 + $0xd8] sm:$0xff]
        %v1808 = vld [vmem:[#allocation3 + $0xe0] sm:$0xff]
        %v1809 = vld [vmem:[#allocation3 + $0xe8] sm:$0xff]
        %v1810 = vld [vmem:[#allocation3 + $0xf0] sm:$0xff]
        %v1811 = vld [vmem:[#allocation3 + $0xf8] sm:$0xff]
        %v1812 = vadd.f32 %v1780, %v1622
        %v1813 = vadd.f32 %v1781, %v1627
        %v1814 = vadd.f32 %v1782, %v1632
        %v1815 = vadd.f32 %v1783, %v1637
        %v1816 = vadd.f32 %v1784, %v1642
        %v1817 = vadd.f32 %v1785, %v1647
        %v1818 = vadd.f32 %v1786, %v1652
        %v1819 = vadd.f32 %v1787, %v1657
        %v1820 = vadd.f32 %v1788, %v1662
        %v1821 = vadd.f32 %v1789, %v1667
        %v1822 = vadd.f32 %v1790, %v1672
        %v1823 = vadd.f32 %v1791, %v1677
        %v1824 = vadd.f32 %v1792, %v1682
        %v1825 = vadd.f32 %v1793, %v1687
        %v1826 = vadd.f32 %v1794, %v1692
        %v1827 = vadd.f32 %v1795, %v1697
        %v1828 = vadd.f32 %v1796, %v1702
        %v1829 = vadd.f32 %v1797, %v1707
        %v1830 = vadd.f32 %v1798, %v1712
        %v1831 = vadd.f32 %v1799, %v1717
        %v1832 = vadd.f32 %v1800, %v1722
        %v1833 = vadd.f32 %v1801, %v1727
        %v1834 = vadd.f32 %v1802, %v1732
        %v1835 = vadd.f32 %v1803, %v1737
        %v1836 = vadd.f32 %v1804, %v1742
        %v1837 = vadd.f32 %v1805, %v1747
        %v1838 = vadd.f32 %v1806, %v1752
        %v1839 = vadd.f32 %v1807, %v1757
        %v1840 = vadd.f32 %v1808, %v1762
        %v1841 = vadd.f32 %v1809, %v1767
        %v1842 = vadd.f32 %v1810, %v1772
        %v1843 = vadd.f32 %v1811, %v1777
        %1844 = vst [vmem:[#allocation3] sm:$0xff] %v1812
        %1845 = vst [vmem:[#allocation3 + $0x8] sm:$0xff] %v1813
        %1846 = vst [vmem:[#allocation3 + $0x10] sm:$0xff] %v1814
        %1847 = vst [vmem:[#allocation3 + $0x18] sm:$0xff] %v1815
        %1848 = vst [vmem:[#allocation3 + $0x20] sm:$0xff] %v1816
        %1849 = vst [vmem:[#allocation3 + $0x28] sm:$0xff] %v1817
        %1850 = vst [vmem:[#allocation3 + $0x30] sm:$0xff] %v1818
        %1851 = vst [vmem:[#allocation3 + $0x38] sm:$0xff] %v1819
        %1852 = vst [vmem:[#allocation3 + $0x40] sm:$0xff] %v1820
        %1853 = vst [vmem:[#allocation3 + $0x48] sm:$0xff] %v1821
        %1854 = vst [vmem:[#allocation3 + $0x50] sm:$0xff] %v1822
        %1855 = vst [vmem:[#allocation3 + $0x58] sm:$0xff] %v1823
        %1856 = vst [vmem:[#allocation3 + $0x60] sm:$0xff] %v1824
        %1857 = vst [vmem:[#allocation3 + $0x68] sm:$0xff] %v1825
        %1858 = vst [vmem:[#allocation3 + $0x70] sm:$0xff] %v1826
        %1859 = vst [vmem:[#allocation3 + $0x78] sm:$0xff] %v1827
        %1860 = vst [vmem:[#allocation3 + $0x80] sm:$0xff] %v1828
        %1861 = vst [vmem:[#allocation3 + $0x88] sm:$0xff] %v1829
        %1862 = vst [vmem:[#allocation3 + $0x90] sm:$0xff] %v1830
        %1863 = vst [vmem:[#allocation3 + $0x98] sm:$0xff] %v1831
        %1864 = vst [vmem:[#allocation3 + $0xa0] sm:$0xff] %v1832
        %1865 = vst [vmem:[#allocation3 + $0xa8] sm:$0xff] %v1833
        %1866 = vst [vmem:[#allocation3 + $0xb0] sm:$0xff] %v1834
        %1867 = vst [vmem:[#allocation3 + $0xb8] sm:$0xff] %v1835
        %1868 = vst [vmem:[#allocation3 + $0xc0] sm:$0xff] %v1836
        %1869 = vst [vmem:[#allocation3 + $0xc8] sm:$0xff] %v1837
        %1870 = vst [vmem:[#allocation3 + $0xd0] sm:$0xff] %v1838
        %1871 = vst [vmem:[#allocation3 + $0xd8] sm:$0xff] %v1839
        %1872 = vst [vmem:[#allocation3 + $0xe0] sm:$0xff] %v1840
        %1873 = vst [vmem:[#allocation3 + $0xe8] sm:$0xff] %v1841
        %1874 = vst [vmem:[#allocation3 + $0xf0] sm:$0xff] %v1842
        %1875 = vst [vmem:[#allocation3 + $0xf8] sm:$0xff] %v1843
        %v1876 = vld [vmem:[%s428 + $0x1] sm:$0xff]
        %v1877 = vld [vmem:[%s428 + $0x9] sm:$0xff]
        %v1878 = vld [vmem:[%s428 + $0x19] sm:$0xff]
        %v1879 = vld [vmem:[%s428 + $0x21] sm:$0xff]
        %v1880 = vld [vmem:[%s428 + $0x31] sm:$0xff]
        %v1881 = vld [vmem:[%s428 + $0x39] sm:$0xff]
        %v1882 = vld [vmem:[%s428 + $0x49] sm:$0xff]
        %v1883 = vld [vmem:[%s428 + $0x51] sm:$0xff]
        %v1884 = vld [vmem:[%s428 + $0x61] sm:$0xff]
        %v1885 = vld [vmem:[%s428 + $0x69] sm:$0xff]
        %v1886 = vld [vmem:[%s428 + $0x79] sm:$0xff]
        %v1887 = vld [vmem:[%s428 + $0x81] sm:$0xff]
        %v1888 = vld [vmem:[%s428 + $0x91] sm:$0xff]
        %v1889 = vld [vmem:[%s428 + $0x99] sm:$0xff]
        %v1890 = vld [vmem:[%s428 + $0xa9] sm:$0xff]
        %v1891 = vld [vmem:[%s428 + $0xb1] sm:$0xff]
        %v1892 = vld [vmem:[%s428 + $0xc1] sm:$0xff]
        %v1893 = vld [vmem:[%s428 + $0xc9] sm:$0xff]
        %v1894 = vld [vmem:[%s428 + $0xd9] sm:$0xff]
        %v1895 = vld [vmem:[%s428 + $0xe1] sm:$0xff]
        %v1896 = vld [vmem:[%s428 + $0xf1] sm:$0xff]
        %v1897 = vld [vmem:[%s428 + $0xf9] sm:$0xff]
        %v1898 = vld [vmem:[%s428 + $0x109] sm:$0xff]
        %v1899 = vld [vmem:[%s428 + $0x111] sm:$0xff]
        %v1900 = vld [vmem:[%s428 + $0x121] sm:$0xff]
        %v1901 = vld [vmem:[%s428 + $0x129] sm:$0xff]
        %v1902 = vld [vmem:[%s428 + $0x139] sm:$0xff]
        %v1903 = vld [vmem:[%s428 + $0x141] sm:$0xff]
        %v1904 = vld [vmem:[%s428 + $0x151] sm:$0xff]
        %v1905 = vld [vmem:[%s428 + $0x159] sm:$0xff]
        %v1906 = vld [vmem:[%s428 + $0x169] sm:$0xff]
        %v1907 = vld [vmem:[%s428 + $0x171] sm:$0xff]
        %s1908 = scalar_lea.vmem [#allocation7], 512
        %v1909 = vld [vmem:[%s1908] sm:$0xff]
        %v1910 = vld [vmem:[%s1908 + $0x8] sm:$0xff]
        %v1911 = vld [vmem:[%s1908 + $0x10] sm:$0xff]
        %v1912 = vld [vmem:[%s1908 + $0x18] sm:$0xff]
        %v1913 = vld [vmem:[%s1908 + $0x20] sm:$0xff]
        %v1914 = vld [vmem:[%s1908 + $0x28] sm:$0xff]
        %v1915 = vld [vmem:[%s1908 + $0x30] sm:$0xff]
        %v1916 = vld [vmem:[%s1908 + $0x38] sm:$0xff]
        %v1917 = vld [vmem:[%s1908 + $0x40] sm:$0xff]
        %v1918 = vld [vmem:[%s1908 + $0x48] sm:$0xff]
        %v1919 = vld [vmem:[%s1908 + $0x50] sm:$0xff]
        %v1920 = vld [vmem:[%s1908 + $0x58] sm:$0xff]
        %v1921 = vld [vmem:[%s1908 + $0x60] sm:$0xff]
        %v1922 = vld [vmem:[%s1908 + $0x68] sm:$0xff]
        %v1923 = vld [vmem:[%s1908 + $0x70] sm:$0xff]
        %v1924 = vld [vmem:[%s1908 + $0x78] sm:$0xff]
        %1925 = vmatprep.subr.mxu0 0.0
        %1926 = vmatpush1.msra.mxu0 %v1909
        %1927 = vmatprep.subr.mxu0 0.0
        %1928 = vmatpush1.msra.mxu0 %v1910
        %1929 = vmatprep.subr.mxu0 0.0
        %1930 = vmatpush1.msra.mxu0 %v1911
        %1931 = vmatprep.subr.mxu0 0.0
        %1932 = vmatpush1.msra.mxu0 %v1912
        %1933 = vmatprep.subr.mxu0 0.0
        %1934 = vmatpush1.msra.mxu0 %v1913
        %1935 = vmatprep.subr.mxu0 0.0
        %1936 = vmatpush1.msra.mxu0 %v1914
        %1937 = vmatprep.subr.mxu0 0.0
        %1938 = vmatpush1.msra.mxu0 %v1915
        %1939 = vmatprep.subr.mxu0 0.0
        %1940 = vmatpush1.msra.mxu0 %v1916
        %1941 = vmatprep.subr.mxu0 0.0
        %1942 = vmatpush1.msra.mxu0 %v1917
        %1943 = vmatprep.subr.mxu0 0.0
        %1944 = vmatpush1.msra.mxu0 %v1918
        %1945 = vmatprep.subr.mxu0 0.0
        %1946 = vmatpush1.msra.mxu0 %v1919
        %1947 = vmatprep.subr.mxu0 0.0
        %1948 = vmatpush1.msra.mxu0 %v1920
        %1949 = vmatprep.subr.mxu0 0.0
        %1950 = vmatpush1.msra.mxu0 %v1921
        %1951 = vmatprep.subr.mxu0 0.0
        %1952 = vmatpush1.msra.mxu0 %v1922
        %1953 = vmatprep.subr.mxu0 0.0
        %1954 = vmatpush1.msra.mxu0 %v1923
        %1955 = vmatprep.subr.mxu0 0.0
        %1956 = vmatpush1.msra.mxu0 %v1924
        %1957 = vmatprep.subr.mxu0 0.0
        %1958 = vmatpush1.msra.mxu0 0.0
        %1959 = vmatprep.subr.mxu0 0.0
        %1960 = vmatpush1.msra.mxu0 0.0
        %1961 = vmatprep.subr.mxu0 0.0
        %1962 = vmatpush1.msra.mxu0 0.0
        %1963 = vmatprep.subr.mxu0 0.0
        %1964 = vmatpush1.msra.mxu0 0.0
        %1965 = vmatprep.subr.mxu0 0.0
        %1966 = vmatpush1.msra.mxu0 0.0
        %1967 = vmatprep.subr.mxu0 0.0
        %1968 = vmatpush1.msra.mxu0 0.0
        %1969 = vmatprep.subr.mxu0 0.0
        %1970 = vmatpush1.msra.mxu0 0.0
        %1971 = vmatprep.subr.mxu0 0.0
        %1972 = vmatpush1.msra.mxu0 0.0
        %1973 = vmatprep.subr.mxu0 0.0
        %1974 = vmatpush1.msra.mxu0 0.0
        %1975 = vmatprep.subr.mxu0 0.0
        %1976 = vmatpush1.msra.mxu0 0.0
        %1977 = vmatprep.subr.mxu0 0.0
        %1978 = vmatpush1.msra.mxu0 0.0
        %1979 = vmatprep.subr.mxu0 0.0
        %1980 = vmatpush1.msra.mxu0 0.0
        %1981 = vmatprep.subr.mxu0 0.0
        %1982 = vmatpush1.msra.mxu0 0.0
        %1983 = vmatprep.subr.mxu0 0.0
        %1984 = vmatpush1.msra.mxu0 0.0
        %1985 = vmatprep.subr.mxu0 0.0
        %1986 = vmatpush1.msra.mxu0 0.0
        %1987 = vmatprep.subr.mxu0 0.0
        %1988 = vmatpush1.msra.mxu0 0.0
        %1989 = vmatprep.mubr.f32.mxu0 0.0
        %1990 = vmatmul.mubr.f32.gmra.mrb[0].mxu0 %v1876
        %v1991 = vpop.f32.mrb[0].mxu0
        %v1992 = vadd.f32 0.0, %v1991
        %v1993 = vpop.f32.mrb[0].mxu0
        %1994 = vmatprep.mubr.f32.mxu0 0.0
        %1995 = vmatmul.mubr.f32.gmra.mrb[0].mxu0 %v1877
        %v1996 = vpop.f32.mrb[0].mxu0
        %v1997 = vadd.f32 0.0, %v1996
        %v1998 = vpop.f32.mrb[0].mxu0
        %1999 = vmatprep.mubr.f32.mxu0 0.0
        %2000 = vmatmul.mubr.f32.gmra.mrb[0].mxu0 %v1878
        %v2001 = vpop.f32.mrb[0].mxu0
        %v2002 = vadd.f32 0.0, %v2001
        %v2003 = vpop.f32.mrb[0].mxu0
        %2004 = vmatprep.mubr.f32.mxu0 0.0
        %2005 = vmatmul.mubr.f32.gmra.mrb[0].mxu0 %v1879
        %v2006 = vpop.f32.mrb[0].mxu0
        %v2007 = vadd.f32 0.0, %v2006
        %v2008 = vpop.f32.mrb[0].mxu0
        %2009 = vmatprep.mubr.f32.mxu0 0.0
        %2010 = vmatmul.mubr.f32.gmra.mrb[0].mxu0 %v1880
        %v2011 = vpop.f32.mrb[0].mxu0
        %v2012 = vadd.f32 0.0, %v2011
        %v2013 = vpop.f32.mrb[0].mxu0
        %2014 = vmatprep.mubr.f32.mxu0 0.0
        %2015 = vmatmul.mubr.f32.gmra.mrb[0].mxu0 %v1881
        %v2016 = vpop.f32.mrb[0].mxu0
        %v2017 = vadd.f32 0.0, %v2016
        %v2018 = vpop.f32.mrb[0].mxu0
        %2019 = vmatprep.mubr.f32.mxu0 0.0
        %2020 = vmatmul.mubr.f32.gmra.mrb[0].mxu0 %v1882
        %v2021 = vpop.f32.mrb[0].mxu0
        %v2022 = vadd.f32 0.0, %v2021
        %v2023 = vpop.f32.mrb[0].mxu0
        %2024 = vmatprep.mubr.f32.mxu0 0.0
        %2025 = vmatmul.mubr.f32.gmra.mrb[0].mxu0 %v1883
        %v2026 = vpop.f32.mrb[0].mxu0
        %v2027 = vadd.f32 0.0, %v2026
        %v2028 = vpop.f32.mrb[0].mxu0
        %2029 = vmatprep.mubr.f32.mxu0 0.0
        %2030 = vmatmul.mubr.f32.gmra.mrb[0].mxu0 %v1884
        %v2031 = vpop.f32.mrb[0].mxu0
        %v2032 = vadd.f32 0.0, %v2031
        %v2033 = vpop.f32.mrb[0].mxu0
        %2034 = vmatprep.mubr.f32.mxu0 0.0
        %2035 = vmatmul.mubr.f32.gmra.mrb[0].mxu0 %v1885
        %v2036 = vpop.f32.mrb[0].mxu0
        %v2037 = vadd.f32 0.0, %v2036
        %v2038 = vpop.f32.mrb[0].mxu0
        %2039 = vmatprep.mubr.f32.mxu0 0.0
        %2040 = vmatmul.mubr.f32.gmra.mrb[0].mxu0 %v1886
        %v2041 = vpop.f32.mrb[0].mxu0
        %v2042 = vadd.f32 0.0, %v2041
        %v2043 = vpop.f32.mrb[0].mxu0
        %2044 = vmatprep.mubr.f32.mxu0 0.0
        %2045 = vmatmul.mubr.f32.gmra.mrb[0].mxu0 %v1887
        %v2046 = vpop.f32.mrb[0].mxu0
        %v2047 = vadd.f32 0.0, %v2046
        %v2048 = vpop.f32.mrb[0].mxu0
        %2049 = vmatprep.mubr.f32.mxu0 0.0
        %2050 = vmatmul.mubr.f32.gmra.mrb[0].mxu0 %v1888
        %v2051 = vpop.f32.mrb[0].mxu0
        %v2052 = vadd.f32 0.0, %v2051
        %v2053 = vpop.f32.mrb[0].mxu0
        %2054 = vmatprep.mubr.f32.mxu0 0.0
        %2055 = vmatmul.mubr.f32.gmra.mrb[0].mxu0 %v1889
        %v2056 = vpop.f32.mrb[0].mxu0
        %v2057 = vadd.f32 0.0, %v2056
        %v2058 = vpop.f32.mrb[0].mxu0
        %2059 = vmatprep.mubr.f32.mxu0 0.0
        %2060 = vmatmul.mubr.f32.gmra.mrb[0].mxu0 %v1890
        %v2061 = vpop.f32.mrb[0].mxu0
        %v2062 = vadd.f32 0.0, %v2061
        %v2063 = vpop.f32.mrb[0].mxu0
        %2064 = vmatprep.mubr.f32.mxu0 0.0
        %2065 = vmatmul.mubr.f32.gmra.mrb[0].mxu0 %v1891
        %v2066 = vpop.f32.mrb[0].mxu0
        %v2067 = vadd.f32 0.0, %v2066
        %v2068 = vpop.f32.mrb[0].mxu0
        %2069 = vmatprep.mubr.f32.mxu0 0.0
        %2070 = vmatmul.mubr.f32.gmra.mrb[0].mxu0 %v1892
        %v2071 = vpop.f32.mrb[0].mxu0
        %v2072 = vadd.f32 0.0, %v2071
        %v2073 = vpop.f32.mrb[0].mxu0
        %2074 = vmatprep.mubr.f32.mxu0 0.0
        %2075 = vmatmul.mubr.f32.gmra.mrb[0].mxu0 %v1893
        %v2076 = vpop.f32.mrb[0].mxu0
        %v2077 = vadd.f32 0.0, %v2076
        %v2078 = vpop.f32.mrb[0].mxu0
        %2079 = vmatprep.mubr.f32.mxu0 0.0
        %2080 = vmatmul.mubr.f32.gmra.mrb[0].mxu0 %v1894
        %v2081 = vpop.f32.mrb[0].mxu0
        %v2082 = vadd.f32 0.0, %v2081
        %v2083 = vpop.f32.mrb[0].mxu0
        %2084 = vmatprep.mubr.f32.mxu0 0.0
        %2085 = vmatmul.mubr.f32.gmra.mrb[0].mxu0 %v1895
        %v2086 = vpop.f32.mrb[0].mxu0
        %v2087 = vadd.f32 0.0, %v2086
        %v2088 = vpop.f32.mrb[0].mxu0
        %2089 = vmatprep.mubr.f32.mxu0 0.0
        %2090 = vmatmul.mubr.f32.gmra.mrb[0].mxu0 %v1896
        %v2091 = vpop.f32.mrb[0].mxu0
        %v2092 = vadd.f32 0.0, %v2091
        %v2093 = vpop.f32.mrb[0].mxu0
        %2094 = vmatprep.mubr.f32.mxu0 0.0
        %2095 = vmatmul.mubr.f32.gmra.mrb[0].mxu0 %v1897
        %v2096 = vpop.f32.mrb[0].mxu0
        %v2097 = vadd.f32 0.0, %v2096
        %v2098 = vpop.f32.mrb[0].mxu0
        %2099 = vmatprep.mubr.f32.mxu0 0.0
        %2100 = vmatmul.mubr.f32.gmra.mrb[0].mxu0 %v1898
        %v2101 = vpop.f32.mrb[0].mxu0
        %v2102 = vadd.f32 0.0, %v2101
        %v2103 = vpop.f32.mrb[0].mxu0
        %2104 = vmatprep.mubr.f32.mxu0 0.0
        %2105 = vmatmul.mubr.f32.gmra.mrb[0].mxu0 %v1899
        %v2106 = vpop.f32.mrb[0].mxu0
        %v2107 = vadd.f32 0.0, %v2106
        %v2108 = vpop.f32.mrb[0].mxu0
        %2109 = vmatprep.mubr.f32.mxu0 0.0
        %2110 = vmatmul.mubr.f32.gmra.mrb[0].mxu0 %v1900
        %v2111 = vpop.f32.mrb[0].mxu0
        %v2112 = vadd.f32 0.0, %v2111
        %v2113 = vpop.f32.mrb[0].mxu0
        %2114 = vmatprep.mubr.f32.mxu0 0.0
        %2115 = vmatmul.mubr.f32.gmra.mrb[0].mxu0 %v1901
        %v2116 = vpop.f32.mrb[0].mxu0
        %v2117 = vadd.f32 0.0, %v2116
        %v2118 = vpop.f32.mrb[0].mxu0
        %2119 = vmatprep.mubr.f32.mxu0 0.0
        %2120 = vmatmul.mubr.f32.gmra.mrb[0].mxu0 %v1902
        %v2121 = vpop.f32.mrb[0].mxu0
        %v2122 = vadd.f32 0.0, %v2121
        %v2123 = vpop.f32.mrb[0].mxu0
        %2124 = vmatprep.mubr.f32.mxu0 0.0
        %2125 = vmatmul.mubr.f32.gmra.mrb[0].mxu0 %v1903
        %v2126 = vpop.f32.mrb[0].mxu0
        %v2127 = vadd.f32 0.0, %v2126
        %v2128 = vpop.f32.mrb[0].mxu0
        %2129 = vmatprep.mubr.f32.mxu0 0.0
        %2130 = vmatmul.mubr.f32.gmra.mrb[0].mxu0 %v1904
        %v2131 = vpop.f32.mrb[0].mxu0
        %v2132 = vadd.f32 0.0, %v2131
        %v2133 = vpop.f32.mrb[0].mxu0
        %2134 = vmatprep.mubr.f32.mxu0 0.0
        %2135 = vmatmul.mubr.f32.gmra.mrb[0].mxu0 %v1905
        %v2136 = vpop.f32.mrb[0].mxu0
        %v2137 = vadd.f32 0.0, %v2136
        %v2138 = vpop.f32.mrb[0].mxu0
        %2139 = vmatprep.mubr.f32.mxu0 0.0
        %2140 = vmatmul.mubr.f32.gmra.mrb[0].mxu0 %v1906
        %v2141 = vpop.f32.mrb[0].mxu0
        %v2142 = vadd.f32 0.0, %v2141
        %v2143 = vpop.f32.mrb[0].mxu0
        %2144 = vmatprep.mubr.f32.mxu0 0.0
        %2145 = vmatmul.mubr.f32.gmra.mrb[0].mxu0 %v1907
        %v2146 = vpop.f32.mrb[0].mxu0
        %v2147 = vadd.f32 0.0, %v2146
        %v2148 = vpop.f32.mrb[0].mxu0
        %2149 = vdwg.mxu0
        %v2150 = vld [vmem:[#allocation3] sm:$0xff]
        %v2151 = vld [vmem:[#allocation3 + $0x8] sm:$0xff]
        %v2152 = vld [vmem:[#allocation3 + $0x10] sm:$0xff]
        %v2153 = vld [vmem:[#allocation3 + $0x18] sm:$0xff]
        %v2154 = vld [vmem:[#allocation3 + $0x20] sm:$0xff]
        %v2155 = vld [vmem:[#allocation3 + $0x28] sm:$0xff]
        %v2156 = vld [vmem:[#allocation3 + $0x30] sm:$0xff]
        %v2157 = vld [vmem:[#allocation3 + $0x38] sm:$0xff]
        %v2158 = vld [vmem:[#allocation3 + $0x40] sm:$0xff]
        %v2159 = vld [vmem:[#allocation3 + $0x48] sm:$0xff]
        %v2160 = vld [vmem:[#allocation3 + $0x50] sm:$0xff]
        %v2161 = vld [vmem:[#allocation3 + $0x58] sm:$0xff]
        %v2162 = vld [vmem:[#allocation3 + $0x60] sm:$0xff]
        %v2163 = vld [vmem:[#allocation3 + $0x68] sm:$0xff]
        %v2164 = vld [vmem:[#allocation3 + $0x70] sm:$0xff]
        %v2165 = vld [vmem:[#allocation3 + $0x78] sm:$0xff]
        %v2166 = vld [vmem:[#allocation3 + $0x80] sm:$0xff]
        %v2167 = vld [vmem:[#allocation3 + $0x88] sm:$0xff]
        %v2168 = vld [vmem:[#allocation3 + $0x90] sm:$0xff]
        %v2169 = vld [vmem:[#allocation3 + $0x98] sm:$0xff]
        %v2170 = vld [vmem:[#allocation3 + $0xa0] sm:$0xff]
        %v2171 = vld [vmem:[#allocation3 + $0xa8] sm:$0xff]
        %v2172 = vld [vmem:[#allocation3 + $0xb0] sm:$0xff]
        %v2173 = vld [vmem:[#allocation3 + $0xb8] sm:$0xff]
        %v2174 = vld [vmem:[#allocation3 + $0xc0] sm:$0xff]
        %v2175 = vld [vmem:[#allocation3 + $0xc8] sm:$0xff]
        %v2176 = vld [vmem:[#allocation3 + $0xd0] sm:$0xff]
        %v2177 = vld [vmem:[#allocation3 + $0xd8] sm:$0xff]
        %v2178 = vld [vmem:[#allocation3 + $0xe0] sm:$0xff]
        %v2179 = vld [vmem:[#allocation3 + $0xe8] sm:$0xff]
        %v2180 = vld [vmem:[#allocation3 + $0xf0] sm:$0xff]
        %v2181 = vld [vmem:[#allocation3 + $0xf8] sm:$0xff]
        %v2182 = vadd.f32 %v2150, %v1992
        %v2183 = vadd.f32 %v2151, %v1997
        %v2184 = vadd.f32 %v2152, %v2002
        %v2185 = vadd.f32 %v2153, %v2007
        %v2186 = vadd.f32 %v2154, %v2012
        %v2187 = vadd.f32 %v2155, %v2017
        %v2188 = vadd.f32 %v2156, %v2022
        %v2189 = vadd.f32 %v2157, %v2027
        %v2190 = vadd.f32 %v2158, %v2032
        %v2191 = vadd.f32 %v2159, %v2037
        %v2192 = vadd.f32 %v2160, %v2042
        %v2193 = vadd.f32 %v2161, %v2047
        %v2194 = vadd.f32 %v2162, %v2052
        %v2195 = vadd.f32 %v2163, %v2057
        %v2196 = vadd.f32 %v2164, %v2062
        %v2197 = vadd.f32 %v2165, %v2067
        %v2198 = vadd.f32 %v2166, %v2072
        %v2199 = vadd.f32 %v2167, %v2077
        %v2200 = vadd.f32 %v2168, %v2082
        %v2201 = vadd.f32 %v2169, %v2087
        %v2202 = vadd.f32 %v2170, %v2092
        %v2203 = vadd.f32 %v2171, %v2097
        %v2204 = vadd.f32 %v2172, %v2102
        %v2205 = vadd.f32 %v2173, %v2107
        %v2206 = vadd.f32 %v2174, %v2112
        %v2207 = vadd.f32 %v2175, %v2117
        %v2208 = vadd.f32 %v2176, %v2122
        %v2209 = vadd.f32 %v2177, %v2127
        %v2210 = vadd.f32 %v2178, %v2132
        %v2211 = vadd.f32 %v2179, %v2137
        %v2212 = vadd.f32 %v2180, %v2142
        %v2213 = vadd.f32 %v2181, %v2147
        %2214 = vst [vmem:[#allocation3] sm:$0xff] %v2182
        %2215 = vst [vmem:[#allocation3 + $0x8] sm:$0xff] %v2183
        %2216 = vst [vmem:[#allocation3 + $0x10] sm:$0xff] %v2184
        %2217 = vst [vmem:[#allocation3 + $0x18] sm:$0xff] %v2185
        %2218 = vst [vmem:[#allocation3 + $0x20] sm:$0xff] %v2186
        %2219 = vst [vmem:[#allocation3 + $0x28] sm:$0xff] %v2187
        %2220 = vst [vmem:[#allocation3 + $0x30] sm:$0xff] %v2188
        %2221 = vst [vmem:[#allocation3 + $0x38] sm:$0xff] %v2189
        %2222 = vst [vmem:[#allocation3 + $0x40] sm:$0xff] %v2190
        %2223 = vst [vmem:[#allocation3 + $0x48] sm:$0xff] %v2191
        %2224 = vst [vmem:[#allocation3 + $0x50] sm:$0xff] %v2192
        %2225 = vst [vmem:[#allocation3 + $0x58] sm:$0xff] %v2193
        %2226 = vst [vmem:[#allocation3 + $0x60] sm:$0xff] %v2194
        %2227 = vst [vmem:[#allocation3 + $0x68] sm:$0xff] %v2195
        %2228 = vst [vmem:[#allocation3 + $0x70] sm:$0xff] %v2196
        %2229 = vst [vmem:[#allocation3 + $0x78] sm:$0xff] %v2197
        %2230 = vst [vmem:[#allocation3 + $0x80] sm:$0xff] %v2198
        %2231 = vst [vmem:[#allocation3 + $0x88] sm:$0xff] %v2199
        %2232 = vst [vmem:[#allocation3 + $0x90] sm:$0xff] %v2200
        %2233 = vst [vmem:[#allocation3 + $0x98] sm:$0xff] %v2201
        %2234 = vst [vmem:[#allocation3 + $0xa0] sm:$0xff] %v2202
        %2235 = vst [vmem:[#allocation3 + $0xa8] sm:$0xff] %v2203
        %2236 = vst [vmem:[#allocation3 + $0xb0] sm:$0xff] %v2204
        %2237 = vst [vmem:[#allocation3 + $0xb8] sm:$0xff] %v2205
        %2238 = vst [vmem:[#allocation3 + $0xc0] sm:$0xff] %v2206
        %2239 = vst [vmem:[#allocation3 + $0xc8] sm:$0xff] %v2207
        %2240 = vst [vmem:[#allocation3 + $0xd0] sm:$0xff] %v2208
        %2241 = vst [vmem:[#allocation3 + $0xd8] sm:$0xff] %v2209
        %2242 = vst [vmem:[#allocation3 + $0xe0] sm:$0xff] %v2210
        %2243 = vst [vmem:[#allocation3 + $0xe8] sm:$0xff] %v2211
        %2244 = vst [vmem:[#allocation3 + $0xf0] sm:$0xff] %v2212
        %2245 = vst [vmem:[#allocation3 + $0xf8] sm:$0xff] %v2213
        %v2246 = vld [vmem:[%s428 + $0x2] sm:$0xff]
        %v2247 = vld [vmem:[%s428 + $0xa] sm:$0xff]
        %v2248 = vld [vmem:[%s428 + $0x1a] sm:$0xff]
        %v2249 = vld [vmem:[%s428 + $0x22] sm:$0xff]
        %v2250 = vld [vmem:[%s428 + $0x32] sm:$0xff]
        %v2251 = vld [vmem:[%s428 + $0x3a] sm:$0xff]
        %v2252 = vld [vmem:[%s428 + $0x4a] sm:$0xff]
        %v2253 = vld [vmem:[%s428 + $0x52] sm:$0xff]
        %v2254 = vld [vmem:[%s428 + $0x62] sm:$0xff]
        %v2255 = vld [vmem:[%s428 + $0x6a] sm:$0xff]
        %v2256 = vld [vmem:[%s428 + $0x7a] sm:$0xff]
        %v2257 = vld [vmem:[%s428 + $0x82] sm:$0xff]
        %v2258 = vld [vmem:[%s428 + $0x92] sm:$0xff]
        %v2259 = vld [vmem:[%s428 + $0x9a] sm:$0xff]
        %v2260 = vld [vmem:[%s428 + $0xaa] sm:$0xff]
        %v2261 = vld [vmem:[%s428 + $0xb2] sm:$0xff]
        %v2262 = vld [vmem:[%s428 + $0xc2] sm:$0xff]
        %v2263 = vld [vmem:[%s428 + $0xca] sm:$0xff]
        %v2264 = vld [vmem:[%s428 + $0xda] sm:$0xff]
        %v2265 = vld [vmem:[%s428 + $0xe2] sm:$0xff]
        %v2266 = vld [vmem:[%s428 + $0xf2] sm:$0xff]
        %v2267 = vld [vmem:[%s428 + $0xfa] sm:$0xff]
        %v2268 = vld [vmem:[%s428 + $0x10a] sm:$0xff]
        %v2269 = vld [vmem:[%s428 + $0x112] sm:$0xff]
        %v2270 = vld [vmem:[%s428 + $0x122] sm:$0xff]
        %v2271 = vld [vmem:[%s428 + $0x12a] sm:$0xff]
        %v2272 = vld [vmem:[%s428 + $0x13a] sm:$0xff]
        %v2273 = vld [vmem:[%s428 + $0x142] sm:$0xff]
        %v2274 = vld [vmem:[%s428 + $0x152] sm:$0xff]
        %v2275 = vld [vmem:[%s428 + $0x15a] sm:$0xff]
        %v2276 = vld [vmem:[%s428 + $0x16a] sm:$0xff]
        %v2277 = vld [vmem:[%s428 + $0x172] sm:$0xff]
        %s2278 = scalar_lea.vmem [#allocation7], 640
        %v2279 = vld [vmem:[%s2278] sm:$0xff]
        %v2280 = vld [vmem:[%s2278 + $0x8] sm:$0xff]
        %v2281 = vld [vmem:[%s2278 + $0x10] sm:$0xff]
        %v2282 = vld [vmem:[%s2278 + $0x18] sm:$0xff]
        %v2283 = vld [vmem:[%s2278 + $0x20] sm:$0xff]
        %v2284 = vld [vmem:[%s2278 + $0x28] sm:$0xff]
        %v2285 = vld [vmem:[%s2278 + $0x30] sm:$0xff]
        %v2286 = vld [vmem:[%s2278 + $0x38] sm:$0xff]
        %v2287 = vld [vmem:[%s2278 + $0x40] sm:$0xff]
        %v2288 = vld [vmem:[%s2278 + $0x48] sm:$0xff]
        %v2289 = vld [vmem:[%s2278 + $0x50] sm:$0xff]
        %v2290 = vld [vmem:[%s2278 + $0x58] sm:$0xff]
        %v2291 = vld [vmem:[%s2278 + $0x60] sm:$0xff]
        %v2292 = vld [vmem:[%s2278 + $0x68] sm:$0xff]
        %v2293 = vld [vmem:[%s2278 + $0x70] sm:$0xff]
        %v2294 = vld [vmem:[%s2278 + $0x78] sm:$0xff]
        %2295 = vmatprep.subr.mxu0 0.0
        %2296 = vmatpush1.msra.mxu0 %v2279
        %2297 = vmatprep.subr.mxu0 0.0
        %2298 = vmatpush1.msra.mxu0 %v2280
        %2299 = vmatprep.subr.mxu0 0.0
        %2300 = vmatpush1.msra.mxu0 %v2281
        %2301 = vmatprep.subr.mxu0 0.0
        %2302 = vmatpush1.msra.mxu0 %v2282
        %2303 = vmatprep.subr.mxu0 0.0
        %2304 = vmatpush1.msra.mxu0 %v2283
        %2305 = vmatprep.subr.mxu0 0.0
        %2306 = vmatpush1.msra.mxu0 %v2284
        %2307 = vmatprep.subr.mxu0 0.0
        %2308 = vmatpush1.msra.mxu0 %v2285
        %2309 = vmatprep.subr.mxu0 0.0
        %2310 = vmatpush1.msra.mxu0 %v2286
        %2311 = vmatprep.subr.mxu0 0.0
        %2312 = vmatpush1.msra.mxu0 %v2287
        %2313 = vmatprep.subr.mxu0 0.0
        %2314 = vmatpush1.msra.mxu0 %v2288
        %2315 = vmatprep.subr.mxu0 0.0
        %2316 = vmatpush1.msra.mxu0 %v2289
        %2317 = vmatprep.subr.mxu0 0.0
        %2318 = vmatpush1.msra.mxu0 %v2290
        %2319 = vmatprep.subr.mxu0 0.0
        %2320 = vmatpush1.msra.mxu0 %v2291
        %2321 = vmatprep.subr.mxu0 0.0
        %2322 = vmatpush1.msra.mxu0 %v2292
        %2323 = vmatprep.subr.mxu0 0.0
        %2324 = vmatpush1.msra.mxu0 %v2293
        %2325 = vmatprep.subr.mxu0 0.0
        %2326 = vmatpush1.msra.mxu0 %v2294
        %2327 = vmatprep.subr.mxu0 0.0
        %2328 = vmatpush1.msra.mxu0 0.0
        %2329 = vmatprep.subr.mxu0 0.0
        %2330 = vmatpush1.msra.mxu0 0.0
        %2331 = vmatprep.subr.mxu0 0.0
        %2332 = vmatpush1.msra.mxu0 0.0
        %2333 = vmatprep.subr.mxu0 0.0
        %2334 = vmatpush1.msra.mxu0 0.0
        %2335 = vmatprep.subr.mxu0 0.0
        %2336 = vmatpush1.msra.mxu0 0.0
        %2337 = vmatprep.subr.mxu0 0.0
        %2338 = vmatpush1.msra.mxu0 0.0
        %2339 = vmatprep.subr.mxu0 0.0
        %2340 = vmatpush1.msra.mxu0 0.0
        %2341 = vmatprep.subr.mxu0 0.0
        %2342 = vmatpush1.msra.mxu0 0.0
        %2343 = vmatprep.subr.mxu0 0.0
        %2344 = vmatpush1.msra.mxu0 0.0
        %2345 = vmatprep.subr.mxu0 0.0
        %2346 = vmatpush1.msra.mxu0 0.0
        %2347 = vmatprep.subr.mxu0 0.0
        %2348 = vmatpush1.msra.mxu0 0.0
        %2349 = vmatprep.subr.mxu0 0.0
        %2350 = vmatpush1.msra.mxu0 0.0
        %2351 = vmatprep.subr.mxu0 0.0
        %2352 = vmatpush1.msra.mxu0 0.0
        %2353 = vmatprep.subr.mxu0 0.0
        %2354 = vmatpush1.msra.mxu0 0.0
        %2355 = vmatprep.subr.mxu0 0.0
        %2356 = vmatpush1.msra.mxu0 0.0
        %2357 = vmatprep.subr.mxu0 0.0
        %2358 = vmatpush1.msra.mxu0 0.0
        %2359 = vmatprep.mubr.f32.mxu0 0.0
        %2360 = vmatmul.mubr.f32.gmra.mrb[0].mxu0 %v2246
        %v2361 = vpop.f32.mrb[0].mxu0
        %v2362 = vadd.f32 0.0, %v2361
        %v2363 = vpop.f32.mrb[0].mxu0
        %2364 = vmatprep.mubr.f32.mxu0 0.0
        %2365 = vmatmul.mubr.f32.gmra.mrb[0].mxu0 %v2247
        %v2366 = vpop.f32.mrb[0].mxu0
        %v2367 = vadd.f32 0.0, %v2366
        %v2368 = vpop.f32.mrb[0].mxu0
        %2369 = vmatprep.mubr.f32.mxu0 0.0
        %2370 = vmatmul.mubr.f32.gmra.mrb[0].mxu0 %v2248
        %v2371 = vpop.f32.mrb[0].mxu0
        %v2372 = vadd.f32 0.0, %v2371
        %v2373 = vpop.f32.mrb[0].mxu0
        %2374 = vmatprep.mubr.f32.mxu0 0.0
        %2375 = vmatmul.mubr.f32.gmra.mrb[0].mxu0 %v2249
        %v2376 = vpop.f32.mrb[0].mxu0
        %v2377 = vadd.f32 0.0, %v2376
        %v2378 = vpop.f32.mrb[0].mxu0
        %2379 = vmatprep.mubr.f32.mxu0 0.0
        %2380 = vmatmul.mubr.f32.gmra.mrb[0].mxu0 %v2250
        %v2381 = vpop.f32.mrb[0].mxu0
        %v2382 = vadd.f32 0.0, %v2381
        %v2383 = vpop.f32.mrb[0].mxu0
        %2384 = vmatprep.mubr.f32.mxu0 0.0
        %2385 = vmatmul.mubr.f32.gmra.mrb[0].mxu0 %v2251
        %v2386 = vpop.f32.mrb[0].mxu0
        %v2387 = vadd.f32 0.0, %v2386
        %v2388 = vpop.f32.mrb[0].mxu0
        %2389 = vmatprep.mubr.f32.mxu0 0.0
        %2390 = vmatmul.mubr.f32.gmra.mrb[0].mxu0 %v2252
        %v2391 = vpop.f32.mrb[0].mxu0
        %v2392 = vadd.f32 0.0, %v2391
        %v2393 = vpop.f32.mrb[0].mxu0
        %2394 = vmatprep.mubr.f32.mxu0 0.0
        %2395 = vmatmul.mubr.f32.gmra.mrb[0].mxu0 %v2253
        %v2396 = vpop.f32.mrb[0].mxu0
        %v2397 = vadd.f32 0.0, %v2396
        %v2398 = vpop.f32.mrb[0].mxu0
        %2399 = vmatprep.mubr.f32.mxu0 0.0
        %2400 = vmatmul.mubr.f32.gmra.mrb[0].mxu0 %v2254
        %v2401 = vpop.f32.mrb[0].mxu0
        %v2402 = vadd.f32 0.0, %v2401
        %v2403 = vpop.f32.mrb[0].mxu0
        %2404 = vmatprep.mubr.f32.mxu0 0.0
        %2405 = vmatmul.mubr.f32.gmra.mrb[0].mxu0 %v2255
        %v2406 = vpop.f32.mrb[0].mxu0
        %v2407 = vadd.f32 0.0, %v2406
        %v2408 = vpop.f32.mrb[0].mxu0
        %2409 = vmatprep.mubr.f32.mxu0 0.0
        %2410 = vmatmul.mubr.f32.gmra.mrb[0].mxu0 %v2256
        %v2411 = vpop.f32.mrb[0].mxu0
        %v2412 = vadd.f32 0.0, %v2411
        %v2413 = vpop.f32.mrb[0].mxu0
        %2414 = vmatprep.mubr.f32.mxu0 0.0
        %2415 = vmatmul.mubr.f32.gmra.mrb[0].mxu0 %v2257
        %v2416 = vpop.f32.mrb[0].mxu0
        %v2417 = vadd.f32 0.0, %v2416
        %v2418 = vpop.f32.mrb[0].mxu0
        %2419 = vmatprep.mubr.f32.mxu0 0.0
        %2420 = vmatmul.mubr.f32.gmra.mrb[0].mxu0 %v2258
        %v2421 = vpop.f32.mrb[0].mxu0
        %v2422 = vadd.f32 0.0, %v2421
        %v2423 = vpop.f32.mrb[0].mxu0
        %2424 = vmatprep.mubr.f32.mxu0 0.0
        %2425 = vmatmul.mubr.f32.gmra.mrb[0].mxu0 %v2259
        %v2426 = vpop.f32.mrb[0].mxu0
        %v2427 = vadd.f32 0.0, %v2426
        %v2428 = vpop.f32.mrb[0].mxu0
        %2429 = vmatprep.mubr.f32.mxu0 0.0
        %2430 = vmatmul.mubr.f32.gmra.mrb[0].mxu0 %v2260
        %v2431 = vpop.f32.mrb[0].mxu0
        %v2432 = vadd.f32 0.0, %v2431
        %v2433 = vpop.f32.mrb[0].mxu0
        %2434 = vmatprep.mubr.f32.mxu0 0.0
        %2435 = vmatmul.mubr.f32.gmra.mrb[0].mxu0 %v2261
        %v2436 = vpop.f32.mrb[0].mxu0
        %v2437 = vadd.f32 0.0, %v2436
        %v2438 = vpop.f32.mrb[0].mxu0
        %2439 = vmatprep.mubr.f32.mxu0 0.0
        %2440 = vmatmul.mubr.f32.gmra.mrb[0].mxu0 %v2262
        %v2441 = vpop.f32.mrb[0].mxu0
        %v2442 = vadd.f32 0.0, %v2441
        %v2443 = vpop.f32.mrb[0].mxu0
        %2444 = vmatprep.mubr.f32.mxu0 0.0
        %2445 = vmatmul.mubr.f32.gmra.mrb[0].mxu0 %v2263
        %v2446 = vpop.f32.mrb[0].mxu0
        %v2447 = vadd.f32 0.0, %v2446
        %v2448 = vpop.f32.mrb[0].mxu0
        %2449 = vmatprep.mubr.f32.mxu0 0.0
        %2450 = vmatmul.mubr.f32.gmra.mrb[0].mxu0 %v2264
        %v2451 = vpop.f32.mrb[0].mxu0
        %v2452 = vadd.f32 0.0, %v2451
        %v2453 = vpop.f32.mrb[0].mxu0
        %2454 = vmatprep.mubr.f32.mxu0 0.0
        %2455 = vmatmul.mubr.f32.gmra.mrb[0].mxu0 %v2265
        %v2456 = vpop.f32.mrb[0].mxu0
        %v2457 = vadd.f32 0.0, %v2456
        %v2458 = vpop.f32.mrb[0].mxu0
        %2459 = vmatprep.mubr.f32.mxu0 0.0
        %2460 = vmatmul.mubr.f32.gmra.mrb[0].mxu0 %v2266
        %v2461 = vpop.f32.mrb[0].mxu0
        %v2462 = vadd.f32 0.0, %v2461
        %v2463 = vpop.f32.mrb[0].mxu0
        %2464 = vmatprep.mubr.f32.mxu0 0.0
        %2465 = vmatmul.mubr.f32.gmra.mrb[0].mxu0 %v2267
        %v2466 = vpop.f32.mrb[0].mxu0
        %v2467 = vadd.f32 0.0, %v2466
        %v2468 = vpop.f32.mrb[0].mxu0
        %2469 = vmatprep.mubr.f32.mxu0 0.0
        %2470 = vmatmul.mubr.f32.gmra.mrb[0].mxu0 %v2268
        %v2471 = vpop.f32.mrb[0].mxu0
        %v2472 = vadd.f32 0.0, %v2471
        %v2473 = vpop.f32.mrb[0].mxu0
        %2474 = vmatprep.mubr.f32.mxu0 0.0
        %2475 = vmatmul.mubr.f32.gmra.mrb[0].mxu0 %v2269
        %v2476 = vpop.f32.mrb[0].mxu0
        %v2477 = vadd.f32 0.0, %v2476
        %v2478 = vpop.f32.mrb[0].mxu0
        %2479 = vmatprep.mubr.f32.mxu0 0.0
        %2480 = vmatmul.mubr.f32.gmra.mrb[0].mxu0 %v2270
        %v2481 = vpop.f32.mrb[0].mxu0
        %v2482 = vadd.f32 0.0, %v2481
        %v2483 = vpop.f32.mrb[0].mxu0
        %2484 = vmatprep.mubr.f32.mxu0 0.0
        %2485 = vmatmul.mubr.f32.gmra.mrb[0].mxu0 %v2271
        %v2486 = vpop.f32.mrb[0].mxu0
        %v2487 = vadd.f32 0.0, %v2486
        %v2488 = vpop.f32.mrb[0].mxu0
        %2489 = vmatprep.mubr.f32.mxu0 0.0
        %2490 = vmatmul.mubr.f32.gmra.mrb[0].mxu0 %v2272
        %v2491 = vpop.f32.mrb[0].mxu0
        %v2492 = vadd.f32 0.0, %v2491
        %v2493 = vpop.f32.mrb[0].mxu0
        %2494 = vmatprep.mubr.f32.mxu0 0.0
        %2495 = vmatmul.mubr.f32.gmra.mrb[0].mxu0 %v2273
        %v2496 = vpop.f32.mrb[0].mxu0
        %v2497 = vadd.f32 0.0, %v2496
        %v2498 = vpop.f32.mrb[0].mxu0
        %2499 = vmatprep.mubr.f32.mxu0 0.0
        %2500 = vmatmul.mubr.f32.gmra.mrb[0].mxu0 %v2274
        %v2501 = vpop.f32.mrb[0].mxu0
        %v2502 = vadd.f32 0.0, %v2501
        %v2503 = vpop.f32.mrb[0].mxu0
        %2504 = vmatprep.mubr.f32.mxu0 0.0
        %2505 = vmatmul.mubr.f32.gmra.mrb[0].mxu0 %v2275
        %v2506 = vpop.f32.mrb[0].mxu0
        %v2507 = vadd.f32 0.0, %v2506
        %v2508 = vpop.f32.mrb[0].mxu0
        %2509 = vmatprep.mubr.f32.mxu0 0.0
        %2510 = vmatmul.mubr.f32.gmra.mrb[0].mxu0 %v2276
        %v2511 = vpop.f32.mrb[0].mxu0
        %v2512 = vadd.f32 0.0, %v2511
        %v2513 = vpop.f32.mrb[0].mxu0
        %2514 = vmatprep.mubr.f32.mxu0 0.0
        %2515 = vmatmul.mubr.f32.gmra.mrb[0].mxu0 %v2277
        %v2516 = vpop.f32.mrb[0].mxu0
        %v2517 = vadd.f32 0.0, %v2516
        %v2518 = vpop.f32.mrb[0].mxu0
        %2519 = vdwg.mxu0
        %v2520 = vld [vmem:[#allocation3] sm:$0xff]
        %v2521 = vld [vmem:[#allocation3 + $0x8] sm:$0xff]
        %v2522 = vld [vmem:[#allocation3 + $0x10] sm:$0xff]
        %v2523 = vld [vmem:[#allocation3 + $0x18] sm:$0xff]
        %v2524 = vld [vmem:[#allocation3 + $0x20] sm:$0xff]
        %v2525 = vld [vmem:[#allocation3 + $0x28] sm:$0xff]
        %v2526 = vld [vmem:[#allocation3 + $0x30] sm:$0xff]
        %v2527 = vld [vmem:[#allocation3 + $0x38] sm:$0xff]
        %v2528 = vld [vmem:[#allocation3 + $0x40] sm:$0xff]
        %v2529 = vld [vmem:[#allocation3 + $0x48] sm:$0xff]
        %v2530 = vld [vmem:[#allocation3 + $0x50] sm:$0xff]
        %v2531 = vld [vmem:[#allocation3 + $0x58] sm:$0xff]
        %v2532 = vld [vmem:[#allocation3 + $0x60] sm:$0xff]
        %v2533 = vld [vmem:[#allocation3 + $0x68] sm:$0xff]
        %v2534 = vld [vmem:[#allocation3 + $0x70] sm:$0xff]
        %v2535 = vld [vmem:[#allocation3 + $0x78] sm:$0xff]
        %v2536 = vld [vmem:[#allocation3 + $0x80] sm:$0xff]
        %v2537 = vld [vmem:[#allocation3 + $0x88] sm:$0xff]
        %v2538 = vld [vmem:[#allocation3 + $0x90] sm:$0xff]
        %v2539 = vld [vmem:[#allocation3 + $0x98] sm:$0xff]
        %v2540 = vld [vmem:[#allocation3 + $0xa0] sm:$0xff]
        %v2541 = vld [vmem:[#allocation3 + $0xa8] sm:$0xff]
        %v2542 = vld [vmem:[#allocation3 + $0xb0] sm:$0xff]
        %v2543 = vld [vmem:[#allocation3 + $0xb8] sm:$0xff]
        %v2544 = vld [vmem:[#allocation3 + $0xc0] sm:$0xff]
        %v2545 = vld [vmem:[#allocation3 + $0xc8] sm:$0xff]
        %v2546 = vld [vmem:[#allocation3 + $0xd0] sm:$0xff]
        %v2547 = vld [vmem:[#allocation3 + $0xd8] sm:$0xff]
        %v2548 = vld [vmem:[#allocation3 + $0xe0] sm:$0xff]
        %v2549 = vld [vmem:[#allocation3 + $0xe8] sm:$0xff]
        %v2550 = vld [vmem:[#allocation3 + $0xf0] sm:$0xff]
        %v2551 = vld [vmem:[#allocation3 + $0xf8] sm:$0xff]
        %v2552 = vadd.f32 %v2520, %v2362
        %v2553 = vadd.f32 %v2521, %v2367
        %v2554 = vadd.f32 %v2522, %v2372
        %v2555 = vadd.f32 %v2523, %v2377
        %v2556 = vadd.f32 %v2524, %v2382
        %v2557 = vadd.f32 %v2525, %v2387
        %v2558 = vadd.f32 %v2526, %v2392
        %v2559 = vadd.f32 %v2527, %v2397
        %v2560 = vadd.f32 %v2528, %v2402
        %v2561 = vadd.f32 %v2529, %v2407
        %v2562 = vadd.f32 %v2530, %v2412
        %v2563 = vadd.f32 %v2531, %v2417
        %v2564 = vadd.f32 %v2532, %v2422
        %v2565 = vadd.f32 %v2533, %v2427
        %v2566 = vadd.f32 %v2534, %v2432
        %v2567 = vadd.f32 %v2535, %v2437
        %v2568 = vadd.f32 %v2536, %v2442
        %v2569 = vadd.f32 %v2537, %v2447
        %v2570 = vadd.f32 %v2538, %v2452
        %v2571 = vadd.f32 %v2539, %v2457
        %v2572 = vadd.f32 %v2540, %v2462
        %v2573 = vadd.f32 %v2541, %v2467
        %v2574 = vadd.f32 %v2542, %v2472
        %v2575 = vadd.f32 %v2543, %v2477
        %v2576 = vadd.f32 %v2544, %v2482
        %v2577 = vadd.f32 %v2545, %v2487
        %v2578 = vadd.f32 %v2546, %v2492
        %v2579 = vadd.f32 %v2547, %v2497
        %v2580 = vadd.f32 %v2548, %v2502
        %v2581 = vadd.f32 %v2549, %v2507
        %v2582 = vadd.f32 %v2550, %v2512
        %v2583 = vadd.f32 %v2551, %v2517
        %2584 = vst [vmem:[#allocation3] sm:$0xff] %v2552
        %2585 = vst [vmem:[#allocation3 + $0x8] sm:$0xff] %v2553
        %2586 = vst [vmem:[#allocation3 + $0x10] sm:$0xff] %v2554
        %2587 = vst [vmem:[#allocation3 + $0x18] sm:$0xff] %v2555
        %2588 = vst [vmem:[#allocation3 + $0x20] sm:$0xff] %v2556
        %2589 = vst [vmem:[#allocation3 + $0x28] sm:$0xff] %v2557
        %2590 = vst [vmem:[#allocation3 + $0x30] sm:$0xff] %v2558
        %2591 = vst [vmem:[#allocation3 + $0x38] sm:$0xff] %v2559
        %2592 = vst [vmem:[#allocation3 + $0x40] sm:$0xff] %v2560
        %2593 = vst [vmem:[#allocation3 + $0x48] sm:$0xff] %v2561
        %2594 = vst [vmem:[#allocation3 + $0x50] sm:$0xff] %v2562
        %2595 = vst [vmem:[#allocation3 + $0x58] sm:$0xff] %v2563
        %2596 = vst [vmem:[#allocation3 + $0x60] sm:$0xff] %v2564
        %2597 = vst [vmem:[#allocation3 + $0x68] sm:$0xff] %v2565
        %2598 = vst [vmem:[#allocation3 + $0x70] sm:$0xff] %v2566
        %2599 = vst [vmem:[#allocation3 + $0x78] sm:$0xff] %v2567
        %2600 = vst [vmem:[#allocation3 + $0x80] sm:$0xff] %v2568
        %2601 = vst [vmem:[#allocation3 + $0x88] sm:$0xff] %v2569
        %2602 = vst [vmem:[#allocation3 + $0x90] sm:$0xff] %v2570
        %2603 = vst [vmem:[#allocation3 + $0x98] sm:$0xff] %v2571
        %2604 = vst [vmem:[#allocation3 + $0xa0] sm:$0xff] %v2572
        %2605 = vst [vmem:[#allocation3 + $0xa8] sm:$0xff] %v2573
        %2606 = vst [vmem:[#allocation3 + $0xb0] sm:$0xff] %v2574
        %2607 = vst [vmem:[#allocation3 + $0xb8] sm:$0xff] %v2575
        %2608 = vst [vmem:[#allocation3 + $0xc0] sm:$0xff] %v2576
        %2609 = vst [vmem:[#allocation3 + $0xc8] sm:$0xff] %v2577
        %2610 = vst [vmem:[#allocation3 + $0xd0] sm:$0xff] %v2578
        %2611 = vst [vmem:[#allocation3 + $0xd8] sm:$0xff] %v2579
        %2612 = vst [vmem:[#allocation3 + $0xe0] sm:$0xff] %v2580
        %2613 = vst [vmem:[#allocation3 + $0xe8] sm:$0xff] %v2581
        %2614 = vst [vmem:[#allocation3 + $0xf0] sm:$0xff] %v2582
        %2615 = vst [vmem:[#allocation3 + $0xf8] sm:$0xff] %v2583
        %s2616 = scalar_lea.vmem [#allocation2], 48
        %v2617 = vld [vmem:[%s2616] sm:$0xff]
        %v2618 = vld [vmem:[%s2616 + $0x8] sm:$0xff]
        %v2619 = vld [vmem:[%s2616 + $0x18] sm:$0xff]
        %v2620 = vld [vmem:[%s2616 + $0x20] sm:$0xff]
        %v2621 = vld [vmem:[%s2616 + $0x30] sm:$0xff]
        %v2622 = vld [vmem:[%s2616 + $0x38] sm:$0xff]
        %v2623 = vld [vmem:[%s2616 + $0x48] sm:$0xff]
        %v2624 = vld [vmem:[%s2616 + $0x50] sm:$0xff]
        %v2625 = vld [vmem:[%s2616 + $0x60] sm:$0xff]
        %v2626 = vld [vmem:[%s2616 + $0x68] sm:$0xff]
        %v2627 = vld [vmem:[%s2616 + $0x78] sm:$0xff]
        %v2628 = vld [vmem:[%s2616 + $0x80] sm:$0xff]
        %v2629 = vld [vmem:[%s2616 + $0x90] sm:$0xff]
        %v2630 = vld [vmem:[%s2616 + $0x98] sm:$0xff]
        %v2631 = vld [vmem:[%s2616 + $0xa8] sm:$0xff]
        %v2632 = vld [vmem:[%s2616 + $0xb0] sm:$0xff]
        %v2633 = vld [vmem:[%s2616 + $0xc0] sm:$0xff]
        %v2634 = vld [vmem:[%s2616 + $0xc8] sm:$0xff]
        %v2635 = vld [vmem:[%s2616 + $0xd8] sm:$0xff]
        %v2636 = vld [vmem:[%s2616 + $0xe0] sm:$0xff]
        %v2637 = vld [vmem:[%s2616 + $0xf0] sm:$0xff]
        %v2638 = vld [vmem:[%s2616 + $0xf8] sm:$0xff]
        %v2639 = vld [vmem:[%s2616 + $0x108] sm:$0xff]
        %v2640 = vld [vmem:[%s2616 + $0x110] sm:$0xff]
        %v2641 = vld [vmem:[%s2616 + $0x120] sm:$0xff]
        %v2642 = vld [vmem:[%s2616 + $0x128] sm:$0xff]
        %v2643 = vld [vmem:[%s2616 + $0x138] sm:$0xff]
        %v2644 = vld [vmem:[%s2616 + $0x140] sm:$0xff]
        %v2645 = vld [vmem:[%s2616 + $0x150] sm:$0xff]
        %v2646 = vld [vmem:[%s2616 + $0x158] sm:$0xff]
        %v2647 = vld [vmem:[%s2616 + $0x168] sm:$0xff]
        %v2648 = vld [vmem:[%s2616 + $0x170] sm:$0xff]
        %s2649 = scalar_lea.vmem [#allocation7], 768
        %v2650 = vld [vmem:[%s2649] sm:$0xff]
        %v2651 = vld [vmem:[%s2649 + $0x8] sm:$0xff]
        %v2652 = vld [vmem:[%s2649 + $0x10] sm:$0xff]
        %v2653 = vld [vmem:[%s2649 + $0x18] sm:$0xff]
        %v2654 = vld [vmem:[%s2649 + $0x20] sm:$0xff]
        %v2655 = vld [vmem:[%s2649 + $0x28] sm:$0xff]
        %v2656 = vld [vmem:[%s2649 + $0x30] sm:$0xff]
        %v2657 = vld [vmem:[%s2649 + $0x38] sm:$0xff]
        %v2658 = vld [vmem:[%s2649 + $0x40] sm:$0xff]
        %v2659 = vld [vmem:[%s2649 + $0x48] sm:$0xff]
        %v2660 = vld [vmem:[%s2649 + $0x50] sm:$0xff]
        %v2661 = vld [vmem:[%s2649 + $0x58] sm:$0xff]
        %v2662 = vld [vmem:[%s2649 + $0x60] sm:$0xff]
        %v2663 = vld [vmem:[%s2649 + $0x68] sm:$0xff]
        %v2664 = vld [vmem:[%s2649 + $0x70] sm:$0xff]
        %v2665 = vld [vmem:[%s2649 + $0x78] sm:$0xff]
        %2666 = vmatprep.subr.mxu0 0.0
        %2667 = vmatpush1.msra.mxu0 %v2650
        %2668 = vmatprep.subr.mxu0 0.0
        %2669 = vmatpush1.msra.mxu0 %v2651
        %2670 = vmatprep.subr.mxu0 0.0
        %2671 = vmatpush1.msra.mxu0 %v2652
        %2672 = vmatprep.subr.mxu0 0.0
        %2673 = vmatpush1.msra.mxu0 %v2653
        %2674 = vmatprep.subr.mxu0 0.0
        %2675 = vmatpush1.msra.mxu0 %v2654
        %2676 = vmatprep.subr.mxu0 0.0
        %2677 = vmatpush1.msra.mxu0 %v2655
        %2678 = vmatprep.subr.mxu0 0.0
        %2679 = vmatpush1.msra.mxu0 %v2656
        %2680 = vmatprep.subr.mxu0 0.0
        %2681 = vmatpush1.msra.mxu0 %v2657
        %2682 = vmatprep.subr.mxu0 0.0
        %2683 = vmatpush1.msra.mxu0 %v2658
        %2684 = vmatprep.subr.mxu0 0.0
        %2685 = vmatpush1.msra.mxu0 %v2659
        %2686 = vmatprep.subr.mxu0 0.0
        %2687 = vmatpush1.msra.mxu0 %v2660
        %2688 = vmatprep.subr.mxu0 0.0
        %2689 = vmatpush1.msra.mxu0 %v2661
        %2690 = vmatprep.subr.mxu0 0.0
        %2691 = vmatpush1.msra.mxu0 %v2662
        %2692 = vmatprep.subr.mxu0 0.0
        %2693 = vmatpush1.msra.mxu0 %v2663
        %2694 = vmatprep.subr.mxu0 0.0
        %2695 = vmatpush1.msra.mxu0 %v2664
        %2696 = vmatprep.subr.mxu0 0.0
        %2697 = vmatpush1.msra.mxu0 %v2665
        %2698 = vmatprep.subr.mxu0 0.0
        %2699 = vmatpush1.msra.mxu0 0.0
        %2700 = vmatprep.subr.mxu0 0.0
        %2701 = vmatpush1.msra.mxu0 0.0
        %2702 = vmatprep.subr.mxu0 0.0
        %2703 = vmatpush1.msra.mxu0 0.0
        %2704 = vmatprep.subr.mxu0 0.0
        %2705 = vmatpush1.msra.mxu0 0.0
        %2706 = vmatprep.subr.mxu0 0.0
        %2707 = vmatpush1.msra.mxu0 0.0
        %2708 = vmatprep.subr.mxu0 0.0
        %2709 = vmatpush1.msra.mxu0 0.0
        %2710 = vmatprep.subr.mxu0 0.0
        %2711 = vmatpush1.msra.mxu0 0.0
        %2712 = vmatprep.subr.mxu0 0.0
        %2713 = vmatpush1.msra.mxu0 0.0
        %2714 = vmatprep.subr.mxu0 0.0
        %2715 = vmatpush1.msra.mxu0 0.0
        %2716 = vmatprep.subr.mxu0 0.0
        %2717 = vmatpush1.msra.mxu0 0.0
        %2718 = vmatprep.subr.mxu0 0.0
        %2719 = vmatpush1.msra.mxu0 0.0
        %2720 = vmatprep.subr.mxu0 0.0
        %2721 = vmatpush1.msra.mxu0 0.0
        %2722 = vmatprep.subr.mxu0 0.0
        %2723 = vmatpush1.msra.mxu0 0.0
        %2724 = vmatprep.subr.mxu0 0.0
        %2725 = vmatpush1.msra.mxu0 0.0
        %2726 = vmatprep.subr.mxu0 0.0
        %2727 = vmatpush1.msra.mxu0 0.0
        %2728 = vmatprep.subr.mxu0 0.0
        %2729 = vmatpush1.msra.mxu0 0.0
        %2730 = vmatprep.mubr.f32.mxu0 0.0
        %2731 = vmatmul.mubr.f32.gmra.mrb[0].mxu0 %v2617
        %v2732 = vpop.f32.mrb[0].mxu0
        %v2733 = vadd.f32 0.0, %v2732
        %v2734 = vpop.f32.mrb[0].mxu0
        %2735 = vmatprep.mubr.f32.mxu0 0.0
        %2736 = vmatmul.mubr.f32.gmra.mrb[0].mxu0 %v2618
        %v2737 = vpop.f32.mrb[0].mxu0
        %v2738 = vadd.f32 0.0, %v2737
        %v2739 = vpop.f32.mrb[0].mxu0
        %2740 = vmatprep.mubr.f32.mxu0 0.0
        %2741 = vmatmul.mubr.f32.gmra.mrb[0].mxu0 %v2619
        %v2742 = vpop.f32.mrb[0].mxu0
        %v2743 = vadd.f32 0.0, %v2742
        %v2744 = vpop.f32.mrb[0].mxu0
        %2745 = vmatprep.mubr.f32.mxu0 0.0
        %2746 = vmatmul.mubr.f32.gmra.mrb[0].mxu0 %v2620
        %v2747 = vpop.f32.mrb[0].mxu0
        %v2748 = vadd.f32 0.0, %v2747
        %v2749 = vpop.f32.mrb[0].mxu0
        %2750 = vmatprep.mubr.f32.mxu0 0.0
        %2751 = vmatmul.mubr.f32.gmra.mrb[0].mxu0 %v2621
        %v2752 = vpop.f32.mrb[0].mxu0
        %v2753 = vadd.f32 0.0, %v2752
        %v2754 = vpop.f32.mrb[0].mxu0
        %2755 = vmatprep.mubr.f32.mxu0 0.0
        %2756 = vmatmul.mubr.f32.gmra.mrb[0].mxu0 %v2622
        %v2757 = vpop.f32.mrb[0].mxu0
        %v2758 = vadd.f32 0.0, %v2757
        %v2759 = vpop.f32.mrb[0].mxu0
        %2760 = vmatprep.mubr.f32.mxu0 0.0
        %2761 = vmatmul.mubr.f32.gmra.mrb[0].mxu0 %v2623
        %v2762 = vpop.f32.mrb[0].mxu0
        %v2763 = vadd.f32 0.0, %v2762
        %v2764 = vpop.f32.mrb[0].mxu0
        %2765 = vmatprep.mubr.f32.mxu0 0.0
        %2766 = vmatmul.mubr.f32.gmra.mrb[0].mxu0 %v2624
        %v2767 = vpop.f32.mrb[0].mxu0
        %v2768 = vadd.f32 0.0, %v2767
        %v2769 = vpop.f32.mrb[0].mxu0
        %2770 = vmatprep.mubr.f32.mxu0 0.0
        %2771 = vmatmul.mubr.f32.gmra.mrb[0].mxu0 %v2625
        %v2772 = vpop.f32.mrb[0].mxu0
        %v2773 = vadd.f32 0.0, %v2772
        %v2774 = vpop.f32.mrb[0].mxu0
        %2775 = vmatprep.mubr.f32.mxu0 0.0
        %2776 = vmatmul.mubr.f32.gmra.mrb[0].mxu0 %v2626
        %v2777 = vpop.f32.mrb[0].mxu0
        %v2778 = vadd.f32 0.0, %v2777
        %v2779 = vpop.f32.mrb[0].mxu0
        %2780 = vmatprep.mubr.f32.mxu0 0.0
        %2781 = vmatmul.mubr.f32.gmra.mrb[0].mxu0 %v2627
        %v2782 = vpop.f32.mrb[0].mxu0
        %v2783 = vadd.f32 0.0, %v2782
        %v2784 = vpop.f32.mrb[0].mxu0
        %2785 = vmatprep.mubr.f32.mxu0 0.0
        %2786 = vmatmul.mubr.f32.gmra.mrb[0].mxu0 %v2628
        %v2787 = vpop.f32.mrb[0].mxu0
        %v2788 = vadd.f32 0.0, %v2787
        %v2789 = vpop.f32.mrb[0].mxu0
        %2790 = vmatprep.mubr.f32.mxu0 0.0
        %2791 = vmatmul.mubr.f32.gmra.mrb[0].mxu0 %v2629
        %v2792 = vpop.f32.mrb[0].mxu0
        %v2793 = vadd.f32 0.0, %v2792
        %v2794 = vpop.f32.mrb[0].mxu0
        %2795 = vmatprep.mubr.f32.mxu0 0.0
        %2796 = vmatmul.mubr.f32.gmra.mrb[0].mxu0 %v2630
        %v2797 = vpop.f32.mrb[0].mxu0
        %v2798 = vadd.f32 0.0, %v2797
        %v2799 = vpop.f32.mrb[0].mxu0
        %2800 = vmatprep.mubr.f32.mxu0 0.0
        %2801 = vmatmul.mubr.f32.gmra.mrb[0].mxu0 %v2631
        %v2802 = vpop.f32.mrb[0].mxu0
        %v2803 = vadd.f32 0.0, %v2802
        %v2804 = vpop.f32.mrb[0].mxu0
        %2805 = vmatprep.mubr.f32.mxu0 0.0
        %2806 = vmatmul.mubr.f32.gmra.mrb[0].mxu0 %v2632
        %v2807 = vpop.f32.mrb[0].mxu0
        %v2808 = vadd.f32 0.0, %v2807
        %v2809 = vpop.f32.mrb[0].mxu0
        %2810 = vmatprep.mubr.f32.mxu0 0.0
        %2811 = vmatmul.mubr.f32.gmra.mrb[0].mxu0 %v2633
        %v2812 = vpop.f32.mrb[0].mxu0
        %v2813 = vadd.f32 0.0, %v2812
        %v2814 = vpop.f32.mrb[0].mxu0
        %2815 = vmatprep.mubr.f32.mxu0 0.0
        %2816 = vmatmul.mubr.f32.gmra.mrb[0].mxu0 %v2634
        %v2817 = vpop.f32.mrb[0].mxu0
        %v2818 = vadd.f32 0.0, %v2817
        %v2819 = vpop.f32.mrb[0].mxu0
        %2820 = vmatprep.mubr.f32.mxu0 0.0
        %2821 = vmatmul.mubr.f32.gmra.mrb[0].mxu0 %v2635
        %v2822 = vpop.f32.mrb[0].mxu0
        %v2823 = vadd.f32 0.0, %v2822
        %v2824 = vpop.f32.mrb[0].mxu0
        %2825 = vmatprep.mubr.f32.mxu0 0.0
        %2826 = vmatmul.mubr.f32.gmra.mrb[0].mxu0 %v2636
        %v2827 = vpop.f32.mrb[0].mxu0
        %v2828 = vadd.f32 0.0, %v2827
        %v2829 = vpop.f32.mrb[0].mxu0
        %2830 = vmatprep.mubr.f32.mxu0 0.0
        %2831 = vmatmul.mubr.f32.gmra.mrb[0].mxu0 %v2637
        %v2832 = vpop.f32.mrb[0].mxu0
        %v2833 = vadd.f32 0.0, %v2832
        %v2834 = vpop.f32.mrb[0].mxu0
        %2835 = vmatprep.mubr.f32.mxu0 0.0
        %2836 = vmatmul.mubr.f32.gmra.mrb[0].mxu0 %v2638
        %v2837 = vpop.f32.mrb[0].mxu0
        %v2838 = vadd.f32 0.0, %v2837
        %v2839 = vpop.f32.mrb[0].mxu0
        %2840 = vmatprep.mubr.f32.mxu0 0.0
        %2841 = vmatmul.mubr.f32.gmra.mrb[0].mxu0 %v2639
        %v2842 = vpop.f32.mrb[0].mxu0
        %v2843 = vadd.f32 0.0, %v2842
        %v2844 = vpop.f32.mrb[0].mxu0
        %2845 = vmatprep.mubr.f32.mxu0 0.0
        %2846 = vmatmul.mubr.f32.gmra.mrb[0].mxu0 %v2640
        %v2847 = vpop.f32.mrb[0].mxu0
        %v2848 = vadd.f32 0.0, %v2847
        %v2849 = vpop.f32.mrb[0].mxu0
        %2850 = vmatprep.mubr.f32.mxu0 0.0
        %2851 = vmatmul.mubr.f32.gmra.mrb[0].mxu0 %v2641
        %v2852 = vpop.f32.mrb[0].mxu0
        %v2853 = vadd.f32 0.0, %v2852
        %v2854 = vpop.f32.mrb[0].mxu0
        %2855 = vmatprep.mubr.f32.mxu0 0.0
        %2856 = vmatmul.mubr.f32.gmra.mrb[0].mxu0 %v2642
        %v2857 = vpop.f32.mrb[0].mxu0
        %v2858 = vadd.f32 0.0, %v2857
        %v2859 = vpop.f32.mrb[0].mxu0
        %2860 = vmatprep.mubr.f32.mxu0 0.0
        %2861 = vmatmul.mubr.f32.gmra.mrb[0].mxu0 %v2643
        %v2862 = vpop.f32.mrb[0].mxu0
        %v2863 = vadd.f32 0.0, %v2862
        %v2864 = vpop.f32.mrb[0].mxu0
        %2865 = vmatprep.mubr.f32.mxu0 0.0
        %2866 = vmatmul.mubr.f32.gmra.mrb[0].mxu0 %v2644
        %v2867 = vpop.f32.mrb[0].mxu0
        %v2868 = vadd.f32 0.0, %v2867
        %v2869 = vpop.f32.mrb[0].mxu0
        %2870 = vmatprep.mubr.f32.mxu0 0.0
        %2871 = vmatmul.mubr.f32.gmra.mrb[0].mxu0 %v2645
        %v2872 = vpop.f32.mrb[0].mxu0
        %v2873 = vadd.f32 0.0, %v2872
        %v2874 = vpop.f32.mrb[0].mxu0
        %2875 = vmatprep.mubr.f32.mxu0 0.0
        %2876 = vmatmul.mubr.f32.gmra.mrb[0].mxu0 %v2646
        %v2877 = vpop.f32.mrb[0].mxu0
        %v2878 = vadd.f32 0.0, %v2877
        %v2879 = vpop.f32.mrb[0].mxu0
        %2880 = vmatprep.mubr.f32.mxu0 0.0
        %2881 = vmatmul.mubr.f32.gmra.mrb[0].mxu0 %v2647
        %v2882 = vpop.f32.mrb[0].mxu0
        %v2883 = vadd.f32 0.0, %v2882
        %v2884 = vpop.f32.mrb[0].mxu0
        %2885 = vmatprep.mubr.f32.mxu0 0.0
        %2886 = vmatmul.mubr.f32.gmra.mrb[0].mxu0 %v2648
        %v2887 = vpop.f32.mrb[0].mxu0
        %v2888 = vadd.f32 0.0, %v2887
        %v2889 = vpop.f32.mrb[0].mxu0
        %2890 = vdwg.mxu0
        %v2891 = vld [vmem:[#allocation3] sm:$0xff]
        %v2892 = vld [vmem:[#allocation3 + $0x8] sm:$0xff]
        %v2893 = vld [vmem:[#allocation3 + $0x10] sm:$0xff]
        %v2894 = vld [vmem:[#allocation3 + $0x18] sm:$0xff]
        %v2895 = vld [vmem:[#allocation3 + $0x20] sm:$0xff]
        %v2896 = vld [vmem:[#allocation3 + $0x28] sm:$0xff]
        %v2897 = vld [vmem:[#allocation3 + $0x30] sm:$0xff]
        %v2898 = vld [vmem:[#allocation3 + $0x38] sm:$0xff]
        %v2899 = vld [vmem:[#allocation3 + $0x40] sm:$0xff]
        %v2900 = vld [vmem:[#allocation3 + $0x48] sm:$0xff]
        %v2901 = vld [vmem:[#allocation3 + $0x50] sm:$0xff]
        %v2902 = vld [vmem:[#allocation3 + $0x58] sm:$0xff]
        %v2903 = vld [vmem:[#allocation3 + $0x60] sm:$0xff]
        %v2904 = vld [vmem:[#allocation3 + $0x68] sm:$0xff]
        %v2905 = vld [vmem:[#allocation3 + $0x70] sm:$0xff]
        %v2906 = vld [vmem:[#allocation3 + $0x78] sm:$0xff]
        %v2907 = vld [vmem:[#allocation3 + $0x80] sm:$0xff]
        %v2908 = vld [vmem:[#allocation3 + $0x88] sm:$0xff]
        %v2909 = vld [vmem:[#allocation3 + $0x90] sm:$0xff]
        %v2910 = vld [vmem:[#allocation3 + $0x98] sm:$0xff]
        %v2911 = vld [vmem:[#allocation3 + $0xa0] sm:$0xff]
        %v2912 = vld [vmem:[#allocation3 + $0xa8] sm:$0xff]
        %v2913 = vld [vmem:[#allocation3 + $0xb0] sm:$0xff]
        %v2914 = vld [vmem:[#allocation3 + $0xb8] sm:$0xff]
        %v2915 = vld [vmem:[#allocation3 + $0xc0] sm:$0xff]
        %v2916 = vld [vmem:[#allocation3 + $0xc8] sm:$0xff]
        %v2917 = vld [vmem:[#allocation3 + $0xd0] sm:$0xff]
        %v2918 = vld [vmem:[#allocation3 + $0xd8] sm:$0xff]
        %v2919 = vld [vmem:[#allocation3 + $0xe0] sm:$0xff]
        %v2920 = vld [vmem:[#allocation3 + $0xe8] sm:$0xff]
        %v2921 = vld [vmem:[#allocation3 + $0xf0] sm:$0xff]
        %v2922 = vld [vmem:[#allocation3 + $0xf8] sm:$0xff]
        %v2923 = vadd.f32 %v2891, %v2733
        %v2924 = vadd.f32 %v2892, %v2738
        %v2925 = vadd.f32 %v2893, %v2743
        %v2926 = vadd.f32 %v2894, %v2748
        %v2927 = vadd.f32 %v2895, %v2753
        %v2928 = vadd.f32 %v2896, %v2758
        %v2929 = vadd.f32 %v2897, %v2763
        %v2930 = vadd.f32 %v2898, %v2768
        %v2931 = vadd.f32 %v2899, %v2773
        %v2932 = vadd.f32 %v2900, %v2778
        %v2933 = vadd.f32 %v2901, %v2783
        %v2934 = vadd.f32 %v2902, %v2788
        %v2935 = vadd.f32 %v2903, %v2793
        %v2936 = vadd.f32 %v2904, %v2798
        %v2937 = vadd.f32 %v2905, %v2803
        %v2938 = vadd.f32 %v2906, %v2808
        %v2939 = vadd.f32 %v2907, %v2813
        %v2940 = vadd.f32 %v2908, %v2818
        %v2941 = vadd.f32 %v2909, %v2823
        %v2942 = vadd.f32 %v2910, %v2828
        %v2943 = vadd.f32 %v2911, %v2833
        %v2944 = vadd.f32 %v2912, %v2838
        %v2945 = vadd.f32 %v2913, %v2843
        %v2946 = vadd.f32 %v2914, %v2848
        %v2947 = vadd.f32 %v2915, %v2853
        %v2948 = vadd.f32 %v2916, %v2858
        %v2949 = vadd.f32 %v2917, %v2863
        %v2950 = vadd.f32 %v2918, %v2868
        %v2951 = vadd.f32 %v2919, %v2873
        %v2952 = vadd.f32 %v2920, %v2878
        %v2953 = vadd.f32 %v2921, %v2883
        %v2954 = vadd.f32 %v2922, %v2888
        %2955 = vst [vmem:[#allocation3] sm:$0xff] %v2923
        %2956 = vst [vmem:[#allocation3 + $0x8] sm:$0xff] %v2924
        %2957 = vst [vmem:[#allocation3 + $0x10] sm:$0xff] %v2925
        %2958 = vst [vmem:[#allocation3 + $0x18] sm:$0xff] %v2926
        %2959 = vst [vmem:[#allocation3 + $0x20] sm:$0xff] %v2927
        %2960 = vst [vmem:[#allocation3 + $0x28] sm:$0xff] %v2928
        %2961 = vst [vmem:[#allocation3 + $0x30] sm:$0xff] %v2929
        %2962 = vst [vmem:[#allocation3 + $0x38] sm:$0xff] %v2930
        %2963 = vst [vmem:[#allocation3 + $0x40] sm:$0xff] %v2931
        %2964 = vst [vmem:[#allocation3 + $0x48] sm:$0xff] %v2932
        %2965 = vst [vmem:[#allocation3 + $0x50] sm:$0xff] %v2933
        %2966 = vst [vmem:[#allocation3 + $0x58] sm:$0xff] %v2934
        %2967 = vst [vmem:[#allocation3 + $0x60] sm:$0xff] %v2935
        %2968 = vst [vmem:[#allocation3 + $0x68] sm:$0xff] %v2936
        %2969 = vst [vmem:[#allocation3 + $0x70] sm:$0xff] %v2937
        %2970 = vst [vmem:[#allocation3 + $0x78] sm:$0xff] %v2938
        %2971 = vst [vmem:[#allocation3 + $0x80] sm:$0xff] %v2939
        %2972 = vst [vmem:[#allocation3 + $0x88] sm:$0xff] %v2940
        %2973 = vst [vmem:[#allocation3 + $0x90] sm:$0xff] %v2941
        %2974 = vst [vmem:[#allocation3 + $0x98] sm:$0xff] %v2942
        %2975 = vst [vmem:[#allocation3 + $0xa0] sm:$0xff] %v2943
        %2976 = vst [vmem:[#allocation3 + $0xa8] sm:$0xff] %v2944
        %2977 = vst [vmem:[#allocation3 + $0xb0] sm:$0xff] %v2945
        %2978 = vst [vmem:[#allocation3 + $0xb8] sm:$0xff] %v2946
        %2979 = vst [vmem:[#allocation3 + $0xc0] sm:$0xff] %v2947
        %2980 = vst [vmem:[#allocation3 + $0xc8] sm:$0xff] %v2948
        %2981 = vst [vmem:[#allocation3 + $0xd0] sm:$0xff] %v2949
        %2982 = vst [vmem:[#allocation3 + $0xd8] sm:$0xff] %v2950
        %2983 = vst [vmem:[#allocation3 + $0xe0] sm:$0xff] %v2951
        %2984 = vst [vmem:[#allocation3 + $0xe8] sm:$0xff] %v2952
        %2985 = vst [vmem:[#allocation3 + $0xf0] sm:$0xff] %v2953
        %2986 = vst [vmem:[#allocation3 + $0xf8] sm:$0xff] %v2954
        %v2987 = vld [vmem:[%s2616 + $0x1] sm:$0xff]
        %v2988 = vld [vmem:[%s2616 + $0x9] sm:$0xff]
        %v2989 = vld [vmem:[%s2616 + $0x19] sm:$0xff]
        %v2990 = vld [vmem:[%s2616 + $0x21] sm:$0xff]
        %v2991 = vld [vmem:[%s2616 + $0x31] sm:$0xff]
        %v2992 = vld [vmem:[%s2616 + $0x39] sm:$0xff]
        %v2993 = vld [vmem:[%s2616 + $0x49] sm:$0xff]
        %v2994 = vld [vmem:[%s2616 + $0x51] sm:$0xff]
        %v2995 = vld [vmem:[%s2616 + $0x61] sm:$0xff]
        %v2996 = vld [vmem:[%s2616 + $0x69] sm:$0xff]
        %v2997 = vld [vmem:[%s2616 + $0x79] sm:$0xff]
        %v2998 = vld [vmem:[%s2616 + $0x81] sm:$0xff]
        %v2999 = vld [vmem:[%s2616 + $0x91] sm:$0xff]
        %v3000 = vld [vmem:[%s2616 + $0x99] sm:$0xff]
        %v3001 = vld [vmem:[%s2616 + $0xa9] sm:$0xff]
        %v3002 = vld [vmem:[%s2616 + $0xb1] sm:$0xff]
        %v3003 = vld [vmem:[%s2616 + $0xc1] sm:$0xff]
        %v3004 = vld [vmem:[%s2616 + $0xc9] sm:$0xff]
        %v3005 = vld [vmem:[%s2616 + $0xd9] sm:$0xff]
        %v3006 = vld [vmem:[%s2616 + $0xe1] sm:$0xff]
        %v3007 = vld [vmem:[%s2616 + $0xf1] sm:$0xff]
        %v3008 = vld [vmem:[%s2616 + $0xf9] sm:$0xff]
        %v3009 = vld [vmem:[%s2616 + $0x109] sm:$0xff]
        %v3010 = vld [vmem:[%s2616 + $0x111] sm:$0xff]
        %v3011 = vld [vmem:[%s2616 + $0x121] sm:$0xff]
        %v3012 = vld [vmem:[%s2616 + $0x129] sm:$0xff]
        %v3013 = vld [vmem:[%s2616 + $0x139] sm:$0xff]
        %v3014 = vld [vmem:[%s2616 + $0x141] sm:$0xff]
        %v3015 = vld [vmem:[%s2616 + $0x151] sm:$0xff]
        %v3016 = vld [vmem:[%s2616 + $0x159] sm:$0xff]
        %v3017 = vld [vmem:[%s2616 + $0x169] sm:$0xff]
        %v3018 = vld [vmem:[%s2616 + $0x171] sm:$0xff]
        %s3019 = scalar_lea.vmem [#allocation7], 896
        %v3020 = vld [vmem:[%s3019] sm:$0xff]
        %v3021 = vld [vmem:[%s3019 + $0x8] sm:$0xff]
        %v3022 = vld [vmem:[%s3019 + $0x10] sm:$0xff]
        %v3023 = vld [vmem:[%s3019 + $0x18] sm:$0xff]
        %v3024 = vld [vmem:[%s3019 + $0x20] sm:$0xff]
        %v3025 = vld [vmem:[%s3019 + $0x28] sm:$0xff]
        %v3026 = vld [vmem:[%s3019 + $0x30] sm:$0xff]
        %v3027 = vld [vmem:[%s3019 + $0x38] sm:$0xff]
        %v3028 = vld [vmem:[%s3019 + $0x40] sm:$0xff]
        %v3029 = vld [vmem:[%s3019 + $0x48] sm:$0xff]
        %v3030 = vld [vmem:[%s3019 + $0x50] sm:$0xff]
        %v3031 = vld [vmem:[%s3019 + $0x58] sm:$0xff]
        %v3032 = vld [vmem:[%s3019 + $0x60] sm:$0xff]
        %v3033 = vld [vmem:[%s3019 + $0x68] sm:$0xff]
        %v3034 = vld [vmem:[%s3019 + $0x70] sm:$0xff]
        %v3035 = vld [vmem:[%s3019 + $0x78] sm:$0xff]
        %3036 = vmatprep.subr.mxu0 0.0
        %3037 = vmatpush1.msra.mxu0 %v3020
        %3038 = vmatprep.subr.mxu0 0.0
        %3039 = vmatpush1.msra.mxu0 %v3021
        %3040 = vmatprep.subr.mxu0 0.0
        %3041 = vmatpush1.msra.mxu0 %v3022
        %3042 = vmatprep.subr.mxu0 0.0
        %3043 = vmatpush1.msra.mxu0 %v3023
        %3044 = vmatprep.subr.mxu0 0.0
        %3045 = vmatpush1.msra.mxu0 %v3024
        %3046 = vmatprep.subr.mxu0 0.0
        %3047 = vmatpush1.msra.mxu0 %v3025
        %3048 = vmatprep.subr.mxu0 0.0
        %3049 = vmatpush1.msra.mxu0 %v3026
        %3050 = vmatprep.subr.mxu0 0.0
        %3051 = vmatpush1.msra.mxu0 %v3027
        %3052 = vmatprep.subr.mxu0 0.0
        %3053 = vmatpush1.msra.mxu0 %v3028
        %3054 = vmatprep.subr.mxu0 0.0
        %3055 = vmatpush1.msra.mxu0 %v3029
        %3056 = vmatprep.subr.mxu0 0.0
        %3057 = vmatpush1.msra.mxu0 %v3030
        %3058 = vmatprep.subr.mxu0 0.0
        %3059 = vmatpush1.msra.mxu0 %v3031
        %3060 = vmatprep.subr.mxu0 0.0
        %3061 = vmatpush1.msra.mxu0 %v3032
        %3062 = vmatprep.subr.mxu0 0.0
        %3063 = vmatpush1.msra.mxu0 %v3033
        %3064 = vmatprep.subr.mxu0 0.0
        %3065 = vmatpush1.msra.mxu0 %v3034
        %3066 = vmatprep.subr.mxu0 0.0
        %3067 = vmatpush1.msra.mxu0 %v3035
        %3068 = vmatprep.subr.mxu0 0.0
        %3069 = vmatpush1.msra.mxu0 0.0
        %3070 = vmatprep.subr.mxu0 0.0
        %3071 = vmatpush1.msra.mxu0 0.0
        %3072 = vmatprep.subr.mxu0 0.0
        %3073 = vmatpush1.msra.mxu0 0.0
        %3074 = vmatprep.subr.mxu0 0.0
        %3075 = vmatpush1.msra.mxu0 0.0
        %3076 = vmatprep.subr.mxu0 0.0
        %3077 = vmatpush1.msra.mxu0 0.0
        %3078 = vmatprep.subr.mxu0 0.0
        %3079 = vmatpush1.msra.mxu0 0.0
        %3080 = vmatprep.subr.mxu0 0.0
        %3081 = vmatpush1.msra.mxu0 0.0
        %3082 = vmatprep.subr.mxu0 0.0
        %3083 = vmatpush1.msra.mxu0 0.0
        %3084 = vmatprep.subr.mxu0 0.0
        %3085 = vmatpush1.msra.mxu0 0.0
        %3086 = vmatprep.subr.mxu0 0.0
        %3087 = vmatpush1.msra.mxu0 0.0
        %3088 = vmatprep.subr.mxu0 0.0
        %3089 = vmatpush1.msra.mxu0 0.0
        %3090 = vmatprep.subr.mxu0 0.0
        %3091 = vmatpush1.msra.mxu0 0.0
        %3092 = vmatprep.subr.mxu0 0.0
        %3093 = vmatpush1.msra.mxu0 0.0
        %3094 = vmatprep.subr.mxu0 0.0
        %3095 = vmatpush1.msra.mxu0 0.0
        %3096 = vmatprep.subr.mxu0 0.0
        %3097 = vmatpush1.msra.mxu0 0.0
        %3098 = vmatprep.subr.mxu0 0.0
        %3099 = vmatpush1.msra.mxu0 0.0
        %3100 = vmatprep.mubr.f32.mxu0 0.0
        %3101 = vmatmul.mubr.f32.gmra.mrb[0].mxu0 %v2987
        %v3102 = vpop.f32.mrb[0].mxu0
        %v3103 = vadd.f32 0.0, %v3102
        %v3104 = vpop.f32.mrb[0].mxu0
        %3105 = vmatprep.mubr.f32.mxu0 0.0
        %3106 = vmatmul.mubr.f32.gmra.mrb[0].mxu0 %v2988
        %v3107 = vpop.f32.mrb[0].mxu0
        %v3108 = vadd.f32 0.0, %v3107
        %v3109 = vpop.f32.mrb[0].mxu0
        %3110 = vmatprep.mubr.f32.mxu0 0.0
        %3111 = vmatmul.mubr.f32.gmra.mrb[0].mxu0 %v2989
        %v3112 = vpop.f32.mrb[0].mxu0
        %v3113 = vadd.f32 0.0, %v3112
        %v3114 = vpop.f32.mrb[0].mxu0
        %3115 = vmatprep.mubr.f32.mxu0 0.0
        %3116 = vmatmul.mubr.f32.gmra.mrb[0].mxu0 %v2990
        %v3117 = vpop.f32.mrb[0].mxu0
        %v3118 = vadd.f32 0.0, %v3117
        %v3119 = vpop.f32.mrb[0].mxu0
        %3120 = vmatprep.mubr.f32.mxu0 0.0
        %3121 = vmatmul.mubr.f32.gmra.mrb[0].mxu0 %v2991
        %v3122 = vpop.f32.mrb[0].mxu0
        %v3123 = vadd.f32 0.0, %v3122
        %v3124 = vpop.f32.mrb[0].mxu0
        %3125 = vmatprep.mubr.f32.mxu0 0.0
        %3126 = vmatmul.mubr.f32.gmra.mrb[0].mxu0 %v2992
        %v3127 = vpop.f32.mrb[0].mxu0
        %v3128 = vadd.f32 0.0, %v3127
        %v3129 = vpop.f32.mrb[0].mxu0
        %3130 = vmatprep.mubr.f32.mxu0 0.0
        %3131 = vmatmul.mubr.f32.gmra.mrb[0].mxu0 %v2993
        %v3132 = vpop.f32.mrb[0].mxu0
        %v3133 = vadd.f32 0.0, %v3132
        %v3134 = vpop.f32.mrb[0].mxu0
        %3135 = vmatprep.mubr.f32.mxu0 0.0
        %3136 = vmatmul.mubr.f32.gmra.mrb[0].mxu0 %v2994
        %v3137 = vpop.f32.mrb[0].mxu0
        %v3138 = vadd.f32 0.0, %v3137
        %v3139 = vpop.f32.mrb[0].mxu0
        %3140 = vmatprep.mubr.f32.mxu0 0.0
        %3141 = vmatmul.mubr.f32.gmra.mrb[0].mxu0 %v2995
        %v3142 = vpop.f32.mrb[0].mxu0
        %v3143 = vadd.f32 0.0, %v3142
        %v3144 = vpop.f32.mrb[0].mxu0
        %3145 = vmatprep.mubr.f32.mxu0 0.0
        %3146 = vmatmul.mubr.f32.gmra.mrb[0].mxu0 %v2996
        %v3147 = vpop.f32.mrb[0].mxu0
        %v3148 = vadd.f32 0.0, %v3147
        %v3149 = vpop.f32.mrb[0].mxu0
        %3150 = vmatprep.mubr.f32.mxu0 0.0
        %3151 = vmatmul.mubr.f32.gmra.mrb[0].mxu0 %v2997
        %v3152 = vpop.f32.mrb[0].mxu0
        %v3153 = vadd.f32 0.0, %v3152
        %v3154 = vpop.f32.mrb[0].mxu0
        %3155 = vmatprep.mubr.f32.mxu0 0.0
        %3156 = vmatmul.mubr.f32.gmra.mrb[0].mxu0 %v2998
        %v3157 = vpop.f32.mrb[0].mxu0
        %v3158 = vadd.f32 0.0, %v3157
        %v3159 = vpop.f32.mrb[0].mxu0
        %3160 = vmatprep.mubr.f32.mxu0 0.0
        %3161 = vmatmul.mubr.f32.gmra.mrb[0].mxu0 %v2999
        %v3162 = vpop.f32.mrb[0].mxu0
        %v3163 = vadd.f32 0.0, %v3162
        %v3164 = vpop.f32.mrb[0].mxu0
        %3165 = vmatprep.mubr.f32.mxu0 0.0
        %3166 = vmatmul.mubr.f32.gmra.mrb[0].mxu0 %v3000
        %v3167 = vpop.f32.mrb[0].mxu0
        %v3168 = vadd.f32 0.0, %v3167
        %v3169 = vpop.f32.mrb[0].mxu0
        %3170 = vmatprep.mubr.f32.mxu0 0.0
        %3171 = vmatmul.mubr.f32.gmra.mrb[0].mxu0 %v3001
        %v3172 = vpop.f32.mrb[0].mxu0
        %v3173 = vadd.f32 0.0, %v3172
        %v3174 = vpop.f32.mrb[0].mxu0
        %3175 = vmatprep.mubr.f32.mxu0 0.0
        %3176 = vmatmul.mubr.f32.gmra.mrb[0].mxu0 %v3002
        %v3177 = vpop.f32.mrb[0].mxu0
        %v3178 = vadd.f32 0.0, %v3177
        %v3179 = vpop.f32.mrb[0].mxu0
        %3180 = vmatprep.mubr.f32.mxu0 0.0
        %3181 = vmatmul.mubr.f32.gmra.mrb[0].mxu0 %v3003
        %v3182 = vpop.f32.mrb[0].mxu0
        %v3183 = vadd.f32 0.0, %v3182
        %v3184 = vpop.f32.mrb[0].mxu0
        %3185 = vmatprep.mubr.f32.mxu0 0.0
        %3186 = vmatmul.mubr.f32.gmra.mrb[0].mxu0 %v3004
        %v3187 = vpop.f32.mrb[0].mxu0
        %v3188 = vadd.f32 0.0, %v3187
        %v3189 = vpop.f32.mrb[0].mxu0
        %3190 = vmatprep.mubr.f32.mxu0 0.0
        %3191 = vmatmul.mubr.f32.gmra.mrb[0].mxu0 %v3005
        %v3192 = vpop.f32.mrb[0].mxu0
        %v3193 = vadd.f32 0.0, %v3192
        %v3194 = vpop.f32.mrb[0].mxu0
        %3195 = vmatprep.mubr.f32.mxu0 0.0
        %3196 = vmatmul.mubr.f32.gmra.mrb[0].mxu0 %v3006
        %v3197 = vpop.f32.mrb[0].mxu0
        %v3198 = vadd.f32 0.0, %v3197
        %v3199 = vpop.f32.mrb[0].mxu0
        %3200 = vmatprep.mubr.f32.mxu0 0.0
        %3201 = vmatmul.mubr.f32.gmra.mrb[0].mxu0 %v3007
        %v3202 = vpop.f32.mrb[0].mxu0
        %v3203 = vadd.f32 0.0, %v3202
        %v3204 = vpop.f32.mrb[0].mxu0
        %3205 = vmatprep.mubr.f32.mxu0 0.0
        %3206 = vmatmul.mubr.f32.gmra.mrb[0].mxu0 %v3008
        %v3207 = vpop.f32.mrb[0].mxu0
        %v3208 = vadd.f32 0.0, %v3207
        %v3209 = vpop.f32.mrb[0].mxu0
        %3210 = vmatprep.mubr.f32.mxu0 0.0
        %3211 = vmatmul.mubr.f32.gmra.mrb[0].mxu0 %v3009
        %v3212 = vpop.f32.mrb[0].mxu0
        %v3213 = vadd.f32 0.0, %v3212
        %v3214 = vpop.f32.mrb[0].mxu0
        %3215 = vmatprep.mubr.f32.mxu0 0.0
        %3216 = vmatmul.mubr.f32.gmra.mrb[0].mxu0 %v3010
        %v3217 = vpop.f32.mrb[0].mxu0
        %v3218 = vadd.f32 0.0, %v3217
        %v3219 = vpop.f32.mrb[0].mxu0
        %3220 = vmatprep.mubr.f32.mxu0 0.0
        %3221 = vmatmul.mubr.f32.gmra.mrb[0].mxu0 %v3011
        %v3222 = vpop.f32.mrb[0].mxu0
        %v3223 = vadd.f32 0.0, %v3222
        %v3224 = vpop.f32.mrb[0].mxu0
        %3225 = vmatprep.mubr.f32.mxu0 0.0
        %3226 = vmatmul.mubr.f32.gmra.mrb[0].mxu0 %v3012
        %v3227 = vpop.f32.mrb[0].mxu0
        %v3228 = vadd.f32 0.0, %v3227
        %v3229 = vpop.f32.mrb[0].mxu0
        %3230 = vmatprep.mubr.f32.mxu0 0.0
        %3231 = vmatmul.mubr.f32.gmra.mrb[0].mxu0 %v3013
        %v3232 = vpop.f32.mrb[0].mxu0
        %v3233 = vadd.f32 0.0, %v3232
        %v3234 = vpop.f32.mrb[0].mxu0
        %3235 = vmatprep.mubr.f32.mxu0 0.0
        %3236 = vmatmul.mubr.f32.gmra.mrb[0].mxu0 %v3014
        %v3237 = vpop.f32.mrb[0].mxu0
        %v3238 = vadd.f32 0.0, %v3237
        %v3239 = vpop.f32.mrb[0].mxu0
        %3240 = vmatprep.mubr.f32.mxu0 0.0
        %3241 = vmatmul.mubr.f32.gmra.mrb[0].mxu0 %v3015
        %v3242 = vpop.f32.mrb[0].mxu0
        %v3243 = vadd.f32 0.0, %v3242
        %v3244 = vpop.f32.mrb[0].mxu0
        %3245 = vmatprep.mubr.f32.mxu0 0.0
        %3246 = vmatmul.mubr.f32.gmra.mrb[0].mxu0 %v3016
        %v3247 = vpop.f32.mrb[0].mxu0
        %v3248 = vadd.f32 0.0, %v3247
        %v3249 = vpop.f32.mrb[0].mxu0
        %3250 = vmatprep.mubr.f32.mxu0 0.0
        %3251 = vmatmul.mubr.f32.gmra.mrb[0].mxu0 %v3017
        %v3252 = vpop.f32.mrb[0].mxu0
        %v3253 = vadd.f32 0.0, %v3252
        %v3254 = vpop.f32.mrb[0].mxu0
        %3255 = vmatprep.mubr.f32.mxu0 0.0
        %3256 = vmatmul.mubr.f32.gmra.mrb[0].mxu0 %v3018
        %v3257 = vpop.f32.mrb[0].mxu0
        %v3258 = vadd.f32 0.0, %v3257
        %v3259 = vpop.f32.mrb[0].mxu0
        %3260 = vdwg.mxu0
        %v3261 = vld [vmem:[#allocation3] sm:$0xff]
        %v3262 = vld [vmem:[#allocation3 + $0x8] sm:$0xff]
        %v3263 = vld [vmem:[#allocation3 + $0x10] sm:$0xff]
        %v3264 = vld [vmem:[#allocation3 + $0x18] sm:$0xff]
        %v3265 = vld [vmem:[#allocation3 + $0x20] sm:$0xff]
        %v3266 = vld [vmem:[#allocation3 + $0x28] sm:$0xff]
        %v3267 = vld [vmem:[#allocation3 + $0x30] sm:$0xff]
        %v3268 = vld [vmem:[#allocation3 + $0x38] sm:$0xff]
        %v3269 = vld [vmem:[#allocation3 + $0x40] sm:$0xff]
        %v3270 = vld [vmem:[#allocation3 + $0x48] sm:$0xff]
        %v3271 = vld [vmem:[#allocation3 + $0x50] sm:$0xff]
        %v3272 = vld [vmem:[#allocation3 + $0x58] sm:$0xff]
        %v3273 = vld [vmem:[#allocation3 + $0x60] sm:$0xff]
        %v3274 = vld [vmem:[#allocation3 + $0x68] sm:$0xff]
        %v3275 = vld [vmem:[#allocation3 + $0x70] sm:$0xff]
        %v3276 = vld [vmem:[#allocation3 + $0x78] sm:$0xff]
        %v3277 = vld [vmem:[#allocation3 + $0x80] sm:$0xff]
        %v3278 = vld [vmem:[#allocation3 + $0x88] sm:$0xff]
        %v3279 = vld [vmem:[#allocation3 + $0x90] sm:$0xff]
        %v3280 = vld [vmem:[#allocation3 + $0x98] sm:$0xff]
        %v3281 = vld [vmem:[#allocation3 + $0xa0] sm:$0xff]
        %v3282 = vld [vmem:[#allocation3 + $0xa8] sm:$0xff]
        %v3283 = vld [vmem:[#allocation3 + $0xb0] sm:$0xff]
        %v3284 = vld [vmem:[#allocation3 + $0xb8] sm:$0xff]
        %v3285 = vld [vmem:[#allocation3 + $0xc0] sm:$0xff]
        %v3286 = vld [vmem:[#allocation3 + $0xc8] sm:$0xff]
        %v3287 = vld [vmem:[#allocation3 + $0xd0] sm:$0xff]
        %v3288 = vld [vmem:[#allocation3 + $0xd8] sm:$0xff]
        %v3289 = vld [vmem:[#allocation3 + $0xe0] sm:$0xff]
        %v3290 = vld [vmem:[#allocation3 + $0xe8] sm:$0xff]
        %v3291 = vld [vmem:[#allocation3 + $0xf0] sm:$0xff]
        %v3292 = vld [vmem:[#allocation3 + $0xf8] sm:$0xff]
        %v3293 = vadd.f32 %v3261, %v3103
        %v3294 = vadd.f32 %v3262, %v3108
        %v3295 = vadd.f32 %v3263, %v3113
        %v3296 = vadd.f32 %v3264, %v3118
        %v3297 = vadd.f32 %v3265, %v3123
        %v3298 = vadd.f32 %v3266, %v3128
        %v3299 = vadd.f32 %v3267, %v3133
        %v3300 = vadd.f32 %v3268, %v3138
        %v3301 = vadd.f32 %v3269, %v3143
        %v3302 = vadd.f32 %v3270, %v3148
        %v3303 = vadd.f32 %v3271, %v3153
        %v3304 = vadd.f32 %v3272, %v3158
        %v3305 = vadd.f32 %v3273, %v3163
        %v3306 = vadd.f32 %v3274, %v3168
        %v3307 = vadd.f32 %v3275, %v3173
        %v3308 = vadd.f32 %v3276, %v3178
        %v3309 = vadd.f32 %v3277, %v3183
        %v3310 = vadd.f32 %v3278, %v3188
        %v3311 = vadd.f32 %v3279, %v3193
        %v3312 = vadd.f32 %v3280, %v3198
        %v3313 = vadd.f32 %v3281, %v3203
        %v3314 = vadd.f32 %v3282, %v3208
        %v3315 = vadd.f32 %v3283, %v3213
        %v3316 = vadd.f32 %v3284, %v3218
        %v3317 = vadd.f32 %v3285, %v3223
        %v3318 = vadd.f32 %v3286, %v3228
        %v3319 = vadd.f32 %v3287, %v3233
        %v3320 = vadd.f32 %v3288, %v3238
        %v3321 = vadd.f32 %v3289, %v3243
        %v3322 = vadd.f32 %v3290, %v3248
        %v3323 = vadd.f32 %v3291, %v3253
        %v3324 = vadd.f32 %v3292, %v3258
        %3325 = vst [vmem:[#allocation3] sm:$0xff] %v3293
        %3326 = vst [vmem:[#allocation3 + $0x8] sm:$0xff] %v3294
        %3327 = vst [vmem:[#allocation3 + $0x10] sm:$0xff] %v3295
        %3328 = vst [vmem:[#allocation3 + $0x18] sm:$0xff] %v3296
        %3329 = vst [vmem:[#allocation3 + $0x20] sm:$0xff] %v3297
        %3330 = vst [vmem:[#allocation3 + $0x28] sm:$0xff] %v3298
        %3331 = vst [vmem:[#allocation3 + $0x30] sm:$0xff] %v3299
        %3332 = vst [vmem:[#allocation3 + $0x38] sm:$0xff] %v3300
        %3333 = vst [vmem:[#allocation3 + $0x40] sm:$0xff] %v3301
        %3334 = vst [vmem:[#allocation3 + $0x48] sm:$0xff] %v3302
        %3335 = vst [vmem:[#allocation3 + $0x50] sm:$0xff] %v3303
        %3336 = vst [vmem:[#allocation3 + $0x58] sm:$0xff] %v3304
        %3337 = vst [vmem:[#allocation3 + $0x60] sm:$0xff] %v3305
        %3338 = vst [vmem:[#allocation3 + $0x68] sm:$0xff] %v3306
        %3339 = vst [vmem:[#allocation3 + $0x70] sm:$0xff] %v3307
        %3340 = vst [vmem:[#allocation3 + $0x78] sm:$0xff] %v3308
        %3341 = vst [vmem:[#allocation3 + $0x80] sm:$0xff] %v3309
        %3342 = vst [vmem:[#allocation3 + $0x88] sm:$0xff] %v3310
        %3343 = vst [vmem:[#allocation3 + $0x90] sm:$0xff] %v3311
        %3344 = vst [vmem:[#allocation3 + $0x98] sm:$0xff] %v3312
        %3345 = vst [vmem:[#allocation3 + $0xa0] sm:$0xff] %v3313
        %3346 = vst [vmem:[#allocation3 + $0xa8] sm:$0xff] %v3314
        %3347 = vst [vmem:[#allocation3 + $0xb0] sm:$0xff] %v3315
        %3348 = vst [vmem:[#allocation3 + $0xb8] sm:$0xff] %v3316
        %3349 = vst [vmem:[#allocation3 + $0xc0] sm:$0xff] %v3317
        %3350 = vst [vmem:[#allocation3 + $0xc8] sm:$0xff] %v3318
        %3351 = vst [vmem:[#allocation3 + $0xd0] sm:$0xff] %v3319
        %3352 = vst [vmem:[#allocation3 + $0xd8] sm:$0xff] %v3320
        %3353 = vst [vmem:[#allocation3 + $0xe0] sm:$0xff] %v3321
        %3354 = vst [vmem:[#allocation3 + $0xe8] sm:$0xff] %v3322
        %3355 = vst [vmem:[#allocation3 + $0xf0] sm:$0xff] %v3323
        %3356 = vst [vmem:[#allocation3 + $0xf8] sm:$0xff] %v3324
        %v3357 = vld [vmem:[%s2616 + $0x2] sm:$0xff]
        %v3358 = vld [vmem:[%s2616 + $0xa] sm:$0xff]
        %v3359 = vld [vmem:[%s2616 + $0x1a] sm:$0xff]
        %v3360 = vld [vmem:[%s2616 + $0x22] sm:$0xff]
        %v3361 = vld [vmem:[%s2616 + $0x32] sm:$0xff]
        %v3362 = vld [vmem:[%s2616 + $0x3a] sm:$0xff]
        %v3363 = vld [vmem:[%s2616 + $0x4a] sm:$0xff]
        %v3364 = vld [vmem:[%s2616 + $0x52] sm:$0xff]
        %v3365 = vld [vmem:[%s2616 + $0x62] sm:$0xff]
        %v3366 = vld [vmem:[%s2616 + $0x6a] sm:$0xff]
        %v3367 = vld [vmem:[%s2616 + $0x7a] sm:$0xff]
        %v3368 = vld [vmem:[%s2616 + $0x82] sm:$0xff]
        %v3369 = vld [vmem:[%s2616 + $0x92] sm:$0xff]
        %v3370 = vld [vmem:[%s2616 + $0x9a] sm:$0xff]
        %v3371 = vld [vmem:[%s2616 + $0xaa] sm:$0xff]
        %v3372 = vld [vmem:[%s2616 + $0xb2] sm:$0xff]
        %v3373 = vld [vmem:[%s2616 + $0xc2] sm:$0xff]
        %v3374 = vld [vmem:[%s2616 + $0xca] sm:$0xff]
        %v3375 = vld [vmem:[%s2616 + $0xda] sm:$0xff]
        %v3376 = vld [vmem:[%s2616 + $0xe2] sm:$0xff]
        %v3377 = vld [vmem:[%s2616 + $0xf2] sm:$0xff]
        %v3378 = vld [vmem:[%s2616 + $0xfa] sm:$0xff]
        %v3379 = vld [vmem:[%s2616 + $0x10a] sm:$0xff]
        %v3380 = vld [vmem:[%s2616 + $0x112] sm:$0xff]
        %v3381 = vld [vmem:[%s2616 + $0x122] sm:$0xff]
        %v3382 = vld [vmem:[%s2616 + $0x12a] sm:$0xff]
        %v3383 = vld [vmem:[%s2616 + $0x13a] sm:$0xff]
        %v3384 = vld [vmem:[%s2616 + $0x142] sm:$0xff]
        %v3385 = vld [vmem:[%s2616 + $0x152] sm:$0xff]
        %v3386 = vld [vmem:[%s2616 + $0x15a] sm:$0xff]
        %v3387 = vld [vmem:[%s2616 + $0x16a] sm:$0xff]
        %v3388 = vld [vmem:[%s2616 + $0x172] sm:$0xff]
        %s3389 = scalar_lea.vmem [#allocation7], 1024
        %v3390 = vld [vmem:[%s3389] sm:$0xff]
        %v3391 = vld [vmem:[%s3389 + $0x8] sm:$0xff]
        %v3392 = vld [vmem:[%s3389 + $0x10] sm:$0xff]
        %v3393 = vld [vmem:[%s3389 + $0x18] sm:$0xff]
        %v3394 = vld [vmem:[%s3389 + $0x20] sm:$0xff]
        %v3395 = vld [vmem:[%s3389 + $0x28] sm:$0xff]
        %v3396 = vld [vmem:[%s3389 + $0x30] sm:$0xff]
        %v3397 = vld [vmem:[%s3389 + $0x38] sm:$0xff]
        %v3398 = vld [vmem:[%s3389 + $0x40] sm:$0xff]
        %v3399 = vld [vmem:[%s3389 + $0x48] sm:$0xff]
        %v3400 = vld [vmem:[%s3389 + $0x50] sm:$0xff]
        %v3401 = vld [vmem:[%s3389 + $0x58] sm:$0xff]
        %v3402 = vld [vmem:[%s3389 + $0x60] sm:$0xff]
        %v3403 = vld [vmem:[%s3389 + $0x68] sm:$0xff]
        %v3404 = vld [vmem:[%s3389 + $0x70] sm:$0xff]
        %v3405 = vld [vmem:[%s3389 + $0x78] sm:$0xff]
        %3406 = vmatprep.subr.mxu0 0.0
        %3407 = vmatpush1.msra.mxu0 %v3390
        %3408 = vmatprep.subr.mxu0 0.0
        %3409 = vmatpush1.msra.mxu0 %v3391
        %3410 = vmatprep.subr.mxu0 0.0
        %3411 = vmatpush1.msra.mxu0 %v3392
        %3412 = vmatprep.subr.mxu0 0.0
        %3413 = vmatpush1.msra.mxu0 %v3393
        %3414 = vmatprep.subr.mxu0 0.0
        %3415 = vmatpush1.msra.mxu0 %v3394
        %3416 = vmatprep.subr.mxu0 0.0
        %3417 = vmatpush1.msra.mxu0 %v3395
        %3418 = vmatprep.subr.mxu0 0.0
        %3419 = vmatpush1.msra.mxu0 %v3396
        %3420 = vmatprep.subr.mxu0 0.0
        %3421 = vmatpush1.msra.mxu0 %v3397
        %3422 = vmatprep.subr.mxu0 0.0
        %3423 = vmatpush1.msra.mxu0 %v3398
        %3424 = vmatprep.subr.mxu0 0.0
        %3425 = vmatpush1.msra.mxu0 %v3399
        %3426 = vmatprep.subr.mxu0 0.0
        %3427 = vmatpush1.msra.mxu0 %v3400
        %3428 = vmatprep.subr.mxu0 0.0
        %3429 = vmatpush1.msra.mxu0 %v3401
        %3430 = vmatprep.subr.mxu0 0.0
        %3431 = vmatpush1.msra.mxu0 %v3402
        %3432 = vmatprep.subr.mxu0 0.0
        %3433 = vmatpush1.msra.mxu0 %v3403
        %3434 = vmatprep.subr.mxu0 0.0
        %3435 = vmatpush1.msra.mxu0 %v3404
        %3436 = vmatprep.subr.mxu0 0.0
        %3437 = vmatpush1.msra.mxu0 %v3405
        %3438 = vmatprep.subr.mxu0 0.0
        %3439 = vmatpush1.msra.mxu0 0.0
        %3440 = vmatprep.subr.mxu0 0.0
        %3441 = vmatpush1.msra.mxu0 0.0
        %3442 = vmatprep.subr.mxu0 0.0
        %3443 = vmatpush1.msra.mxu0 0.0
        %3444 = vmatprep.subr.mxu0 0.0
        %3445 = vmatpush1.msra.mxu0 0.0
        %3446 = vmatprep.subr.mxu0 0.0
        %3447 = vmatpush1.msra.mxu0 0.0
        %3448 = vmatprep.subr.mxu0 0.0
        %3449 = vmatpush1.msra.mxu0 0.0
        %3450 = vmatprep.subr.mxu0 0.0
        %3451 = vmatpush1.msra.mxu0 0.0
        %3452 = vmatprep.subr.mxu0 0.0
        %3453 = vmatpush1.msra.mxu0 0.0
        %3454 = vmatprep.subr.mxu0 0.0
        %3455 = vmatpush1.msra.mxu0 0.0
        %3456 = vmatprep.subr.mxu0 0.0
        %3457 = vmatpush1.msra.mxu0 0.0
        %3458 = vmatprep.subr.mxu0 0.0
        %3459 = vmatpush1.msra.mxu0 0.0
        %3460 = vmatprep.subr.mxu0 0.0
        %3461 = vmatpush1.msra.mxu0 0.0
        %3462 = vmatprep.subr.mxu0 0.0
        %3463 = vmatpush1.msra.mxu0 0.0
        %3464 = vmatprep.subr.mxu0 0.0
        %3465 = vmatpush1.msra.mxu0 0.0
        %3466 = vmatprep.subr.mxu0 0.0
        %3467 = vmatpush1.msra.mxu0 0.0
        %3468 = vmatprep.subr.mxu0 0.0
        %3469 = vmatpush1.msra.mxu0 0.0
        %3470 = vmatprep.mubr.f32.mxu0 0.0
        %3471 = vmatmul.mubr.f32.gmra.mrb[0].mxu0 %v3357
        %v3472 = vpop.f32.mrb[0].mxu0
        %v3473 = vadd.f32 0.0, %v3472
        %v3474 = vpop.f32.mrb[0].mxu0
        %3475 = vmatprep.mubr.f32.mxu0 0.0
        %3476 = vmatmul.mubr.f32.gmra.mrb[0].mxu0 %v3358
        %v3477 = vpop.f32.mrb[0].mxu0
        %v3478 = vadd.f32 0.0, %v3477
        %v3479 = vpop.f32.mrb[0].mxu0
        %3480 = vmatprep.mubr.f32.mxu0 0.0
        %3481 = vmatmul.mubr.f32.gmra.mrb[0].mxu0 %v3359
        %v3482 = vpop.f32.mrb[0].mxu0
        %v3483 = vadd.f32 0.0, %v3482
        %v3484 = vpop.f32.mrb[0].mxu0
        %3485 = vmatprep.mubr.f32.mxu0 0.0
        %3486 = vmatmul.mubr.f32.gmra.mrb[0].mxu0 %v3360
        %v3487 = vpop.f32.mrb[0].mxu0
        %v3488 = vadd.f32 0.0, %v3487
        %v3489 = vpop.f32.mrb[0].mxu0
        %3490 = vmatprep.mubr.f32.mxu0 0.0
        %3491 = vmatmul.mubr.f32.gmra.mrb[0].mxu0 %v3361
        %v3492 = vpop.f32.mrb[0].mxu0
        %v3493 = vadd.f32 0.0, %v3492
        %v3494 = vpop.f32.mrb[0].mxu0
        %3495 = vmatprep.mubr.f32.mxu0 0.0
        %3496 = vmatmul.mubr.f32.gmra.mrb[0].mxu0 %v3362
        %v3497 = vpop.f32.mrb[0].mxu0
        %v3498 = vadd.f32 0.0, %v3497
        %v3499 = vpop.f32.mrb[0].mxu0
        %3500 = vmatprep.mubr.f32.mxu0 0.0
        %3501 = vmatmul.mubr.f32.gmra.mrb[0].mxu0 %v3363
        %v3502 = vpop.f32.mrb[0].mxu0
        %v3503 = vadd.f32 0.0, %v3502
        %v3504 = vpop.f32.mrb[0].mxu0
        %3505 = vmatprep.mubr.f32.mxu0 0.0
        %3506 = vmatmul.mubr.f32.gmra.mrb[0].mxu0 %v3364
        %v3507 = vpop.f32.mrb[0].mxu0
        %v3508 = vadd.f32 0.0, %v3507
        %v3509 = vpop.f32.mrb[0].mxu0
        %3510 = vmatprep.mubr.f32.mxu0 0.0
        %3511 = vmatmul.mubr.f32.gmra.mrb[0].mxu0 %v3365
        %v3512 = vpop.f32.mrb[0].mxu0
        %v3513 = vadd.f32 0.0, %v3512
        %v3514 = vpop.f32.mrb[0].mxu0
        %3515 = vmatprep.mubr.f32.mxu0 0.0
        %3516 = vmatmul.mubr.f32.gmra.mrb[0].mxu0 %v3366
        %v3517 = vpop.f32.mrb[0].mxu0
        %v3518 = vadd.f32 0.0, %v3517
        %v3519 = vpop.f32.mrb[0].mxu0
        %3520 = vmatprep.mubr.f32.mxu0 0.0
        %3521 = vmatmul.mubr.f32.gmra.mrb[0].mxu0 %v3367
        %v3522 = vpop.f32.mrb[0].mxu0
        %v3523 = vadd.f32 0.0, %v3522
        %v3524 = vpop.f32.mrb[0].mxu0
        %3525 = vmatprep.mubr.f32.mxu0 0.0
        %3526 = vmatmul.mubr.f32.gmra.mrb[0].mxu0 %v3368
        %v3527 = vpop.f32.mrb[0].mxu0
        %v3528 = vadd.f32 0.0, %v3527
        %v3529 = vpop.f32.mrb[0].mxu0
        %3530 = vmatprep.mubr.f32.mxu0 0.0
        %3531 = vmatmul.mubr.f32.gmra.mrb[0].mxu0 %v3369
        %v3532 = vpop.f32.mrb[0].mxu0
        %v3533 = vadd.f32 0.0, %v3532
        %v3534 = vpop.f32.mrb[0].mxu0
        %3535 = vmatprep.mubr.f32.mxu0 0.0
        %3536 = vmatmul.mubr.f32.gmra.mrb[0].mxu0 %v3370
        %v3537 = vpop.f32.mrb[0].mxu0
        %v3538 = vadd.f32 0.0, %v3537
        %v3539 = vpop.f32.mrb[0].mxu0
        %3540 = vmatprep.mubr.f32.mxu0 0.0
        %3541 = vmatmul.mubr.f32.gmra.mrb[0].mxu0 %v3371
        %v3542 = vpop.f32.mrb[0].mxu0
        %v3543 = vadd.f32 0.0, %v3542
        %v3544 = vpop.f32.mrb[0].mxu0
        %3545 = vmatprep.mubr.f32.mxu0 0.0
        %3546 = vmatmul.mubr.f32.gmra.mrb[0].mxu0 %v3372
        %v3547 = vpop.f32.mrb[0].mxu0
        %v3548 = vadd.f32 0.0, %v3547
        %v3549 = vpop.f32.mrb[0].mxu0
        %3550 = vmatprep.mubr.f32.mxu0 0.0
        %3551 = vmatmul.mubr.f32.gmra.mrb[0].mxu0 %v3373
        %v3552 = vpop.f32.mrb[0].mxu0
        %v3553 = vadd.f32 0.0, %v3552
        %v3554 = vpop.f32.mrb[0].mxu0
        %3555 = vmatprep.mubr.f32.mxu0 0.0
        %3556 = vmatmul.mubr.f32.gmra.mrb[0].mxu0 %v3374
        %v3557 = vpop.f32.mrb[0].mxu0
        %v3558 = vadd.f32 0.0, %v3557
        %v3559 = vpop.f32.mrb[0].mxu0
        %3560 = vmatprep.mubr.f32.mxu0 0.0
        %3561 = vmatmul.mubr.f32.gmra.mrb[0].mxu0 %v3375
        %v3562 = vpop.f32.mrb[0].mxu0
        %v3563 = vadd.f32 0.0, %v3562
        %v3564 = vpop.f32.mrb[0].mxu0
        %3565 = vmatprep.mubr.f32.mxu0 0.0
        %3566 = vmatmul.mubr.f32.gmra.mrb[0].mxu0 %v3376
        %v3567 = vpop.f32.mrb[0].mxu0
        %v3568 = vadd.f32 0.0, %v3567
        %v3569 = vpop.f32.mrb[0].mxu0
        %3570 = vmatprep.mubr.f32.mxu0 0.0
        %3571 = vmatmul.mubr.f32.gmra.mrb[0].mxu0 %v3377
        %v3572 = vpop.f32.mrb[0].mxu0
        %v3573 = vadd.f32 0.0, %v3572
        %v3574 = vpop.f32.mrb[0].mxu0
        %3575 = vmatprep.mubr.f32.mxu0 0.0
        %3576 = vmatmul.mubr.f32.gmra.mrb[0].mxu0 %v3378
        %v3577 = vpop.f32.mrb[0].mxu0
        %v3578 = vadd.f32 0.0, %v3577
        %v3579 = vpop.f32.mrb[0].mxu0
        %3580 = vmatprep.mubr.f32.mxu0 0.0
        %3581 = vmatmul.mubr.f32.gmra.mrb[0].mxu0 %v3379
        %v3582 = vpop.f32.mrb[0].mxu0
        %v3583 = vadd.f32 0.0, %v3582
        %v3584 = vpop.f32.mrb[0].mxu0
        %3585 = vmatprep.mubr.f32.mxu0 0.0
        %3586 = vmatmul.mubr.f32.gmra.mrb[0].mxu0 %v3380
        %v3587 = vpop.f32.mrb[0].mxu0
        %v3588 = vadd.f32 0.0, %v3587
        %v3589 = vpop.f32.mrb[0].mxu0
        %3590 = vmatprep.mubr.f32.mxu0 0.0
        %3591 = vmatmul.mubr.f32.gmra.mrb[0].mxu0 %v3381
        %v3592 = vpop.f32.mrb[0].mxu0
        %v3593 = vadd.f32 0.0, %v3592
        %v3594 = vpop.f32.mrb[0].mxu0
        %3595 = vmatprep.mubr.f32.mxu0 0.0
        %3596 = vmatmul.mubr.f32.gmra.mrb[0].mxu0 %v3382
        %v3597 = vpop.f32.mrb[0].mxu0
        %v3598 = vadd.f32 0.0, %v3597
        %v3599 = vpop.f32.mrb[0].mxu0
        %3600 = vmatprep.mubr.f32.mxu0 0.0
        %3601 = vmatmul.mubr.f32.gmra.mrb[0].mxu0 %v3383
        %v3602 = vpop.f32.mrb[0].mxu0
        %v3603 = vadd.f32 0.0, %v3602
        %v3604 = vpop.f32.mrb[0].mxu0
        %3605 = vmatprep.mubr.f32.mxu0 0.0
        %3606 = vmatmul.mubr.f32.gmra.mrb[0].mxu0 %v3384
        %v3607 = vpop.f32.mrb[0].mxu0
        %v3608 = vadd.f32 0.0, %v3607
        %v3609 = vpop.f32.mrb[0].mxu0
        %3610 = vmatprep.mubr.f32.mxu0 0.0
        %3611 = vmatmul.mubr.f32.gmra.mrb[0].mxu0 %v3385
        %v3612 = vpop.f32.mrb[0].mxu0
        %v3613 = vadd.f32 0.0, %v3612
        %v3614 = vpop.f32.mrb[0].mxu0
        %3615 = vmatprep.mubr.f32.mxu0 0.0
        %3616 = vmatmul.mubr.f32.gmra.mrb[0].mxu0 %v3386
        %v3617 = vpop.f32.mrb[0].mxu0
        %v3618 = vadd.f32 0.0, %v3617
        %v3619 = vpop.f32.mrb[0].mxu0
        %3620 = vmatprep.mubr.f32.mxu0 0.0
        %3621 = vmatmul.mubr.f32.gmra.mrb[0].mxu0 %v3387
        %v3622 = vpop.f32.mrb[0].mxu0
        %v3623 = vadd.f32 0.0, %v3622
        %v3624 = vpop.f32.mrb[0].mxu0
        %3625 = vmatprep.mubr.f32.mxu0 0.0
        %3626 = vmatmul.mubr.f32.gmra.mrb[0].mxu0 %v3388
        %v3627 = vpop.f32.mrb[0].mxu0
        %v3628 = vadd.f32 0.0, %v3627
        %v3629 = vpop.f32.mrb[0].mxu0
        %3630 = vdwg.mxu0
        %v3631 = vld [vmem:[#allocation3] sm:$0xff]
        %v3632 = vld [vmem:[#allocation3 + $0x8] sm:$0xff]
        %v3633 = vld [vmem:[#allocation3 + $0x10] sm:$0xff]
        %v3634 = vld [vmem:[#allocation3 + $0x18] sm:$0xff]
        %v3635 = vld [vmem:[#allocation3 + $0x20] sm:$0xff]
        %v3636 = vld [vmem:[#allocation3 + $0x28] sm:$0xff]
        %v3637 = vld [vmem:[#allocation3 + $0x30] sm:$0xff]
        %v3638 = vld [vmem:[#allocation3 + $0x38] sm:$0xff]
        %v3639 = vld [vmem:[#allocation3 + $0x40] sm:$0xff]
        %v3640 = vld [vmem:[#allocation3 + $0x48] sm:$0xff]
        %v3641 = vld [vmem:[#allocation3 + $0x50] sm:$0xff]
        %v3642 = vld [vmem:[#allocation3 + $0x58] sm:$0xff]
        %v3643 = vld [vmem:[#allocation3 + $0x60] sm:$0xff]
        %v3644 = vld [vmem:[#allocation3 + $0x68] sm:$0xff]
        %v3645 = vld [vmem:[#allocation3 + $0x70] sm:$0xff]
        %v3646 = vld [vmem:[#allocation3 + $0x78] sm:$0xff]
        %v3647 = vld [vmem:[#allocation3 + $0x80] sm:$0xff]
        %v3648 = vld [vmem:[#allocation3 + $0x88] sm:$0xff]
        %v3649 = vld [vmem:[#allocation3 + $0x90] sm:$0xff]
        %v3650 = vld [vmem:[#allocation3 + $0x98] sm:$0xff]
        %v3651 = vld [vmem:[#allocation3 + $0xa0] sm:$0xff]
        %v3652 = vld [vmem:[#allocation3 + $0xa8] sm:$0xff]
        %v3653 = vld [vmem:[#allocation3 + $0xb0] sm:$0xff]
        %v3654 = vld [vmem:[#allocation3 + $0xb8] sm:$0xff]
        %v3655 = vld [vmem:[#allocation3 + $0xc0] sm:$0xff]
        %v3656 = vld [vmem:[#allocation3 + $0xc8] sm:$0xff]
        %v3657 = vld [vmem:[#allocation3 + $0xd0] sm:$0xff]
        %v3658 = vld [vmem:[#allocation3 + $0xd8] sm:$0xff]
        %v3659 = vld [vmem:[#allocation3 + $0xe0] sm:$0xff]
        %v3660 = vld [vmem:[#allocation3 + $0xe8] sm:$0xff]
        %v3661 = vld [vmem:[#allocation3 + $0xf0] sm:$0xff]
        %v3662 = vld [vmem:[#allocation3 + $0xf8] sm:$0xff]
        %v3663 = vadd.f32 %v3631, %v3473
        %v3664 = vadd.f32 %v3632, %v3478
        %v3665 = vadd.f32 %v3633, %v3483
        %v3666 = vadd.f32 %v3634, %v3488
        %v3667 = vadd.f32 %v3635, %v3493
        %v3668 = vadd.f32 %v3636, %v3498
        %v3669 = vadd.f32 %v3637, %v3503
        %v3670 = vadd.f32 %v3638, %v3508
        %v3671 = vadd.f32 %v3639, %v3513
        %v3672 = vadd.f32 %v3640, %v3518
        %v3673 = vadd.f32 %v3641, %v3523
        %v3674 = vadd.f32 %v3642, %v3528
        %v3675 = vadd.f32 %v3643, %v3533
        %v3676 = vadd.f32 %v3644, %v3538
        %v3677 = vadd.f32 %v3645, %v3543
        %v3678 = vadd.f32 %v3646, %v3548
        %v3679 = vadd.f32 %v3647, %v3553
        %v3680 = vadd.f32 %v3648, %v3558
        %v3681 = vadd.f32 %v3649, %v3563
        %v3682 = vadd.f32 %v3650, %v3568
        %v3683 = vadd.f32 %v3651, %v3573
        %v3684 = vadd.f32 %v3652, %v3578
        %v3685 = vadd.f32 %v3653, %v3583
        %v3686 = vadd.f32 %v3654, %v3588
        %v3687 = vadd.f32 %v3655, %v3593
        %v3688 = vadd.f32 %v3656, %v3598
        %v3689 = vadd.f32 %v3657, %v3603
        %v3690 = vadd.f32 %v3658, %v3608
        %v3691 = vadd.f32 %v3659, %v3613
        %v3692 = vadd.f32 %v3660, %v3618
        %v3693 = vadd.f32 %v3661, %v3623
        %v3694 = vadd.f32 %v3662, %v3628
        %3695 = vst [vmem:[#allocation3] sm:$0xff] %v3663
        %3696 = vst [vmem:[#allocation3 + $0x8] sm:$0xff] %v3664
        %3697 = vst [vmem:[#allocation3 + $0x10] sm:$0xff] %v3665
        %3698 = vst [vmem:[#allocation3 + $0x18] sm:$0xff] %v3666
        %3699 = vst [vmem:[#allocation3 + $0x20] sm:$0xff] %v3667
        %3700 = vst [vmem:[#allocation3 + $0x28] sm:$0xff] %v3668
        %3701 = vst [vmem:[#allocation3 + $0x30] sm:$0xff] %v3669
        %3702 = vst [vmem:[#allocation3 + $0x38] sm:$0xff] %v3670
        %3703 = vst [vmem:[#allocation3 + $0x40] sm:$0xff] %v3671
        %3704 = vst [vmem:[#allocation3 + $0x48] sm:$0xff] %v3672
        %3705 = vst [vmem:[#allocation3 + $0x50] sm:$0xff] %v3673
        %3706 = vst [vmem:[#allocation3 + $0x58] sm:$0xff] %v3674
        %3707 = vst [vmem:[#allocation3 + $0x60] sm:$0xff] %v3675
        %3708 = vst [vmem:[#allocation3 + $0x68] sm:$0xff] %v3676
        %3709 = vst [vmem:[#allocation3 + $0x70] sm:$0xff] %v3677
        %3710 = vst [vmem:[#allocation3 + $0x78] sm:$0xff] %v3678
        %3711 = vst [vmem:[#allocation3 + $0x80] sm:$0xff] %v3679
        %3712 = vst [vmem:[#allocation3 + $0x88] sm:$0xff] %v3680
        %3713 = vst [vmem:[#allocation3 + $0x90] sm:$0xff] %v3681
        %3714 = vst [vmem:[#allocation3 + $0x98] sm:$0xff] %v3682
        %3715 = vst [vmem:[#allocation3 + $0xa0] sm:$0xff] %v3683
        %3716 = vst [vmem:[#allocation3 + $0xa8] sm:$0xff] %v3684
        %3717 = vst [vmem:[#allocation3 + $0xb0] sm:$0xff] %v3685
        %3718 = vst [vmem:[#allocation3 + $0xb8] sm:$0xff] %v3686
        %3719 = vst [vmem:[#allocation3 + $0xc0] sm:$0xff] %v3687
        %3720 = vst [vmem:[#allocation3 + $0xc8] sm:$0xff] %v3688
        %3721 = vst [vmem:[#allocation3 + $0xd0] sm:$0xff] %v3689
        %3722 = vst [vmem:[#allocation3 + $0xd8] sm:$0xff] %v3690
        %3723 = vst [vmem:[#allocation3 + $0xe0] sm:$0xff] %v3691
        %3724 = vst [vmem:[#allocation3 + $0xe8] sm:$0xff] %v3692
        %3725 = vst [vmem:[#allocation3 + $0xf0] sm:$0xff] %v3693
        %3726 = vst [vmem:[#allocation3 + $0xf8] sm:$0xff] %v3694
        %v3727 = vld [vmem:[#allocation3] sm:$0xff]
        %v3728 = vld [vmem:[#allocation3 + $0x8] sm:$0xff]
        %v3729 = vld [vmem:[#allocation3 + $0x10] sm:$0xff]
        %v3730 = vld [vmem:[#allocation3 + $0x18] sm:$0xff]
        %v3731 = vld [vmem:[#allocation3 + $0x20] sm:$0xff]
        %v3732 = vld [vmem:[#allocation3 + $0x28] sm:$0xff]
        %v3733 = vld [vmem:[#allocation3 + $0x30] sm:$0xff]
        %v3734 = vld [vmem:[#allocation3 + $0x38] sm:$0xff]
        %v3735 = vld [vmem:[#allocation3 + $0x40] sm:$0xff]
        %v3736 = vld [vmem:[#allocation3 + $0x48] sm:$0xff]
        %v3737 = vld [vmem:[#allocation3 + $0x50] sm:$0xff]
        %v3738 = vld [vmem:[#allocation3 + $0x58] sm:$0xff]
        %v3739 = vld [vmem:[#allocation3 + $0x60] sm:$0xff]
        %v3740 = vld [vmem:[#allocation3 + $0x68] sm:$0xff]
        %v3741 = vld [vmem:[#allocation3 + $0x70] sm:$0xff]
        %v3742 = vld [vmem:[#allocation3 + $0x78] sm:$0xff]
        %v3743 = vld [vmem:[#allocation3 + $0x80] sm:$0xff]
        %v3744 = vld [vmem:[#allocation3 + $0x88] sm:$0xff]
        %v3745 = vld [vmem:[#allocation3 + $0x90] sm:$0xff]
        %v3746 = vld [vmem:[#allocation3 + $0x98] sm:$0xff]
        %v3747 = vld [vmem:[#allocation3 + $0xa0] sm:$0xff]
        %v3748 = vld [vmem:[#allocation3 + $0xa8] sm:$0xff]
        %v3749 = vld [vmem:[#allocation3 + $0xb0] sm:$0xff]
        %v3750 = vld [vmem:[#allocation3 + $0xb8] sm:$0xff]
        %v3751 = vld [vmem:[#allocation3 + $0xc0] sm:$0xff]
        %v3752 = vld [vmem:[#allocation3 + $0xc8] sm:$0xff]
        %v3753 = vld [vmem:[#allocation3 + $0xd0] sm:$0xff]
        %v3754 = vld [vmem:[#allocation3 + $0xd8] sm:$0xff]
        %v3755 = vld [vmem:[#allocation3 + $0xe0] sm:$0xff]
        %v3756 = vld [vmem:[#allocation3 + $0xe8] sm:$0xff]
        %v3757 = vld [vmem:[#allocation3 + $0xf0] sm:$0xff]
        %v3758 = vld [vmem:[#allocation3 + $0xf8] sm:$0xff]
        %v3759 = vld [vmem:[%s2] sm:$0x1]
        %v3761 = vlaneseq
        %v3762 = vshrl.u32 %v3761, 7
        %v3763 = vsub.s32 0, %v3762
        %v3764 = vrot.slane %v3759, %v3763
        %v3766 = vmul.f32 %v3727, %v3764
        %v3767 = vmul.f32 %v3728, %v3764
        %v3768 = vmul.f32 %v3729, %v3764
        %v3769 = vmul.f32 %v3730, %v3764
        %v3770 = vmul.f32 %v3731, %v3764
        %v3771 = vmul.f32 %v3732, %v3764
        %v3772 = vmul.f32 %v3733, %v3764
        %v3773 = vmul.f32 %v3734, %v3764
        %v3774 = vmul.f32 %v3735, %v3764
        %v3775 = vmul.f32 %v3736, %v3764
        %v3776 = vmul.f32 %v3737, %v3764
        %v3777 = vmul.f32 %v3738, %v3764
        %v3778 = vmul.f32 %v3739, %v3764
        %v3779 = vmul.f32 %v3740, %v3764
        %v3780 = vmul.f32 %v3741, %v3764
        %v3781 = vmul.f32 %v3742, %v3764
        %v3782 = vmul.f32 %v3743, %v3764
        %v3783 = vmul.f32 %v3744, %v3764
        %v3784 = vmul.f32 %v3745, %v3764
        %v3785 = vmul.f32 %v3746, %v3764
        %v3786 = vmul.f32 %v3747, %v3764
        %v3787 = vmul.f32 %v3748, %v3764
        %v3788 = vmul.f32 %v3749, %v3764
        %v3789 = vmul.f32 %v3750, %v3764
        %v3790 = vmul.f32 %v3751, %v3764
        %v3791 = vmul.f32 %v3752, %v3764
        %v3792 = vmul.f32 %v3753, %v3764
        %v3793 = vmul.f32 %v3754, %v3764
        %v3794 = vmul.f32 %v3755, %v3764
        %v3795 = vmul.f32 %v3756, %v3764
        %v3796 = vmul.f32 %v3757, %v3764
        %v3797 = vmul.f32 %v3758, %v3764
        %v3798 = vld [vmem:[%s3] sm:$0x1]
        %v3800 = vlaneseq
        %v3801 = vshrl.u32 %v3800, 7
        %v3802 = vsub.s32 0, %v3801
        %v3803 = vrot.slane %v3798, %v3802
        %v3805 = vadd.f32 %v3766, %v3803
        %v3806 = vadd.f32 %v3767, %v3803
        %v3807 = vadd.f32 %v3768, %v3803
        %v3808 = vadd.f32 %v3769, %v3803
        %v3809 = vadd.f32 %v3770, %v3803
        %v3810 = vadd.f32 %v3771, %v3803
        %v3811 = vadd.f32 %v3772, %v3803
        %v3812 = vadd.f32 %v3773, %v3803
        %v3813 = vadd.f32 %v3774, %v3803
        %v3814 = vadd.f32 %v3775, %v3803
        %v3815 = vadd.f32 %v3776, %v3803
        %v3816 = vadd.f32 %v3777, %v3803
        %v3817 = vadd.f32 %v3778, %v3803
        %v3818 = vadd.f32 %v3779, %v3803
        %v3819 = vadd.f32 %v3780, %v3803
        %v3820 = vadd.f32 %v3781, %v3803
        %v3821 = vadd.f32 %v3782, %v3803
        %v3822 = vadd.f32 %v3783, %v3803
        %v3823 = vadd.f32 %v3784, %v3803
        %v3824 = vadd.f32 %v3785, %v3803
        %v3825 = vadd.f32 %v3786, %v3803
        %v3826 = vadd.f32 %v3787, %v3803
        %v3827 = vadd.f32 %v3788, %v3803
        %v3828 = vadd.f32 %v3789, %v3803
        %v3829 = vadd.f32 %v3790, %v3803
        %v3830 = vadd.f32 %v3791, %v3803
        %v3831 = vadd.f32 %v3792, %v3803
        %v3832 = vadd.f32 %v3793, %v3803
        %v3833 = vadd.f32 %v3794, %v3803
        %v3834 = vadd.f32 %v3795, %v3803
        %v3835 = vadd.f32 %v3796, %v3803
        %v3836 = vadd.f32 %v3797, %v3803
        %vm3837 = vcmp.gt.f32.partialorder %v3805, 0.0
        %vm3838 = vcmp.gt.f32.partialorder %v3806, 0.0
        %vm3839 = vcmp.gt.f32.partialorder %v3807, 0.0
        %vm3840 = vcmp.gt.f32.partialorder %v3808, 0.0
        %vm3841 = vcmp.gt.f32.partialorder %v3809, 0.0
        %vm3842 = vcmp.gt.f32.partialorder %v3810, 0.0
        %vm3843 = vcmp.gt.f32.partialorder %v3811, 0.0
        %vm3844 = vcmp.gt.f32.partialorder %v3812, 0.0
        %vm3845 = vcmp.gt.f32.partialorder %v3813, 0.0
        %vm3846 = vcmp.gt.f32.partialorder %v3814, 0.0
        %vm3847 = vcmp.gt.f32.partialorder %v3815, 0.0
        %vm3848 = vcmp.gt.f32.partialorder %v3816, 0.0
        %vm3849 = vcmp.gt.f32.partialorder %v3817, 0.0
        %vm3850 = vcmp.gt.f32.partialorder %v3818, 0.0
        %vm3851 = vcmp.gt.f32.partialorder %v3819, 0.0
        %vm3852 = vcmp.gt.f32.partialorder %v3820, 0.0
        %vm3853 = vcmp.gt.f32.partialorder %v3821, 0.0
        %vm3854 = vcmp.gt.f32.partialorder %v3822, 0.0
        %vm3855 = vcmp.gt.f32.partialorder %v3823, 0.0
        %vm3856 = vcmp.gt.f32.partialorder %v3824, 0.0
        %vm3857 = vcmp.gt.f32.partialorder %v3825, 0.0
        %vm3858 = vcmp.gt.f32.partialorder %v3826, 0.0
        %vm3859 = vcmp.gt.f32.partialorder %v3827, 0.0
        %vm3860 = vcmp.gt.f32.partialorder %v3828, 0.0
        %vm3861 = vcmp.gt.f32.partialorder %v3829, 0.0
        %vm3862 = vcmp.gt.f32.partialorder %v3830, 0.0
        %vm3863 = vcmp.gt.f32.partialorder %v3831, 0.0
        %vm3864 = vcmp.gt.f32.partialorder %v3832, 0.0
        %vm3865 = vcmp.gt.f32.partialorder %v3833, 0.0
        %vm3866 = vcmp.gt.f32.partialorder %v3834, 0.0
        %vm3867 = vcmp.gt.f32.partialorder %v3835, 0.0
        %vm3868 = vcmp.gt.f32.partialorder %v3836, 0.0
        %v3869 = vld [vmem:[%s7] sm:$0x1]
        %v3871 = vlaneseq
        %v3872 = vshrl.u32 %v3871, 7
        %v3873 = vsub.s32 0, %v3872
        %v3874 = vrot.slane %v3869, %v3873
        %v3876 = vmul.f32 %v3874, %v3805
        %v3877 = vmul.f32 %v3874, %v3806
        %v3878 = vmul.f32 %v3874, %v3807
        %v3879 = vmul.f32 %v3874, %v3808
        %v3880 = vmul.f32 %v3874, %v3809
        %v3881 = vmul.f32 %v3874, %v3810
        %v3882 = vmul.f32 %v3874, %v3811
        %v3883 = vmul.f32 %v3874, %v3812
        %v3884 = vmul.f32 %v3874, %v3813
        %v3885 = vmul.f32 %v3874, %v3814
        %v3886 = vmul.f32 %v3874, %v3815
        %v3887 = vmul.f32 %v3874, %v3816
        %v3888 = vmul.f32 %v3874, %v3817
        %v3889 = vmul.f32 %v3874, %v3818
        %v3890 = vmul.f32 %v3874, %v3819
        %v3891 = vmul.f32 %v3874, %v3820
        %v3892 = vmul.f32 %v3874, %v3821
        %v3893 = vmul.f32 %v3874, %v3822
        %v3894 = vmul.f32 %v3874, %v3823
        %v3895 = vmul.f32 %v3874, %v3824
        %v3896 = vmul.f32 %v3874, %v3825
        %v3897 = vmul.f32 %v3874, %v3826
        %v3898 = vmul.f32 %v3874, %v3827
        %v3899 = vmul.f32 %v3874, %v3828
        %v3900 = vmul.f32 %v3874, %v3829
        %v3901 = vmul.f32 %v3874, %v3830
        %v3902 = vmul.f32 %v3874, %v3831
        %v3903 = vmul.f32 %v3874, %v3832
        %v3904 = vmul.f32 %v3874, %v3833
        %v3905 = vmul.f32 %v3874, %v3834
        %v3906 = vmul.f32 %v3874, %v3835
        %v3907 = vmul.f32 %v3874, %v3836
        %v3908 = vsel %vm3837, %v3805, %v3876
        %v3909 = vsel %vm3838, %v3806, %v3877
        %v3910 = vsel %vm3839, %v3807, %v3878
        %v3911 = vsel %vm3840, %v3808, %v3879
        %v3912 = vsel %vm3841, %v3809, %v3880
        %v3913 = vsel %vm3842, %v3810, %v3881
        %v3914 = vsel %vm3843, %v3811, %v3882
        %v3915 = vsel %vm3844, %v3812, %v3883
        %v3916 = vsel %vm3845, %v3813, %v3884
        %v3917 = vsel %vm3846, %v3814, %v3885
        %v3918 = vsel %vm3847, %v3815, %v3886
        %v3919 = vsel %vm3848, %v3816, %v3887
        %v3920 = vsel %vm3849, %v3817, %v3888
        %v3921 = vsel %vm3850, %v3818, %v3889
        %v3922 = vsel %vm3851, %v3819, %v3890
        %v3923 = vsel %vm3852, %v3820, %v3891
        %v3924 = vsel %vm3853, %v3821, %v3892
        %v3925 = vsel %vm3854, %v3822, %v3893
        %v3926 = vsel %vm3855, %v3823, %v3894
        %v3927 = vsel %vm3856, %v3824, %v3895
        %v3928 = vsel %vm3857, %v3825, %v3896
        %v3929 = vsel %vm3858, %v3826, %v3897
        %v3930 = vsel %vm3859, %v3827, %v3898
        %v3931 = vsel %vm3860, %v3828, %v3899
        %v3932 = vsel %vm3861, %v3829, %v3900
        %v3933 = vsel %vm3862, %v3830, %v3901
        %v3934 = vsel %vm3863, %v3831, %v3902
        %v3935 = vsel %vm3864, %v3832, %v3903
        %v3936 = vsel %vm3865, %v3833, %v3904
        %v3937 = vsel %vm3866, %v3834, %v3905
        %v3938 = vsel %vm3867, %v3835, %v3906
        %v3939 = vsel %vm3868, %v3836, %v3907
        %3940 = vst [vmem:[%s428 + $0x1] sm:$0xff] %v3908
        %3941 = vst [vmem:[%s428 + $0x9] sm:$0xff] %v3909
        %3942 = vst [vmem:[%s428 + $0x19] sm:$0xff] %v3910
        %3943 = vst [vmem:[%s428 + $0x21] sm:$0xff] %v3911
        %3944 = vst [vmem:[%s428 + $0x31] sm:$0xff] %v3912
        %3945 = vst [vmem:[%s428 + $0x39] sm:$0xff] %v3913
        %3946 = vst [vmem:[%s428 + $0x49] sm:$0xff] %v3914
        %3947 = vst [vmem:[%s428 + $0x51] sm:$0xff] %v3915
        %3948 = vst [vmem:[%s428 + $0x61] sm:$0xff] %v3916
        %3949 = vst [vmem:[%s428 + $0x69] sm:$0xff] %v3917
        %3950 = vst [vmem:[%s428 + $0x79] sm:$0xff] %v3918
        %3951 = vst [vmem:[%s428 + $0x81] sm:$0xff] %v3919
        %3952 = vst [vmem:[%s428 + $0x91] sm:$0xff] %v3920
        %3953 = vst [vmem:[%s428 + $0x99] sm:$0xff] %v3921
        %3954 = vst [vmem:[%s428 + $0xa9] sm:$0xff] %v3922
        %3955 = vst [vmem:[%s428 + $0xb1] sm:$0xff] %v3923
        %3956 = vst [vmem:[%s428 + $0xc1] sm:$0xff] %v3924
        %3957 = vst [vmem:[%s428 + $0xc9] sm:$0xff] %v3925
        %3958 = vst [vmem:[%s428 + $0xd9] sm:$0xff] %v3926
        %3959 = vst [vmem:[%s428 + $0xe1] sm:$0xff] %v3927
        %3960 = vst [vmem:[%s428 + $0xf1] sm:$0xff] %v3928
        %3961 = vst [vmem:[%s428 + $0xf9] sm:$0xff] %v3929
        %3962 = vst [vmem:[%s428 + $0x109] sm:$0xff] %v3930
        %3963 = vst [vmem:[%s428 + $0x111] sm:$0xff] %v3931
        %3964 = vst [vmem:[%s428 + $0x121] sm:$0xff] %v3932
        %3965 = vst [vmem:[%s428 + $0x129] sm:$0xff] %v3933
        %3966 = vst [vmem:[%s428 + $0x139] sm:$0xff] %v3934
        %3967 = vst [vmem:[%s428 + $0x141] sm:$0xff] %v3935
        %3968 = vst [vmem:[%s428 + $0x151] sm:$0xff] %v3936
        %3969 = vst [vmem:[%s428 + $0x159] sm:$0xff] %v3937
        %3970 = vst [vmem:[%s428 + $0x169] sm:$0xff] %v3938
        %3971 = vst [vmem:[%s428 + $0x171] sm:$0xff] %v3939
        %v3972 = vld [vmem:[#allocation2] sm:$0xff]
        %v3973 = vld [vmem:[#allocation2 + $0x8] sm:$0xff]
        %v3974 = vld [vmem:[#allocation2 + $0x18] sm:$0xff]
        %v3975 = vld [vmem:[#allocation2 + $0x20] sm:$0xff]
        %v3976 = vld [vmem:[#allocation2 + $0x30] sm:$0xff]
        %v3977 = vld [vmem:[#allocation2 + $0x38] sm:$0xff]
        %v3978 = vld [vmem:[#allocation2 + $0x48] sm:$0xff]
        %v3979 = vld [vmem:[#allocation2 + $0x50] sm:$0xff]
        %v3980 = vld [vmem:[#allocation2 + $0x60] sm:$0xff]
        %v3981 = vld [vmem:[#allocation2 + $0x68] sm:$0xff]
        %v3982 = vld [vmem:[#allocation2 + $0x78] sm:$0xff]
        %v3983 = vld [vmem:[#allocation2 + $0x80] sm:$0xff]
        %v3984 = vld [vmem:[#allocation2 + $0x90] sm:$0xff]
        %v3985 = vld [vmem:[#allocation2 + $0x98] sm:$0xff]
        %v3986 = vld [vmem:[#allocation2 + $0xa8] sm:$0xff]
        %v3987 = vld [vmem:[#allocation2 + $0xb0] sm:$0xff]
        %v3988 = vld [vmem:[#allocation2 + $0xc0] sm:$0xff]
        %v3989 = vld [vmem:[#allocation2 + $0xc8] sm:$0xff]
        %v3990 = vld [vmem:[#allocation2 + $0xd8] sm:$0xff]
        %v3991 = vld [vmem:[#allocation2 + $0xe0] sm:$0xff]
        %v3992 = vld [vmem:[#allocation2 + $0xf0] sm:$0xff]
        %v3993 = vld [vmem:[#allocation2 + $0xf8] sm:$0xff]
        %v3994 = vld [vmem:[#allocation2 + $0x108] sm:$0xff]
        %v3995 = vld [vmem:[#allocation2 + $0x110] sm:$0xff]
        %v3996 = vld [vmem:[#allocation2 + $0x120] sm:$0xff]
        %v3997 = vld [vmem:[#allocation2 + $0x128] sm:$0xff]
        %v3998 = vld [vmem:[#allocation2 + $0x138] sm:$0xff]
        %v3999 = vld [vmem:[#allocation2 + $0x140] sm:$0xff]
        %v4000 = vld [vmem:[#allocation2 + $0x150] sm:$0xff]
        %v4001 = vld [vmem:[#allocation2 + $0x158] sm:$0xff]
        %v4002 = vld [vmem:[#allocation2 + $0x168] sm:$0xff]
        %v4003 = vld [vmem:[#allocation2 + $0x170] sm:$0xff]
        %v4004 = vld [vmem:[#allocation9] sm:$0xff]
        %v4005 = vld [vmem:[#allocation9 + $0x8] sm:$0xff]
        %v4006 = vld [vmem:[#allocation9 + $0x10] sm:$0xff]
        %v4007 = vld [vmem:[#allocation9 + $0x18] sm:$0xff]
        %v4008 = vld [vmem:[#allocation9 + $0x20] sm:$0xff]
        %v4009 = vld [vmem:[#allocation9 + $0x28] sm:$0xff]
        %v4010 = vld [vmem:[#allocation9 + $0x30] sm:$0xff]
        %v4011 = vld [vmem:[#allocation9 + $0x38] sm:$0xff]
        %v4012 = vld [vmem:[#allocation9 + $0x40] sm:$0xff]
        %v4013 = vld [vmem:[#allocation9 + $0x48] sm:$0xff]
        %v4014 = vld [vmem:[#allocation9 + $0x50] sm:$0xff]
        %v4015 = vld [vmem:[#allocation9 + $0x58] sm:$0xff]
        %v4016 = vld [vmem:[#allocation9 + $0x60] sm:$0xff]
        %v4017 = vld [vmem:[#allocation9 + $0x68] sm:$0xff]
        %v4018 = vld [vmem:[#allocation9 + $0x70] sm:$0xff]
        %v4019 = vld [vmem:[#allocation9 + $0x78] sm:$0xff]
        %4020 = vmatprep.subr.mxu0 0.0
        %4021 = vmatpush1.msra.mxu0 %v4004
        %4022 = vmatprep.subr.mxu0 0.0
        %4023 = vmatpush1.msra.mxu0 %v4005
        %4024 = vmatprep.subr.mxu0 0.0
        %4025 = vmatpush1.msra.mxu0 %v4006
        %4026 = vmatprep.subr.mxu0 0.0
        %4027 = vmatpush1.msra.mxu0 %v4007
        %4028 = vmatprep.subr.mxu0 0.0
        %4029 = vmatpush1.msra.mxu0 %v4008
        %4030 = vmatprep.subr.mxu0 0.0
        %4031 = vmatpush1.msra.mxu0 %v4009
        %4032 = vmatprep.subr.mxu0 0.0
        %4033 = vmatpush1.msra.mxu0 %v4010
        %4034 = vmatprep.subr.mxu0 0.0
        %4035 = vmatpush1.msra.mxu0 %v4011
        %4036 = vmatprep.subr.mxu0 0.0
        %4037 = vmatpush1.msra.mxu0 %v4012
        %4038 = vmatprep.subr.mxu0 0.0
        %4039 = vmatpush1.msra.mxu0 %v4013
        %4040 = vmatprep.subr.mxu0 0.0
        %4041 = vmatpush1.msra.mxu0 %v4014
        %4042 = vmatprep.subr.mxu0 0.0
        %4043 = vmatpush1.msra.mxu0 %v4015
        %4044 = vmatprep.subr.mxu0 0.0
        %4045 = vmatpush1.msra.mxu0 %v4016
        %4046 = vmatprep.subr.mxu0 0.0
        %4047 = vmatpush1.msra.mxu0 %v4017
        %4048 = vmatprep.subr.mxu0 0.0
        %4049 = vmatpush1.msra.mxu0 %v4018
        %4050 = vmatprep.subr.mxu0 0.0
        %4051 = vmatpush1.msra.mxu0 %v4019
        %4052 = vmatprep.subr.mxu0 0.0
        %4053 = vmatpush1.msra.mxu0 0.0
        %4054 = vmatprep.subr.mxu0 0.0
        %4055 = vmatpush1.msra.mxu0 0.0
        %4056 = vmatprep.subr.mxu0 0.0
        %4057 = vmatpush1.msra.mxu0 0.0
        %4058 = vmatprep.subr.mxu0 0.0
        %4059 = vmatpush1.msra.mxu0 0.0
        %4060 = vmatprep.subr.mxu0 0.0
        %4061 = vmatpush1.msra.mxu0 0.0
        %4062 = vmatprep.subr.mxu0 0.0
        %4063 = vmatpush1.msra.mxu0 0.0
        %4064 = vmatprep.subr.mxu0 0.0
        %4065 = vmatpush1.msra.mxu0 0.0
        %4066 = vmatprep.subr.mxu0 0.0
        %4067 = vmatpush1.msra.mxu0 0.0
        %4068 = vmatprep.subr.mxu0 0.0
        %4069 = vmatpush1.msra.mxu0 0.0
        %4070 = vmatprep.subr.mxu0 0.0
        %4071 = vmatpush1.msra.mxu0 0.0
        %4072 = vmatprep.subr.mxu0 0.0
        %4073 = vmatpush1.msra.mxu0 0.0
        %4074 = vmatprep.subr.mxu0 0.0
        %4075 = vmatpush1.msra.mxu0 0.0
        %4076 = vmatprep.subr.mxu0 0.0
        %4077 = vmatpush1.msra.mxu0 0.0
        %4078 = vmatprep.subr.mxu0 0.0
        %4079 = vmatpush1.msra.mxu0 0.0
        %4080 = vmatprep.subr.mxu0 0.0
        %4081 = vmatpush1.msra.mxu0 0.0
        %4082 = vmatprep.subr.mxu0 0.0
        %4083 = vmatpush1.msra.mxu0 0.0
        %4084 = vmatprep.mubr.f32.mxu0 0.0
        %4085 = vmatmul.mubr.f32.gmra.mrb[0].mxu0 %v3972
        %v4086 = vpop.f32.mrb[0].mxu0
        %v4087 = vadd.f32 0.0, %v4086
        %v4088 = vpop.f32.mrb[0].mxu0
        %4089 = vmatprep.mubr.f32.mxu0 0.0
        %4090 = vmatmul.mubr.f32.gmra.mrb[0].mxu0 %v3973
        %v4091 = vpop.f32.mrb[0].mxu0
        %v4092 = vadd.f32 0.0, %v4091
        %v4093 = vpop.f32.mrb[0].mxu0
        %4094 = vmatprep.mubr.f32.mxu0 0.0
        %4095 = vmatmul.mubr.f32.gmra.mrb[0].mxu0 %v3974
        %v4096 = vpop.f32.mrb[0].mxu0
        %v4097 = vadd.f32 0.0, %v4096
        %v4098 = vpop.f32.mrb[0].mxu0
        %4099 = vmatprep.mubr.f32.mxu0 0.0
        %4100 = vmatmul.mubr.f32.gmra.mrb[0].mxu0 %v3975
        %v4101 = vpop.f32.mrb[0].mxu0
        %v4102 = vadd.f32 0.0, %v4101
        %v4103 = vpop.f32.mrb[0].mxu0
        %4104 = vmatprep.mubr.f32.mxu0 0.0
        %4105 = vmatmul.mubr.f32.gmra.mrb[0].mxu0 %v3976
        %v4106 = vpop.f32.mrb[0].mxu0
        %v4107 = vadd.f32 0.0, %v4106
        %v4108 = vpop.f32.mrb[0].mxu0
        %4109 = vmatprep.mubr.f32.mxu0 0.0
        %4110 = vmatmul.mubr.f32.gmra.mrb[0].mxu0 %v3977
        %v4111 = vpop.f32.mrb[0].mxu0
        %v4112 = vadd.f32 0.0, %v4111
        %v4113 = vpop.f32.mrb[0].mxu0
        %4114 = vmatprep.mubr.f32.mxu0 0.0
        %4115 = vmatmul.mubr.f32.gmra.mrb[0].mxu0 %v3978
        %v4116 = vpop.f32.mrb[0].mxu0
        %v4117 = vadd.f32 0.0, %v4116
        %v4118 = vpop.f32.mrb[0].mxu0
        %4119 = vmatprep.mubr.f32.mxu0 0.0
        %4120 = vmatmul.mubr.f32.gmra.mrb[0].mxu0 %v3979
        %v4121 = vpop.f32.mrb[0].mxu0
        %v4122 = vadd.f32 0.0, %v4121
        %v4123 = vpop.f32.mrb[0].mxu0
        %4124 = vmatprep.mubr.f32.mxu0 0.0
        %4125 = vmatmul.mubr.f32.gmra.mrb[0].mxu0 %v3980
        %v4126 = vpop.f32.mrb[0].mxu0
        %v4127 = vadd.f32 0.0, %v4126
        %v4128 = vpop.f32.mrb[0].mxu0
        %4129 = vmatprep.mubr.f32.mxu0 0.0
        %4130 = vmatmul.mubr.f32.gmra.mrb[0].mxu0 %v3981
        %v4131 = vpop.f32.mrb[0].mxu0
        %v4132 = vadd.f32 0.0, %v4131
        %v4133 = vpop.f32.mrb[0].mxu0
        %4134 = vmatprep.mubr.f32.mxu0 0.0
        %4135 = vmatmul.mubr.f32.gmra.mrb[0].mxu0 %v3982
        %v4136 = vpop.f32.mrb[0].mxu0
        %v4137 = vadd.f32 0.0, %v4136
        %v4138 = vpop.f32.mrb[0].mxu0
        %4139 = vmatprep.mubr.f32.mxu0 0.0
        %4140 = vmatmul.mubr.f32.gmra.mrb[0].mxu0 %v3983
        %v4141 = vpop.f32.mrb[0].mxu0
        %v4142 = vadd.f32 0.0, %v4141
        %v4143 = vpop.f32.mrb[0].mxu0
        %4144 = vmatprep.mubr.f32.mxu0 0.0
        %4145 = vmatmul.mubr.f32.gmra.mrb[0].mxu0 %v3984
        %v4146 = vpop.f32.mrb[0].mxu0
        %v4147 = vadd.f32 0.0, %v4146
        %v4148 = vpop.f32.mrb[0].mxu0
        %4149 = vmatprep.mubr.f32.mxu0 0.0
        %4150 = vmatmul.mubr.f32.gmra.mrb[0].mxu0 %v3985
        %v4151 = vpop.f32.mrb[0].mxu0
        %v4152 = vadd.f32 0.0, %v4151
        %v4153 = vpop.f32.mrb[0].mxu0
        %4154 = vmatprep.mubr.f32.mxu0 0.0
        %4155 = vmatmul.mubr.f32.gmra.mrb[0].mxu0 %v3986
        %v4156 = vpop.f32.mrb[0].mxu0
        %v4157 = vadd.f32 0.0, %v4156
        %v4158 = vpop.f32.mrb[0].mxu0
        %4159 = vmatprep.mubr.f32.mxu0 0.0
        %4160 = vmatmul.mubr.f32.gmra.mrb[0].mxu0 %v3987
        %v4161 = vpop.f32.mrb[0].mxu0
        %v4162 = vadd.f32 0.0, %v4161
        %v4163 = vpop.f32.mrb[0].mxu0
        %4164 = vmatprep.mubr.f32.mxu0 0.0
        %4165 = vmatmul.mubr.f32.gmra.mrb[0].mxu0 %v3988
        %v4166 = vpop.f32.mrb[0].mxu0
        %v4167 = vadd.f32 0.0, %v4166
        %v4168 = vpop.f32.mrb[0].mxu0
        %4169 = vmatprep.mubr.f32.mxu0 0.0
        %4170 = vmatmul.mubr.f32.gmra.mrb[0].mxu0 %v3989
        %v4171 = vpop.f32.mrb[0].mxu0
        %v4172 = vadd.f32 0.0, %v4171
        %v4173 = vpop.f32.mrb[0].mxu0
        %4174 = vmatprep.mubr.f32.mxu0 0.0
        %4175 = vmatmul.mubr.f32.gmra.mrb[0].mxu0 %v3990
        %v4176 = vpop.f32.mrb[0].mxu0
        %v4177 = vadd.f32 0.0, %v4176
        %v4178 = vpop.f32.mrb[0].mxu0
        %4179 = vmatprep.mubr.f32.mxu0 0.0
        %4180 = vmatmul.mubr.f32.gmra.mrb[0].mxu0 %v3991
        %v4181 = vpop.f32.mrb[0].mxu0
        %v4182 = vadd.f32 0.0, %v4181
        %v4183 = vpop.f32.mrb[0].mxu0
        %4184 = vmatprep.mubr.f32.mxu0 0.0
        %4185 = vmatmul.mubr.f32.gmra.mrb[0].mxu0 %v3992
        %v4186 = vpop.f32.mrb[0].mxu0
        %v4187 = vadd.f32 0.0, %v4186
        %v4188 = vpop.f32.mrb[0].mxu0
        %4189 = vmatprep.mubr.f32.mxu0 0.0
        %4190 = vmatmul.mubr.f32.gmra.mrb[0].mxu0 %v3993
        %v4191 = vpop.f32.mrb[0].mxu0
        %v4192 = vadd.f32 0.0, %v4191
        %v4193 = vpop.f32.mrb[0].mxu0
        %4194 = vmatprep.mubr.f32.mxu0 0.0
        %4195 = vmatmul.mubr.f32.gmra.mrb[0].mxu0 %v3994
        %v4196 = vpop.f32.mrb[0].mxu0
        %v4197 = vadd.f32 0.0, %v4196
        %v4198 = vpop.f32.mrb[0].mxu0
        %4199 = vmatprep.mubr.f32.mxu0 0.0
        %4200 = vmatmul.mubr.f32.gmra.mrb[0].mxu0 %v3995
        %v4201 = vpop.f32.mrb[0].mxu0
        %v4202 = vadd.f32 0.0, %v4201
        %v4203 = vpop.f32.mrb[0].mxu0
        %4204 = vmatprep.mubr.f32.mxu0 0.0
        %4205 = vmatmul.mubr.f32.gmra.mrb[0].mxu0 %v3996
        %v4206 = vpop.f32.mrb[0].mxu0
        %v4207 = vadd.f32 0.0, %v4206
        %v4208 = vpop.f32.mrb[0].mxu0
        %4209 = vmatprep.mubr.f32.mxu0 0.0
        %4210 = vmatmul.mubr.f32.gmra.mrb[0].mxu0 %v3997
        %v4211 = vpop.f32.mrb[0].mxu0
        %v4212 = vadd.f32 0.0, %v4211
        %v4213 = vpop.f32.mrb[0].mxu0
        %4214 = vmatprep.mubr.f32.mxu0 0.0
        %4215 = vmatmul.mubr.f32.gmra.mrb[0].mxu0 %v3998
        %v4216 = vpop.f32.mrb[0].mxu0
        %v4217 = vadd.f32 0.0, %v4216
        %v4218 = vpop.f32.mrb[0].mxu0
        %4219 = vmatprep.mubr.f32.mxu0 0.0
        %4220 = vmatmul.mubr.f32.gmra.mrb[0].mxu0 %v3999
        %v4221 = vpop.f32.mrb[0].mxu0
        %v4222 = vadd.f32 0.0, %v4221
        %v4223 = vpop.f32.mrb[0].mxu0
        %4224 = vmatprep.mubr.f32.mxu0 0.0
        %4225 = vmatmul.mubr.f32.gmra.mrb[0].mxu0 %v4000
        %v4226 = vpop.f32.mrb[0].mxu0
        %v4227 = vadd.f32 0.0, %v4226
        %v4228 = vpop.f32.mrb[0].mxu0
        %4229 = vmatprep.mubr.f32.mxu0 0.0
        %4230 = vmatmul.mubr.f32.gmra.mrb[0].mxu0 %v4001
        %v4231 = vpop.f32.mrb[0].mxu0
        %v4232 = vadd.f32 0.0, %v4231
        %v4233 = vpop.f32.mrb[0].mxu0
        %4234 = vmatprep.mubr.f32.mxu0 0.0
        %4235 = vmatmul.mubr.f32.gmra.mrb[0].mxu0 %v4002
        %v4236 = vpop.f32.mrb[0].mxu0
        %v4237 = vadd.f32 0.0, %v4236
        %v4238 = vpop.f32.mrb[0].mxu0
        %4239 = vmatprep.mubr.f32.mxu0 0.0
        %4240 = vmatmul.mubr.f32.gmra.mrb[0].mxu0 %v4003
        %v4241 = vpop.f32.mrb[0].mxu0
        %v4242 = vadd.f32 0.0, %v4241
        %v4243 = vpop.f32.mrb[0].mxu0
        %4244 = vdwg.mxu0
        %4245 = vst [vmem:[#allocation3] sm:$0xff] %v4087
        %4246 = vst [vmem:[#allocation3 + $0x8] sm:$0xff] %v4092
        %4247 = vst [vmem:[#allocation3 + $0x10] sm:$0xff] %v4097
        %4248 = vst [vmem:[#allocation3 + $0x18] sm:$0xff] %v4102
        %4249 = vst [vmem:[#allocation3 + $0x20] sm:$0xff] %v4107
        %4250 = vst [vmem:[#allocation3 + $0x28] sm:$0xff] %v4112
        %4251 = vst [vmem:[#allocation3 + $0x30] sm:$0xff] %v4117
        %4252 = vst [vmem:[#allocation3 + $0x38] sm:$0xff] %v4122
        %4253 = vst [vmem:[#allocation3 + $0x40] sm:$0xff] %v4127
        %4254 = vst [vmem:[#allocation3 + $0x48] sm:$0xff] %v4132
        %4255 = vst [vmem:[#allocation3 + $0x50] sm:$0xff] %v4137
        %4256 = vst [vmem:[#allocation3 + $0x58] sm:$0xff] %v4142
        %4257 = vst [vmem:[#allocation3 + $0x60] sm:$0xff] %v4147
        %4258 = vst [vmem:[#allocation3 + $0x68] sm:$0xff] %v4152
        %4259 = vst [vmem:[#allocation3 + $0x70] sm:$0xff] %v4157
        %4260 = vst [vmem:[#allocation3 + $0x78] sm:$0xff] %v4162
        %4261 = vst [vmem:[#allocation3 + $0x80] sm:$0xff] %v4167
        %4262 = vst [vmem:[#allocation3 + $0x88] sm:$0xff] %v4172
        %4263 = vst [vmem:[#allocation3 + $0x90] sm:$0xff] %v4177
        %4264 = vst [vmem:[#allocation3 + $0x98] sm:$0xff] %v4182
        %4265 = vst [vmem:[#allocation3 + $0xa0] sm:$0xff] %v4187
        %4266 = vst [vmem:[#allocation3 + $0xa8] sm:$0xff] %v4192
        %4267 = vst [vmem:[#allocation3 + $0xb0] sm:$0xff] %v4197
        %4268 = vst [vmem:[#allocation3 + $0xb8] sm:$0xff] %v4202
        %4269 = vst [vmem:[#allocation3 + $0xc0] sm:$0xff] %v4207
        %4270 = vst [vmem:[#allocation3 + $0xc8] sm:$0xff] %v4212
        %4271 = vst [vmem:[#allocation3 + $0xd0] sm:$0xff] %v4217
        %4272 = vst [vmem:[#allocation3 + $0xd8] sm:$0xff] %v4222
        %4273 = vst [vmem:[#allocation3 + $0xe0] sm:$0xff] %v4227
        %4274 = vst [vmem:[#allocation3 + $0xe8] sm:$0xff] %v4232
        %4275 = vst [vmem:[#allocation3 + $0xf0] sm:$0xff] %v4237
        %4276 = vst [vmem:[#allocation3 + $0xf8] sm:$0xff] %v4242
        %v4277 = vld [vmem:[#allocation2 + $0x1] sm:$0xff]
        %v4278 = vld [vmem:[#allocation2 + $0x9] sm:$0xff]
        %v4279 = vld [vmem:[#allocation2 + $0x19] sm:$0xff]
        %v4280 = vld [vmem:[#allocation2 + $0x21] sm:$0xff]
        %v4281 = vld [vmem:[#allocation2 + $0x31] sm:$0xff]
        %v4282 = vld [vmem:[#allocation2 + $0x39] sm:$0xff]
        %v4283 = vld [vmem:[#allocation2 + $0x49] sm:$0xff]
        %v4284 = vld [vmem:[#allocation2 + $0x51] sm:$0xff]
        %v4285 = vld [vmem:[#allocation2 + $0x61] sm:$0xff]
        %v4286 = vld [vmem:[#allocation2 + $0x69] sm:$0xff]
        %v4287 = vld [vmem:[#allocation2 + $0x79] sm:$0xff]
        %v4288 = vld [vmem:[#allocation2 + $0x81] sm:$0xff]
        %v4289 = vld [vmem:[#allocation2 + $0x91] sm:$0xff]
        %v4290 = vld [vmem:[#allocation2 + $0x99] sm:$0xff]
        %v4291 = vld [vmem:[#allocation2 + $0xa9] sm:$0xff]
        %v4292 = vld [vmem:[#allocation2 + $0xb1] sm:$0xff]
        %v4293 = vld [vmem:[#allocation2 + $0xc1] sm:$0xff]
        %v4294 = vld [vmem:[#allocation2 + $0xc9] sm:$0xff]
        %v4295 = vld [vmem:[#allocation2 + $0xd9] sm:$0xff]
        %v4296 = vld [vmem:[#allocation2 + $0xe1] sm:$0xff]
        %v4297 = vld [vmem:[#allocation2 + $0xf1] sm:$0xff]
        %v4298 = vld [vmem:[#allocation2 + $0xf9] sm:$0xff]
        %v4299 = vld [vmem:[#allocation2 + $0x109] sm:$0xff]
        %v4300 = vld [vmem:[#allocation2 + $0x111] sm:$0xff]
        %v4301 = vld [vmem:[#allocation2 + $0x121] sm:$0xff]
        %v4302 = vld [vmem:[#allocation2 + $0x129] sm:$0xff]
        %v4303 = vld [vmem:[#allocation2 + $0x139] sm:$0xff]
        %v4304 = vld [vmem:[#allocation2 + $0x141] sm:$0xff]
        %v4305 = vld [vmem:[#allocation2 + $0x151] sm:$0xff]
        %v4306 = vld [vmem:[#allocation2 + $0x159] sm:$0xff]
        %v4307 = vld [vmem:[#allocation2 + $0x169] sm:$0xff]
        %v4308 = vld [vmem:[#allocation2 + $0x171] sm:$0xff]
        %s4309 = scalar_lea.vmem [#allocation9], 128
        %v4310 = vld [vmem:[%s4309] sm:$0xff]
        %v4311 = vld [vmem:[%s4309 + $0x8] sm:$0xff]
        %v4312 = vld [vmem:[%s4309 + $0x10] sm:$0xff]
        %v4313 = vld [vmem:[%s4309 + $0x18] sm:$0xff]
        %v4314 = vld [vmem:[%s4309 + $0x20] sm:$0xff]
        %v4315 = vld [vmem:[%s4309 + $0x28] sm:$0xff]
        %v4316 = vld [vmem:[%s4309 + $0x30] sm:$0xff]
        %v4317 = vld [vmem:[%s4309 + $0x38] sm:$0xff]
        %v4318 = vld [vmem:[%s4309 + $0x40] sm:$0xff]
        %v4319 = vld [vmem:[%s4309 + $0x48] sm:$0xff]
        %v4320 = vld [vmem:[%s4309 + $0x50] sm:$0xff]
        %v4321 = vld [vmem:[%s4309 + $0x58] sm:$0xff]
        %v4322 = vld [vmem:[%s4309 + $0x60] sm:$0xff]
        %v4323 = vld [vmem:[%s4309 + $0x68] sm:$0xff]
        %v4324 = vld [vmem:[%s4309 + $0x70] sm:$0xff]
        %v4325 = vld [vmem:[%s4309 + $0x78] sm:$0xff]
        %4326 = vmatprep.subr.mxu0 0.0
        %4327 = vmatpush1.msra.mxu0 %v4310
        %4328 = vmatprep.subr.mxu0 0.0
        %4329 = vmatpush1.msra.mxu0 %v4311
        %4330 = vmatprep.subr.mxu0 0.0
        %4331 = vmatpush1.msra.mxu0 %v4312
        %4332 = vmatprep.subr.mxu0 0.0
        %4333 = vmatpush1.msra.mxu0 %v4313
        %4334 = vmatprep.subr.mxu0 0.0
        %4335 = vmatpush1.msra.mxu0 %v4314
        %4336 = vmatprep.subr.mxu0 0.0
        %4337 = vmatpush1.msra.mxu0 %v4315
        %4338 = vmatprep.subr.mxu0 0.0
        %4339 = vmatpush1.msra.mxu0 %v4316
        %4340 = vmatprep.subr.mxu0 0.0
        %4341 = vmatpush1.msra.mxu0 %v4317
        %4342 = vmatprep.subr.mxu0 0.0
        %4343 = vmatpush1.msra.mxu0 %v4318
        %4344 = vmatprep.subr.mxu0 0.0
        %4345 = vmatpush1.msra.mxu0 %v4319
        %4346 = vmatprep.subr.mxu0 0.0
        %4347 = vmatpush1.msra.mxu0 %v4320
        %4348 = vmatprep.subr.mxu0 0.0
        %4349 = vmatpush1.msra.mxu0 %v4321
        %4350 = vmatprep.subr.mxu0 0.0
        %4351 = vmatpush1.msra.mxu0 %v4322
        %4352 = vmatprep.subr.mxu0 0.0
        %4353 = vmatpush1.msra.mxu0 %v4323
        %4354 = vmatprep.subr.mxu0 0.0
        %4355 = vmatpush1.msra.mxu0 %v4324
        %4356 = vmatprep.subr.mxu0 0.0
        %4357 = vmatpush1.msra.mxu0 %v4325
        %4358 = vmatprep.subr.mxu0 0.0
        %4359 = vmatpush1.msra.mxu0 0.0
        %4360 = vmatprep.subr.mxu0 0.0
        %4361 = vmatpush1.msra.mxu0 0.0
        %4362 = vmatprep.subr.mxu0 0.0
        %4363 = vmatpush1.msra.mxu0 0.0
        %4364 = vmatprep.subr.mxu0 0.0
        %4365 = vmatpush1.msra.mxu0 0.0
        %4366 = vmatprep.subr.mxu0 0.0
        %4367 = vmatpush1.msra.mxu0 0.0
        %4368 = vmatprep.subr.mxu0 0.0
        %4369 = vmatpush1.msra.mxu0 0.0
        %4370 = vmatprep.subr.mxu0 0.0
        %4371 = vmatpush1.msra.mxu0 0.0
        %4372 = vmatprep.subr.mxu0 0.0
        %4373 = vmatpush1.msra.mxu0 0.0
        %4374 = vmatprep.subr.mxu0 0.0
        %4375 = vmatpush1.msra.mxu0 0.0
        %4376 = vmatprep.subr.mxu0 0.0
        %4377 = vmatpush1.msra.mxu0 0.0
        %4378 = vmatprep.subr.mxu0 0.0
        %4379 = vmatpush1.msra.mxu0 0.0
        %4380 = vmatprep.subr.mxu0 0.0
        %4381 = vmatpush1.msra.mxu0 0.0
        %4382 = vmatprep.subr.mxu0 0.0
        %4383 = vmatpush1.msra.mxu0 0.0
        %4384 = vmatprep.subr.mxu0 0.0
        %4385 = vmatpush1.msra.mxu0 0.0
        %4386 = vmatprep.subr.mxu0 0.0
        %4387 = vmatpush1.msra.mxu0 0.0
        %4388 = vmatprep.subr.mxu0 0.0
        %4389 = vmatpush1.msra.mxu0 0.0
        %4390 = vmatprep.mubr.f32.mxu0 0.0
        %4391 = vmatmul.mubr.f32.gmra.mrb[0].mxu0 %v4277
        %v4392 = vpop.f32.mrb[0].mxu0
        %v4393 = vadd.f32 0.0, %v4392
        %v4394 = vpop.f32.mrb[0].mxu0
        %4395 = vmatprep.mubr.f32.mxu0 0.0
        %4396 = vmatmul.mubr.f32.gmra.mrb[0].mxu0 %v4278
        %v4397 = vpop.f32.mrb[0].mxu0
        %v4398 = vadd.f32 0.0, %v4397
        %v4399 = vpop.f32.mrb[0].mxu0
        %4400 = vmatprep.mubr.f32.mxu0 0.0
        %4401 = vmatmul.mubr.f32.gmra.mrb[0].mxu0 %v4279
        %v4402 = vpop.f32.mrb[0].mxu0
        %v4403 = vadd.f32 0.0, %v4402
        %v4404 = vpop.f32.mrb[0].mxu0
        %4405 = vmatprep.mubr.f32.mxu0 0.0
        %4406 = vmatmul.mubr.f32.gmra.mrb[0].mxu0 %v4280
        %v4407 = vpop.f32.mrb[0].mxu0
        %v4408 = vadd.f32 0.0, %v4407
        %v4409 = vpop.f32.mrb[0].mxu0
        %4410 = vmatprep.mubr.f32.mxu0 0.0
        %4411 = vmatmul.mubr.f32.gmra.mrb[0].mxu0 %v4281
        %v4412 = vpop.f32.mrb[0].mxu0
        %v4413 = vadd.f32 0.0, %v4412
        %v4414 = vpop.f32.mrb[0].mxu0
        %4415 = vmatprep.mubr.f32.mxu0 0.0
        %4416 = vmatmul.mubr.f32.gmra.mrb[0].mxu0 %v4282
        %v4417 = vpop.f32.mrb[0].mxu0
        %v4418 = vadd.f32 0.0, %v4417
        %v4419 = vpop.f32.mrb[0].mxu0
        %4420 = vmatprep.mubr.f32.mxu0 0.0
        %4421 = vmatmul.mubr.f32.gmra.mrb[0].mxu0 %v4283
        %v4422 = vpop.f32.mrb[0].mxu0
        %v4423 = vadd.f32 0.0, %v4422
        %v4424 = vpop.f32.mrb[0].mxu0
        %4425 = vmatprep.mubr.f32.mxu0 0.0
        %4426 = vmatmul.mubr.f32.gmra.mrb[0].mxu0 %v4284
        %v4427 = vpop.f32.mrb[0].mxu0
        %v4428 = vadd.f32 0.0, %v4427
        %v4429 = vpop.f32.mrb[0].mxu0
        %4430 = vmatprep.mubr.f32.mxu0 0.0
        %4431 = vmatmul.mubr.f32.gmra.mrb[0].mxu0 %v4285
        %v4432 = vpop.f32.mrb[0].mxu0
        %v4433 = vadd.f32 0.0, %v4432
        %v4434 = vpop.f32.mrb[0].mxu0
        %4435 = vmatprep.mubr.f32.mxu0 0.0
        %4436 = vmatmul.mubr.f32.gmra.mrb[0].mxu0 %v4286
        %v4437 = vpop.f32.mrb[0].mxu0
        %v4438 = vadd.f32 0.0, %v4437
        %v4439 = vpop.f32.mrb[0].mxu0
        %4440 = vmatprep.mubr.f32.mxu0 0.0
        %4441 = vmatmul.mubr.f32.gmra.mrb[0].mxu0 %v4287
        %v4442 = vpop.f32.mrb[0].mxu0
        %v4443 = vadd.f32 0.0, %v4442
        %v4444 = vpop.f32.mrb[0].mxu0
        %4445 = vmatprep.mubr.f32.mxu0 0.0
        %4446 = vmatmul.mubr.f32.gmra.mrb[0].mxu0 %v4288
        %v4447 = vpop.f32.mrb[0].mxu0
        %v4448 = vadd.f32 0.0, %v4447
        %v4449 = vpop.f32.mrb[0].mxu0
        %4450 = vmatprep.mubr.f32.mxu0 0.0
        %4451 = vmatmul.mubr.f32.gmra.mrb[0].mxu0 %v4289
        %v4452 = vpop.f32.mrb[0].mxu0
        %v4453 = vadd.f32 0.0, %v4452
        %v4454 = vpop.f32.mrb[0].mxu0
        %4455 = vmatprep.mubr.f32.mxu0 0.0
        %4456 = vmatmul.mubr.f32.gmra.mrb[0].mxu0 %v4290
        %v4457 = vpop.f32.mrb[0].mxu0
        %v4458 = vadd.f32 0.0, %v4457
        %v4459 = vpop.f32.mrb[0].mxu0
        %4460 = vmatprep.mubr.f32.mxu0 0.0
        %4461 = vmatmul.mubr.f32.gmra.mrb[0].mxu0 %v4291
        %v4462 = vpop.f32.mrb[0].mxu0
        %v4463 = vadd.f32 0.0, %v4462
        %v4464 = vpop.f32.mrb[0].mxu0
        %4465 = vmatprep.mubr.f32.mxu0 0.0
        %4466 = vmatmul.mubr.f32.gmra.mrb[0].mxu0 %v4292
        %v4467 = vpop.f32.mrb[0].mxu0
        %v4468 = vadd.f32 0.0, %v4467
        %v4469 = vpop.f32.mrb[0].mxu0
        %4470 = vmatprep.mubr.f32.mxu0 0.0
        %4471 = vmatmul.mubr.f32.gmra.mrb[0].mxu0 %v4293
        %v4472 = vpop.f32.mrb[0].mxu0
        %v4473 = vadd.f32 0.0, %v4472
        %v4474 = vpop.f32.mrb[0].mxu0
        %4475 = vmatprep.mubr.f32.mxu0 0.0
        %4476 = vmatmul.mubr.f32.gmra.mrb[0].mxu0 %v4294
        %v4477 = vpop.f32.mrb[0].mxu0
        %v4478 = vadd.f32 0.0, %v4477
        %v4479 = vpop.f32.mrb[0].mxu0
        %4480 = vmatprep.mubr.f32.mxu0 0.0
        %4481 = vmatmul.mubr.f32.gmra.mrb[0].mxu0 %v4295
        %v4482 = vpop.f32.mrb[0].mxu0
        %v4483 = vadd.f32 0.0, %v4482
        %v4484 = vpop.f32.mrb[0].mxu0
        %4485 = vmatprep.mubr.f32.mxu0 0.0
        %4486 = vmatmul.mubr.f32.gmra.mrb[0].mxu0 %v4296
        %v4487 = vpop.f32.mrb[0].mxu0
        %v4488 = vadd.f32 0.0, %v4487
        %v4489 = vpop.f32.mrb[0].mxu0
        %4490 = vmatprep.mubr.f32.mxu0 0.0
        %4491 = vmatmul.mubr.f32.gmra.mrb[0].mxu0 %v4297
        %v4492 = vpop.f32.mrb[0].mxu0
        %v4493 = vadd.f32 0.0, %v4492
        %v4494 = vpop.f32.mrb[0].mxu0
        %4495 = vmatprep.mubr.f32.mxu0 0.0
        %4496 = vmatmul.mubr.f32.gmra.mrb[0].mxu0 %v4298
        %v4497 = vpop.f32.mrb[0].mxu0
        %v4498 = vadd.f32 0.0, %v4497
        %v4499 = vpop.f32.mrb[0].mxu0
        %4500 = vmatprep.mubr.f32.mxu0 0.0
        %4501 = vmatmul.mubr.f32.gmra.mrb[0].mxu0 %v4299
        %v4502 = vpop.f32.mrb[0].mxu0
        %v4503 = vadd.f32 0.0, %v4502
        %v4504 = vpop.f32.mrb[0].mxu0
        %4505 = vmatprep.mubr.f32.mxu0 0.0
        %4506 = vmatmul.mubr.f32.gmra.mrb[0].mxu0 %v4300
        %v4507 = vpop.f32.mrb[0].mxu0
        %v4508 = vadd.f32 0.0, %v4507
        %v4509 = vpop.f32.mrb[0].mxu0
        %4510 = vmatprep.mubr.f32.mxu0 0.0
        %4511 = vmatmul.mubr.f32.gmra.mrb[0].mxu0 %v4301
        %v4512 = vpop.f32.mrb[0].mxu0
        %v4513 = vadd.f32 0.0, %v4512
        %v4514 = vpop.f32.mrb[0].mxu0
        %4515 = vmatprep.mubr.f32.mxu0 0.0
        %4516 = vmatmul.mubr.f32.gmra.mrb[0].mxu0 %v4302
        %v4517 = vpop.f32.mrb[0].mxu0
        %v4518 = vadd.f32 0.0, %v4517
        %v4519 = vpop.f32.mrb[0].mxu0
        %4520 = vmatprep.mubr.f32.mxu0 0.0
        %4521 = vmatmul.mubr.f32.gmra.mrb[0].mxu0 %v4303
        %v4522 = vpop.f32.mrb[0].mxu0
        %v4523 = vadd.f32 0.0, %v4522
        %v4524 = vpop.f32.mrb[0].mxu0
        %4525 = vmatprep.mubr.f32.mxu0 0.0
        %4526 = vmatmul.mubr.f32.gmra.mrb[0].mxu0 %v4304
        %v4527 = vpop.f32.mrb[0].mxu0
        %v4528 = vadd.f32 0.0, %v4527
        %v4529 = vpop.f32.mrb[0].mxu0
        %4530 = vmatprep.mubr.f32.mxu0 0.0
        %4531 = vmatmul.mubr.f32.gmra.mrb[0].mxu0 %v4305
        %v4532 = vpop.f32.mrb[0].mxu0
        %v4533 = vadd.f32 0.0, %v4532
        %v4534 = vpop.f32.mrb[0].mxu0
        %4535 = vmatprep.mubr.f32.mxu0 0.0
        %4536 = vmatmul.mubr.f32.gmra.mrb[0].mxu0 %v4306
        %v4537 = vpop.f32.mrb[0].mxu0
        %v4538 = vadd.f32 0.0, %v4537
        %v4539 = vpop.f32.mrb[0].mxu0
        %4540 = vmatprep.mubr.f32.mxu0 0.0
        %4541 = vmatmul.mubr.f32.gmra.mrb[0].mxu0 %v4307
        %v4542 = vpop.f32.mrb[0].mxu0
        %v4543 = vadd.f32 0.0, %v4542
        %v4544 = vpop.f32.mrb[0].mxu0
        %4545 = vmatprep.mubr.f32.mxu0 0.0
        %4546 = vmatmul.mubr.f32.gmra.mrb[0].mxu0 %v4308
        %v4547 = vpop.f32.mrb[0].mxu0
        %v4548 = vadd.f32 0.0, %v4547
        %v4549 = vpop.f32.mrb[0].mxu0
        %4550 = vdwg.mxu0
        %v4551 = vld [vmem:[#allocation3] sm:$0xff]
        %v4552 = vld [vmem:[#allocation3 + $0x8] sm:$0xff]
        %v4553 = vld [vmem:[#allocation3 + $0x10] sm:$0xff]
        %v4554 = vld [vmem:[#allocation3 + $0x18] sm:$0xff]
        %v4555 = vld [vmem:[#allocation3 + $0x20] sm:$0xff]
        %v4556 = vld [vmem:[#allocation3 + $0x28] sm:$0xff]
        %v4557 = vld [vmem:[#allocation3 + $0x30] sm:$0xff]
        %v4558 = vld [vmem:[#allocation3 + $0x38] sm:$0xff]
        %v4559 = vld [vmem:[#allocation3 + $0x40] sm:$0xff]
        %v4560 = vld [vmem:[#allocation3 + $0x48] sm:$0xff]
        %v4561 = vld [vmem:[#allocation3 + $0x50] sm:$0xff]
        %v4562 = vld [vmem:[#allocation3 + $0x58] sm:$0xff]
        %v4563 = vld [vmem:[#allocation3 + $0x60] sm:$0xff]
        %v4564 = vld [vmem:[#allocation3 + $0x68] sm:$0xff]
        %v4565 = vld [vmem:[#allocation3 + $0x70] sm:$0xff]
        %v4566 = vld [vmem:[#allocation3 + $0x78] sm:$0xff]
        %v4567 = vld [vmem:[#allocation3 + $0x80] sm:$0xff]
        %v4568 = vld [vmem:[#allocation3 + $0x88] sm:$0xff]
        %v4569 = vld [vmem:[#allocation3 + $0x90] sm:$0xff]
        %v4570 = vld [vmem:[#allocation3 + $0x98] sm:$0xff]
        %v4571 = vld [vmem:[#allocation3 + $0xa0] sm:$0xff]
        %v4572 = vld [vmem:[#allocation3 + $0xa8] sm:$0xff]
        %v4573 = vld [vmem:[#allocation3 + $0xb0] sm:$0xff]
        %v4574 = vld [vmem:[#allocation3 + $0xb8] sm:$0xff]
        %v4575 = vld [vmem:[#allocation3 + $0xc0] sm:$0xff]
        %v4576 = vld [vmem:[#allocation3 + $0xc8] sm:$0xff]
        %v4577 = vld [vmem:[#allocation3 + $0xd0] sm:$0xff]
        %v4578 = vld [vmem:[#allocation3 + $0xd8] sm:$0xff]
        %v4579 = vld [vmem:[#allocation3 + $0xe0] sm:$0xff]
        %v4580 = vld [vmem:[#allocation3 + $0xe8] sm:$0xff]
        %v4581 = vld [vmem:[#allocation3 + $0xf0] sm:$0xff]
        %v4582 = vld [vmem:[#allocation3 + $0xf8] sm:$0xff]
        %v4583 = vadd.f32 %v4551, %v4393
        %v4584 = vadd.f32 %v4552, %v4398
        %v4585 = vadd.f32 %v4553, %v4403
        %v4586 = vadd.f32 %v4554, %v4408
        %v4587 = vadd.f32 %v4555, %v4413
        %v4588 = vadd.f32 %v4556, %v4418
        %v4589 = vadd.f32 %v4557, %v4423
        %v4590 = vadd.f32 %v4558, %v4428
        %v4591 = vadd.f32 %v4559, %v4433
        %v4592 = vadd.f32 %v4560, %v4438
        %v4593 = vadd.f32 %v4561, %v4443
        %v4594 = vadd.f32 %v4562, %v4448
        %v4595 = vadd.f32 %v4563, %v4453
        %v4596 = vadd.f32 %v4564, %v4458
        %v4597 = vadd.f32 %v4565, %v4463
        %v4598 = vadd.f32 %v4566, %v4468
        %v4599 = vadd.f32 %v4567, %v4473
        %v4600 = vadd.f32 %v4568, %v4478
        %v4601 = vadd.f32 %v4569, %v4483
        %v4602 = vadd.f32 %v4570, %v4488
        %v4603 = vadd.f32 %v4571, %v4493
        %v4604 = vadd.f32 %v4572, %v4498
        %v4605 = vadd.f32 %v4573, %v4503
        %v4606 = vadd.f32 %v4574, %v4508
        %v4607 = vadd.f32 %v4575, %v4513
        %v4608 = vadd.f32 %v4576, %v4518
        %v4609 = vadd.f32 %v4577, %v4523
        %v4610 = vadd.f32 %v4578, %v4528
        %v4611 = vadd.f32 %v4579, %v4533
        %v4612 = vadd.f32 %v4580, %v4538
        %v4613 = vadd.f32 %v4581, %v4543
        %v4614 = vadd.f32 %v4582, %v4548
        %4615 = vst [vmem:[#allocation3] sm:$0xff] %v4583
        %4616 = vst [vmem:[#allocation3 + $0x8] sm:$0xff] %v4584
        %4617 = vst [vmem:[#allocation3 + $0x10] sm:$0xff] %v4585
        %4618 = vst [vmem:[#allocation3 + $0x18] sm:$0xff] %v4586
        %4619 = vst [vmem:[#allocation3 + $0x20] sm:$0xff] %v4587
        %4620 = vst [vmem:[#allocation3 + $0x28] sm:$0xff] %v4588
        %4621 = vst [vmem:[#allocation3 + $0x30] sm:$0xff] %v4589
        %4622 = vst [vmem:[#allocation3 + $0x38] sm:$0xff] %v4590
        %4623 = vst [vmem:[#allocation3 + $0x40] sm:$0xff] %v4591
        %4624 = vst [vmem:[#allocation3 + $0x48] sm:$0xff] %v4592
        %4625 = vst [vmem:[#allocation3 + $0x50] sm:$0xff] %v4593
        %4626 = vst [vmem:[#allocation3 + $0x58] sm:$0xff] %v4594
        %4627 = vst [vmem:[#allocation3 + $0x60] sm:$0xff] %v4595
        %4628 = vst [vmem:[#allocation3 + $0x68] sm:$0xff] %v4596
        %4629 = vst [vmem:[#allocation3 + $0x70] sm:$0xff] %v4597
        %4630 = vst [vmem:[#allocation3 + $0x78] sm:$0xff] %v4598
        %4631 = vst [vmem:[#allocation3 + $0x80] sm:$0xff] %v4599
        %4632 = vst [vmem:[#allocation3 + $0x88] sm:$0xff] %v4600
        %4633 = vst [vmem:[#allocation3 + $0x90] sm:$0xff] %v4601
        %4634 = vst [vmem:[#allocation3 + $0x98] sm:$0xff] %v4602
        %4635 = vst [vmem:[#allocation3 + $0xa0] sm:$0xff] %v4603
        %4636 = vst [vmem:[#allocation3 + $0xa8] sm:$0xff] %v4604
        %4637 = vst [vmem:[#allocation3 + $0xb0] sm:$0xff] %v4605
        %4638 = vst [vmem:[#allocation3 + $0xb8] sm:$0xff] %v4606
        %4639 = vst [vmem:[#allocation3 + $0xc0] sm:$0xff] %v4607
        %4640 = vst [vmem:[#allocation3 + $0xc8] sm:$0xff] %v4608
        %4641 = vst [vmem:[#allocation3 + $0xd0] sm:$0xff] %v4609
        %4642 = vst [vmem:[#allocation3 + $0xd8] sm:$0xff] %v4610
        %4643 = vst [vmem:[#allocation3 + $0xe0] sm:$0xff] %v4611
        %4644 = vst [vmem:[#allocation3 + $0xe8] sm:$0xff] %v4612
        %4645 = vst [vmem:[#allocation3 + $0xf0] sm:$0xff] %v4613
        %4646 = vst [vmem:[#allocation3 + $0xf8] sm:$0xff] %v4614
        %v4647 = vld [vmem:[#allocation2 + $0x2] sm:$0xff]
        %v4648 = vld [vmem:[#allocation2 + $0xa] sm:$0xff]
        %v4649 = vld [vmem:[#allocation2 + $0x1a] sm:$0xff]
        %v4650 = vld [vmem:[#allocation2 + $0x22] sm:$0xff]
        %v4651 = vld [vmem:[#allocation2 + $0x32] sm:$0xff]
        %v4652 = vld [vmem:[#allocation2 + $0x3a] sm:$0xff]
        %v4653 = vld [vmem:[#allocation2 + $0x4a] sm:$0xff]
        %v4654 = vld [vmem:[#allocation2 + $0x52] sm:$0xff]
        %v4655 = vld [vmem:[#allocation2 + $0x62] sm:$0xff]
        %v4656 = vld [vmem:[#allocation2 + $0x6a] sm:$0xff]
        %v4657 = vld [vmem:[#allocation2 + $0x7a] sm:$0xff]
        %v4658 = vld [vmem:[#allocation2 + $0x82] sm:$0xff]
        %v4659 = vld [vmem:[#allocation2 + $0x92] sm:$0xff]
        %v4660 = vld [vmem:[#allocation2 + $0x9a] sm:$0xff]
        %v4661 = vld [vmem:[#allocation2 + $0xaa] sm:$0xff]
        %v4662 = vld [vmem:[#allocation2 + $0xb2] sm:$0xff]
        %v4663 = vld [vmem:[#allocation2 + $0xc2] sm:$0xff]
        %v4664 = vld [vmem:[#allocation2 + $0xca] sm:$0xff]
        %v4665 = vld [vmem:[#allocation2 + $0xda] sm:$0xff]
        %v4666 = vld [vmem:[#allocation2 + $0xe2] sm:$0xff]
        %v4667 = vld [vmem:[#allocation2 + $0xf2] sm:$0xff]
        %v4668 = vld [vmem:[#allocation2 + $0xfa] sm:$0xff]
        %v4669 = vld [vmem:[#allocation2 + $0x10a] sm:$0xff]
        %v4670 = vld [vmem:[#allocation2 + $0x112] sm:$0xff]
        %v4671 = vld [vmem:[#allocation2 + $0x122] sm:$0xff]
        %v4672 = vld [vmem:[#allocation2 + $0x12a] sm:$0xff]
        %v4673 = vld [vmem:[#allocation2 + $0x13a] sm:$0xff]
        %v4674 = vld [vmem:[#allocation2 + $0x142] sm:$0xff]
        %v4675 = vld [vmem:[#allocation2 + $0x152] sm:$0xff]
        %v4676 = vld [vmem:[#allocation2 + $0x15a] sm:$0xff]
        %v4677 = vld [vmem:[#allocation2 + $0x16a] sm:$0xff]
        %v4678 = vld [vmem:[#allocation2 + $0x172] sm:$0xff]
        %s4679 = scalar_lea.vmem [#allocation9], 256
        %v4680 = vld [vmem:[%s4679] sm:$0xff]
        %v4681 = vld [vmem:[%s4679 + $0x8] sm:$0xff]
        %v4682 = vld [vmem:[%s4679 + $0x10] sm:$0xff]
        %v4683 = vld [vmem:[%s4679 + $0x18] sm:$0xff]
        %v4684 = vld [vmem:[%s4679 + $0x20] sm:$0xff]
        %v4685 = vld [vmem:[%s4679 + $0x28] sm:$0xff]
        %v4686 = vld [vmem:[%s4679 + $0x30] sm:$0xff]
        %v4687 = vld [vmem:[%s4679 + $0x38] sm:$0xff]
        %v4688 = vld [vmem:[%s4679 + $0x40] sm:$0xff]
        %v4689 = vld [vmem:[%s4679 + $0x48] sm:$0xff]
        %v4690 = vld [vmem:[%s4679 + $0x50] sm:$0xff]
        %v4691 = vld [vmem:[%s4679 + $0x58] sm:$0xff]
        %v4692 = vld [vmem:[%s4679 + $0x60] sm:$0xff]
        %v4693 = vld [vmem:[%s4679 + $0x68] sm:$0xff]
        %v4694 = vld [vmem:[%s4679 + $0x70] sm:$0xff]
        %v4695 = vld [vmem:[%s4679 + $0x78] sm:$0xff]
        %4696 = vmatprep.subr.mxu0 0.0
        %4697 = vmatpush1.msra.mxu0 %v4680
        %4698 = vmatprep.subr.mxu0 0.0
        %4699 = vmatpush1.msra.mxu0 %v4681
        %4700 = vmatprep.subr.mxu0 0.0
        %4701 = vmatpush1.msra.mxu0 %v4682
        %4702 = vmatprep.subr.mxu0 0.0
        %4703 = vmatpush1.msra.mxu0 %v4683
        %4704 = vmatprep.subr.mxu0 0.0
        %4705 = vmatpush1.msra.mxu0 %v4684
        %4706 = vmatprep.subr.mxu0 0.0
        %4707 = vmatpush1.msra.mxu0 %v4685
        %4708 = vmatprep.subr.mxu0 0.0
        %4709 = vmatpush1.msra.mxu0 %v4686
        %4710 = vmatprep.subr.mxu0 0.0
        %4711 = vmatpush1.msra.mxu0 %v4687
        %4712 = vmatprep.subr.mxu0 0.0
        %4713 = vmatpush1.msra.mxu0 %v4688
        %4714 = vmatprep.subr.mxu0 0.0
        %4715 = vmatpush1.msra.mxu0 %v4689
        %4716 = vmatprep.subr.mxu0 0.0
        %4717 = vmatpush1.msra.mxu0 %v4690
        %4718 = vmatprep.subr.mxu0 0.0
        %4719 = vmatpush1.msra.mxu0 %v4691
        %4720 = vmatprep.subr.mxu0 0.0
        %4721 = vmatpush1.msra.mxu0 %v4692
        %4722 = vmatprep.subr.mxu0 0.0
        %4723 = vmatpush1.msra.mxu0 %v4693
        %4724 = vmatprep.subr.mxu0 0.0
        %4725 = vmatpush1.msra.mxu0 %v4694
        %4726 = vmatprep.subr.mxu0 0.0
        %4727 = vmatpush1.msra.mxu0 %v4695
        %4728 = vmatprep.subr.mxu0 0.0
        %4729 = vmatpush1.msra.mxu0 0.0
        %4730 = vmatprep.subr.mxu0 0.0
        %4731 = vmatpush1.msra.mxu0 0.0
        %4732 = vmatprep.subr.mxu0 0.0
        %4733 = vmatpush1.msra.mxu0 0.0
        %4734 = vmatprep.subr.mxu0 0.0
        %4735 = vmatpush1.msra.mxu0 0.0
        %4736 = vmatprep.subr.mxu0 0.0
        %4737 = vmatpush1.msra.mxu0 0.0
        %4738 = vmatprep.subr.mxu0 0.0
        %4739 = vmatpush1.msra.mxu0 0.0
        %4740 = vmatprep.subr.mxu0 0.0
        %4741 = vmatpush1.msra.mxu0 0.0
        %4742 = vmatprep.subr.mxu0 0.0
        %4743 = vmatpush1.msra.mxu0 0.0
        %4744 = vmatprep.subr.mxu0 0.0
        %4745 = vmatpush1.msra.mxu0 0.0
        %4746 = vmatprep.subr.mxu0 0.0
        %4747 = vmatpush1.msra.mxu0 0.0
        %4748 = vmatprep.subr.mxu0 0.0
        %4749 = vmatpush1.msra.mxu0 0.0
        %4750 = vmatprep.subr.mxu0 0.0
        %4751 = vmatpush1.msra.mxu0 0.0
        %4752 = vmatprep.subr.mxu0 0.0
        %4753 = vmatpush1.msra.mxu0 0.0
        %4754 = vmatprep.subr.mxu0 0.0
        %4755 = vmatpush1.msra.mxu0 0.0
        %4756 = vmatprep.subr.mxu0 0.0
        %4757 = vmatpush1.msra.mxu0 0.0
        %4758 = vmatprep.subr.mxu0 0.0
        %4759 = vmatpush1.msra.mxu0 0.0
        %4760 = vmatprep.mubr.f32.mxu0 0.0
        %4761 = vmatmul.mubr.f32.gmra.mrb[0].mxu0 %v4647
        %v4762 = vpop.f32.mrb[0].mxu0
        %v4763 = vadd.f32 0.0, %v4762
        %v4764 = vpop.f32.mrb[0].mxu0
        %4765 = vmatprep.mubr.f32.mxu0 0.0
        %4766 = vmatmul.mubr.f32.gmra.mrb[0].mxu0 %v4648
        %v4767 = vpop.f32.mrb[0].mxu0
        %v4768 = vadd.f32 0.0, %v4767
        %v4769 = vpop.f32.mrb[0].mxu0
        %4770 = vmatprep.mubr.f32.mxu0 0.0
        %4771 = vmatmul.mubr.f32.gmra.mrb[0].mxu0 %v4649
        %v4772 = vpop.f32.mrb[0].mxu0
        %v4773 = vadd.f32 0.0, %v4772
        %v4774 = vpop.f32.mrb[0].mxu0
        %4775 = vmatprep.mubr.f32.mxu0 0.0
        %4776 = vmatmul.mubr.f32.gmra.mrb[0].mxu0 %v4650
        %v4777 = vpop.f32.mrb[0].mxu0
        %v4778 = vadd.f32 0.0, %v4777
        %v4779 = vpop.f32.mrb[0].mxu0
        %4780 = vmatprep.mubr.f32.mxu0 0.0
        %4781 = vmatmul.mubr.f32.gmra.mrb[0].mxu0 %v4651
        %v4782 = vpop.f32.mrb[0].mxu0
        %v4783 = vadd.f32 0.0, %v4782
        %v4784 = vpop.f32.mrb[0].mxu0
        %4785 = vmatprep.mubr.f32.mxu0 0.0
        %4786 = vmatmul.mubr.f32.gmra.mrb[0].mxu0 %v4652
        %v4787 = vpop.f32.mrb[0].mxu0
        %v4788 = vadd.f32 0.0, %v4787
        %v4789 = vpop.f32.mrb[0].mxu0
        %4790 = vmatprep.mubr.f32.mxu0 0.0
        %4791 = vmatmul.mubr.f32.gmra.mrb[0].mxu0 %v4653
        %v4792 = vpop.f32.mrb[0].mxu0
        %v4793 = vadd.f32 0.0, %v4792
        %v4794 = vpop.f32.mrb[0].mxu0
        %4795 = vmatprep.mubr.f32.mxu0 0.0
        %4796 = vmatmul.mubr.f32.gmra.mrb[0].mxu0 %v4654
        %v4797 = vpop.f32.mrb[0].mxu0
        %v4798 = vadd.f32 0.0, %v4797
        %v4799 = vpop.f32.mrb[0].mxu0
        %4800 = vmatprep.mubr.f32.mxu0 0.0
        %4801 = vmatmul.mubr.f32.gmra.mrb[0].mxu0 %v4655
        %v4802 = vpop.f32.mrb[0].mxu0
        %v4803 = vadd.f32 0.0, %v4802
        %v4804 = vpop.f32.mrb[0].mxu0
        %4805 = vmatprep.mubr.f32.mxu0 0.0
        %4806 = vmatmul.mubr.f32.gmra.mrb[0].mxu0 %v4656
        %v4807 = vpop.f32.mrb[0].mxu0
        %v4808 = vadd.f32 0.0, %v4807
        %v4809 = vpop.f32.mrb[0].mxu0
        %4810 = vmatprep.mubr.f32.mxu0 0.0
        %4811 = vmatmul.mubr.f32.gmra.mrb[0].mxu0 %v4657
        %v4812 = vpop.f32.mrb[0].mxu0
        %v4813 = vadd.f32 0.0, %v4812
        %v4814 = vpop.f32.mrb[0].mxu0
        %4815 = vmatprep.mubr.f32.mxu0 0.0
        %4816 = vmatmul.mubr.f32.gmra.mrb[0].mxu0 %v4658
        %v4817 = vpop.f32.mrb[0].mxu0
        %v4818 = vadd.f32 0.0, %v4817
        %v4819 = vpop.f32.mrb[0].mxu0
        %4820 = vmatprep.mubr.f32.mxu0 0.0
        %4821 = vmatmul.mubr.f32.gmra.mrb[0].mxu0 %v4659
        %v4822 = vpop.f32.mrb[0].mxu0
        %v4823 = vadd.f32 0.0, %v4822
        %v4824 = vpop.f32.mrb[0].mxu0
        %4825 = vmatprep.mubr.f32.mxu0 0.0
        %4826 = vmatmul.mubr.f32.gmra.mrb[0].mxu0 %v4660
        %v4827 = vpop.f32.mrb[0].mxu0
        %v4828 = vadd.f32 0.0, %v4827
        %v4829 = vpop.f32.mrb[0].mxu0
        %4830 = vmatprep.mubr.f32.mxu0 0.0
        %4831 = vmatmul.mubr.f32.gmra.mrb[0].mxu0 %v4661
        %v4832 = vpop.f32.mrb[0].mxu0
        %v4833 = vadd.f32 0.0, %v4832
        %v4834 = vpop.f32.mrb[0].mxu0
        %4835 = vmatprep.mubr.f32.mxu0 0.0
        %4836 = vmatmul.mubr.f32.gmra.mrb[0].mxu0 %v4662
        %v4837 = vpop.f32.mrb[0].mxu0
        %v4838 = vadd.f32 0.0, %v4837
        %v4839 = vpop.f32.mrb[0].mxu0
        %4840 = vmatprep.mubr.f32.mxu0 0.0
        %4841 = vmatmul.mubr.f32.gmra.mrb[0].mxu0 %v4663
        %v4842 = vpop.f32.mrb[0].mxu0
        %v4843 = vadd.f32 0.0, %v4842
        %v4844 = vpop.f32.mrb[0].mxu0
        %4845 = vmatprep.mubr.f32.mxu0 0.0
        %4846 = vmatmul.mubr.f32.gmra.mrb[0].mxu0 %v4664
        %v4847 = vpop.f32.mrb[0].mxu0
        %v4848 = vadd.f32 0.0, %v4847
        %v4849 = vpop.f32.mrb[0].mxu0
        %4850 = vmatprep.mubr.f32.mxu0 0.0
        %4851 = vmatmul.mubr.f32.gmra.mrb[0].mxu0 %v4665
        %v4852 = vpop.f32.mrb[0].mxu0
        %v4853 = vadd.f32 0.0, %v4852
        %v4854 = vpop.f32.mrb[0].mxu0
        %4855 = vmatprep.mubr.f32.mxu0 0.0
        %4856 = vmatmul.mubr.f32.gmra.mrb[0].mxu0 %v4666
        %v4857 = vpop.f32.mrb[0].mxu0
        %v4858 = vadd.f32 0.0, %v4857
        %v4859 = vpop.f32.mrb[0].mxu0
        %4860 = vmatprep.mubr.f32.mxu0 0.0
        %4861 = vmatmul.mubr.f32.gmra.mrb[0].mxu0 %v4667
        %v4862 = vpop.f32.mrb[0].mxu0
        %v4863 = vadd.f32 0.0, %v4862
        %v4864 = vpop.f32.mrb[0].mxu0
        %4865 = vmatprep.mubr.f32.mxu0 0.0
        %4866 = vmatmul.mubr.f32.gmra.mrb[0].mxu0 %v4668
        %v4867 = vpop.f32.mrb[0].mxu0
        %v4868 = vadd.f32 0.0, %v4867
        %v4869 = vpop.f32.mrb[0].mxu0
        %4870 = vmatprep.mubr.f32.mxu0 0.0
        %4871 = vmatmul.mubr.f32.gmra.mrb[0].mxu0 %v4669
        %v4872 = vpop.f32.mrb[0].mxu0
        %v4873 = vadd.f32 0.0, %v4872
        %v4874 = vpop.f32.mrb[0].mxu0
        %4875 = vmatprep.mubr.f32.mxu0 0.0
        %4876 = vmatmul.mubr.f32.gmra.mrb[0].mxu0 %v4670
        %v4877 = vpop.f32.mrb[0].mxu0
        %v4878 = vadd.f32 0.0, %v4877
        %v4879 = vpop.f32.mrb[0].mxu0
        %4880 = vmatprep.mubr.f32.mxu0 0.0
        %4881 = vmatmul.mubr.f32.gmra.mrb[0].mxu0 %v4671
        %v4882 = vpop.f32.mrb[0].mxu0
        %v4883 = vadd.f32 0.0, %v4882
        %v4884 = vpop.f32.mrb[0].mxu0
        %4885 = vmatprep.mubr.f32.mxu0 0.0
        %4886 = vmatmul.mubr.f32.gmra.mrb[0].mxu0 %v4672
        %v4887 = vpop.f32.mrb[0].mxu0
        %v4888 = vadd.f32 0.0, %v4887
        %v4889 = vpop.f32.mrb[0].mxu0
        %4890 = vmatprep.mubr.f32.mxu0 0.0
        %4891 = vmatmul.mubr.f32.gmra.mrb[0].mxu0 %v4673
        %v4892 = vpop.f32.mrb[0].mxu0
        %v4893 = vadd.f32 0.0, %v4892
        %v4894 = vpop.f32.mrb[0].mxu0
        %4895 = vmatprep.mubr.f32.mxu0 0.0
        %4896 = vmatmul.mubr.f32.gmra.mrb[0].mxu0 %v4674
        %v4897 = vpop.f32.mrb[0].mxu0
        %v4898 = vadd.f32 0.0, %v4897
        %v4899 = vpop.f32.mrb[0].mxu0
        %4900 = vmatprep.mubr.f32.mxu0 0.0
        %4901 = vmatmul.mubr.f32.gmra.mrb[0].mxu0 %v4675
        %v4902 = vpop.f32.mrb[0].mxu0
        %v4903 = vadd.f32 0.0, %v4902
        %v4904 = vpop.f32.mrb[0].mxu0
        %4905 = vmatprep.mubr.f32.mxu0 0.0
        %4906 = vmatmul.mubr.f32.gmra.mrb[0].mxu0 %v4676
        %v4907 = vpop.f32.mrb[0].mxu0
        %v4908 = vadd.f32 0.0, %v4907
        %v4909 = vpop.f32.mrb[0].mxu0
        %4910 = vmatprep.mubr.f32.mxu0 0.0
        %4911 = vmatmul.mubr.f32.gmra.mrb[0].mxu0 %v4677
        %v4912 = vpop.f32.mrb[0].mxu0
        %v4913 = vadd.f32 0.0, %v4912
        %v4914 = vpop.f32.mrb[0].mxu0
        %4915 = vmatprep.mubr.f32.mxu0 0.0
        %4916 = vmatmul.mubr.f32.gmra.mrb[0].mxu0 %v4678
        %v4917 = vpop.f32.mrb[0].mxu0
        %v4918 = vadd.f32 0.0, %v4917
        %v4919 = vpop.f32.mrb[0].mxu0
        %4920 = vdwg.mxu0
        %v4921 = vld [vmem:[#allocation3] sm:$0xff]
        %v4922 = vld [vmem:[#allocation3 + $0x8] sm:$0xff]
        %v4923 = vld [vmem:[#allocation3 + $0x10] sm:$0xff]
        %v4924 = vld [vmem:[#allocation3 + $0x18] sm:$0xff]
        %v4925 = vld [vmem:[#allocation3 + $0x20] sm:$0xff]
        %v4926 = vld [vmem:[#allocation3 + $0x28] sm:$0xff]
        %v4927 = vld [vmem:[#allocation3 + $0x30] sm:$0xff]
        %v4928 = vld [vmem:[#allocation3 + $0x38] sm:$0xff]
        %v4929 = vld [vmem:[#allocation3 + $0x40] sm:$0xff]
        %v4930 = vld [vmem:[#allocation3 + $0x48] sm:$0xff]
        %v4931 = vld [vmem:[#allocation3 + $0x50] sm:$0xff]
        %v4932 = vld [vmem:[#allocation3 + $0x58] sm:$0xff]
        %v4933 = vld [vmem:[#allocation3 + $0x60] sm:$0xff]
        %v4934 = vld [vmem:[#allocation3 + $0x68] sm:$0xff]
        %v4935 = vld [vmem:[#allocation3 + $0x70] sm:$0xff]
        %v4936 = vld [vmem:[#allocation3 + $0x78] sm:$0xff]
        %v4937 = vld [vmem:[#allocation3 + $0x80] sm:$0xff]
        %v4938 = vld [vmem:[#allocation3 + $0x88] sm:$0xff]
        %v4939 = vld [vmem:[#allocation3 + $0x90] sm:$0xff]
        %v4940 = vld [vmem:[#allocation3 + $0x98] sm:$0xff]
        %v4941 = vld [vmem:[#allocation3 + $0xa0] sm:$0xff]
        %v4942 = vld [vmem:[#allocation3 + $0xa8] sm:$0xff]
        %v4943 = vld [vmem:[#allocation3 + $0xb0] sm:$0xff]
        %v4944 = vld [vmem:[#allocation3 + $0xb8] sm:$0xff]
        %v4945 = vld [vmem:[#allocation3 + $0xc0] sm:$0xff]
        %v4946 = vld [vmem:[#allocation3 + $0xc8] sm:$0xff]
        %v4947 = vld [vmem:[#allocation3 + $0xd0] sm:$0xff]
        %v4948 = vld [vmem:[#allocation3 + $0xd8] sm:$0xff]
        %v4949 = vld [vmem:[#allocation3 + $0xe0] sm:$0xff]
        %v4950 = vld [vmem:[#allocation3 + $0xe8] sm:$0xff]
        %v4951 = vld [vmem:[#allocation3 + $0xf0] sm:$0xff]
        %v4952 = vld [vmem:[#allocation3 + $0xf8] sm:$0xff]
        %v4953 = vadd.f32 %v4921, %v4763
        %v4954 = vadd.f32 %v4922, %v4768
        %v4955 = vadd.f32 %v4923, %v4773
        %v4956 = vadd.f32 %v4924, %v4778
        %v4957 = vadd.f32 %v4925, %v4783
        %v4958 = vadd.f32 %v4926, %v4788
        %v4959 = vadd.f32 %v4927, %v4793
        %v4960 = vadd.f32 %v4928, %v4798
        %v4961 = vadd.f32 %v4929, %v4803
        %v4962 = vadd.f32 %v4930, %v4808
        %v4963 = vadd.f32 %v4931, %v4813
        %v4964 = vadd.f32 %v4932, %v4818
        %v4965 = vadd.f32 %v4933, %v4823
        %v4966 = vadd.f32 %v4934, %v4828
        %v4967 = vadd.f32 %v4935, %v4833
        %v4968 = vadd.f32 %v4936, %v4838
        %v4969 = vadd.f32 %v4937, %v4843
        %v4970 = vadd.f32 %v4938, %v4848
        %v4971 = vadd.f32 %v4939, %v4853
        %v4972 = vadd.f32 %v4940, %v4858
        %v4973 = vadd.f32 %v4941, %v4863
        %v4974 = vadd.f32 %v4942, %v4868
        %v4975 = vadd.f32 %v4943, %v4873
        %v4976 = vadd.f32 %v4944, %v4878
        %v4977 = vadd.f32 %v4945, %v4883
        %v4978 = vadd.f32 %v4946, %v4888
        %v4979 = vadd.f32 %v4947, %v4893
        %v4980 = vadd.f32 %v4948, %v4898
        %v4981 = vadd.f32 %v4949, %v4903
        %v4982 = vadd.f32 %v4950, %v4908
        %v4983 = vadd.f32 %v4951, %v4913
        %v4984 = vadd.f32 %v4952, %v4918
        %4985 = vst [vmem:[#allocation3] sm:$0xff] %v4953
        %4986 = vst [vmem:[#allocation3 + $0x8] sm:$0xff] %v4954
        %4987 = vst [vmem:[#allocation3 + $0x10] sm:$0xff] %v4955
        %4988 = vst [vmem:[#allocation3 + $0x18] sm:$0xff] %v4956
        %4989 = vst [vmem:[#allocation3 + $0x20] sm:$0xff] %v4957
        %4990 = vst [vmem:[#allocation3 + $0x28] sm:$0xff] %v4958
        %4991 = vst [vmem:[#allocation3 + $0x30] sm:$0xff] %v4959
        %4992 = vst [vmem:[#allocation3 + $0x38] sm:$0xff] %v4960
        %4993 = vst [vmem:[#allocation3 + $0x40] sm:$0xff] %v4961
        %4994 = vst [vmem:[#allocation3 + $0x48] sm:$0xff] %v4962
        %4995 = vst [vmem:[#allocation3 + $0x50] sm:$0xff] %v4963
        %4996 = vst [vmem:[#allocation3 + $0x58] sm:$0xff] %v4964
        %4997 = vst [vmem:[#allocation3 + $0x60] sm:$0xff] %v4965
        %4998 = vst [vmem:[#allocation3 + $0x68] sm:$0xff] %v4966
        %4999 = vst [vmem:[#allocation3 + $0x70] sm:$0xff] %v4967
        %5000 = vst [vmem:[#allocation3 + $0x78] sm:$0xff] %v4968
        %5001 = vst [vmem:[#allocation3 + $0x80] sm:$0xff] %v4969
        %5002 = vst [vmem:[#allocation3 + $0x88] sm:$0xff] %v4970
        %5003 = vst [vmem:[#allocation3 + $0x90] sm:$0xff] %v4971
        %5004 = vst [vmem:[#allocation3 + $0x98] sm:$0xff] %v4972
        %5005 = vst [vmem:[#allocation3 + $0xa0] sm:$0xff] %v4973
        %5006 = vst [vmem:[#allocation3 + $0xa8] sm:$0xff] %v4974
        %5007 = vst [vmem:[#allocation3 + $0xb0] sm:$0xff] %v4975
        %5008 = vst [vmem:[#allocation3 + $0xb8] sm:$0xff] %v4976
        %5009 = vst [vmem:[#allocation3 + $0xc0] sm:$0xff] %v4977
        %5010 = vst [vmem:[#allocation3 + $0xc8] sm:$0xff] %v4978
        %5011 = vst [vmem:[#allocation3 + $0xd0] sm:$0xff] %v4979
        %5012 = vst [vmem:[#allocation3 + $0xd8] sm:$0xff] %v4980
        %5013 = vst [vmem:[#allocation3 + $0xe0] sm:$0xff] %v4981
        %5014 = vst [vmem:[#allocation3 + $0xe8] sm:$0xff] %v4982
        %5015 = vst [vmem:[#allocation3 + $0xf0] sm:$0xff] %v4983
        %5016 = vst [vmem:[#allocation3 + $0xf8] sm:$0xff] %v4984
        %v5017 = vld [vmem:[%s428] sm:$0xff]
        %v5018 = vld [vmem:[%s428 + $0x8] sm:$0xff]
        %v5019 = vld [vmem:[%s428 + $0x18] sm:$0xff]
        %v5020 = vld [vmem:[%s428 + $0x20] sm:$0xff]
        %v5021 = vld [vmem:[%s428 + $0x30] sm:$0xff]
        %v5022 = vld [vmem:[%s428 + $0x38] sm:$0xff]
        %v5023 = vld [vmem:[%s428 + $0x48] sm:$0xff]
        %v5024 = vld [vmem:[%s428 + $0x50] sm:$0xff]
        %v5025 = vld [vmem:[%s428 + $0x60] sm:$0xff]
        %v5026 = vld [vmem:[%s428 + $0x68] sm:$0xff]
        %v5027 = vld [vmem:[%s428 + $0x78] sm:$0xff]
        %v5028 = vld [vmem:[%s428 + $0x80] sm:$0xff]
        %v5029 = vld [vmem:[%s428 + $0x90] sm:$0xff]
        %v5030 = vld [vmem:[%s428 + $0x98] sm:$0xff]
        %v5031 = vld [vmem:[%s428 + $0xa8] sm:$0xff]
        %v5032 = vld [vmem:[%s428 + $0xb0] sm:$0xff]
        %v5033 = vld [vmem:[%s428 + $0xc0] sm:$0xff]
        %v5034 = vld [vmem:[%s428 + $0xc8] sm:$0xff]
        %v5035 = vld [vmem:[%s428 + $0xd8] sm:$0xff]
        %v5036 = vld [vmem:[%s428 + $0xe0] sm:$0xff]
        %v5037 = vld [vmem:[%s428 + $0xf0] sm:$0xff]
        %v5038 = vld [vmem:[%s428 + $0xf8] sm:$0xff]
        %v5039 = vld [vmem:[%s428 + $0x108] sm:$0xff]
        %v5040 = vld [vmem:[%s428 + $0x110] sm:$0xff]
        %v5041 = vld [vmem:[%s428 + $0x120] sm:$0xff]
        %v5042 = vld [vmem:[%s428 + $0x128] sm:$0xff]
        %v5043 = vld [vmem:[%s428 + $0x138] sm:$0xff]
        %v5044 = vld [vmem:[%s428 + $0x140] sm:$0xff]
        %v5045 = vld [vmem:[%s428 + $0x150] sm:$0xff]
        %v5046 = vld [vmem:[%s428 + $0x158] sm:$0xff]
        %v5047 = vld [vmem:[%s428 + $0x168] sm:$0xff]
        %v5048 = vld [vmem:[%s428 + $0x170] sm:$0xff]
        %s5049 = scalar_lea.vmem [#allocation9], 384
        %v5050 = vld [vmem:[%s5049] sm:$0xff]
        %v5051 = vld [vmem:[%s5049 + $0x8] sm:$0xff]
        %v5052 = vld [vmem:[%s5049 + $0x10] sm:$0xff]
        %v5053 = vld [vmem:[%s5049 + $0x18] sm:$0xff]
        %v5054 = vld [vmem:[%s5049 + $0x20] sm:$0xff]
        %v5055 = vld [vmem:[%s5049 + $0x28] sm:$0xff]
        %v5056 = vld [vmem:[%s5049 + $0x30] sm:$0xff]
        %v5057 = vld [vmem:[%s5049 + $0x38] sm:$0xff]
        %v5058 = vld [vmem:[%s5049 + $0x40] sm:$0xff]
        %v5059 = vld [vmem:[%s5049 + $0x48] sm:$0xff]
        %v5060 = vld [vmem:[%s5049 + $0x50] sm:$0xff]
        %v5061 = vld [vmem:[%s5049 + $0x58] sm:$0xff]
        %v5062 = vld [vmem:[%s5049 + $0x60] sm:$0xff]
        %v5063 = vld [vmem:[%s5049 + $0x68] sm:$0xff]
        %v5064 = vld [vmem:[%s5049 + $0x70] sm:$0xff]
        %v5065 = vld [vmem:[%s5049 + $0x78] sm:$0xff]
        %5066 = vmatprep.subr.mxu0 0.0
        %5067 = vmatpush1.msra.mxu0 %v5050
        %5068 = vmatprep.subr.mxu0 0.0
        %5069 = vmatpush1.msra.mxu0 %v5051
        %5070 = vmatprep.subr.mxu0 0.0
        %5071 = vmatpush1.msra.mxu0 %v5052
        %5072 = vmatprep.subr.mxu0 0.0
        %5073 = vmatpush1.msra.mxu0 %v5053
        %5074 = vmatprep.subr.mxu0 0.0
        %5075 = vmatpush1.msra.mxu0 %v5054
        %5076 = vmatprep.subr.mxu0 0.0
        %5077 = vmatpush1.msra.mxu0 %v5055
        %5078 = vmatprep.subr.mxu0 0.0
        %5079 = vmatpush1.msra.mxu0 %v5056
        %5080 = vmatprep.subr.mxu0 0.0
        %5081 = vmatpush1.msra.mxu0 %v5057
        %5082 = vmatprep.subr.mxu0 0.0
        %5083 = vmatpush1.msra.mxu0 %v5058
        %5084 = vmatprep.subr.mxu0 0.0
        %5085 = vmatpush1.msra.mxu0 %v5059
        %5086 = vmatprep.subr.mxu0 0.0
        %5087 = vmatpush1.msra.mxu0 %v5060
        %5088 = vmatprep.subr.mxu0 0.0
        %5089 = vmatpush1.msra.mxu0 %v5061
        %5090 = vmatprep.subr.mxu0 0.0
        %5091 = vmatpush1.msra.mxu0 %v5062
        %5092 = vmatprep.subr.mxu0 0.0
        %5093 = vmatpush1.msra.mxu0 %v5063
        %5094 = vmatprep.subr.mxu0 0.0
        %5095 = vmatpush1.msra.mxu0 %v5064
        %5096 = vmatprep.subr.mxu0 0.0
        %5097 = vmatpush1.msra.mxu0 %v5065
        %5098 = vmatprep.subr.mxu0 0.0
        %5099 = vmatpush1.msra.mxu0 0.0
        %5100 = vmatprep.subr.mxu0 0.0
        %5101 = vmatpush1.msra.mxu0 0.0
        %5102 = vmatprep.subr.mxu0 0.0
        %5103 = vmatpush1.msra.mxu0 0.0
        %5104 = vmatprep.subr.mxu0 0.0
        %5105 = vmatpush1.msra.mxu0 0.0
        %5106 = vmatprep.subr.mxu0 0.0
        %5107 = vmatpush1.msra.mxu0 0.0
        %5108 = vmatprep.subr.mxu0 0.0
        %5109 = vmatpush1.msra.mxu0 0.0
        %5110 = vmatprep.subr.mxu0 0.0
        %5111 = vmatpush1.msra.mxu0 0.0
        %5112 = vmatprep.subr.mxu0 0.0
        %5113 = vmatpush1.msra.mxu0 0.0
        %5114 = vmatprep.subr.mxu0 0.0
        %5115 = vmatpush1.msra.mxu0 0.0
        %5116 = vmatprep.subr.mxu0 0.0
        %5117 = vmatpush1.msra.mxu0 0.0
        %5118 = vmatprep.subr.mxu0 0.0
        %5119 = vmatpush1.msra.mxu0 0.0
        %5120 = vmatprep.subr.mxu0 0.0
        %5121 = vmatpush1.msra.mxu0 0.0
        %5122 = vmatprep.subr.mxu0 0.0
        %5123 = vmatpush1.msra.mxu0 0.0
        %5124 = vmatprep.subr.mxu0 0.0
        %5125 = vmatpush1.msra.mxu0 0.0
        %5126 = vmatprep.subr.mxu0 0.0
        %5127 = vmatpush1.msra.mxu0 0.0
        %5128 = vmatprep.subr.mxu0 0.0
        %5129 = vmatpush1.msra.mxu0 0.0
        %5130 = vmatprep.mubr.f32.mxu0 0.0
        %5131 = vmatmul.mubr.f32.gmra.mrb[0].mxu0 %v5017
        %v5132 = vpop.f32.mrb[0].mxu0
        %v5133 = vadd.f32 0.0, %v5132
        %v5134 = vpop.f32.mrb[0].mxu0
        %5135 = vmatprep.mubr.f32.mxu0 0.0
        %5136 = vmatmul.mubr.f32.gmra.mrb[0].mxu0 %v5018
        %v5137 = vpop.f32.mrb[0].mxu0
        %v5138 = vadd.f32 0.0, %v5137
        %v5139 = vpop.f32.mrb[0].mxu0
        %5140 = vmatprep.mubr.f32.mxu0 0.0
        %5141 = vmatmul.mubr.f32.gmra.mrb[0].mxu0 %v5019
        %v5142 = vpop.f32.mrb[0].mxu0
        %v5143 = vadd.f32 0.0, %v5142
        %v5144 = vpop.f32.mrb[0].mxu0
        %5145 = vmatprep.mubr.f32.mxu0 0.0
        %5146 = vmatmul.mubr.f32.gmra.mrb[0].mxu0 %v5020
        %v5147 = vpop.f32.mrb[0].mxu0
        %v5148 = vadd.f32 0.0, %v5147
        %v5149 = vpop.f32.mrb[0].mxu0
        %5150 = vmatprep.mubr.f32.mxu0 0.0
        %5151 = vmatmul.mubr.f32.gmra.mrb[0].mxu0 %v5021
        %v5152 = vpop.f32.mrb[0].mxu0
        %v5153 = vadd.f32 0.0, %v5152
        %v5154 = vpop.f32.mrb[0].mxu0
        %5155 = vmatprep.mubr.f32.mxu0 0.0
        %5156 = vmatmul.mubr.f32.gmra.mrb[0].mxu0 %v5022
        %v5157 = vpop.f32.mrb[0].mxu0
        %v5158 = vadd.f32 0.0, %v5157
        %v5159 = vpop.f32.mrb[0].mxu0
        %5160 = vmatprep.mubr.f32.mxu0 0.0
        %5161 = vmatmul.mubr.f32.gmra.mrb[0].mxu0 %v5023
        %v5162 = vpop.f32.mrb[0].mxu0
        %v5163 = vadd.f32 0.0, %v5162
        %v5164 = vpop.f32.mrb[0].mxu0
        %5165 = vmatprep.mubr.f32.mxu0 0.0
        %5166 = vmatmul.mubr.f32.gmra.mrb[0].mxu0 %v5024
        %v5167 = vpop.f32.mrb[0].mxu0
        %v5168 = vadd.f32 0.0, %v5167
        %v5169 = vpop.f32.mrb[0].mxu0
        %5170 = vmatprep.mubr.f32.mxu0 0.0
        %5171 = vmatmul.mubr.f32.gmra.mrb[0].mxu0 %v5025
        %v5172 = vpop.f32.mrb[0].mxu0
        %v5173 = vadd.f32 0.0, %v5172
        %v5174 = vpop.f32.mrb[0].mxu0
        %5175 = vmatprep.mubr.f32.mxu0 0.0
        %5176 = vmatmul.mubr.f32.gmra.mrb[0].mxu0 %v5026
        %v5177 = vpop.f32.mrb[0].mxu0
        %v5178 = vadd.f32 0.0, %v5177
        %v5179 = vpop.f32.mrb[0].mxu0
        %5180 = vmatprep.mubr.f32.mxu0 0.0
        %5181 = vmatmul.mubr.f32.gmra.mrb[0].mxu0 %v5027
        %v5182 = vpop.f32.mrb[0].mxu0
        %v5183 = vadd.f32 0.0, %v5182
        %v5184 = vpop.f32.mrb[0].mxu0
        %5185 = vmatprep.mubr.f32.mxu0 0.0
        %5186 = vmatmul.mubr.f32.gmra.mrb[0].mxu0 %v5028
        %v5187 = vpop.f32.mrb[0].mxu0
        %v5188 = vadd.f32 0.0, %v5187
        %v5189 = vpop.f32.mrb[0].mxu0
        %5190 = vmatprep.mubr.f32.mxu0 0.0
        %5191 = vmatmul.mubr.f32.gmra.mrb[0].mxu0 %v5029
        %v5192 = vpop.f32.mrb[0].mxu0
        %v5193 = vadd.f32 0.0, %v5192
        %v5194 = vpop.f32.mrb[0].mxu0
        %5195 = vmatprep.mubr.f32.mxu0 0.0
        %5196 = vmatmul.mubr.f32.gmra.mrb[0].mxu0 %v5030
        %v5197 = vpop.f32.mrb[0].mxu0
        %v5198 = vadd.f32 0.0, %v5197
        %v5199 = vpop.f32.mrb[0].mxu0
        %5200 = vmatprep.mubr.f32.mxu0 0.0
        %5201 = vmatmul.mubr.f32.gmra.mrb[0].mxu0 %v5031
        %v5202 = vpop.f32.mrb[0].mxu0
        %v5203 = vadd.f32 0.0, %v5202
        %v5204 = vpop.f32.mrb[0].mxu0
        %5205 = vmatprep.mubr.f32.mxu0 0.0
        %5206 = vmatmul.mubr.f32.gmra.mrb[0].mxu0 %v5032
        %v5207 = vpop.f32.mrb[0].mxu0
        %v5208 = vadd.f32 0.0, %v5207
        %v5209 = vpop.f32.mrb[0].mxu0
        %5210 = vmatprep.mubr.f32.mxu0 0.0
        %5211 = vmatmul.mubr.f32.gmra.mrb[0].mxu0 %v5033
        %v5212 = vpop.f32.mrb[0].mxu0
        %v5213 = vadd.f32 0.0, %v5212
        %v5214 = vpop.f32.mrb[0].mxu0
        %5215 = vmatprep.mubr.f32.mxu0 0.0
        %5216 = vmatmul.mubr.f32.gmra.mrb[0].mxu0 %v5034
        %v5217 = vpop.f32.mrb[0].mxu0
        %v5218 = vadd.f32 0.0, %v5217
        %v5219 = vpop.f32.mrb[0].mxu0
        %5220 = vmatprep.mubr.f32.mxu0 0.0
        %5221 = vmatmul.mubr.f32.gmra.mrb[0].mxu0 %v5035
        %v5222 = vpop.f32.mrb[0].mxu0
        %v5223 = vadd.f32 0.0, %v5222
        %v5224 = vpop.f32.mrb[0].mxu0
        %5225 = vmatprep.mubr.f32.mxu0 0.0
        %5226 = vmatmul.mubr.f32.gmra.mrb[0].mxu0 %v5036
        %v5227 = vpop.f32.mrb[0].mxu0
        %v5228 = vadd.f32 0.0, %v5227
        %v5229 = vpop.f32.mrb[0].mxu0
        %5230 = vmatprep.mubr.f32.mxu0 0.0
        %5231 = vmatmul.mubr.f32.gmra.mrb[0].mxu0 %v5037
        %v5232 = vpop.f32.mrb[0].mxu0
        %v5233 = vadd.f32 0.0, %v5232
        %v5234 = vpop.f32.mrb[0].mxu0
        %5235 = vmatprep.mubr.f32.mxu0 0.0
        %5236 = vmatmul.mubr.f32.gmra.mrb[0].mxu0 %v5038
        %v5237 = vpop.f32.mrb[0].mxu0
        %v5238 = vadd.f32 0.0, %v5237
        %v5239 = vpop.f32.mrb[0].mxu0
        %5240 = vmatprep.mubr.f32.mxu0 0.0
        %5241 = vmatmul.mubr.f32.gmra.mrb[0].mxu0 %v5039
        %v5242 = vpop.f32.mrb[0].mxu0
        %v5243 = vadd.f32 0.0, %v5242
        %v5244 = vpop.f32.mrb[0].mxu0
        %5245 = vmatprep.mubr.f32.mxu0 0.0
        %5246 = vmatmul.mubr.f32.gmra.mrb[0].mxu0 %v5040
        %v5247 = vpop.f32.mrb[0].mxu0
        %v5248 = vadd.f32 0.0, %v5247
        %v5249 = vpop.f32.mrb[0].mxu0
        %5250 = vmatprep.mubr.f32.mxu0 0.0
        %5251 = vmatmul.mubr.f32.gmra.mrb[0].mxu0 %v5041
        %v5252 = vpop.f32.mrb[0].mxu0
        %v5253 = vadd.f32 0.0, %v5252
        %v5254 = vpop.f32.mrb[0].mxu0
        %5255 = vmatprep.mubr.f32.mxu0 0.0
        %5256 = vmatmul.mubr.f32.gmra.mrb[0].mxu0 %v5042
        %v5257 = vpop.f32.mrb[0].mxu0
        %v5258 = vadd.f32 0.0, %v5257
        %v5259 = vpop.f32.mrb[0].mxu0
        %5260 = vmatprep.mubr.f32.mxu0 0.0
        %5261 = vmatmul.mubr.f32.gmra.mrb[0].mxu0 %v5043
        %v5262 = vpop.f32.mrb[0].mxu0
        %v5263 = vadd.f32 0.0, %v5262
        %v5264 = vpop.f32.mrb[0].mxu0
        %5265 = vmatprep.mubr.f32.mxu0 0.0
        %5266 = vmatmul.mubr.f32.gmra.mrb[0].mxu0 %v5044
        %v5267 = vpop.f32.mrb[0].mxu0
        %v5268 = vadd.f32 0.0, %v5267
        %v5269 = vpop.f32.mrb[0].mxu0
        %5270 = vmatprep.mubr.f32.mxu0 0.0
        %5271 = vmatmul.mubr.f32.gmra.mrb[0].mxu0 %v5045
        %v5272 = vpop.f32.mrb[0].mxu0
        %v5273 = vadd.f32 0.0, %v5272
        %v5274 = vpop.f32.mrb[0].mxu0
        %5275 = vmatprep.mubr.f32.mxu0 0.0
        %5276 = vmatmul.mubr.f32.gmra.mrb[0].mxu0 %v5046
        %v5277 = vpop.f32.mrb[0].mxu0
        %v5278 = vadd.f32 0.0, %v5277
        %v5279 = vpop.f32.mrb[0].mxu0
        %5280 = vmatprep.mubr.f32.mxu0 0.0
        %5281 = vmatmul.mubr.f32.gmra.mrb[0].mxu0 %v5047
        %v5282 = vpop.f32.mrb[0].mxu0
        %v5283 = vadd.f32 0.0, %v5282
        %v5284 = vpop.f32.mrb[0].mxu0
        %5285 = vmatprep.mubr.f32.mxu0 0.0
        %5286 = vmatmul.mubr.f32.gmra.mrb[0].mxu0 %v5048
        %v5287 = vpop.f32.mrb[0].mxu0
        %v5288 = vadd.f32 0.0, %v5287
        %v5289 = vpop.f32.mrb[0].mxu0
        %5290 = vdwg.mxu0
        %v5291 = vld [vmem:[#allocation3] sm:$0xff]
        %v5292 = vld [vmem:[#allocation3 + $0x8] sm:$0xff]
        %v5293 = vld [vmem:[#allocation3 + $0x10] sm:$0xff]
        %v5294 = vld [vmem:[#allocation3 + $0x18] sm:$0xff]
        %v5295 = vld [vmem:[#allocation3 + $0x20] sm:$0xff]
        %v5296 = vld [vmem:[#allocation3 + $0x28] sm:$0xff]
        %v5297 = vld [vmem:[#allocation3 + $0x30] sm:$0xff]
        %v5298 = vld [vmem:[#allocation3 + $0x38] sm:$0xff]
        %v5299 = vld [vmem:[#allocation3 + $0x40] sm:$0xff]
        %v5300 = vld [vmem:[#allocation3 + $0x48] sm:$0xff]
        %v5301 = vld [vmem:[#allocation3 + $0x50] sm:$0xff]
        %v5302 = vld [vmem:[#allocation3 + $0x58] sm:$0xff]
        %v5303 = vld [vmem:[#allocation3 + $0x60] sm:$0xff]
        %v5304 = vld [vmem:[#allocation3 + $0x68] sm:$0xff]
        %v5305 = vld [vmem:[#allocation3 + $0x70] sm:$0xff]
        %v5306 = vld [vmem:[#allocation3 + $0x78] sm:$0xff]
        %v5307 = vld [vmem:[#allocation3 + $0x80] sm:$0xff]
        %v5308 = vld [vmem:[#allocation3 + $0x88] sm:$0xff]
        %v5309 = vld [vmem:[#allocation3 + $0x90] sm:$0xff]
        %v5310 = vld [vmem:[#allocation3 + $0x98] sm:$0xff]
        %v5311 = vld [vmem:[#allocation3 + $0xa0] sm:$0xff]
        %v5312 = vld [vmem:[#allocation3 + $0xa8] sm:$0xff]
        %v5313 = vld [vmem:[#allocation3 + $0xb0] sm:$0xff]
        %v5314 = vld [vmem:[#allocation3 + $0xb8] sm:$0xff]
        %v5315 = vld [vmem:[#allocation3 + $0xc0] sm:$0xff]
        %v5316 = vld [vmem:[#allocation3 + $0xc8] sm:$0xff]
        %v5317 = vld [vmem:[#allocation3 + $0xd0] sm:$0xff]
        %v5318 = vld [vmem:[#allocation3 + $0xd8] sm:$0xff]
        %v5319 = vld [vmem:[#allocation3 + $0xe0] sm:$0xff]
        %v5320 = vld [vmem:[#allocation3 + $0xe8] sm:$0xff]
        %v5321 = vld [vmem:[#allocation3 + $0xf0] sm:$0xff]
        %v5322 = vld [vmem:[#allocation3 + $0xf8] sm:$0xff]
        %v5323 = vadd.f32 %v5291, %v5133
        %v5324 = vadd.f32 %v5292, %v5138
        %v5325 = vadd.f32 %v5293, %v5143
        %v5326 = vadd.f32 %v5294, %v5148
        %v5327 = vadd.f32 %v5295, %v5153
        %v5328 = vadd.f32 %v5296, %v5158
        %v5329 = vadd.f32 %v5297, %v5163
        %v5330 = vadd.f32 %v5298, %v5168
        %v5331 = vadd.f32 %v5299, %v5173
        %v5332 = vadd.f32 %v5300, %v5178
        %v5333 = vadd.f32 %v5301, %v5183
        %v5334 = vadd.f32 %v5302, %v5188
        %v5335 = vadd.f32 %v5303, %v5193
        %v5336 = vadd.f32 %v5304, %v5198
        %v5337 = vadd.f32 %v5305, %v5203
        %v5338 = vadd.f32 %v5306, %v5208
        %v5339 = vadd.f32 %v5307, %v5213
        %v5340 = vadd.f32 %v5308, %v5218
        %v5341 = vadd.f32 %v5309, %v5223
        %v5342 = vadd.f32 %v5310, %v5228
        %v5343 = vadd.f32 %v5311, %v5233
        %v5344 = vadd.f32 %v5312, %v5238
        %v5345 = vadd.f32 %v5313, %v5243
        %v5346 = vadd.f32 %v5314, %v5248
        %v5347 = vadd.f32 %v5315, %v5253
        %v5348 = vadd.f32 %v5316, %v5258
        %v5349 = vadd.f32 %v5317, %v5263
        %v5350 = vadd.f32 %v5318, %v5268
        %v5351 = vadd.f32 %v5319, %v5273
        %v5352 = vadd.f32 %v5320, %v5278
        %v5353 = vadd.f32 %v5321, %v5283
        %v5354 = vadd.f32 %v5322, %v5288
        %5355 = vst [vmem:[#allocation3] sm:$0xff] %v5323
        %5356 = vst [vmem:[#allocation3 + $0x8] sm:$0xff] %v5324
        %5357 = vst [vmem:[#allocation3 + $0x10] sm:$0xff] %v5325
        %5358 = vst [vmem:[#allocation3 + $0x18] sm:$0xff] %v5326
        %5359 = vst [vmem:[#allocation3 + $0x20] sm:$0xff] %v5327
        %5360 = vst [vmem:[#allocation3 + $0x28] sm:$0xff] %v5328
        %5361 = vst [vmem:[#allocation3 + $0x30] sm:$0xff] %v5329
        %5362 = vst [vmem:[#allocation3 + $0x38] sm:$0xff] %v5330
        %5363 = vst [vmem:[#allocation3 + $0x40] sm:$0xff] %v5331
        %5364 = vst [vmem:[#allocation3 + $0x48] sm:$0xff] %v5332
        %5365 = vst [vmem:[#allocation3 + $0x50] sm:$0xff] %v5333
        %5366 = vst [vmem:[#allocation3 + $0x58] sm:$0xff] %v5334
        %5367 = vst [vmem:[#allocation3 + $0x60] sm:$0xff] %v5335
        %5368 = vst [vmem:[#allocation3 + $0x68] sm:$0xff] %v5336
        %5369 = vst [vmem:[#allocation3 + $0x70] sm:$0xff] %v5337
        %5370 = vst [vmem:[#allocation3 + $0x78] sm:$0xff] %v5338
        %5371 = vst [vmem:[#allocation3 + $0x80] sm:$0xff] %v5339
        %5372 = vst [vmem:[#allocation3 + $0x88] sm:$0xff] %v5340
        %5373 = vst [vmem:[#allocation3 + $0x90] sm:$0xff] %v5341
        %5374 = vst [vmem:[#allocation3 + $0x98] sm:$0xff] %v5342
        %5375 = vst [vmem:[#allocation3 + $0xa0] sm:$0xff] %v5343
        %5376 = vst [vmem:[#allocation3 + $0xa8] sm:$0xff] %v5344
        %5377 = vst [vmem:[#allocation3 + $0xb0] sm:$0xff] %v5345
        %5378 = vst [vmem:[#allocation3 + $0xb8] sm:$0xff] %v5346
        %5379 = vst [vmem:[#allocation3 + $0xc0] sm:$0xff] %v5347
        %5380 = vst [vmem:[#allocation3 + $0xc8] sm:$0xff] %v5348
        %5381 = vst [vmem:[#allocation3 + $0xd0] sm:$0xff] %v5349
        %5382 = vst [vmem:[#allocation3 + $0xd8] sm:$0xff] %v5350
        %5383 = vst [vmem:[#allocation3 + $0xe0] sm:$0xff] %v5351
        %5384 = vst [vmem:[#allocation3 + $0xe8] sm:$0xff] %v5352
        %5385 = vst [vmem:[#allocation3 + $0xf0] sm:$0xff] %v5353
        %5386 = vst [vmem:[#allocation3 + $0xf8] sm:$0xff] %v5354
        %v5387 = vld [vmem:[%s428 + $0x1] sm:$0xff]
        %v5388 = vld [vmem:[%s428 + $0x9] sm:$0xff]
        %v5389 = vld [vmem:[%s428 + $0x19] sm:$0xff]
        %v5390 = vld [vmem:[%s428 + $0x21] sm:$0xff]
        %v5391 = vld [vmem:[%s428 + $0x31] sm:$0xff]
        %v5392 = vld [vmem:[%s428 + $0x39] sm:$0xff]
        %v5393 = vld [vmem:[%s428 + $0x49] sm:$0xff]
        %v5394 = vld [vmem:[%s428 + $0x51] sm:$0xff]
        %v5395 = vld [vmem:[%s428 + $0x61] sm:$0xff]
        %v5396 = vld [vmem:[%s428 + $0x69] sm:$0xff]
        %v5397 = vld [vmem:[%s428 + $0x79] sm:$0xff]
        %v5398 = vld [vmem:[%s428 + $0x81] sm:$0xff]
        %v5399 = vld [vmem:[%s428 + $0x91] sm:$0xff]
        %v5400 = vld [vmem:[%s428 + $0x99] sm:$0xff]
        %v5401 = vld [vmem:[%s428 + $0xa9] sm:$0xff]
        %v5402 = vld [vmem:[%s428 + $0xb1] sm:$0xff]
        %v5403 = vld [vmem:[%s428 + $0xc1] sm:$0xff]
        %v5404 = vld [vmem:[%s428 + $0xc9] sm:$0xff]
        %v5405 = vld [vmem:[%s428 + $0xd9] sm:$0xff]
        %v5406 = vld [vmem:[%s428 + $0xe1] sm:$0xff]
        %v5407 = vld [vmem:[%s428 + $0xf1] sm:$0xff]
        %v5408 = vld [vmem:[%s428 + $0xf9] sm:$0xff]
        %v5409 = vld [vmem:[%s428 + $0x109] sm:$0xff]
        %v5410 = vld [vmem:[%s428 + $0x111] sm:$0xff]
        %v5411 = vld [vmem:[%s428 + $0x121] sm:$0xff]
        %v5412 = vld [vmem:[%s428 + $0x129] sm:$0xff]
        %v5413 = vld [vmem:[%s428 + $0x139] sm:$0xff]
        %v5414 = vld [vmem:[%s428 + $0x141] sm:$0xff]
        %v5415 = vld [vmem:[%s428 + $0x151] sm:$0xff]
        %v5416 = vld [vmem:[%s428 + $0x159] sm:$0xff]
        %v5417 = vld [vmem:[%s428 + $0x169] sm:$0xff]
        %v5418 = vld [vmem:[%s428 + $0x171] sm:$0xff]
        %s5419 = scalar_lea.vmem [#allocation9], 512
        %v5420 = vld [vmem:[%s5419] sm:$0xff]
        %v5421 = vld [vmem:[%s5419 + $0x8] sm:$0xff]
        %v5422 = vld [vmem:[%s5419 + $0x10] sm:$0xff]
        %v5423 = vld [vmem:[%s5419 + $0x18] sm:$0xff]
        %v5424 = vld [vmem:[%s5419 + $0x20] sm:$0xff]
        %v5425 = vld [vmem:[%s5419 + $0x28] sm:$0xff]
        %v5426 = vld [vmem:[%s5419 + $0x30] sm:$0xff]
        %v5427 = vld [vmem:[%s5419 + $0x38] sm:$0xff]
        %v5428 = vld [vmem:[%s5419 + $0x40] sm:$0xff]
        %v5429 = vld [vmem:[%s5419 + $0x48] sm:$0xff]
        %v5430 = vld [vmem:[%s5419 + $0x50] sm:$0xff]
        %v5431 = vld [vmem:[%s5419 + $0x58] sm:$0xff]
        %v5432 = vld [vmem:[%s5419 + $0x60] sm:$0xff]
        %v5433 = vld [vmem:[%s5419 + $0x68] sm:$0xff]
        %v5434 = vld [vmem:[%s5419 + $0x70] sm:$0xff]
        %v5435 = vld [vmem:[%s5419 + $0x78] sm:$0xff]
        %5436 = vmatprep.subr.mxu0 0.0
        %5437 = vmatpush1.msra.mxu0 %v5420
        %5438 = vmatprep.subr.mxu0 0.0
        %5439 = vmatpush1.msra.mxu0 %v5421
        %5440 = vmatprep.subr.mxu0 0.0
        %5441 = vmatpush1.msra.mxu0 %v5422
        %5442 = vmatprep.subr.mxu0 0.0
        %5443 = vmatpush1.msra.mxu0 %v5423
        %5444 = vmatprep.subr.mxu0 0.0
        %5445 = vmatpush1.msra.mxu0 %v5424
        %5446 = vmatprep.subr.mxu0 0.0
        %5447 = vmatpush1.msra.mxu0 %v5425
        %5448 = vmatprep.subr.mxu0 0.0
        %5449 = vmatpush1.msra.mxu0 %v5426
        %5450 = vmatprep.subr.mxu0 0.0
        %5451 = vmatpush1.msra.mxu0 %v5427
        %5452 = vmatprep.subr.mxu0 0.0
        %5453 = vmatpush1.msra.mxu0 %v5428
        %5454 = vmatprep.subr.mxu0 0.0
        %5455 = vmatpush1.msra.mxu0 %v5429
        %5456 = vmatprep.subr.mxu0 0.0
        %5457 = vmatpush1.msra.mxu0 %v5430
        %5458 = vmatprep.subr.mxu0 0.0
        %5459 = vmatpush1.msra.mxu0 %v5431
        %5460 = vmatprep.subr.mxu0 0.0
        %5461 = vmatpush1.msra.mxu0 %v5432
        %5462 = vmatprep.subr.mxu0 0.0
        %5463 = vmatpush1.msra.mxu0 %v5433
        %5464 = vmatprep.subr.mxu0 0.0
        %5465 = vmatpush1.msra.mxu0 %v5434
        %5466 = vmatprep.subr.mxu0 0.0
        %5467 = vmatpush1.msra.mxu0 %v5435
        %5468 = vmatprep.subr.mxu0 0.0
        %5469 = vmatpush1.msra.mxu0 0.0
        %5470 = vmatprep.subr.mxu0 0.0
        %5471 = vmatpush1.msra.mxu0 0.0
        %5472 = vmatprep.subr.mxu0 0.0
        %5473 = vmatpush1.msra.mxu0 0.0
        %5474 = vmatprep.subr.mxu0 0.0
        %5475 = vmatpush1.msra.mxu0 0.0
        %5476 = vmatprep.subr.mxu0 0.0
        %5477 = vmatpush1.msra.mxu0 0.0
        %5478 = vmatprep.subr.mxu0 0.0
        %5479 = vmatpush1.msra.mxu0 0.0
        %5480 = vmatprep.subr.mxu0 0.0
        %5481 = vmatpush1.msra.mxu0 0.0
        %5482 = vmatprep.subr.mxu0 0.0
        %5483 = vmatpush1.msra.mxu0 0.0
        %5484 = vmatprep.subr.mxu0 0.0
        %5485 = vmatpush1.msra.mxu0 0.0
        %5486 = vmatprep.subr.mxu0 0.0
        %5487 = vmatpush1.msra.mxu0 0.0
        %5488 = vmatprep.subr.mxu0 0.0
        %5489 = vmatpush1.msra.mxu0 0.0
        %5490 = vmatprep.subr.mxu0 0.0
        %5491 = vmatpush1.msra.mxu0 0.0
        %5492 = vmatprep.subr.mxu0 0.0
        %5493 = vmatpush1.msra.mxu0 0.0
        %5494 = vmatprep.subr.mxu0 0.0
        %5495 = vmatpush1.msra.mxu0 0.0
        %5496 = vmatprep.subr.mxu0 0.0
        %5497 = vmatpush1.msra.mxu0 0.0
        %5498 = vmatprep.subr.mxu0 0.0
        %5499 = vmatpush1.msra.mxu0 0.0
        %5500 = vmatprep.mubr.f32.mxu0 0.0
        %5501 = vmatmul.mubr.f32.gmra.mrb[0].mxu0 %v5387
        %v5502 = vpop.f32.mrb[0].mxu0
        %v5503 = vadd.f32 0.0, %v5502
        %v5504 = vpop.f32.mrb[0].mxu0
        %5505 = vmatprep.mubr.f32.mxu0 0.0
        %5506 = vmatmul.mubr.f32.gmra.mrb[0].mxu0 %v5388
        %v5507 = vpop.f32.mrb[0].mxu0
        %v5508 = vadd.f32 0.0, %v5507
        %v5509 = vpop.f32.mrb[0].mxu0
        %5510 = vmatprep.mubr.f32.mxu0 0.0
        %5511 = vmatmul.mubr.f32.gmra.mrb[0].mxu0 %v5389
        %v5512 = vpop.f32.mrb[0].mxu0
        %v5513 = vadd.f32 0.0, %v5512
        %v5514 = vpop.f32.mrb[0].mxu0
        %5515 = vmatprep.mubr.f32.mxu0 0.0
        %5516 = vmatmul.mubr.f32.gmra.mrb[0].mxu0 %v5390
        %v5517 = vpop.f32.mrb[0].mxu0
        %v5518 = vadd.f32 0.0, %v5517
        %v5519 = vpop.f32.mrb[0].mxu0
        %5520 = vmatprep.mubr.f32.mxu0 0.0
        %5521 = vmatmul.mubr.f32.gmra.mrb[0].mxu0 %v5391
        %v5522 = vpop.f32.mrb[0].mxu0
        %v5523 = vadd.f32 0.0, %v5522
        %v5524 = vpop.f32.mrb[0].mxu0
        %5525 = vmatprep.mubr.f32.mxu0 0.0
        %5526 = vmatmul.mubr.f32.gmra.mrb[0].mxu0 %v5392
        %v5527 = vpop.f32.mrb[0].mxu0
        %v5528 = vadd.f32 0.0, %v5527
        %v5529 = vpop.f32.mrb[0].mxu0
        %5530 = vmatprep.mubr.f32.mxu0 0.0
        %5531 = vmatmul.mubr.f32.gmra.mrb[0].mxu0 %v5393
        %v5532 = vpop.f32.mrb[0].mxu0
        %v5533 = vadd.f32 0.0, %v5532
        %v5534 = vpop.f32.mrb[0].mxu0
        %5535 = vmatprep.mubr.f32.mxu0 0.0
        %5536 = vmatmul.mubr.f32.gmra.mrb[0].mxu0 %v5394
        %v5537 = vpop.f32.mrb[0].mxu0
        %v5538 = vadd.f32 0.0, %v5537
        %v5539 = vpop.f32.mrb[0].mxu0
        %5540 = vmatprep.mubr.f32.mxu0 0.0
        %5541 = vmatmul.mubr.f32.gmra.mrb[0].mxu0 %v5395
        %v5542 = vpop.f32.mrb[0].mxu0
        %v5543 = vadd.f32 0.0, %v5542
        %v5544 = vpop.f32.mrb[0].mxu0
        %5545 = vmatprep.mubr.f32.mxu0 0.0
        %5546 = vmatmul.mubr.f32.gmra.mrb[0].mxu0 %v5396
        %v5547 = vpop.f32.mrb[0].mxu0
        %v5548 = vadd.f32 0.0, %v5547
        %v5549 = vpop.f32.mrb[0].mxu0
        %5550 = vmatprep.mubr.f32.mxu0 0.0
        %5551 = vmatmul.mubr.f32.gmra.mrb[0].mxu0 %v5397
        %v5552 = vpop.f32.mrb[0].mxu0
        %v5553 = vadd.f32 0.0, %v5552
        %v5554 = vpop.f32.mrb[0].mxu0
        %5555 = vmatprep.mubr.f32.mxu0 0.0
        %5556 = vmatmul.mubr.f32.gmra.mrb[0].mxu0 %v5398
        %v5557 = vpop.f32.mrb[0].mxu0
        %v5558 = vadd.f32 0.0, %v5557
        %v5559 = vpop.f32.mrb[0].mxu0
        %5560 = vmatprep.mubr.f32.mxu0 0.0
        %5561 = vmatmul.mubr.f32.gmra.mrb[0].mxu0 %v5399
        %v5562 = vpop.f32.mrb[0].mxu0
        %v5563 = vadd.f32 0.0, %v5562
        %v5564 = vpop.f32.mrb[0].mxu0
        %5565 = vmatprep.mubr.f32.mxu0 0.0
        %5566 = vmatmul.mubr.f32.gmra.mrb[0].mxu0 %v5400
        %v5567 = vpop.f32.mrb[0].mxu0
        %v5568 = vadd.f32 0.0, %v5567
        %v5569 = vpop.f32.mrb[0].mxu0
        %5570 = vmatprep.mubr.f32.mxu0 0.0
        %5571 = vmatmul.mubr.f32.gmra.mrb[0].mxu0 %v5401
        %v5572 = vpop.f32.mrb[0].mxu0
        %v5573 = vadd.f32 0.0, %v5572
        %v5574 = vpop.f32.mrb[0].mxu0
        %5575 = vmatprep.mubr.f32.mxu0 0.0
        %5576 = vmatmul.mubr.f32.gmra.mrb[0].mxu0 %v5402
        %v5577 = vpop.f32.mrb[0].mxu0
        %v5578 = vadd.f32 0.0, %v5577
        %v5579 = vpop.f32.mrb[0].mxu0
        %5580 = vmatprep.mubr.f32.mxu0 0.0
        %5581 = vmatmul.mubr.f32.gmra.mrb[0].mxu0 %v5403
        %v5582 = vpop.f32.mrb[0].mxu0
        %v5583 = vadd.f32 0.0, %v5582
        %v5584 = vpop.f32.mrb[0].mxu0
        %5585 = vmatprep.mubr.f32.mxu0 0.0
        %5586 = vmatmul.mubr.f32.gmra.mrb[0].mxu0 %v5404
        %v5587 = vpop.f32.mrb[0].mxu0
        %v5588 = vadd.f32 0.0, %v5587
        %v5589 = vpop.f32.mrb[0].mxu0
        %5590 = vmatprep.mubr.f32.mxu0 0.0
        %5591 = vmatmul.mubr.f32.gmra.mrb[0].mxu0 %v5405
        %v5592 = vpop.f32.mrb[0].mxu0
        %v5593 = vadd.f32 0.0, %v5592
        %v5594 = vpop.f32.mrb[0].mxu0
        %5595 = vmatprep.mubr.f32.mxu0 0.0
        %5596 = vmatmul.mubr.f32.gmra.mrb[0].mxu0 %v5406
        %v5597 = vpop.f32.mrb[0].mxu0
        %v5598 = vadd.f32 0.0, %v5597
        %v5599 = vpop.f32.mrb[0].mxu0
        %5600 = vmatprep.mubr.f32.mxu0 0.0
        %5601 = vmatmul.mubr.f32.gmra.mrb[0].mxu0 %v5407
        %v5602 = vpop.f32.mrb[0].mxu0
        %v5603 = vadd.f32 0.0, %v5602
        %v5604 = vpop.f32.mrb[0].mxu0
        %5605 = vmatprep.mubr.f32.mxu0 0.0
        %5606 = vmatmul.mubr.f32.gmra.mrb[0].mxu0 %v5408
        %v5607 = vpop.f32.mrb[0].mxu0
        %v5608 = vadd.f32 0.0, %v5607
        %v5609 = vpop.f32.mrb[0].mxu0
        %5610 = vmatprep.mubr.f32.mxu0 0.0
        %5611 = vmatmul.mubr.f32.gmra.mrb[0].mxu0 %v5409
        %v5612 = vpop.f32.mrb[0].mxu0
        %v5613 = vadd.f32 0.0, %v5612
        %v5614 = vpop.f32.mrb[0].mxu0
        %5615 = vmatprep.mubr.f32.mxu0 0.0
        %5616 = vmatmul.mubr.f32.gmra.mrb[0].mxu0 %v5410
        %v5617 = vpop.f32.mrb[0].mxu0
        %v5618 = vadd.f32 0.0, %v5617
        %v5619 = vpop.f32.mrb[0].mxu0
        %5620 = vmatprep.mubr.f32.mxu0 0.0
        %5621 = vmatmul.mubr.f32.gmra.mrb[0].mxu0 %v5411
        %v5622 = vpop.f32.mrb[0].mxu0
        %v5623 = vadd.f32 0.0, %v5622
        %v5624 = vpop.f32.mrb[0].mxu0
        %5625 = vmatprep.mubr.f32.mxu0 0.0
        %5626 = vmatmul.mubr.f32.gmra.mrb[0].mxu0 %v5412
        %v5627 = vpop.f32.mrb[0].mxu0
        %v5628 = vadd.f32 0.0, %v5627
        %v5629 = vpop.f32.mrb[0].mxu0
        %5630 = vmatprep.mubr.f32.mxu0 0.0
        %5631 = vmatmul.mubr.f32.gmra.mrb[0].mxu0 %v5413
        %v5632 = vpop.f32.mrb[0].mxu0
        %v5633 = vadd.f32 0.0, %v5632
        %v5634 = vpop.f32.mrb[0].mxu0
        %5635 = vmatprep.mubr.f32.mxu0 0.0
        %5636 = vmatmul.mubr.f32.gmra.mrb[0].mxu0 %v5414
        %v5637 = vpop.f32.mrb[0].mxu0
        %v5638 = vadd.f32 0.0, %v5637
        %v5639 = vpop.f32.mrb[0].mxu0
        %5640 = vmatprep.mubr.f32.mxu0 0.0
        %5641 = vmatmul.mubr.f32.gmra.mrb[0].mxu0 %v5415
        %v5642 = vpop.f32.mrb[0].mxu0
        %v5643 = vadd.f32 0.0, %v5642
        %v5644 = vpop.f32.mrb[0].mxu0
        %5645 = vmatprep.mubr.f32.mxu0 0.0
        %5646 = vmatmul.mubr.f32.gmra.mrb[0].mxu0 %v5416
        %v5647 = vpop.f32.mrb[0].mxu0
        %v5648 = vadd.f32 0.0, %v5647
        %v5649 = vpop.f32.mrb[0].mxu0
        %5650 = vmatprep.mubr.f32.mxu0 0.0
        %5651 = vmatmul.mubr.f32.gmra.mrb[0].mxu0 %v5417
        %v5652 = vpop.f32.mrb[0].mxu0
        %v5653 = vadd.f32 0.0, %v5652
        %v5654 = vpop.f32.mrb[0].mxu0
        %5655 = vmatprep.mubr.f32.mxu0 0.0
        %5656 = vmatmul.mubr.f32.gmra.mrb[0].mxu0 %v5418
        %v5657 = vpop.f32.mrb[0].mxu0
        %v5658 = vadd.f32 0.0, %v5657
        %v5659 = vpop.f32.mrb[0].mxu0
        %5660 = vdwg.mxu0
        %v5661 = vld [vmem:[#allocation3] sm:$0xff]
        %v5662 = vld [vmem:[#allocation3 + $0x8] sm:$0xff]
        %v5663 = vld [vmem:[#allocation3 + $0x10] sm:$0xff]
        %v5664 = vld [vmem:[#allocation3 + $0x18] sm:$0xff]
        %v5665 = vld [vmem:[#allocation3 + $0x20] sm:$0xff]
        %v5666 = vld [vmem:[#allocation3 + $0x28] sm:$0xff]
        %v5667 = vld [vmem:[#allocation3 + $0x30] sm:$0xff]
        %v5668 = vld [vmem:[#allocation3 + $0x38] sm:$0xff]
        %v5669 = vld [vmem:[#allocation3 + $0x40] sm:$0xff]
        %v5670 = vld [vmem:[#allocation3 + $0x48] sm:$0xff]
        %v5671 = vld [vmem:[#allocation3 + $0x50] sm:$0xff]
        %v5672 = vld [vmem:[#allocation3 + $0x58] sm:$0xff]
        %v5673 = vld [vmem:[#allocation3 + $0x60] sm:$0xff]
        %v5674 = vld [vmem:[#allocation3 + $0x68] sm:$0xff]
        %v5675 = vld [vmem:[#allocation3 + $0x70] sm:$0xff]
        %v5676 = vld [vmem:[#allocation3 + $0x78] sm:$0xff]
        %v5677 = vld [vmem:[#allocation3 + $0x80] sm:$0xff]
        %v5678 = vld [vmem:[#allocation3 + $0x88] sm:$0xff]
        %v5679 = vld [vmem:[#allocation3 + $0x90] sm:$0xff]
        %v5680 = vld [vmem:[#allocation3 + $0x98] sm:$0xff]
        %v5681 = vld [vmem:[#allocation3 + $0xa0] sm:$0xff]
        %v5682 = vld [vmem:[#allocation3 + $0xa8] sm:$0xff]
        %v5683 = vld [vmem:[#allocation3 + $0xb0] sm:$0xff]
        %v5684 = vld [vmem:[#allocation3 + $0xb8] sm:$0xff]
        %v5685 = vld [vmem:[#allocation3 + $0xc0] sm:$0xff]
        %v5686 = vld [vmem:[#allocation3 + $0xc8] sm:$0xff]
        %v5687 = vld [vmem:[#allocation3 + $0xd0] sm:$0xff]
        %v5688 = vld [vmem:[#allocation3 + $0xd8] sm:$0xff]
        %v5689 = vld [vmem:[#allocation3 + $0xe0] sm:$0xff]
        %v5690 = vld [vmem:[#allocation3 + $0xe8] sm:$0xff]
        %v5691 = vld [vmem:[#allocation3 + $0xf0] sm:$0xff]
        %v5692 = vld [vmem:[#allocation3 + $0xf8] sm:$0xff]
        %v5693 = vadd.f32 %v5661, %v5503
        %v5694 = vadd.f32 %v5662, %v5508
        %v5695 = vadd.f32 %v5663, %v5513
        %v5696 = vadd.f32 %v5664, %v5518
        %v5697 = vadd.f32 %v5665, %v5523
        %v5698 = vadd.f32 %v5666, %v5528
        %v5699 = vadd.f32 %v5667, %v5533
        %v5700 = vadd.f32 %v5668, %v5538
        %v5701 = vadd.f32 %v5669, %v5543
        %v5702 = vadd.f32 %v5670, %v5548
        %v5703 = vadd.f32 %v5671, %v5553
        %v5704 = vadd.f32 %v5672, %v5558
        %v5705 = vadd.f32 %v5673, %v5563
        %v5706 = vadd.f32 %v5674, %v5568
        %v5707 = vadd.f32 %v5675, %v5573
        %v5708 = vadd.f32 %v5676, %v5578
        %v5709 = vadd.f32 %v5677, %v5583
        %v5710 = vadd.f32 %v5678, %v5588
        %v5711 = vadd.f32 %v5679, %v5593
        %v5712 = vadd.f32 %v5680, %v5598
        %v5713 = vadd.f32 %v5681, %v5603
        %v5714 = vadd.f32 %v5682, %v5608
        %v5715 = vadd.f32 %v5683, %v5613
        %v5716 = vadd.f32 %v5684, %v5618
        %v5717 = vadd.f32 %v5685, %v5623
        %v5718 = vadd.f32 %v5686, %v5628
        %v5719 = vadd.f32 %v5687, %v5633
        %v5720 = vadd.f32 %v5688, %v5638
        %v5721 = vadd.f32 %v5689, %v5643
        %v5722 = vadd.f32 %v5690, %v5648
        %v5723 = vadd.f32 %v5691, %v5653
        %v5724 = vadd.f32 %v5692, %v5658
        %5725 = vst [vmem:[#allocation3] sm:$0xff] %v5693
        %5726 = vst [vmem:[#allocation3 + $0x8] sm:$0xff] %v5694
        %5727 = vst [vmem:[#allocation3 + $0x10] sm:$0xff] %v5695
        %5728 = vst [vmem:[#allocation3 + $0x18] sm:$0xff] %v5696
        %5729 = vst [vmem:[#allocation3 + $0x20] sm:$0xff] %v5697
        %5730 = vst [vmem:[#allocation3 + $0x28] sm:$0xff] %v5698
        %5731 = vst [vmem:[#allocation3 + $0x30] sm:$0xff] %v5699
        %5732 = vst [vmem:[#allocation3 + $0x38] sm:$0xff] %v5700
        %5733 = vst [vmem:[#allocation3 + $0x40] sm:$0xff] %v5701
        %5734 = vst [vmem:[#allocation3 + $0x48] sm:$0xff] %v5702
        %5735 = vst [vmem:[#allocation3 + $0x50] sm:$0xff] %v5703
        %5736 = vst [vmem:[#allocation3 + $0x58] sm:$0xff] %v5704
        %5737 = vst [vmem:[#allocation3 + $0x60] sm:$0xff] %v5705
        %5738 = vst [vmem:[#allocation3 + $0x68] sm:$0xff] %v5706
        %5739 = vst [vmem:[#allocation3 + $0x70] sm:$0xff] %v5707
        %5740 = vst [vmem:[#allocation3 + $0x78] sm:$0xff] %v5708
        %5741 = vst [vmem:[#allocation3 + $0x80] sm:$0xff] %v5709
        %5742 = vst [vmem:[#allocation3 + $0x88] sm:$0xff] %v5710
        %5743 = vst [vmem:[#allocation3 + $0x90] sm:$0xff] %v5711
        %5744 = vst [vmem:[#allocation3 + $0x98] sm:$0xff] %v5712
        %5745 = vst [vmem:[#allocation3 + $0xa0] sm:$0xff] %v5713
        %5746 = vst [vmem:[#allocation3 + $0xa8] sm:$0xff] %v5714
        %5747 = vst [vmem:[#allocation3 + $0xb0] sm:$0xff] %v5715
        %5748 = vst [vmem:[#allocation3 + $0xb8] sm:$0xff] %v5716
        %5749 = vst [vmem:[#allocation3 + $0xc0] sm:$0xff] %v5717
        %5750 = vst [vmem:[#allocation3 + $0xc8] sm:$0xff] %v5718
        %5751 = vst [vmem:[#allocation3 + $0xd0] sm:$0xff] %v5719
        %5752 = vst [vmem:[#allocation3 + $0xd8] sm:$0xff] %v5720
        %5753 = vst [vmem:[#allocation3 + $0xe0] sm:$0xff] %v5721
        %5754 = vst [vmem:[#allocation3 + $0xe8] sm:$0xff] %v5722
        %5755 = vst [vmem:[#allocation3 + $0xf0] sm:$0xff] %v5723
        %5756 = vst [vmem:[#allocation3 + $0xf8] sm:$0xff] %v5724
        %v5757 = vld [vmem:[%s428 + $0x2] sm:$0xff]
        %v5758 = vld [vmem:[%s428 + $0xa] sm:$0xff]
        %v5759 = vld [vmem:[%s428 + $0x1a] sm:$0xff]
        %v5760 = vld [vmem:[%s428 + $0x22] sm:$0xff]
        %v5761 = vld [vmem:[%s428 + $0x32] sm:$0xff]
        %v5762 = vld [vmem:[%s428 + $0x3a] sm:$0xff]
        %v5763 = vld [vmem:[%s428 + $0x4a] sm:$0xff]
        %v5764 = vld [vmem:[%s428 + $0x52] sm:$0xff]
        %v5765 = vld [vmem:[%s428 + $0x62] sm:$0xff]
        %v5766 = vld [vmem:[%s428 + $0x6a] sm:$0xff]
        %v5767 = vld [vmem:[%s428 + $0x7a] sm:$0xff]
        %v5768 = vld [vmem:[%s428 + $0x82] sm:$0xff]
        %v5769 = vld [vmem:[%s428 + $0x92] sm:$0xff]
        %v5770 = vld [vmem:[%s428 + $0x9a] sm:$0xff]
        %v5771 = vld [vmem:[%s428 + $0xaa] sm:$0xff]
        %v5772 = vld [vmem:[%s428 + $0xb2] sm:$0xff]
        %v5773 = vld [vmem:[%s428 + $0xc2] sm:$0xff]
        %v5774 = vld [vmem:[%s428 + $0xca] sm:$0xff]
        %v5775 = vld [vmem:[%s428 + $0xda] sm:$0xff]
        %v5776 = vld [vmem:[%s428 + $0xe2] sm:$0xff]
        %v5777 = vld [vmem:[%s428 + $0xf2] sm:$0xff]
        %v5778 = vld [vmem:[%s428 + $0xfa] sm:$0xff]
        %v5779 = vld [vmem:[%s428 + $0x10a] sm:$0xff]
        %v5780 = vld [vmem:[%s428 + $0x112] sm:$0xff]
        %v5781 = vld [vmem:[%s428 + $0x122] sm:$0xff]
        %v5782 = vld [vmem:[%s428 + $0x12a] sm:$0xff]
        %v5783 = vld [vmem:[%s428 + $0x13a] sm:$0xff]
        %v5784 = vld [vmem:[%s428 + $0x142] sm:$0xff]
        %v5785 = vld [vmem:[%s428 + $0x152] sm:$0xff]
        %v5786 = vld [vmem:[%s428 + $0x15a] sm:$0xff]
        %v5787 = vld [vmem:[%s428 + $0x16a] sm:$0xff]
        %v5788 = vld [vmem:[%s428 + $0x172] sm:$0xff]
        %s5789 = scalar_lea.vmem [#allocation9], 640
        %v5790 = vld [vmem:[%s5789] sm:$0xff]
        %v5791 = vld [vmem:[%s5789 + $0x8] sm:$0xff]
        %v5792 = vld [vmem:[%s5789 + $0x10] sm:$0xff]
        %v5793 = vld [vmem:[%s5789 + $0x18] sm:$0xff]
        %v5794 = vld [vmem:[%s5789 + $0x20] sm:$0xff]
        %v5795 = vld [vmem:[%s5789 + $0x28] sm:$0xff]
        %v5796 = vld [vmem:[%s5789 + $0x30] sm:$0xff]
        %v5797 = vld [vmem:[%s5789 + $0x38] sm:$0xff]
        %v5798 = vld [vmem:[%s5789 + $0x40] sm:$0xff]
        %v5799 = vld [vmem:[%s5789 + $0x48] sm:$0xff]
        %v5800 = vld [vmem:[%s5789 + $0x50] sm:$0xff]
        %v5801 = vld [vmem:[%s5789 + $0x58] sm:$0xff]
        %v5802 = vld [vmem:[%s5789 + $0x60] sm:$0xff]
        %v5803 = vld [vmem:[%s5789 + $0x68] sm:$0xff]
        %v5804 = vld [vmem:[%s5789 + $0x70] sm:$0xff]
        %v5805 = vld [vmem:[%s5789 + $0x78] sm:$0xff]
        %5806 = vmatprep.subr.mxu0 0.0
        %5807 = vmatpush1.msra.mxu0 %v5790
        %5808 = vmatprep.subr.mxu0 0.0
        %5809 = vmatpush1.msra.mxu0 %v5791
        %5810 = vmatprep.subr.mxu0 0.0
        %5811 = vmatpush1.msra.mxu0 %v5792
        %5812 = vmatprep.subr.mxu0 0.0
        %5813 = vmatpush1.msra.mxu0 %v5793
        %5814 = vmatprep.subr.mxu0 0.0
        %5815 = vmatpush1.msra.mxu0 %v5794
        %5816 = vmatprep.subr.mxu0 0.0
        %5817 = vmatpush1.msra.mxu0 %v5795
        %5818 = vmatprep.subr.mxu0 0.0
        %5819 = vmatpush1.msra.mxu0 %v5796
        %5820 = vmatprep.subr.mxu0 0.0
        %5821 = vmatpush1.msra.mxu0 %v5797
        %5822 = vmatprep.subr.mxu0 0.0
        %5823 = vmatpush1.msra.mxu0 %v5798
        %5824 = vmatprep.subr.mxu0 0.0
        %5825 = vmatpush1.msra.mxu0 %v5799
        %5826 = vmatprep.subr.mxu0 0.0
        %5827 = vmatpush1.msra.mxu0 %v5800
        %5828 = vmatprep.subr.mxu0 0.0
        %5829 = vmatpush1.msra.mxu0 %v5801
        %5830 = vmatprep.subr.mxu0 0.0
        %5831 = vmatpush1.msra.mxu0 %v5802
        %5832 = vmatprep.subr.mxu0 0.0
        %5833 = vmatpush1.msra.mxu0 %v5803
        %5834 = vmatprep.subr.mxu0 0.0
        %5835 = vmatpush1.msra.mxu0 %v5804
        %5836 = vmatprep.subr.mxu0 0.0
        %5837 = vmatpush1.msra.mxu0 %v5805
        %5838 = vmatprep.subr.mxu0 0.0
        %5839 = vmatpush1.msra.mxu0 0.0
        %5840 = vmatprep.subr.mxu0 0.0
        %5841 = vmatpush1.msra.mxu0 0.0
        %5842 = vmatprep.subr.mxu0 0.0
        %5843 = vmatpush1.msra.mxu0 0.0
        %5844 = vmatprep.subr.mxu0 0.0
        %5845 = vmatpush1.msra.mxu0 0.0
        %5846 = vmatprep.subr.mxu0 0.0
        %5847 = vmatpush1.msra.mxu0 0.0
        %5848 = vmatprep.subr.mxu0 0.0
        %5849 = vmatpush1.msra.mxu0 0.0
        %5850 = vmatprep.subr.mxu0 0.0
        %5851 = vmatpush1.msra.mxu0 0.0
        %5852 = vmatprep.subr.mxu0 0.0
        %5853 = vmatpush1.msra.mxu0 0.0
        %5854 = vmatprep.subr.mxu0 0.0
        %5855 = vmatpush1.msra.mxu0 0.0
        %5856 = vmatprep.subr.mxu0 0.0
        %5857 = vmatpush1.msra.mxu0 0.0
        %5858 = vmatprep.subr.mxu0 0.0
        %5859 = vmatpush1.msra.mxu0 0.0
        %5860 = vmatprep.subr.mxu0 0.0
        %5861 = vmatpush1.msra.mxu0 0.0
        %5862 = vmatprep.subr.mxu0 0.0
        %5863 = vmatpush1.msra.mxu0 0.0
        %5864 = vmatprep.subr.mxu0 0.0
        %5865 = vmatpush1.msra.mxu0 0.0
        %5866 = vmatprep.subr.mxu0 0.0
        %5867 = vmatpush1.msra.mxu0 0.0
        %5868 = vmatprep.subr.mxu0 0.0
        %5869 = vmatpush1.msra.mxu0 0.0
        %5870 = vmatprep.mubr.f32.mxu0 0.0
        %5871 = vmatmul.mubr.f32.gmra.mrb[0].mxu0 %v5757
        %v5872 = vpop.f32.mrb[0].mxu0
        %v5873 = vadd.f32 0.0, %v5872
        %v5874 = vpop.f32.mrb[0].mxu0
        %5875 = vmatprep.mubr.f32.mxu0 0.0
        %5876 = vmatmul.mubr.f32.gmra.mrb[0].mxu0 %v5758
        %v5877 = vpop.f32.mrb[0].mxu0
        %v5878 = vadd.f32 0.0, %v5877
        %v5879 = vpop.f32.mrb[0].mxu0
        %5880 = vmatprep.mubr.f32.mxu0 0.0
        %5881 = vmatmul.mubr.f32.gmra.mrb[0].mxu0 %v5759
        %v5882 = vpop.f32.mrb[0].mxu0
        %v5883 = vadd.f32 0.0, %v5882
        %v5884 = vpop.f32.mrb[0].mxu0
        %5885 = vmatprep.mubr.f32.mxu0 0.0
        %5886 = vmatmul.mubr.f32.gmra.mrb[0].mxu0 %v5760
        %v5887 = vpop.f32.mrb[0].mxu0
        %v5888 = vadd.f32 0.0, %v5887
        %v5889 = vpop.f32.mrb[0].mxu0
        %5890 = vmatprep.mubr.f32.mxu0 0.0
        %5891 = vmatmul.mubr.f32.gmra.mrb[0].mxu0 %v5761
        %v5892 = vpop.f32.mrb[0].mxu0
        %v5893 = vadd.f32 0.0, %v5892
        %v5894 = vpop.f32.mrb[0].mxu0
        %5895 = vmatprep.mubr.f32.mxu0 0.0
        %5896 = vmatmul.mubr.f32.gmra.mrb[0].mxu0 %v5762
        %v5897 = vpop.f32.mrb[0].mxu0
        %v5898 = vadd.f32 0.0, %v5897
        %v5899 = vpop.f32.mrb[0].mxu0
        %5900 = vmatprep.mubr.f32.mxu0 0.0
        %5901 = vmatmul.mubr.f32.gmra.mrb[0].mxu0 %v5763
        %v5902 = vpop.f32.mrb[0].mxu0
        %v5903 = vadd.f32 0.0, %v5902
        %v5904 = vpop.f32.mrb[0].mxu0
        %5905 = vmatprep.mubr.f32.mxu0 0.0
        %5906 = vmatmul.mubr.f32.gmra.mrb[0].mxu0 %v5764
        %v5907 = vpop.f32.mrb[0].mxu0
        %v5908 = vadd.f32 0.0, %v5907
        %v5909 = vpop.f32.mrb[0].mxu0
        %5910 = vmatprep.mubr.f32.mxu0 0.0
        %5911 = vmatmul.mubr.f32.gmra.mrb[0].mxu0 %v5765
        %v5912 = vpop.f32.mrb[0].mxu0
        %v5913 = vadd.f32 0.0, %v5912
        %v5914 = vpop.f32.mrb[0].mxu0
        %5915 = vmatprep.mubr.f32.mxu0 0.0
        %5916 = vmatmul.mubr.f32.gmra.mrb[0].mxu0 %v5766
        %v5917 = vpop.f32.mrb[0].mxu0
        %v5918 = vadd.f32 0.0, %v5917
        %v5919 = vpop.f32.mrb[0].mxu0
        %5920 = vmatprep.mubr.f32.mxu0 0.0
        %5921 = vmatmul.mubr.f32.gmra.mrb[0].mxu0 %v5767
        %v5922 = vpop.f32.mrb[0].mxu0
        %v5923 = vadd.f32 0.0, %v5922
        %v5924 = vpop.f32.mrb[0].mxu0
        %5925 = vmatprep.mubr.f32.mxu0 0.0
        %5926 = vmatmul.mubr.f32.gmra.mrb[0].mxu0 %v5768
        %v5927 = vpop.f32.mrb[0].mxu0
        %v5928 = vadd.f32 0.0, %v5927
        %v5929 = vpop.f32.mrb[0].mxu0
        %5930 = vmatprep.mubr.f32.mxu0 0.0
        %5931 = vmatmul.mubr.f32.gmra.mrb[0].mxu0 %v5769
        %v5932 = vpop.f32.mrb[0].mxu0
        %v5933 = vadd.f32 0.0, %v5932
        %v5934 = vpop.f32.mrb[0].mxu0
        %5935 = vmatprep.mubr.f32.mxu0 0.0
        %5936 = vmatmul.mubr.f32.gmra.mrb[0].mxu0 %v5770
        %v5937 = vpop.f32.mrb[0].mxu0
        %v5938 = vadd.f32 0.0, %v5937
        %v5939 = vpop.f32.mrb[0].mxu0
        %5940 = vmatprep.mubr.f32.mxu0 0.0
        %5941 = vmatmul.mubr.f32.gmra.mrb[0].mxu0 %v5771
        %v5942 = vpop.f32.mrb[0].mxu0
        %v5943 = vadd.f32 0.0, %v5942
        %v5944 = vpop.f32.mrb[0].mxu0
        %5945 = vmatprep.mubr.f32.mxu0 0.0
        %5946 = vmatmul.mubr.f32.gmra.mrb[0].mxu0 %v5772
        %v5947 = vpop.f32.mrb[0].mxu0
        %v5948 = vadd.f32 0.0, %v5947
        %v5949 = vpop.f32.mrb[0].mxu0
        %5950 = vmatprep.mubr.f32.mxu0 0.0
        %5951 = vmatmul.mubr.f32.gmra.mrb[0].mxu0 %v5773
        %v5952 = vpop.f32.mrb[0].mxu0
        %v5953 = vadd.f32 0.0, %v5952
        %v5954 = vpop.f32.mrb[0].mxu0
        %5955 = vmatprep.mubr.f32.mxu0 0.0
        %5956 = vmatmul.mubr.f32.gmra.mrb[0].mxu0 %v5774
        %v5957 = vpop.f32.mrb[0].mxu0
        %v5958 = vadd.f32 0.0, %v5957
        %v5959 = vpop.f32.mrb[0].mxu0
        %5960 = vmatprep.mubr.f32.mxu0 0.0
        %5961 = vmatmul.mubr.f32.gmra.mrb[0].mxu0 %v5775
        %v5962 = vpop.f32.mrb[0].mxu0
        %v5963 = vadd.f32 0.0, %v5962
        %v5964 = vpop.f32.mrb[0].mxu0
        %5965 = vmatprep.mubr.f32.mxu0 0.0
        %5966 = vmatmul.mubr.f32.gmra.mrb[0].mxu0 %v5776
        %v5967 = vpop.f32.mrb[0].mxu0
        %v5968 = vadd.f32 0.0, %v5967
        %v5969 = vpop.f32.mrb[0].mxu0
        %5970 = vmatprep.mubr.f32.mxu0 0.0
        %5971 = vmatmul.mubr.f32.gmra.mrb[0].mxu0 %v5777
        %v5972 = vpop.f32.mrb[0].mxu0
        %v5973 = vadd.f32 0.0, %v5972
        %v5974 = vpop.f32.mrb[0].mxu0
        %5975 = vmatprep.mubr.f32.mxu0 0.0
        %5976 = vmatmul.mubr.f32.gmra.mrb[0].mxu0 %v5778
        %v5977 = vpop.f32.mrb[0].mxu0
        %v5978 = vadd.f32 0.0, %v5977
        %v5979 = vpop.f32.mrb[0].mxu0
        %5980 = vmatprep.mubr.f32.mxu0 0.0
        %5981 = vmatmul.mubr.f32.gmra.mrb[0].mxu0 %v5779
        %v5982 = vpop.f32.mrb[0].mxu0
        %v5983 = vadd.f32 0.0, %v5982
        %v5984 = vpop.f32.mrb[0].mxu0
        %5985 = vmatprep.mubr.f32.mxu0 0.0
        %5986 = vmatmul.mubr.f32.gmra.mrb[0].mxu0 %v5780
        %v5987 = vpop.f32.mrb[0].mxu0
        %v5988 = vadd.f32 0.0, %v5987
        %v5989 = vpop.f32.mrb[0].mxu0
        %5990 = vmatprep.mubr.f32.mxu0 0.0
        %5991 = vmatmul.mubr.f32.gmra.mrb[0].mxu0 %v5781
        %v5992 = vpop.f32.mrb[0].mxu0
        %v5993 = vadd.f32 0.0, %v5992
        %v5994 = vpop.f32.mrb[0].mxu0
        %5995 = vmatprep.mubr.f32.mxu0 0.0
        %5996 = vmatmul.mubr.f32.gmra.mrb[0].mxu0 %v5782
        %v5997 = vpop.f32.mrb[0].mxu0
        %v5998 = vadd.f32 0.0, %v5997
        %v5999 = vpop.f32.mrb[0].mxu0
        %6000 = vmatprep.mubr.f32.mxu0 0.0
        %6001 = vmatmul.mubr.f32.gmra.mrb[0].mxu0 %v5783
        %v6002 = vpop.f32.mrb[0].mxu0
        %v6003 = vadd.f32 0.0, %v6002
        %v6004 = vpop.f32.mrb[0].mxu0
        %6005 = vmatprep.mubr.f32.mxu0 0.0
        %6006 = vmatmul.mubr.f32.gmra.mrb[0].mxu0 %v5784
        %v6007 = vpop.f32.mrb[0].mxu0
        %v6008 = vadd.f32 0.0, %v6007
        %v6009 = vpop.f32.mrb[0].mxu0
        %6010 = vmatprep.mubr.f32.mxu0 0.0
        %6011 = vmatmul.mubr.f32.gmra.mrb[0].mxu0 %v5785
        %v6012 = vpop.f32.mrb[0].mxu0
        %v6013 = vadd.f32 0.0, %v6012
        %v6014 = vpop.f32.mrb[0].mxu0
        %6015 = vmatprep.mubr.f32.mxu0 0.0
        %6016 = vmatmul.mubr.f32.gmra.mrb[0].mxu0 %v5786
        %v6017 = vpop.f32.mrb[0].mxu0
        %v6018 = vadd.f32 0.0, %v6017
        %v6019 = vpop.f32.mrb[0].mxu0
        %6020 = vmatprep.mubr.f32.mxu0 0.0
        %6021 = vmatmul.mubr.f32.gmra.mrb[0].mxu0 %v5787
        %v6022 = vpop.f32.mrb[0].mxu0
        %v6023 = vadd.f32 0.0, %v6022
        %v6024 = vpop.f32.mrb[0].mxu0
        %6025 = vmatprep.mubr.f32.mxu0 0.0
        %6026 = vmatmul.mubr.f32.gmra.mrb[0].mxu0 %v5788
        %v6027 = vpop.f32.mrb[0].mxu0
        %v6028 = vadd.f32 0.0, %v6027
        %v6029 = vpop.f32.mrb[0].mxu0
        %6030 = vdwg.mxu0
        %v6031 = vld [vmem:[#allocation3] sm:$0xff]
        %v6032 = vld [vmem:[#allocation3 + $0x8] sm:$0xff]
        %v6033 = vld [vmem:[#allocation3 + $0x10] sm:$0xff]
        %v6034 = vld [vmem:[#allocation3 + $0x18] sm:$0xff]
        %v6035 = vld [vmem:[#allocation3 + $0x20] sm:$0xff]
        %v6036 = vld [vmem:[#allocation3 + $0x28] sm:$0xff]
        %v6037 = vld [vmem:[#allocation3 + $0x30] sm:$0xff]
        %v6038 = vld [vmem:[#allocation3 + $0x38] sm:$0xff]
        %v6039 = vld [vmem:[#allocation3 + $0x40] sm:$0xff]
        %v6040 = vld [vmem:[#allocation3 + $0x48] sm:$0xff]
        %v6041 = vld [vmem:[#allocation3 + $0x50] sm:$0xff]
        %v6042 = vld [vmem:[#allocation3 + $0x58] sm:$0xff]
        %v6043 = vld [vmem:[#allocation3 + $0x60] sm:$0xff]
        %v6044 = vld [vmem:[#allocation3 + $0x68] sm:$0xff]
        %v6045 = vld [vmem:[#allocation3 + $0x70] sm:$0xff]
        %v6046 = vld [vmem:[#allocation3 + $0x78] sm:$0xff]
        %v6047 = vld [vmem:[#allocation3 + $0x80] sm:$0xff]
        %v6048 = vld [vmem:[#allocation3 + $0x88] sm:$0xff]
        %v6049 = vld [vmem:[#allocation3 + $0x90] sm:$0xff]
        %v6050 = vld [vmem:[#allocation3 + $0x98] sm:$0xff]
        %v6051 = vld [vmem:[#allocation3 + $0xa0] sm:$0xff]
        %v6052 = vld [vmem:[#allocation3 + $0xa8] sm:$0xff]
        %v6053 = vld [vmem:[#allocation3 + $0xb0] sm:$0xff]
        %v6054 = vld [vmem:[#allocation3 + $0xb8] sm:$0xff]
        %v6055 = vld [vmem:[#allocation3 + $0xc0] sm:$0xff]
        %v6056 = vld [vmem:[#allocation3 + $0xc8] sm:$0xff]
        %v6057 = vld [vmem:[#allocation3 + $0xd0] sm:$0xff]
        %v6058 = vld [vmem:[#allocation3 + $0xd8] sm:$0xff]
        %v6059 = vld [vmem:[#allocation3 + $0xe0] sm:$0xff]
        %v6060 = vld [vmem:[#allocation3 + $0xe8] sm:$0xff]
        %v6061 = vld [vmem:[#allocation3 + $0xf0] sm:$0xff]
        %v6062 = vld [vmem:[#allocation3 + $0xf8] sm:$0xff]
        %v6063 = vadd.f32 %v6031, %v5873
        %v6064 = vadd.f32 %v6032, %v5878
        %v6065 = vadd.f32 %v6033, %v5883
        %v6066 = vadd.f32 %v6034, %v5888
        %v6067 = vadd.f32 %v6035, %v5893
        %v6068 = vadd.f32 %v6036, %v5898
        %v6069 = vadd.f32 %v6037, %v5903
        %v6070 = vadd.f32 %v6038, %v5908
        %v6071 = vadd.f32 %v6039, %v5913
        %v6072 = vadd.f32 %v6040, %v5918
        %v6073 = vadd.f32 %v6041, %v5923
        %v6074 = vadd.f32 %v6042, %v5928
        %v6075 = vadd.f32 %v6043, %v5933
        %v6076 = vadd.f32 %v6044, %v5938
        %v6077 = vadd.f32 %v6045, %v5943
        %v6078 = vadd.f32 %v6046, %v5948
        %v6079 = vadd.f32 %v6047, %v5953
        %v6080 = vadd.f32 %v6048, %v5958
        %v6081 = vadd.f32 %v6049, %v5963
        %v6082 = vadd.f32 %v6050, %v5968
        %v6083 = vadd.f32 %v6051, %v5973
        %v6084 = vadd.f32 %v6052, %v5978
        %v6085 = vadd.f32 %v6053, %v5983
        %v6086 = vadd.f32 %v6054, %v5988
        %v6087 = vadd.f32 %v6055, %v5993
        %v6088 = vadd.f32 %v6056, %v5998
        %v6089 = vadd.f32 %v6057, %v6003
        %v6090 = vadd.f32 %v6058, %v6008
        %v6091 = vadd.f32 %v6059, %v6013
        %v6092 = vadd.f32 %v6060, %v6018
        %v6093 = vadd.f32 %v6061, %v6023
        %v6094 = vadd.f32 %v6062, %v6028
        %6095 = vst [vmem:[#allocation3] sm:$0xff] %v6063
        %6096 = vst [vmem:[#allocation3 + $0x8] sm:$0xff] %v6064
        %6097 = vst [vmem:[#allocation3 + $0x10] sm:$0xff] %v6065
        %6098 = vst [vmem:[#allocation3 + $0x18] sm:$0xff] %v6066
        %6099 = vst [vmem:[#allocation3 + $0x20] sm:$0xff] %v6067
        %6100 = vst [vmem:[#allocation3 + $0x28] sm:$0xff] %v6068
        %6101 = vst [vmem:[#allocation3 + $0x30] sm:$0xff] %v6069
        %6102 = vst [vmem:[#allocation3 + $0x38] sm:$0xff] %v6070
        %6103 = vst [vmem:[#allocation3 + $0x40] sm:$0xff] %v6071
        %6104 = vst [vmem:[#allocation3 + $0x48] sm:$0xff] %v6072
        %6105 = vst [vmem:[#allocation3 + $0x50] sm:$0xff] %v6073
        %6106 = vst [vmem:[#allocation3 + $0x58] sm:$0xff] %v6074
        %6107 = vst [vmem:[#allocation3 + $0x60] sm:$0xff] %v6075
        %6108 = vst [vmem:[#allocation3 + $0x68] sm:$0xff] %v6076
        %6109 = vst [vmem:[#allocation3 + $0x70] sm:$0xff] %v6077
        %6110 = vst [vmem:[#allocation3 + $0x78] sm:$0xff] %v6078
        %6111 = vst [vmem:[#allocation3 + $0x80] sm:$0xff] %v6079
        %6112 = vst [vmem:[#allocation3 + $0x88] sm:$0xff] %v6080
        %6113 = vst [vmem:[#allocation3 + $0x90] sm:$0xff] %v6081
        %6114 = vst [vmem:[#allocation3 + $0x98] sm:$0xff] %v6082
        %6115 = vst [vmem:[#allocation3 + $0xa0] sm:$0xff] %v6083
        %6116 = vst [vmem:[#allocation3 + $0xa8] sm:$0xff] %v6084
        %6117 = vst [vmem:[#allocation3 + $0xb0] sm:$0xff] %v6085
        %6118 = vst [vmem:[#allocation3 + $0xb8] sm:$0xff] %v6086
        %6119 = vst [vmem:[#allocation3 + $0xc0] sm:$0xff] %v6087
        %6120 = vst [vmem:[#allocation3 + $0xc8] sm:$0xff] %v6088
        %6121 = vst [vmem:[#allocation3 + $0xd0] sm:$0xff] %v6089
        %6122 = vst [vmem:[#allocation3 + $0xd8] sm:$0xff] %v6090
        %6123 = vst [vmem:[#allocation3 + $0xe0] sm:$0xff] %v6091
        %6124 = vst [vmem:[#allocation3 + $0xe8] sm:$0xff] %v6092
        %6125 = vst [vmem:[#allocation3 + $0xf0] sm:$0xff] %v6093
        %6126 = vst [vmem:[#allocation3 + $0xf8] sm:$0xff] %v6094
        %v6127 = vld [vmem:[%s2616] sm:$0xff]
        %v6128 = vld [vmem:[%s2616 + $0x8] sm:$0xff]
        %v6129 = vld [vmem:[%s2616 + $0x18] sm:$0xff]
        %v6130 = vld [vmem:[%s2616 + $0x20] sm:$0xff]
        %v6131 = vld [vmem:[%s2616 + $0x30] sm:$0xff]
        %v6132 = vld [vmem:[%s2616 + $0x38] sm:$0xff]
        %v6133 = vld [vmem:[%s2616 + $0x48] sm:$0xff]
        %v6134 = vld [vmem:[%s2616 + $0x50] sm:$0xff]
        %v6135 = vld [vmem:[%s2616 + $0x60] sm:$0xff]
        %v6136 = vld [vmem:[%s2616 + $0x68] sm:$0xff]
        %v6137 = vld [vmem:[%s2616 + $0x78] sm:$0xff]
        %v6138 = vld [vmem:[%s2616 + $0x80] sm:$0xff]
        %v6139 = vld [vmem:[%s2616 + $0x90] sm:$0xff]
        %v6140 = vld [vmem:[%s2616 + $0x98] sm:$0xff]
        %v6141 = vld [vmem:[%s2616 + $0xa8] sm:$0xff]
        %v6142 = vld [vmem:[%s2616 + $0xb0] sm:$0xff]
        %v6143 = vld [vmem:[%s2616 + $0xc0] sm:$0xff]
        %v6144 = vld [vmem:[%s2616 + $0xc8] sm:$0xff]
        %v6145 = vld [vmem:[%s2616 + $0xd8] sm:$0xff]
        %v6146 = vld [vmem:[%s2616 + $0xe0] sm:$0xff]
        %v6147 = vld [vmem:[%s2616 + $0xf0] sm:$0xff]
        %v6148 = vld [vmem:[%s2616 + $0xf8] sm:$0xff]
        %v6149 = vld [vmem:[%s2616 + $0x108] sm:$0xff]
        %v6150 = vld [vmem:[%s2616 + $0x110] sm:$0xff]
        %v6151 = vld [vmem:[%s2616 + $0x120] sm:$0xff]
        %v6152 = vld [vmem:[%s2616 + $0x128] sm:$0xff]
        %v6153 = vld [vmem:[%s2616 + $0x138] sm:$0xff]
        %v6154 = vld [vmem:[%s2616 + $0x140] sm:$0xff]
        %v6155 = vld [vmem:[%s2616 + $0x150] sm:$0xff]
        %v6156 = vld [vmem:[%s2616 + $0x158] sm:$0xff]
        %v6157 = vld [vmem:[%s2616 + $0x168] sm:$0xff]
        %v6158 = vld [vmem:[%s2616 + $0x170] sm:$0xff]
        %s6159 = scalar_lea.vmem [#allocation9], 768
        %v6160 = vld [vmem:[%s6159] sm:$0xff]
        %v6161 = vld [vmem:[%s6159 + $0x8] sm:$0xff]
        %v6162 = vld [vmem:[%s6159 + $0x10] sm:$0xff]
        %v6163 = vld [vmem:[%s6159 + $0x18] sm:$0xff]
        %v6164 = vld [vmem:[%s6159 + $0x20] sm:$0xff]
        %v6165 = vld [vmem:[%s6159 + $0x28] sm:$0xff]
        %v6166 = vld [vmem:[%s6159 + $0x30] sm:$0xff]
        %v6167 = vld [vmem:[%s6159 + $0x38] sm:$0xff]
        %v6168 = vld [vmem:[%s6159 + $0x40] sm:$0xff]
        %v6169 = vld [vmem:[%s6159 + $0x48] sm:$0xff]
        %v6170 = vld [vmem:[%s6159 + $0x50] sm:$0xff]
        %v6171 = vld [vmem:[%s6159 + $0x58] sm:$0xff]
        %v6172 = vld [vmem:[%s6159 + $0x60] sm:$0xff]
        %v6173 = vld [vmem:[%s6159 + $0x68] sm:$0xff]
        %v6174 = vld [vmem:[%s6159 + $0x70] sm:$0xff]
        %v6175 = vld [vmem:[%s6159 + $0x78] sm:$0xff]
        %6176 = vmatprep.subr.mxu0 0.0
        %6177 = vmatpush1.msra.mxu0 %v6160
        %6178 = vmatprep.subr.mxu0 0.0
        %6179 = vmatpush1.msra.mxu0 %v6161
        %6180 = vmatprep.subr.mxu0 0.0
        %6181 = vmatpush1.msra.mxu0 %v6162
        %6182 = vmatprep.subr.mxu0 0.0
        %6183 = vmatpush1.msra.mxu0 %v6163
        %6184 = vmatprep.subr.mxu0 0.0
        %6185 = vmatpush1.msra.mxu0 %v6164
        %6186 = vmatprep.subr.mxu0 0.0
        %6187 = vmatpush1.msra.mxu0 %v6165
        %6188 = vmatprep.subr.mxu0 0.0
        %6189 = vmatpush1.msra.mxu0 %v6166
        %6190 = vmatprep.subr.mxu0 0.0
        %6191 = vmatpush1.msra.mxu0 %v6167
        %6192 = vmatprep.subr.mxu0 0.0
        %6193 = vmatpush1.msra.mxu0 %v6168
        %6194 = vmatprep.subr.mxu0 0.0
        %6195 = vmatpush1.msra.mxu0 %v6169
        %6196 = vmatprep.subr.mxu0 0.0
        %6197 = vmatpush1.msra.mxu0 %v6170
        %6198 = vmatprep.subr.mxu0 0.0
        %6199 = vmatpush1.msra.mxu0 %v6171
        %6200 = vmatprep.subr.mxu0 0.0
        %6201 = vmatpush1.msra.mxu0 %v6172
        %6202 = vmatprep.subr.mxu0 0.0
        %6203 = vmatpush1.msra.mxu0 %v6173
        %6204 = vmatprep.subr.mxu0 0.0
        %6205 = vmatpush1.msra.mxu0 %v6174
        %6206 = vmatprep.subr.mxu0 0.0
        %6207 = vmatpush1.msra.mxu0 %v6175
        %6208 = vmatprep.subr.mxu0 0.0
        %6209 = vmatpush1.msra.mxu0 0.0
        %6210 = vmatprep.subr.mxu0 0.0
        %6211 = vmatpush1.msra.mxu0 0.0
        %6212 = vmatprep.subr.mxu0 0.0
        %6213 = vmatpush1.msra.mxu0 0.0
        %6214 = vmatprep.subr.mxu0 0.0
        %6215 = vmatpush1.msra.mxu0 0.0
        %6216 = vmatprep.subr.mxu0 0.0
        %6217 = vmatpush1.msra.mxu0 0.0
        %6218 = vmatprep.subr.mxu0 0.0
        %6219 = vmatpush1.msra.mxu0 0.0
        %6220 = vmatprep.subr.mxu0 0.0
        %6221 = vmatpush1.msra.mxu0 0.0
        %6222 = vmatprep.subr.mxu0 0.0
        %6223 = vmatpush1.msra.mxu0 0.0
        %6224 = vmatprep.subr.mxu0 0.0
        %6225 = vmatpush1.msra.mxu0 0.0
        %6226 = vmatprep.subr.mxu0 0.0
        %6227 = vmatpush1.msra.mxu0 0.0
        %6228 = vmatprep.subr.mxu0 0.0
        %6229 = vmatpush1.msra.mxu0 0.0
        %6230 = vmatprep.subr.mxu0 0.0
        %6231 = vmatpush1.msra.mxu0 0.0
        %6232 = vmatprep.subr.mxu0 0.0
        %6233 = vmatpush1.msra.mxu0 0.0
        %6234 = vmatprep.subr.mxu0 0.0
        %6235 = vmatpush1.msra.mxu0 0.0
        %6236 = vmatprep.subr.mxu0 0.0
        %6237 = vmatpush1.msra.mxu0 0.0
        %6238 = vmatprep.subr.mxu0 0.0
        %6239 = vmatpush1.msra.mxu0 0.0
        %6240 = vmatprep.mubr.f32.mxu0 0.0
        %6241 = vmatmul.mubr.f32.gmra.mrb[0].mxu0 %v6127
        %v6242 = vpop.f32.mrb[0].mxu0
        %v6243 = vadd.f32 0.0, %v6242
        %v6244 = vpop.f32.mrb[0].mxu0
        %6245 = vmatprep.mubr.f32.mxu0 0.0
        %6246 = vmatmul.mubr.f32.gmra.mrb[0].mxu0 %v6128
        %v6247 = vpop.f32.mrb[0].mxu0
        %v6248 = vadd.f32 0.0, %v6247
        %v6249 = vpop.f32.mrb[0].mxu0
        %6250 = vmatprep.mubr.f32.mxu0 0.0
        %6251 = vmatmul.mubr.f32.gmra.mrb[0].mxu0 %v6129
        %v6252 = vpop.f32.mrb[0].mxu0
        %v6253 = vadd.f32 0.0, %v6252
        %v6254 = vpop.f32.mrb[0].mxu0
        %6255 = vmatprep.mubr.f32.mxu0 0.0
        %6256 = vmatmul.mubr.f32.gmra.mrb[0].mxu0 %v6130
        %v6257 = vpop.f32.mrb[0].mxu0
        %v6258 = vadd.f32 0.0, %v6257
        %v6259 = vpop.f32.mrb[0].mxu0
        %6260 = vmatprep.mubr.f32.mxu0 0.0
        %6261 = vmatmul.mubr.f32.gmra.mrb[0].mxu0 %v6131
        %v6262 = vpop.f32.mrb[0].mxu0
        %v6263 = vadd.f32 0.0, %v6262
        %v6264 = vpop.f32.mrb[0].mxu0
        %6265 = vmatprep.mubr.f32.mxu0 0.0
        %6266 = vmatmul.mubr.f32.gmra.mrb[0].mxu0 %v6132
        %v6267 = vpop.f32.mrb[0].mxu0
        %v6268 = vadd.f32 0.0, %v6267
        %v6269 = vpop.f32.mrb[0].mxu0
        %6270 = vmatprep.mubr.f32.mxu0 0.0
        %6271 = vmatmul.mubr.f32.gmra.mrb[0].mxu0 %v6133
        %v6272 = vpop.f32.mrb[0].mxu0
        %v6273 = vadd.f32 0.0, %v6272
        %v6274 = vpop.f32.mrb[0].mxu0
        %6275 = vmatprep.mubr.f32.mxu0 0.0
        %6276 = vmatmul.mubr.f32.gmra.mrb[0].mxu0 %v6134
        %v6277 = vpop.f32.mrb[0].mxu0
        %v6278 = vadd.f32 0.0, %v6277
        %v6279 = vpop.f32.mrb[0].mxu0
        %6280 = vmatprep.mubr.f32.mxu0 0.0
        %6281 = vmatmul.mubr.f32.gmra.mrb[0].mxu0 %v6135
        %v6282 = vpop.f32.mrb[0].mxu0
        %v6283 = vadd.f32 0.0, %v6282
        %v6284 = vpop.f32.mrb[0].mxu0
        %6285 = vmatprep.mubr.f32.mxu0 0.0
        %6286 = vmatmul.mubr.f32.gmra.mrb[0].mxu0 %v6136
        %v6287 = vpop.f32.mrb[0].mxu0
        %v6288 = vadd.f32 0.0, %v6287
        %v6289 = vpop.f32.mrb[0].mxu0
        %6290 = vmatprep.mubr.f32.mxu0 0.0
        %6291 = vmatmul.mubr.f32.gmra.mrb[0].mxu0 %v6137
        %v6292 = vpop.f32.mrb[0].mxu0
        %v6293 = vadd.f32 0.0, %v6292
        %v6294 = vpop.f32.mrb[0].mxu0
        %6295 = vmatprep.mubr.f32.mxu0 0.0
        %6296 = vmatmul.mubr.f32.gmra.mrb[0].mxu0 %v6138
        %v6297 = vpop.f32.mrb[0].mxu0
        %v6298 = vadd.f32 0.0, %v6297
        %v6299 = vpop.f32.mrb[0].mxu0
        %6300 = vmatprep.mubr.f32.mxu0 0.0
        %6301 = vmatmul.mubr.f32.gmra.mrb[0].mxu0 %v6139
        %v6302 = vpop.f32.mrb[0].mxu0
        %v6303 = vadd.f32 0.0, %v6302
        %v6304 = vpop.f32.mrb[0].mxu0
        %6305 = vmatprep.mubr.f32.mxu0 0.0
        %6306 = vmatmul.mubr.f32.gmra.mrb[0].mxu0 %v6140
        %v6307 = vpop.f32.mrb[0].mxu0
        %v6308 = vadd.f32 0.0, %v6307
        %v6309 = vpop.f32.mrb[0].mxu0
        %6310 = vmatprep.mubr.f32.mxu0 0.0
        %6311 = vmatmul.mubr.f32.gmra.mrb[0].mxu0 %v6141
        %v6312 = vpop.f32.mrb[0].mxu0
        %v6313 = vadd.f32 0.0, %v6312
        %v6314 = vpop.f32.mrb[0].mxu0
        %6315 = vmatprep.mubr.f32.mxu0 0.0
        %6316 = vmatmul.mubr.f32.gmra.mrb[0].mxu0 %v6142
        %v6317 = vpop.f32.mrb[0].mxu0
        %v6318 = vadd.f32 0.0, %v6317
        %v6319 = vpop.f32.mrb[0].mxu0
        %6320 = vmatprep.mubr.f32.mxu0 0.0
        %6321 = vmatmul.mubr.f32.gmra.mrb[0].mxu0 %v6143
        %v6322 = vpop.f32.mrb[0].mxu0
        %v6323 = vadd.f32 0.0, %v6322
        %v6324 = vpop.f32.mrb[0].mxu0
        %6325 = vmatprep.mubr.f32.mxu0 0.0
        %6326 = vmatmul.mubr.f32.gmra.mrb[0].mxu0 %v6144
        %v6327 = vpop.f32.mrb[0].mxu0
        %v6328 = vadd.f32 0.0, %v6327
        %v6329 = vpop.f32.mrb[0].mxu0
        %6330 = vmatprep.mubr.f32.mxu0 0.0
        %6331 = vmatmul.mubr.f32.gmra.mrb[0].mxu0 %v6145
        %v6332 = vpop.f32.mrb[0].mxu0
        %v6333 = vadd.f32 0.0, %v6332
        %v6334 = vpop.f32.mrb[0].mxu0
        %6335 = vmatprep.mubr.f32.mxu0 0.0
        %6336 = vmatmul.mubr.f32.gmra.mrb[0].mxu0 %v6146
        %v6337 = vpop.f32.mrb[0].mxu0
        %v6338 = vadd.f32 0.0, %v6337
        %v6339 = vpop.f32.mrb[0].mxu0
        %6340 = vmatprep.mubr.f32.mxu0 0.0
        %6341 = vmatmul.mubr.f32.gmra.mrb[0].mxu0 %v6147
        %v6342 = vpop.f32.mrb[0].mxu0
        %v6343 = vadd.f32 0.0, %v6342
        %v6344 = vpop.f32.mrb[0].mxu0
        %6345 = vmatprep.mubr.f32.mxu0 0.0
        %6346 = vmatmul.mubr.f32.gmra.mrb[0].mxu0 %v6148
        %v6347 = vpop.f32.mrb[0].mxu0
        %v6348 = vadd.f32 0.0, %v6347
        %v6349 = vpop.f32.mrb[0].mxu0
        %6350 = vmatprep.mubr.f32.mxu0 0.0
        %6351 = vmatmul.mubr.f32.gmra.mrb[0].mxu0 %v6149
        %v6352 = vpop.f32.mrb[0].mxu0
        %v6353 = vadd.f32 0.0, %v6352
        %v6354 = vpop.f32.mrb[0].mxu0
        %6355 = vmatprep.mubr.f32.mxu0 0.0
        %6356 = vmatmul.mubr.f32.gmra.mrb[0].mxu0 %v6150
        %v6357 = vpop.f32.mrb[0].mxu0
        %v6358 = vadd.f32 0.0, %v6357
        %v6359 = vpop.f32.mrb[0].mxu0
        %6360 = vmatprep.mubr.f32.mxu0 0.0
        %6361 = vmatmul.mubr.f32.gmra.mrb[0].mxu0 %v6151
        %v6362 = vpop.f32.mrb[0].mxu0
        %v6363 = vadd.f32 0.0, %v6362
        %v6364 = vpop.f32.mrb[0].mxu0
        %6365 = vmatprep.mubr.f32.mxu0 0.0
        %6366 = vmatmul.mubr.f32.gmra.mrb[0].mxu0 %v6152
        %v6367 = vpop.f32.mrb[0].mxu0
        %v6368 = vadd.f32 0.0, %v6367
        %v6369 = vpop.f32.mrb[0].mxu0
        %6370 = vmatprep.mubr.f32.mxu0 0.0
        %6371 = vmatmul.mubr.f32.gmra.mrb[0].mxu0 %v6153
        %v6372 = vpop.f32.mrb[0].mxu0
        %v6373 = vadd.f32 0.0, %v6372
        %v6374 = vpop.f32.mrb[0].mxu0
        %6375 = vmatprep.mubr.f32.mxu0 0.0
        %6376 = vmatmul.mubr.f32.gmra.mrb[0].mxu0 %v6154
        %v6377 = vpop.f32.mrb[0].mxu0
        %v6378 = vadd.f32 0.0, %v6377
        %v6379 = vpop.f32.mrb[0].mxu0
        %6380 = vmatprep.mubr.f32.mxu0 0.0
        %6381 = vmatmul.mubr.f32.gmra.mrb[0].mxu0 %v6155
        %v6382 = vpop.f32.mrb[0].mxu0
        %v6383 = vadd.f32 0.0, %v6382
        %v6384 = vpop.f32.mrb[0].mxu0
        %6385 = vmatprep.mubr.f32.mxu0 0.0
        %6386 = vmatmul.mubr.f32.gmra.mrb[0].mxu0 %v6156
        %v6387 = vpop.f32.mrb[0].mxu0
        %v6388 = vadd.f32 0.0, %v6387
        %v6389 = vpop.f32.mrb[0].mxu0
        %6390 = vmatprep.mubr.f32.mxu0 0.0
        %6391 = vmatmul.mubr.f32.gmra.mrb[0].mxu0 %v6157
        %v6392 = vpop.f32.mrb[0].mxu0
        %v6393 = vadd.f32 0.0, %v6392
        %v6394 = vpop.f32.mrb[0].mxu0
        %6395 = vmatprep.mubr.f32.mxu0 0.0
        %6396 = vmatmul.mubr.f32.gmra.mrb[0].mxu0 %v6158
        %v6397 = vpop.f32.mrb[0].mxu0
        %v6398 = vadd.f32 0.0, %v6397
        %v6399 = vpop.f32.mrb[0].mxu0
        %6400 = vdwg.mxu0
        %v6401 = vld [vmem:[#allocation3] sm:$0xff]
        %v6402 = vld [vmem:[#allocation3 + $0x8] sm:$0xff]
        %v6403 = vld [vmem:[#allocation3 + $0x10] sm:$0xff]
        %v6404 = vld [vmem:[#allocation3 + $0x18] sm:$0xff]
        %v6405 = vld [vmem:[#allocation3 + $0x20] sm:$0xff]
        %v6406 = vld [vmem:[#allocation3 + $0x28] sm:$0xff]
        %v6407 = vld [vmem:[#allocation3 + $0x30] sm:$0xff]
        %v6408 = vld [vmem:[#allocation3 + $0x38] sm:$0xff]
        %v6409 = vld [vmem:[#allocation3 + $0x40] sm:$0xff]
        %v6410 = vld [vmem:[#allocation3 + $0x48] sm:$0xff]
        %v6411 = vld [vmem:[#allocation3 + $0x50] sm:$0xff]
        %v6412 = vld [vmem:[#allocation3 + $0x58] sm:$0xff]
        %v6413 = vld [vmem:[#allocation3 + $0x60] sm:$0xff]
        %v6414 = vld [vmem:[#allocation3 + $0x68] sm:$0xff]
        %v6415 = vld [vmem:[#allocation3 + $0x70] sm:$0xff]
        %v6416 = vld [vmem:[#allocation3 + $0x78] sm:$0xff]
        %v6417 = vld [vmem:[#allocation3 + $0x80] sm:$0xff]
        %v6418 = vld [vmem:[#allocation3 + $0x88] sm:$0xff]
        %v6419 = vld [vmem:[#allocation3 + $0x90] sm:$0xff]
        %v6420 = vld [vmem:[#allocation3 + $0x98] sm:$0xff]
        %v6421 = vld [vmem:[#allocation3 + $0xa0] sm:$0xff]
        %v6422 = vld [vmem:[#allocation3 + $0xa8] sm:$0xff]
        %v6423 = vld [vmem:[#allocation3 + $0xb0] sm:$0xff]
        %v6424 = vld [vmem:[#allocation3 + $0xb8] sm:$0xff]
        %v6425 = vld [vmem:[#allocation3 + $0xc0] sm:$0xff]
        %v6426 = vld [vmem:[#allocation3 + $0xc8] sm:$0xff]
        %v6427 = vld [vmem:[#allocation3 + $0xd0] sm:$0xff]
        %v6428 = vld [vmem:[#allocation3 + $0xd8] sm:$0xff]
        %v6429 = vld [vmem:[#allocation3 + $0xe0] sm:$0xff]
        %v6430 = vld [vmem:[#allocation3 + $0xe8] sm:$0xff]
        %v6431 = vld [vmem:[#allocation3 + $0xf0] sm:$0xff]
        %v6432 = vld [vmem:[#allocation3 + $0xf8] sm:$0xff]
        %v6433 = vadd.f32 %v6401, %v6243
        %v6434 = vadd.f32 %v6402, %v6248
        %v6435 = vadd.f32 %v6403, %v6253
        %v6436 = vadd.f32 %v6404, %v6258
        %v6437 = vadd.f32 %v6405, %v6263
        %v6438 = vadd.f32 %v6406, %v6268
        %v6439 = vadd.f32 %v6407, %v6273
        %v6440 = vadd.f32 %v6408, %v6278
        %v6441 = vadd.f32 %v6409, %v6283
        %v6442 = vadd.f32 %v6410, %v6288
        %v6443 = vadd.f32 %v6411, %v6293
        %v6444 = vadd.f32 %v6412, %v6298
        %v6445 = vadd.f32 %v6413, %v6303
        %v6446 = vadd.f32 %v6414, %v6308
        %v6447 = vadd.f32 %v6415, %v6313
        %v6448 = vadd.f32 %v6416, %v6318
        %v6449 = vadd.f32 %v6417, %v6323
        %v6450 = vadd.f32 %v6418, %v6328
        %v6451 = vadd.f32 %v6419, %v6333
        %v6452 = vadd.f32 %v6420, %v6338
        %v6453 = vadd.f32 %v6421, %v6343
        %v6454 = vadd.f32 %v6422, %v6348
        %v6455 = vadd.f32 %v6423, %v6353
        %v6456 = vadd.f32 %v6424, %v6358
        %v6457 = vadd.f32 %v6425, %v6363
        %v6458 = vadd.f32 %v6426, %v6368
        %v6459 = vadd.f32 %v6427, %v6373
        %v6460 = vadd.f32 %v6428, %v6378
        %v6461 = vadd.f32 %v6429, %v6383
        %v6462 = vadd.f32 %v6430, %v6388
        %v6463 = vadd.f32 %v6431, %v6393
        %v6464 = vadd.f32 %v6432, %v6398
        %6465 = vst [vmem:[#allocation3] sm:$0xff] %v6433
        %6466 = vst [vmem:[#allocation3 + $0x8] sm:$0xff] %v6434
        %6467 = vst [vmem:[#allocation3 + $0x10] sm:$0xff] %v6435
        %6468 = vst [vmem:[#allocation3 + $0x18] sm:$0xff] %v6436
        %6469 = vst [vmem:[#allocation3 + $0x20] sm:$0xff] %v6437
        %6470 = vst [vmem:[#allocation3 + $0x28] sm:$0xff] %v6438
        %6471 = vst [vmem:[#allocation3 + $0x30] sm:$0xff] %v6439
        %6472 = vst [vmem:[#allocation3 + $0x38] sm:$0xff] %v6440
        %6473 = vst [vmem:[#allocation3 + $0x40] sm:$0xff] %v6441
        %6474 = vst [vmem:[#allocation3 + $0x48] sm:$0xff] %v6442
        %6475 = vst [vmem:[#allocation3 + $0x50] sm:$0xff] %v6443
        %6476 = vst [vmem:[#allocation3 + $0x58] sm:$0xff] %v6444
        %6477 = vst [vmem:[#allocation3 + $0x60] sm:$0xff] %v6445
        %6478 = vst [vmem:[#allocation3 + $0x68] sm:$0xff] %v6446
        %6479 = vst [vmem:[#allocation3 + $0x70] sm:$0xff] %v6447
        %6480 = vst [vmem:[#allocation3 + $0x78] sm:$0xff] %v6448
        %6481 = vst [vmem:[#allocation3 + $0x80] sm:$0xff] %v6449
        %6482 = vst [vmem:[#allocation3 + $0x88] sm:$0xff] %v6450
        %6483 = vst [vmem:[#allocation3 + $0x90] sm:$0xff] %v6451
        %6484 = vst [vmem:[#allocation3 + $0x98] sm:$0xff] %v6452
        %6485 = vst [vmem:[#allocation3 + $0xa0] sm:$0xff] %v6453
        %6486 = vst [vmem:[#allocation3 + $0xa8] sm:$0xff] %v6454
        %6487 = vst [vmem:[#allocation3 + $0xb0] sm:$0xff] %v6455
        %6488 = vst [vmem:[#allocation3 + $0xb8] sm:$0xff] %v6456
        %6489 = vst [vmem:[#allocation3 + $0xc0] sm:$0xff] %v6457
        %6490 = vst [vmem:[#allocation3 + $0xc8] sm:$0xff] %v6458
        %6491 = vst [vmem:[#allocation3 + $0xd0] sm:$0xff] %v6459
        %6492 = vst [vmem:[#allocation3 + $0xd8] sm:$0xff] %v6460
        %6493 = vst [vmem:[#allocation3 + $0xe0] sm:$0xff] %v6461
        %6494 = vst [vmem:[#allocation3 + $0xe8] sm:$0xff] %v6462
        %6495 = vst [vmem:[#allocation3 + $0xf0] sm:$0xff] %v6463
        %6496 = vst [vmem:[#allocation3 + $0xf8] sm:$0xff] %v6464
        %v6497 = vld [vmem:[%s2616 + $0x1] sm:$0xff]
        %v6498 = vld [vmem:[%s2616 + $0x9] sm:$0xff]
        %v6499 = vld [vmem:[%s2616 + $0x19] sm:$0xff]
        %v6500 = vld [vmem:[%s2616 + $0x21] sm:$0xff]
        %v6501 = vld [vmem:[%s2616 + $0x31] sm:$0xff]
        %v6502 = vld [vmem:[%s2616 + $0x39] sm:$0xff]
        %v6503 = vld [vmem:[%s2616 + $0x49] sm:$0xff]
        %v6504 = vld [vmem:[%s2616 + $0x51] sm:$0xff]
        %v6505 = vld [vmem:[%s2616 + $0x61] sm:$0xff]
        %v6506 = vld [vmem:[%s2616 + $0x69] sm:$0xff]
        %v6507 = vld [vmem:[%s2616 + $0x79] sm:$0xff]
        %v6508 = vld [vmem:[%s2616 + $0x81] sm:$0xff]
        %v6509 = vld [vmem:[%s2616 + $0x91] sm:$0xff]
        %v6510 = vld [vmem:[%s2616 + $0x99] sm:$0xff]
        %v6511 = vld [vmem:[%s2616 + $0xa9] sm:$0xff]
        %v6512 = vld [vmem:[%s2616 + $0xb1] sm:$0xff]
        %v6513 = vld [vmem:[%s2616 + $0xc1] sm:$0xff]
        %v6514 = vld [vmem:[%s2616 + $0xc9] sm:$0xff]
        %v6515 = vld [vmem:[%s2616 + $0xd9] sm:$0xff]
        %v6516 = vld [vmem:[%s2616 + $0xe1] sm:$0xff]
        %v6517 = vld [vmem:[%s2616 + $0xf1] sm:$0xff]
        %v6518 = vld [vmem:[%s2616 + $0xf9] sm:$0xff]
        %v6519 = vld [vmem:[%s2616 + $0x109] sm:$0xff]
        %v6520 = vld [vmem:[%s2616 + $0x111] sm:$0xff]
        %v6521 = vld [vmem:[%s2616 + $0x121] sm:$0xff]
        %v6522 = vld [vmem:[%s2616 + $0x129] sm:$0xff]
        %v6523 = vld [vmem:[%s2616 + $0x139] sm:$0xff]
        %v6524 = vld [vmem:[%s2616 + $0x141] sm:$0xff]
        %v6525 = vld [vmem:[%s2616 + $0x151] sm:$0xff]
        %v6526 = vld [vmem:[%s2616 + $0x159] sm:$0xff]
        %v6527 = vld [vmem:[%s2616 + $0x169] sm:$0xff]
        %v6528 = vld [vmem:[%s2616 + $0x171] sm:$0xff]
        %s6529 = scalar_lea.vmem [#allocation9], 896
        %v6530 = vld [vmem:[%s6529] sm:$0xff]
        %v6531 = vld [vmem:[%s6529 + $0x8] sm:$0xff]
        %v6532 = vld [vmem:[%s6529 + $0x10] sm:$0xff]
        %v6533 = vld [vmem:[%s6529 + $0x18] sm:$0xff]
        %v6534 = vld [vmem:[%s6529 + $0x20] sm:$0xff]
        %v6535 = vld [vmem:[%s6529 + $0x28] sm:$0xff]
        %v6536 = vld [vmem:[%s6529 + $0x30] sm:$0xff]
        %v6537 = vld [vmem:[%s6529 + $0x38] sm:$0xff]
        %v6538 = vld [vmem:[%s6529 + $0x40] sm:$0xff]
        %v6539 = vld [vmem:[%s6529 + $0x48] sm:$0xff]
        %v6540 = vld [vmem:[%s6529 + $0x50] sm:$0xff]
        %v6541 = vld [vmem:[%s6529 + $0x58] sm:$0xff]
        %v6542 = vld [vmem:[%s6529 + $0x60] sm:$0xff]
        %v6543 = vld [vmem:[%s6529 + $0x68] sm:$0xff]
        %v6544 = vld [vmem:[%s6529 + $0x70] sm:$0xff]
        %v6545 = vld [vmem:[%s6529 + $0x78] sm:$0xff]
        %6546 = vmatprep.subr.mxu0 0.0
        %6547 = vmatpush1.msra.mxu0 %v6530
        %6548 = vmatprep.subr.mxu0 0.0
        %6549 = vmatpush1.msra.mxu0 %v6531
        %6550 = vmatprep.subr.mxu0 0.0
        %6551 = vmatpush1.msra.mxu0 %v6532
        %6552 = vmatprep.subr.mxu0 0.0
        %6553 = vmatpush1.msra.mxu0 %v6533
        %6554 = vmatprep.subr.mxu0 0.0
        %6555 = vmatpush1.msra.mxu0 %v6534
        %6556 = vmatprep.subr.mxu0 0.0
        %6557 = vmatpush1.msra.mxu0 %v6535
        %6558 = vmatprep.subr.mxu0 0.0
        %6559 = vmatpush1.msra.mxu0 %v6536
        %6560 = vmatprep.subr.mxu0 0.0
        %6561 = vmatpush1.msra.mxu0 %v6537
        %6562 = vmatprep.subr.mxu0 0.0
        %6563 = vmatpush1.msra.mxu0 %v6538
        %6564 = vmatprep.subr.mxu0 0.0
        %6565 = vmatpush1.msra.mxu0 %v6539
        %6566 = vmatprep.subr.mxu0 0.0
        %6567 = vmatpush1.msra.mxu0 %v6540
        %6568 = vmatprep.subr.mxu0 0.0
        %6569 = vmatpush1.msra.mxu0 %v6541
        %6570 = vmatprep.subr.mxu0 0.0
        %6571 = vmatpush1.msra.mxu0 %v6542
        %6572 = vmatprep.subr.mxu0 0.0
        %6573 = vmatpush1.msra.mxu0 %v6543
        %6574 = vmatprep.subr.mxu0 0.0
        %6575 = vmatpush1.msra.mxu0 %v6544
        %6576 = vmatprep.subr.mxu0 0.0
        %6577 = vmatpush1.msra.mxu0 %v6545
        %6578 = vmatprep.subr.mxu0 0.0
        %6579 = vmatpush1.msra.mxu0 0.0
        %6580 = vmatprep.subr.mxu0 0.0
        %6581 = vmatpush1.msra.mxu0 0.0
        %6582 = vmatprep.subr.mxu0 0.0
        %6583 = vmatpush1.msra.mxu0 0.0
        %6584 = vmatprep.subr.mxu0 0.0
        %6585 = vmatpush1.msra.mxu0 0.0
        %6586 = vmatprep.subr.mxu0 0.0
        %6587 = vmatpush1.msra.mxu0 0.0
        %6588 = vmatprep.subr.mxu0 0.0
        %6589 = vmatpush1.msra.mxu0 0.0
        %6590 = vmatprep.subr.mxu0 0.0
        %6591 = vmatpush1.msra.mxu0 0.0
        %6592 = vmatprep.subr.mxu0 0.0
        %6593 = vmatpush1.msra.mxu0 0.0
        %6594 = vmatprep.subr.mxu0 0.0
        %6595 = vmatpush1.msra.mxu0 0.0
        %6596 = vmatprep.subr.mxu0 0.0
        %6597 = vmatpush1.msra.mxu0 0.0
        %6598 = vmatprep.subr.mxu0 0.0
        %6599 = vmatpush1.msra.mxu0 0.0
        %6600 = vmatprep.subr.mxu0 0.0
        %6601 = vmatpush1.msra.mxu0 0.0
        %6602 = vmatprep.subr.mxu0 0.0
        %6603 = vmatpush1.msra.mxu0 0.0
        %6604 = vmatprep.subr.mxu0 0.0
        %6605 = vmatpush1.msra.mxu0 0.0
        %6606 = vmatprep.subr.mxu0 0.0
        %6607 = vmatpush1.msra.mxu0 0.0
        %6608 = vmatprep.subr.mxu0 0.0
        %6609 = vmatpush1.msra.mxu0 0.0
        %6610 = vmatprep.mubr.f32.mxu0 0.0
        %6611 = vmatmul.mubr.f32.gmra.mrb[0].mxu0 %v6497
        %v6612 = vpop.f32.mrb[0].mxu0
        %v6613 = vadd.f32 0.0, %v6612
        %v6614 = vpop.f32.mrb[0].mxu0
        %6615 = vmatprep.mubr.f32.mxu0 0.0
        %6616 = vmatmul.mubr.f32.gmra.mrb[0].mxu0 %v6498
        %v6617 = vpop.f32.mrb[0].mxu0
        %v6618 = vadd.f32 0.0, %v6617
        %v6619 = vpop.f32.mrb[0].mxu0
        %6620 = vmatprep.mubr.f32.mxu0 0.0
        %6621 = vmatmul.mubr.f32.gmra.mrb[0].mxu0 %v6499
        %v6622 = vpop.f32.mrb[0].mxu0
        %v6623 = vadd.f32 0.0, %v6622
        %v6624 = vpop.f32.mrb[0].mxu0
        %6625 = vmatprep.mubr.f32.mxu0 0.0
        %6626 = vmatmul.mubr.f32.gmra.mrb[0].mxu0 %v6500
        %v6627 = vpop.f32.mrb[0].mxu0
        %v6628 = vadd.f32 0.0, %v6627
        %v6629 = vpop.f32.mrb[0].mxu0
        %6630 = vmatprep.mubr.f32.mxu0 0.0
        %6631 = vmatmul.mubr.f32.gmra.mrb[0].mxu0 %v6501
        %v6632 = vpop.f32.mrb[0].mxu0
        %v6633 = vadd.f32 0.0, %v6632
        %v6634 = vpop.f32.mrb[0].mxu0
        %6635 = vmatprep.mubr.f32.mxu0 0.0
        %6636 = vmatmul.mubr.f32.gmra.mrb[0].mxu0 %v6502
        %v6637 = vpop.f32.mrb[0].mxu0
        %v6638 = vadd.f32 0.0, %v6637
        %v6639 = vpop.f32.mrb[0].mxu0
        %6640 = vmatprep.mubr.f32.mxu0 0.0
        %6641 = vmatmul.mubr.f32.gmra.mrb[0].mxu0 %v6503
        %v6642 = vpop.f32.mrb[0].mxu0
        %v6643 = vadd.f32 0.0, %v6642
        %v6644 = vpop.f32.mrb[0].mxu0
        %6645 = vmatprep.mubr.f32.mxu0 0.0
        %6646 = vmatmul.mubr.f32.gmra.mrb[0].mxu0 %v6504
        %v6647 = vpop.f32.mrb[0].mxu0
        %v6648 = vadd.f32 0.0, %v6647
        %v6649 = vpop.f32.mrb[0].mxu0
        %6650 = vmatprep.mubr.f32.mxu0 0.0
        %6651 = vmatmul.mubr.f32.gmra.mrb[0].mxu0 %v6505
        %v6652 = vpop.f32.mrb[0].mxu0
        %v6653 = vadd.f32 0.0, %v6652
        %v6654 = vpop.f32.mrb[0].mxu0
        %6655 = vmatprep.mubr.f32.mxu0 0.0
        %6656 = vmatmul.mubr.f32.gmra.mrb[0].mxu0 %v6506
        %v6657 = vpop.f32.mrb[0].mxu0
        %v6658 = vadd.f32 0.0, %v6657
        %v6659 = vpop.f32.mrb[0].mxu0
        %6660 = vmatprep.mubr.f32.mxu0 0.0
        %6661 = vmatmul.mubr.f32.gmra.mrb[0].mxu0 %v6507
        %v6662 = vpop.f32.mrb[0].mxu0
        %v6663 = vadd.f32 0.0, %v6662
        %v6664 = vpop.f32.mrb[0].mxu0
        %6665 = vmatprep.mubr.f32.mxu0 0.0
        %6666 = vmatmul.mubr.f32.gmra.mrb[0].mxu0 %v6508
        %v6667 = vpop.f32.mrb[0].mxu0
        %v6668 = vadd.f32 0.0, %v6667
        %v6669 = vpop.f32.mrb[0].mxu0
        %6670 = vmatprep.mubr.f32.mxu0 0.0
        %6671 = vmatmul.mubr.f32.gmra.mrb[0].mxu0 %v6509
        %v6672 = vpop.f32.mrb[0].mxu0
        %v6673 = vadd.f32 0.0, %v6672
        %v6674 = vpop.f32.mrb[0].mxu0
        %6675 = vmatprep.mubr.f32.mxu0 0.0
        %6676 = vmatmul.mubr.f32.gmra.mrb[0].mxu0 %v6510
        %v6677 = vpop.f32.mrb[0].mxu0
        %v6678 = vadd.f32 0.0, %v6677
        %v6679 = vpop.f32.mrb[0].mxu0
        %6680 = vmatprep.mubr.f32.mxu0 0.0
        %6681 = vmatmul.mubr.f32.gmra.mrb[0].mxu0 %v6511
        %v6682 = vpop.f32.mrb[0].mxu0
        %v6683 = vadd.f32 0.0, %v6682
        %v6684 = vpop.f32.mrb[0].mxu0
        %6685 = vmatprep.mubr.f32.mxu0 0.0
        %6686 = vmatmul.mubr.f32.gmra.mrb[0].mxu0 %v6512
        %v6687 = vpop.f32.mrb[0].mxu0
        %v6688 = vadd.f32 0.0, %v6687
        %v6689 = vpop.f32.mrb[0].mxu0
        %6690 = vmatprep.mubr.f32.mxu0 0.0
        %6691 = vmatmul.mubr.f32.gmra.mrb[0].mxu0 %v6513
        %v6692 = vpop.f32.mrb[0].mxu0
        %v6693 = vadd.f32 0.0, %v6692
        %v6694 = vpop.f32.mrb[0].mxu0
        %6695 = vmatprep.mubr.f32.mxu0 0.0
        %6696 = vmatmul.mubr.f32.gmra.mrb[0].mxu0 %v6514
        %v6697 = vpop.f32.mrb[0].mxu0
        %v6698 = vadd.f32 0.0, %v6697
        %v6699 = vpop.f32.mrb[0].mxu0
        %6700 = vmatprep.mubr.f32.mxu0 0.0
        %6701 = vmatmul.mubr.f32.gmra.mrb[0].mxu0 %v6515
        %v6702 = vpop.f32.mrb[0].mxu0
        %v6703 = vadd.f32 0.0, %v6702
        %v6704 = vpop.f32.mrb[0].mxu0
        %6705 = vmatprep.mubr.f32.mxu0 0.0
        %6706 = vmatmul.mubr.f32.gmra.mrb[0].mxu0 %v6516
        %v6707 = vpop.f32.mrb[0].mxu0
        %v6708 = vadd.f32 0.0, %v6707
        %v6709 = vpop.f32.mrb[0].mxu0
        %6710 = vmatprep.mubr.f32.mxu0 0.0
        %6711 = vmatmul.mubr.f32.gmra.mrb[0].mxu0 %v6517
        %v6712 = vpop.f32.mrb[0].mxu0
        %v6713 = vadd.f32 0.0, %v6712
        %v6714 = vpop.f32.mrb[0].mxu0
        %6715 = vmatprep.mubr.f32.mxu0 0.0
        %6716 = vmatmul.mubr.f32.gmra.mrb[0].mxu0 %v6518
        %v6717 = vpop.f32.mrb[0].mxu0
        %v6718 = vadd.f32 0.0, %v6717
        %v6719 = vpop.f32.mrb[0].mxu0
        %6720 = vmatprep.mubr.f32.mxu0 0.0
        %6721 = vmatmul.mubr.f32.gmra.mrb[0].mxu0 %v6519
        %v6722 = vpop.f32.mrb[0].mxu0
        %v6723 = vadd.f32 0.0, %v6722
        %v6724 = vpop.f32.mrb[0].mxu0
        %6725 = vmatprep.mubr.f32.mxu0 0.0
        %6726 = vmatmul.mubr.f32.gmra.mrb[0].mxu0 %v6520
        %v6727 = vpop.f32.mrb[0].mxu0
        %v6728 = vadd.f32 0.0, %v6727
        %v6729 = vpop.f32.mrb[0].mxu0
        %6730 = vmatprep.mubr.f32.mxu0 0.0
        %6731 = vmatmul.mubr.f32.gmra.mrb[0].mxu0 %v6521
        %v6732 = vpop.f32.mrb[0].mxu0
        %v6733 = vadd.f32 0.0, %v6732
        %v6734 = vpop.f32.mrb[0].mxu0
        %6735 = vmatprep.mubr.f32.mxu0 0.0
        %6736 = vmatmul.mubr.f32.gmra.mrb[0].mxu0 %v6522
        %v6737 = vpop.f32.mrb[0].mxu0
        %v6738 = vadd.f32 0.0, %v6737
        %v6739 = vpop.f32.mrb[0].mxu0
        %6740 = vmatprep.mubr.f32.mxu0 0.0
        %6741 = vmatmul.mubr.f32.gmra.mrb[0].mxu0 %v6523
        %v6742 = vpop.f32.mrb[0].mxu0
        %v6743 = vadd.f32 0.0, %v6742
        %v6744 = vpop.f32.mrb[0].mxu0
        %6745 = vmatprep.mubr.f32.mxu0 0.0
        %6746 = vmatmul.mubr.f32.gmra.mrb[0].mxu0 %v6524
        %v6747 = vpop.f32.mrb[0].mxu0
        %v6748 = vadd.f32 0.0, %v6747
        %v6749 = vpop.f32.mrb[0].mxu0
        %6750 = vmatprep.mubr.f32.mxu0 0.0
        %6751 = vmatmul.mubr.f32.gmra.mrb[0].mxu0 %v6525
        %v6752 = vpop.f32.mrb[0].mxu0
        %v6753 = vadd.f32 0.0, %v6752
        %v6754 = vpop.f32.mrb[0].mxu0
        %6755 = vmatprep.mubr.f32.mxu0 0.0
        %6756 = vmatmul.mubr.f32.gmra.mrb[0].mxu0 %v6526
        %v6757 = vpop.f32.mrb[0].mxu0
        %v6758 = vadd.f32 0.0, %v6757
        %v6759 = vpop.f32.mrb[0].mxu0
        %6760 = vmatprep.mubr.f32.mxu0 0.0
        %6761 = vmatmul.mubr.f32.gmra.mrb[0].mxu0 %v6527
        %v6762 = vpop.f32.mrb[0].mxu0
        %v6763 = vadd.f32 0.0, %v6762
        %v6764 = vpop.f32.mrb[0].mxu0
        %6765 = vmatprep.mubr.f32.mxu0 0.0
        %6766 = vmatmul.mubr.f32.gmra.mrb[0].mxu0 %v6528
        %v6767 = vpop.f32.mrb[0].mxu0
        %v6768 = vadd.f32 0.0, %v6767
        %v6769 = vpop.f32.mrb[0].mxu0
        %6770 = vdwg.mxu0
        %v6771 = vld [vmem:[#allocation3] sm:$0xff]
        %v6772 = vld [vmem:[#allocation3 + $0x8] sm:$0xff]
        %v6773 = vld [vmem:[#allocation3 + $0x10] sm:$0xff]
        %v6774 = vld [vmem:[#allocation3 + $0x18] sm:$0xff]
        %v6775 = vld [vmem:[#allocation3 + $0x20] sm:$0xff]
        %v6776 = vld [vmem:[#allocation3 + $0x28] sm:$0xff]
        %v6777 = vld [vmem:[#allocation3 + $0x30] sm:$0xff]
        %v6778 = vld [vmem:[#allocation3 + $0x38] sm:$0xff]
        %v6779 = vld [vmem:[#allocation3 + $0x40] sm:$0xff]
        %v6780 = vld [vmem:[#allocation3 + $0x48] sm:$0xff]
        %v6781 = vld [vmem:[#allocation3 + $0x50] sm:$0xff]
        %v6782 = vld [vmem:[#allocation3 + $0x58] sm:$0xff]
        %v6783 = vld [vmem:[#allocation3 + $0x60] sm:$0xff]
        %v6784 = vld [vmem:[#allocation3 + $0x68] sm:$0xff]
        %v6785 = vld [vmem:[#allocation3 + $0x70] sm:$0xff]
        %v6786 = vld [vmem:[#allocation3 + $0x78] sm:$0xff]
        %v6787 = vld [vmem:[#allocation3 + $0x80] sm:$0xff]
        %v6788 = vld [vmem:[#allocation3 + $0x88] sm:$0xff]
        %v6789 = vld [vmem:[#allocation3 + $0x90] sm:$0xff]
        %v6790 = vld [vmem:[#allocation3 + $0x98] sm:$0xff]
        %v6791 = vld [vmem:[#allocation3 + $0xa0] sm:$0xff]
        %v6792 = vld [vmem:[#allocation3 + $0xa8] sm:$0xff]
        %v6793 = vld [vmem:[#allocation3 + $0xb0] sm:$0xff]
        %v6794 = vld [vmem:[#allocation3 + $0xb8] sm:$0xff]
        %v6795 = vld [vmem:[#allocation3 + $0xc0] sm:$0xff]
        %v6796 = vld [vmem:[#allocation3 + $0xc8] sm:$0xff]
        %v6797 = vld [vmem:[#allocation3 + $0xd0] sm:$0xff]
        %v6798 = vld [vmem:[#allocation3 + $0xd8] sm:$0xff]
        %v6799 = vld [vmem:[#allocation3 + $0xe0] sm:$0xff]
        %v6800 = vld [vmem:[#allocation3 + $0xe8] sm:$0xff]
        %v6801 = vld [vmem:[#allocation3 + $0xf0] sm:$0xff]
        %v6802 = vld [vmem:[#allocation3 + $0xf8] sm:$0xff]
        %v6803 = vadd.f32 %v6771, %v6613
        %v6804 = vadd.f32 %v6772, %v6618
        %v6805 = vadd.f32 %v6773, %v6623
        %v6806 = vadd.f32 %v6774, %v6628
        %v6807 = vadd.f32 %v6775, %v6633
        %v6808 = vadd.f32 %v6776, %v6638
        %v6809 = vadd.f32 %v6777, %v6643
        %v6810 = vadd.f32 %v6778, %v6648
        %v6811 = vadd.f32 %v6779, %v6653
        %v6812 = vadd.f32 %v6780, %v6658
        %v6813 = vadd.f32 %v6781, %v6663
        %v6814 = vadd.f32 %v6782, %v6668
        %v6815 = vadd.f32 %v6783, %v6673
        %v6816 = vadd.f32 %v6784, %v6678
        %v6817 = vadd.f32 %v6785, %v6683
        %v6818 = vadd.f32 %v6786, %v6688
        %v6819 = vadd.f32 %v6787, %v6693
        %v6820 = vadd.f32 %v6788, %v6698
        %v6821 = vadd.f32 %v6789, %v6703
        %v6822 = vadd.f32 %v6790, %v6708
        %v6823 = vadd.f32 %v6791, %v6713
        %v6824 = vadd.f32 %v6792, %v6718
        %v6825 = vadd.f32 %v6793, %v6723
        %v6826 = vadd.f32 %v6794, %v6728
        %v6827 = vadd.f32 %v6795, %v6733
        %v6828 = vadd.f32 %v6796, %v6738
        %v6829 = vadd.f32 %v6797, %v6743
        %v6830 = vadd.f32 %v6798, %v6748
        %v6831 = vadd.f32 %v6799, %v6753
        %v6832 = vadd.f32 %v6800, %v6758
        %v6833 = vadd.f32 %v6801, %v6763
        %v6834 = vadd.f32 %v6802, %v6768
        %6835 = vst [vmem:[#allocation3] sm:$0xff] %v6803
        %6836 = vst [vmem:[#allocation3 + $0x8] sm:$0xff] %v6804
        %6837 = vst [vmem:[#allocation3 + $0x10] sm:$0xff] %v6805
        %6838 = vst [vmem:[#allocation3 + $0x18] sm:$0xff] %v6806
        %6839 = vst [vmem:[#allocation3 + $0x20] sm:$0xff] %v6807
        %6840 = vst [vmem:[#allocation3 + $0x28] sm:$0xff] %v6808
        %6841 = vst [vmem:[#allocation3 + $0x30] sm:$0xff] %v6809
        %6842 = vst [vmem:[#allocation3 + $0x38] sm:$0xff] %v6810
        %6843 = vst [vmem:[#allocation3 + $0x40] sm:$0xff] %v6811
        %6844 = vst [vmem:[#allocation3 + $0x48] sm:$0xff] %v6812
        %6845 = vst [vmem:[#allocation3 + $0x50] sm:$0xff] %v6813
        %6846 = vst [vmem:[#allocation3 + $0x58] sm:$0xff] %v6814
        %6847 = vst [vmem:[#allocation3 + $0x60] sm:$0xff] %v6815
        %6848 = vst [vmem:[#allocation3 + $0x68] sm:$0xff] %v6816
        %6849 = vst [vmem:[#allocation3 + $0x70] sm:$0xff] %v6817
        %6850 = vst [vmem:[#allocation3 + $0x78] sm:$0xff] %v6818
        %6851 = vst [vmem:[#allocation3 + $0x80] sm:$0xff] %v6819
        %6852 = vst [vmem:[#allocation3 + $0x88] sm:$0xff] %v6820
        %6853 = vst [vmem:[#allocation3 + $0x90] sm:$0xff] %v6821
        %6854 = vst [vmem:[#allocation3 + $0x98] sm:$0xff] %v6822
        %6855 = vst [vmem:[#allocation3 + $0xa0] sm:$0xff] %v6823
        %6856 = vst [vmem:[#allocation3 + $0xa8] sm:$0xff] %v6824
        %6857 = vst [vmem:[#allocation3 + $0xb0] sm:$0xff] %v6825
        %6858 = vst [vmem:[#allocation3 + $0xb8] sm:$0xff] %v6826
        %6859 = vst [vmem:[#allocation3 + $0xc0] sm:$0xff] %v6827
        %6860 = vst [vmem:[#allocation3 + $0xc8] sm:$0xff] %v6828
        %6861 = vst [vmem:[#allocation3 + $0xd0] sm:$0xff] %v6829
        %6862 = vst [vmem:[#allocation3 + $0xd8] sm:$0xff] %v6830
        %6863 = vst [vmem:[#allocation3 + $0xe0] sm:$0xff] %v6831
        %6864 = vst [vmem:[#allocation3 + $0xe8] sm:$0xff] %v6832
        %6865 = vst [vmem:[#allocation3 + $0xf0] sm:$0xff] %v6833
        %6866 = vst [vmem:[#allocation3 + $0xf8] sm:$0xff] %v6834
        %v6867 = vld [vmem:[%s2616 + $0x2] sm:$0xff]
        %v6868 = vld [vmem:[%s2616 + $0xa] sm:$0xff]
        %v6869 = vld [vmem:[%s2616 + $0x1a] sm:$0xff]
        %v6870 = vld [vmem:[%s2616 + $0x22] sm:$0xff]
        %v6871 = vld [vmem:[%s2616 + $0x32] sm:$0xff]
        %v6872 = vld [vmem:[%s2616 + $0x3a] sm:$0xff]
        %v6873 = vld [vmem:[%s2616 + $0x4a] sm:$0xff]
        %v6874 = vld [vmem:[%s2616 + $0x52] sm:$0xff]
        %v6875 = vld [vmem:[%s2616 + $0x62] sm:$0xff]
        %v6876 = vld [vmem:[%s2616 + $0x6a] sm:$0xff]
        %v6877 = vld [vmem:[%s2616 + $0x7a] sm:$0xff]
        %v6878 = vld [vmem:[%s2616 + $0x82] sm:$0xff]
        %v6879 = vld [vmem:[%s2616 + $0x92] sm:$0xff]
        %v6880 = vld [vmem:[%s2616 + $0x9a] sm:$0xff]
        %v6881 = vld [vmem:[%s2616 + $0xaa] sm:$0xff]
        %v6882 = vld [vmem:[%s2616 + $0xb2] sm:$0xff]
        %v6883 = vld [vmem:[%s2616 + $0xc2] sm:$0xff]
        %v6884 = vld [vmem:[%s2616 + $0xca] sm:$0xff]
        %v6885 = vld [vmem:[%s2616 + $0xda] sm:$0xff]
        %v6886 = vld [vmem:[%s2616 + $0xe2] sm:$0xff]
        %v6887 = vld [vmem:[%s2616 + $0xf2] sm:$0xff]
        %v6888 = vld [vmem:[%s2616 + $0xfa] sm:$0xff]
        %v6889 = vld [vmem:[%s2616 + $0x10a] sm:$0xff]
        %v6890 = vld [vmem:[%s2616 + $0x112] sm:$0xff]
        %v6891 = vld [vmem:[%s2616 + $0x122] sm:$0xff]
        %v6892 = vld [vmem:[%s2616 + $0x12a] sm:$0xff]
        %v6893 = vld [vmem:[%s2616 + $0x13a] sm:$0xff]
        %v6894 = vld [vmem:[%s2616 + $0x142] sm:$0xff]
        %v6895 = vld [vmem:[%s2616 + $0x152] sm:$0xff]
        %v6896 = vld [vmem:[%s2616 + $0x15a] sm:$0xff]
        %v6897 = vld [vmem:[%s2616 + $0x16a] sm:$0xff]
        %v6898 = vld [vmem:[%s2616 + $0x172] sm:$0xff]
        %s6899 = scalar_lea.vmem [#allocation9], 1024
        %v6900 = vld [vmem:[%s6899] sm:$0xff]
        %v6901 = vld [vmem:[%s6899 + $0x8] sm:$0xff]
        %v6902 = vld [vmem:[%s6899 + $0x10] sm:$0xff]
        %v6903 = vld [vmem:[%s6899 + $0x18] sm:$0xff]
        %v6904 = vld [vmem:[%s6899 + $0x20] sm:$0xff]
        %v6905 = vld [vmem:[%s6899 + $0x28] sm:$0xff]
        %v6906 = vld [vmem:[%s6899 + $0x30] sm:$0xff]
        %v6907 = vld [vmem:[%s6899 + $0x38] sm:$0xff]
        %v6908 = vld [vmem:[%s6899 + $0x40] sm:$0xff]
        %v6909 = vld [vmem:[%s6899 + $0x48] sm:$0xff]
        %v6910 = vld [vmem:[%s6899 + $0x50] sm:$0xff]
        %v6911 = vld [vmem:[%s6899 + $0x58] sm:$0xff]
        %v6912 = vld [vmem:[%s6899 + $0x60] sm:$0xff]
        %v6913 = vld [vmem:[%s6899 + $0x68] sm:$0xff]
        %v6914 = vld [vmem:[%s6899 + $0x70] sm:$0xff]
        %v6915 = vld [vmem:[%s6899 + $0x78] sm:$0xff]
        %6916 = vmatprep.subr.mxu0 0.0
        %6917 = vmatpush1.msra.mxu0 %v6900
        %6918 = vmatprep.subr.mxu0 0.0
        %6919 = vmatpush1.msra.mxu0 %v6901
        %6920 = vmatprep.subr.mxu0 0.0
        %6921 = vmatpush1.msra.mxu0 %v6902
        %6922 = vmatprep.subr.mxu0 0.0
        %6923 = vmatpush1.msra.mxu0 %v6903
        %6924 = vmatprep.subr.mxu0 0.0
        %6925 = vmatpush1.msra.mxu0 %v6904
        %6926 = vmatprep.subr.mxu0 0.0
        %6927 = vmatpush1.msra.mxu0 %v6905
        %6928 = vmatprep.subr.mxu0 0.0
        %6929 = vmatpush1.msra.mxu0 %v6906
        %6930 = vmatprep.subr.mxu0 0.0
        %6931 = vmatpush1.msra.mxu0 %v6907
        %6932 = vmatprep.subr.mxu0 0.0
        %6933 = vmatpush1.msra.mxu0 %v6908
        %6934 = vmatprep.subr.mxu0 0.0
        %6935 = vmatpush1.msra.mxu0 %v6909
        %6936 = vmatprep.subr.mxu0 0.0
        %6937 = vmatpush1.msra.mxu0 %v6910
        %6938 = vmatprep.subr.mxu0 0.0
        %6939 = vmatpush1.msra.mxu0 %v6911
        %6940 = vmatprep.subr.mxu0 0.0
        %6941 = vmatpush1.msra.mxu0 %v6912
        %6942 = vmatprep.subr.mxu0 0.0
        %6943 = vmatpush1.msra.mxu0 %v6913
        %6944 = vmatprep.subr.mxu0 0.0
        %6945 = vmatpush1.msra.mxu0 %v6914
        %6946 = vmatprep.subr.mxu0 0.0
        %6947 = vmatpush1.msra.mxu0 %v6915
        %6948 = vmatprep.subr.mxu0 0.0
        %6949 = vmatpush1.msra.mxu0 0.0
        %6950 = vmatprep.subr.mxu0 0.0
        %6951 = vmatpush1.msra.mxu0 0.0
        %6952 = vmatprep.subr.mxu0 0.0
        %6953 = vmatpush1.msra.mxu0 0.0
        %6954 = vmatprep.subr.mxu0 0.0
        %6955 = vmatpush1.msra.mxu0 0.0
        %6956 = vmatprep.subr.mxu0 0.0
        %6957 = vmatpush1.msra.mxu0 0.0
        %6958 = vmatprep.subr.mxu0 0.0
        %6959 = vmatpush1.msra.mxu0 0.0
        %6960 = vmatprep.subr.mxu0 0.0
        %6961 = vmatpush1.msra.mxu0 0.0
        %6962 = vmatprep.subr.mxu0 0.0
        %6963 = vmatpush1.msra.mxu0 0.0
        %6964 = vmatprep.subr.mxu0 0.0
        %6965 = vmatpush1.msra.mxu0 0.0
        %6966 = vmatprep.subr.mxu0 0.0
        %6967 = vmatpush1.msra.mxu0 0.0
        %6968 = vmatprep.subr.mxu0 0.0
        %6969 = vmatpush1.msra.mxu0 0.0
        %6970 = vmatprep.subr.mxu0 0.0
        %6971 = vmatpush1.msra.mxu0 0.0
        %6972 = vmatprep.subr.mxu0 0.0
        %6973 = vmatpush1.msra.mxu0 0.0
        %6974 = vmatprep.subr.mxu0 0.0
        %6975 = vmatpush1.msra.mxu0 0.0
        %6976 = vmatprep.subr.mxu0 0.0
        %6977 = vmatpush1.msra.mxu0 0.0
        %6978 = vmatprep.subr.mxu0 0.0
        %6979 = vmatpush1.msra.mxu0 0.0
        %6980 = vmatprep.mubr.f32.mxu0 0.0
        %6981 = vmatmul.mubr.f32.gmra.mrb[0].mxu0 %v6867
        %v6982 = vpop.f32.mrb[0].mxu0
        %v6983 = vadd.f32 0.0, %v6982
        %v6984 = vpop.f32.mrb[0].mxu0
        %6985 = vmatprep.mubr.f32.mxu0 0.0
        %6986 = vmatmul.mubr.f32.gmra.mrb[0].mxu0 %v6868
        %v6987 = vpop.f32.mrb[0].mxu0
        %v6988 = vadd.f32 0.0, %v6987
        %v6989 = vpop.f32.mrb[0].mxu0
        %6990 = vmatprep.mubr.f32.mxu0 0.0
        %6991 = vmatmul.mubr.f32.gmra.mrb[0].mxu0 %v6869
        %v6992 = vpop.f32.mrb[0].mxu0
        %v6993 = vadd.f32 0.0, %v6992
        %v6994 = vpop.f32.mrb[0].mxu0
        %6995 = vmatprep.mubr.f32.mxu0 0.0
        %6996 = vmatmul.mubr.f32.gmra.mrb[0].mxu0 %v6870
        %v6997 = vpop.f32.mrb[0].mxu0
        %v6998 = vadd.f32 0.0, %v6997
        %v6999 = vpop.f32.mrb[0].mxu0
        %7000 = vmatprep.mubr.f32.mxu0 0.0
        %7001 = vmatmul.mubr.f32.gmra.mrb[0].mxu0 %v6871
        %v7002 = vpop.f32.mrb[0].mxu0
        %v7003 = vadd.f32 0.0, %v7002
        %v7004 = vpop.f32.mrb[0].mxu0
        %7005 = vmatprep.mubr.f32.mxu0 0.0
        %7006 = vmatmul.mubr.f32.gmra.mrb[0].mxu0 %v6872
        %v7007 = vpop.f32.mrb[0].mxu0
        %v7008 = vadd.f32 0.0, %v7007
        %v7009 = vpop.f32.mrb[0].mxu0
        %7010 = vmatprep.mubr.f32.mxu0 0.0
        %7011 = vmatmul.mubr.f32.gmra.mrb[0].mxu0 %v6873
        %v7012 = vpop.f32.mrb[0].mxu0
        %v7013 = vadd.f32 0.0, %v7012
        %v7014 = vpop.f32.mrb[0].mxu0
        %7015 = vmatprep.mubr.f32.mxu0 0.0
        %7016 = vmatmul.mubr.f32.gmra.mrb[0].mxu0 %v6874
        %v7017 = vpop.f32.mrb[0].mxu0
        %v7018 = vadd.f32 0.0, %v7017
        %v7019 = vpop.f32.mrb[0].mxu0
        %7020 = vmatprep.mubr.f32.mxu0 0.0
        %7021 = vmatmul.mubr.f32.gmra.mrb[0].mxu0 %v6875
        %v7022 = vpop.f32.mrb[0].mxu0
        %v7023 = vadd.f32 0.0, %v7022
        %v7024 = vpop.f32.mrb[0].mxu0
        %7025 = vmatprep.mubr.f32.mxu0 0.0
        %7026 = vmatmul.mubr.f32.gmra.mrb[0].mxu0 %v6876
        %v7027 = vpop.f32.mrb[0].mxu0
        %v7028 = vadd.f32 0.0, %v7027
        %v7029 = vpop.f32.mrb[0].mxu0
        %7030 = vmatprep.mubr.f32.mxu0 0.0
        %7031 = vmatmul.mubr.f32.gmra.mrb[0].mxu0 %v6877
        %v7032 = vpop.f32.mrb[0].mxu0
        %v7033 = vadd.f32 0.0, %v7032
        %v7034 = vpop.f32.mrb[0].mxu0
        %7035 = vmatprep.mubr.f32.mxu0 0.0
        %7036 = vmatmul.mubr.f32.gmra.mrb[0].mxu0 %v6878
        %v7037 = vpop.f32.mrb[0].mxu0
        %v7038 = vadd.f32 0.0, %v7037
        %v7039 = vpop.f32.mrb[0].mxu0
        %7040 = vmatprep.mubr.f32.mxu0 0.0
        %7041 = vmatmul.mubr.f32.gmra.mrb[0].mxu0 %v6879
        %v7042 = vpop.f32.mrb[0].mxu0
        %v7043 = vadd.f32 0.0, %v7042
        %v7044 = vpop.f32.mrb[0].mxu0
        %7045 = vmatprep.mubr.f32.mxu0 0.0
        %7046 = vmatmul.mubr.f32.gmra.mrb[0].mxu0 %v6880
        %v7047 = vpop.f32.mrb[0].mxu0
        %v7048 = vadd.f32 0.0, %v7047
        %v7049 = vpop.f32.mrb[0].mxu0
        %7050 = vmatprep.mubr.f32.mxu0 0.0
        %7051 = vmatmul.mubr.f32.gmra.mrb[0].mxu0 %v6881
        %v7052 = vpop.f32.mrb[0].mxu0
        %v7053 = vadd.f32 0.0, %v7052
        %v7054 = vpop.f32.mrb[0].mxu0
        %7055 = vmatprep.mubr.f32.mxu0 0.0
        %7056 = vmatmul.mubr.f32.gmra.mrb[0].mxu0 %v6882
        %v7057 = vpop.f32.mrb[0].mxu0
        %v7058 = vadd.f32 0.0, %v7057
        %v7059 = vpop.f32.mrb[0].mxu0
        %7060 = vmatprep.mubr.f32.mxu0 0.0
        %7061 = vmatmul.mubr.f32.gmra.mrb[0].mxu0 %v6883
        %v7062 = vpop.f32.mrb[0].mxu0
        %v7063 = vadd.f32 0.0, %v7062
        %v7064 = vpop.f32.mrb[0].mxu0
        %7065 = vmatprep.mubr.f32.mxu0 0.0
        %7066 = vmatmul.mubr.f32.gmra.mrb[0].mxu0 %v6884
        %v7067 = vpop.f32.mrb[0].mxu0
        %v7068 = vadd.f32 0.0, %v7067
        %v7069 = vpop.f32.mrb[0].mxu0
        %7070 = vmatprep.mubr.f32.mxu0 0.0
        %7071 = vmatmul.mubr.f32.gmra.mrb[0].mxu0 %v6885
        %v7072 = vpop.f32.mrb[0].mxu0
        %v7073 = vadd.f32 0.0, %v7072
        %v7074 = vpop.f32.mrb[0].mxu0
        %7075 = vmatprep.mubr.f32.mxu0 0.0
        %7076 = vmatmul.mubr.f32.gmra.mrb[0].mxu0 %v6886
        %v7077 = vpop.f32.mrb[0].mxu0
        %v7078 = vadd.f32 0.0, %v7077
        %v7079 = vpop.f32.mrb[0].mxu0
        %7080 = vmatprep.mubr.f32.mxu0 0.0
        %7081 = vmatmul.mubr.f32.gmra.mrb[0].mxu0 %v6887
        %v7082 = vpop.f32.mrb[0].mxu0
        %v7083 = vadd.f32 0.0, %v7082
        %v7084 = vpop.f32.mrb[0].mxu0
        %7085 = vmatprep.mubr.f32.mxu0 0.0
        %7086 = vmatmul.mubr.f32.gmra.mrb[0].mxu0 %v6888
        %v7087 = vpop.f32.mrb[0].mxu0
        %v7088 = vadd.f32 0.0, %v7087
        %v7089 = vpop.f32.mrb[0].mxu0
        %7090 = vmatprep.mubr.f32.mxu0 0.0
        %7091 = vmatmul.mubr.f32.gmra.mrb[0].mxu0 %v6889
        %v7092 = vpop.f32.mrb[0].mxu0
        %v7093 = vadd.f32 0.0, %v7092
        %v7094 = vpop.f32.mrb[0].mxu0
        %7095 = vmatprep.mubr.f32.mxu0 0.0
        %7096 = vmatmul.mubr.f32.gmra.mrb[0].mxu0 %v6890
        %v7097 = vpop.f32.mrb[0].mxu0
        %v7098 = vadd.f32 0.0, %v7097
        %v7099 = vpop.f32.mrb[0].mxu0
        %7100 = vmatprep.mubr.f32.mxu0 0.0
        %7101 = vmatmul.mubr.f32.gmra.mrb[0].mxu0 %v6891
        %v7102 = vpop.f32.mrb[0].mxu0
        %v7103 = vadd.f32 0.0, %v7102
        %v7104 = vpop.f32.mrb[0].mxu0
        %7105 = vmatprep.mubr.f32.mxu0 0.0
        %7106 = vmatmul.mubr.f32.gmra.mrb[0].mxu0 %v6892
        %v7107 = vpop.f32.mrb[0].mxu0
        %v7108 = vadd.f32 0.0, %v7107
        %v7109 = vpop.f32.mrb[0].mxu0
        %7110 = vmatprep.mubr.f32.mxu0 0.0
        %7111 = vmatmul.mubr.f32.gmra.mrb[0].mxu0 %v6893
        %v7112 = vpop.f32.mrb[0].mxu0
        %v7113 = vadd.f32 0.0, %v7112
        %v7114 = vpop.f32.mrb[0].mxu0
        %7115 = vmatprep.mubr.f32.mxu0 0.0
        %7116 = vmatmul.mubr.f32.gmra.mrb[0].mxu0 %v6894
        %v7117 = vpop.f32.mrb[0].mxu0
        %v7118 = vadd.f32 0.0, %v7117
        %v7119 = vpop.f32.mrb[0].mxu0
        %7120 = vmatprep.mubr.f32.mxu0 0.0
        %7121 = vmatmul.mubr.f32.gmra.mrb[0].mxu0 %v6895
        %v7122 = vpop.f32.mrb[0].mxu0
        %v7123 = vadd.f32 0.0, %v7122
        %v7124 = vpop.f32.mrb[0].mxu0
        %7125 = vmatprep.mubr.f32.mxu0 0.0
        %7126 = vmatmul.mubr.f32.gmra.mrb[0].mxu0 %v6896
        %v7127 = vpop.f32.mrb[0].mxu0
        %v7128 = vadd.f32 0.0, %v7127
        %v7129 = vpop.f32.mrb[0].mxu0
        %7130 = vmatprep.mubr.f32.mxu0 0.0
        %7131 = vmatmul.mubr.f32.gmra.mrb[0].mxu0 %v6897
        %v7132 = vpop.f32.mrb[0].mxu0
        %v7133 = vadd.f32 0.0, %v7132
        %v7134 = vpop.f32.mrb[0].mxu0
        %7135 = vmatprep.mubr.f32.mxu0 0.0
        %7136 = vmatmul.mubr.f32.gmra.mrb[0].mxu0 %v6898
        %v7137 = vpop.f32.mrb[0].mxu0
        %v7138 = vadd.f32 0.0, %v7137
        %v7139 = vpop.f32.mrb[0].mxu0
        %7140 = vdwg.mxu0
        %v7141 = vld [vmem:[#allocation3] sm:$0xff]
        %v7142 = vld [vmem:[#allocation3 + $0x8] sm:$0xff]
        %v7143 = vld [vmem:[#allocation3 + $0x10] sm:$0xff]
        %v7144 = vld [vmem:[#allocation3 + $0x18] sm:$0xff]
        %v7145 = vld [vmem:[#allocation3 + $0x20] sm:$0xff]
        %v7146 = vld [vmem:[#allocation3 + $0x28] sm:$0xff]
        %v7147 = vld [vmem:[#allocation3 + $0x30] sm:$0xff]
        %v7148 = vld [vmem:[#allocation3 + $0x38] sm:$0xff]
        %v7149 = vld [vmem:[#allocation3 + $0x40] sm:$0xff]
        %v7150 = vld [vmem:[#allocation3 + $0x48] sm:$0xff]
        %v7151 = vld [vmem:[#allocation3 + $0x50] sm:$0xff]
        %v7152 = vld [vmem:[#allocation3 + $0x58] sm:$0xff]
        %v7153 = vld [vmem:[#allocation3 + $0x60] sm:$0xff]
        %v7154 = vld [vmem:[#allocation3 + $0x68] sm:$0xff]
        %v7155 = vld [vmem:[#allocation3 + $0x70] sm:$0xff]
        %v7156 = vld [vmem:[#allocation3 + $0x78] sm:$0xff]
        %v7157 = vld [vmem:[#allocation3 + $0x80] sm:$0xff]
        %v7158 = vld [vmem:[#allocation3 + $0x88] sm:$0xff]
        %v7159 = vld [vmem:[#allocation3 + $0x90] sm:$0xff]
        %v7160 = vld [vmem:[#allocation3 + $0x98] sm:$0xff]
        %v7161 = vld [vmem:[#allocation3 + $0xa0] sm:$0xff]
        %v7162 = vld [vmem:[#allocation3 + $0xa8] sm:$0xff]
        %v7163 = vld [vmem:[#allocation3 + $0xb0] sm:$0xff]
        %v7164 = vld [vmem:[#allocation3 + $0xb8] sm:$0xff]
        %v7165 = vld [vmem:[#allocation3 + $0xc0] sm:$0xff]
        %v7166 = vld [vmem:[#allocation3 + $0xc8] sm:$0xff]
        %v7167 = vld [vmem:[#allocation3 + $0xd0] sm:$0xff]
        %v7168 = vld [vmem:[#allocation3 + $0xd8] sm:$0xff]
        %v7169 = vld [vmem:[#allocation3 + $0xe0] sm:$0xff]
        %v7170 = vld [vmem:[#allocation3 + $0xe8] sm:$0xff]
        %v7171 = vld [vmem:[#allocation3 + $0xf0] sm:$0xff]
        %v7172 = vld [vmem:[#allocation3 + $0xf8] sm:$0xff]
        %v7173 = vadd.f32 %v7141, %v6983
        %v7174 = vadd.f32 %v7142, %v6988
        %v7175 = vadd.f32 %v7143, %v6993
        %v7176 = vadd.f32 %v7144, %v6998
        %v7177 = vadd.f32 %v7145, %v7003
        %v7178 = vadd.f32 %v7146, %v7008
        %v7179 = vadd.f32 %v7147, %v7013
        %v7180 = vadd.f32 %v7148, %v7018
        %v7181 = vadd.f32 %v7149, %v7023
        %v7182 = vadd.f32 %v7150, %v7028
        %v7183 = vadd.f32 %v7151, %v7033
        %v7184 = vadd.f32 %v7152, %v7038
        %v7185 = vadd.f32 %v7153, %v7043
        %v7186 = vadd.f32 %v7154, %v7048
        %v7187 = vadd.f32 %v7155, %v7053
        %v7188 = vadd.f32 %v7156, %v7058
        %v7189 = vadd.f32 %v7157, %v7063
        %v7190 = vadd.f32 %v7158, %v7068
        %v7191 = vadd.f32 %v7159, %v7073
        %v7192 = vadd.f32 %v7160, %v7078
        %v7193 = vadd.f32 %v7161, %v7083
        %v7194 = vadd.f32 %v7162, %v7088
        %v7195 = vadd.f32 %v7163, %v7093
        %v7196 = vadd.f32 %v7164, %v7098
        %v7197 = vadd.f32 %v7165, %v7103
        %v7198 = vadd.f32 %v7166, %v7108
        %v7199 = vadd.f32 %v7167, %v7113
        %v7200 = vadd.f32 %v7168, %v7118
        %v7201 = vadd.f32 %v7169, %v7123
        %v7202 = vadd.f32 %v7170, %v7128
        %v7203 = vadd.f32 %v7171, %v7133
        %v7204 = vadd.f32 %v7172, %v7138
        %7205 = vst [vmem:[#allocation3] sm:$0xff] %v7173
        %7206 = vst [vmem:[#allocation3 + $0x8] sm:$0xff] %v7174
        %7207 = vst [vmem:[#allocation3 + $0x10] sm:$0xff] %v7175
        %7208 = vst [vmem:[#allocation3 + $0x18] sm:$0xff] %v7176
        %7209 = vst [vmem:[#allocation3 + $0x20] sm:$0xff] %v7177
        %7210 = vst [vmem:[#allocation3 + $0x28] sm:$0xff] %v7178
        %7211 = vst [vmem:[#allocation3 + $0x30] sm:$0xff] %v7179
        %7212 = vst [vmem:[#allocation3 + $0x38] sm:$0xff] %v7180
        %7213 = vst [vmem:[#allocation3 + $0x40] sm:$0xff] %v7181
        %7214 = vst [vmem:[#allocation3 + $0x48] sm:$0xff] %v7182
        %7215 = vst [vmem:[#allocation3 + $0x50] sm:$0xff] %v7183
        %7216 = vst [vmem:[#allocation3 + $0x58] sm:$0xff] %v7184
        %7217 = vst [vmem:[#allocation3 + $0x60] sm:$0xff] %v7185
        %7218 = vst [vmem:[#allocation3 + $0x68] sm:$0xff] %v7186
        %7219 = vst [vmem:[#allocation3 + $0x70] sm:$0xff] %v7187
        %7220 = vst [vmem:[#allocation3 + $0x78] sm:$0xff] %v7188
        %7221 = vst [vmem:[#allocation3 + $0x80] sm:$0xff] %v7189
        %7222 = vst [vmem:[#allocation3 + $0x88] sm:$0xff] %v7190
        %7223 = vst [vmem:[#allocation3 + $0x90] sm:$0xff] %v7191
        %7224 = vst [vmem:[#allocation3 + $0x98] sm:$0xff] %v7192
        %7225 = vst [vmem:[#allocation3 + $0xa0] sm:$0xff] %v7193
        %7226 = vst [vmem:[#allocation3 + $0xa8] sm:$0xff] %v7194
        %7227 = vst [vmem:[#allocation3 + $0xb0] sm:$0xff] %v7195
        %7228 = vst [vmem:[#allocation3 + $0xb8] sm:$0xff] %v7196
        %7229 = vst [vmem:[#allocation3 + $0xc0] sm:$0xff] %v7197
        %7230 = vst [vmem:[#allocation3 + $0xc8] sm:$0xff] %v7198
        %7231 = vst [vmem:[#allocation3 + $0xd0] sm:$0xff] %v7199
        %7232 = vst [vmem:[#allocation3 + $0xd8] sm:$0xff] %v7200
        %7233 = vst [vmem:[#allocation3 + $0xe0] sm:$0xff] %v7201
        %7234 = vst [vmem:[#allocation3 + $0xe8] sm:$0xff] %v7202
        %7235 = vst [vmem:[#allocation3 + $0xf0] sm:$0xff] %v7203
        %7236 = vst [vmem:[#allocation3 + $0xf8] sm:$0xff] %v7204
        %v7237 = vld [vmem:[#allocation3] sm:$0xff]
        %v7238 = vld [vmem:[#allocation3 + $0x8] sm:$0xff]
        %v7239 = vld [vmem:[#allocation3 + $0x10] sm:$0xff]
        %v7240 = vld [vmem:[#allocation3 + $0x18] sm:$0xff]
        %v7241 = vld [vmem:[#allocation3 + $0x20] sm:$0xff]
        %v7242 = vld [vmem:[#allocation3 + $0x28] sm:$0xff]
        %v7243 = vld [vmem:[#allocation3 + $0x30] sm:$0xff]
        %v7244 = vld [vmem:[#allocation3 + $0x38] sm:$0xff]
        %v7245 = vld [vmem:[#allocation3 + $0x40] sm:$0xff]
        %v7246 = vld [vmem:[#allocation3 + $0x48] sm:$0xff]
        %v7247 = vld [vmem:[#allocation3 + $0x50] sm:$0xff]
        %v7248 = vld [vmem:[#allocation3 + $0x58] sm:$0xff]
        %v7249 = vld [vmem:[#allocation3 + $0x60] sm:$0xff]
        %v7250 = vld [vmem:[#allocation3 + $0x68] sm:$0xff]
        %v7251 = vld [vmem:[#allocation3 + $0x70] sm:$0xff]
        %v7252 = vld [vmem:[#allocation3 + $0x78] sm:$0xff]
        %v7253 = vld [vmem:[#allocation3 + $0x80] sm:$0xff]
        %v7254 = vld [vmem:[#allocation3 + $0x88] sm:$0xff]
        %v7255 = vld [vmem:[#allocation3 + $0x90] sm:$0xff]
        %v7256 = vld [vmem:[#allocation3 + $0x98] sm:$0xff]
        %v7257 = vld [vmem:[#allocation3 + $0xa0] sm:$0xff]
        %v7258 = vld [vmem:[#allocation3 + $0xa8] sm:$0xff]
        %v7259 = vld [vmem:[#allocation3 + $0xb0] sm:$0xff]
        %v7260 = vld [vmem:[#allocation3 + $0xb8] sm:$0xff]
        %v7261 = vld [vmem:[#allocation3 + $0xc0] sm:$0xff]
        %v7262 = vld [vmem:[#allocation3 + $0xc8] sm:$0xff]
        %v7263 = vld [vmem:[#allocation3 + $0xd0] sm:$0xff]
        %v7264 = vld [vmem:[#allocation3 + $0xd8] sm:$0xff]
        %v7265 = vld [vmem:[#allocation3 + $0xe0] sm:$0xff]
        %v7266 = vld [vmem:[#allocation3 + $0xe8] sm:$0xff]
        %v7267 = vld [vmem:[#allocation3 + $0xf0] sm:$0xff]
        %v7268 = vld [vmem:[#allocation3 + $0xf8] sm:$0xff]
        %v7269 = vld [vmem:[%s5] sm:$0x1]
        %v7271 = vlaneseq
        %v7272 = vshrl.u32 %v7271, 7
        %v7273 = vsub.s32 0, %v7272
        %v7274 = vrot.slane %v7269, %v7273
        %v7276 = vmul.f32 %v7237, %v7274
        %v7277 = vmul.f32 %v7238, %v7274
        %v7278 = vmul.f32 %v7239, %v7274
        %v7279 = vmul.f32 %v7240, %v7274
        %v7280 = vmul.f32 %v7241, %v7274
        %v7281 = vmul.f32 %v7242, %v7274
        %v7282 = vmul.f32 %v7243, %v7274
        %v7283 = vmul.f32 %v7244, %v7274
        %v7284 = vmul.f32 %v7245, %v7274
        %v7285 = vmul.f32 %v7246, %v7274
        %v7286 = vmul.f32 %v7247, %v7274
        %v7287 = vmul.f32 %v7248, %v7274
        %v7288 = vmul.f32 %v7249, %v7274
        %v7289 = vmul.f32 %v7250, %v7274
        %v7290 = vmul.f32 %v7251, %v7274
        %v7291 = vmul.f32 %v7252, %v7274
        %v7292 = vmul.f32 %v7253, %v7274
        %v7293 = vmul.f32 %v7254, %v7274
        %v7294 = vmul.f32 %v7255, %v7274
        %v7295 = vmul.f32 %v7256, %v7274
        %v7296 = vmul.f32 %v7257, %v7274
        %v7297 = vmul.f32 %v7258, %v7274
        %v7298 = vmul.f32 %v7259, %v7274
        %v7299 = vmul.f32 %v7260, %v7274
        %v7300 = vmul.f32 %v7261, %v7274
        %v7301 = vmul.f32 %v7262, %v7274
        %v7302 = vmul.f32 %v7263, %v7274
        %v7303 = vmul.f32 %v7264, %v7274
        %v7304 = vmul.f32 %v7265, %v7274
        %v7305 = vmul.f32 %v7266, %v7274
        %v7306 = vmul.f32 %v7267, %v7274
        %v7307 = vmul.f32 %v7268, %v7274
        %v7308 = vld [vmem:[%s6] sm:$0x1]
        %v7310 = vlaneseq
        %v7311 = vshrl.u32 %v7310, 7
        %v7312 = vsub.s32 0, %v7311
        %v7313 = vrot.slane %v7308, %v7312
        %v7315 = vadd.f32 %v7276, %v7313
        %v7316 = vadd.f32 %v7277, %v7313
        %v7317 = vadd.f32 %v7278, %v7313
        %v7318 = vadd.f32 %v7279, %v7313
        %v7319 = vadd.f32 %v7280, %v7313
        %v7320 = vadd.f32 %v7281, %v7313
        %v7321 = vadd.f32 %v7282, %v7313
        %v7322 = vadd.f32 %v7283, %v7313
        %v7323 = vadd.f32 %v7284, %v7313
        %v7324 = vadd.f32 %v7285, %v7313
        %v7325 = vadd.f32 %v7286, %v7313
        %v7326 = vadd.f32 %v7287, %v7313
        %v7327 = vadd.f32 %v7288, %v7313
        %v7328 = vadd.f32 %v7289, %v7313
        %v7329 = vadd.f32 %v7290, %v7313
        %v7330 = vadd.f32 %v7291, %v7313
        %v7331 = vadd.f32 %v7292, %v7313
        %v7332 = vadd.f32 %v7293, %v7313
        %v7333 = vadd.f32 %v7294, %v7313
        %v7334 = vadd.f32 %v7295, %v7313
        %v7335 = vadd.f32 %v7296, %v7313
        %v7336 = vadd.f32 %v7297, %v7313
        %v7337 = vadd.f32 %v7298, %v7313
        %v7338 = vadd.f32 %v7299, %v7313
        %v7339 = vadd.f32 %v7300, %v7313
        %v7340 = vadd.f32 %v7301, %v7313
        %v7341 = vadd.f32 %v7302, %v7313
        %v7342 = vadd.f32 %v7303, %v7313
        %v7343 = vadd.f32 %v7304, %v7313
        %v7344 = vadd.f32 %v7305, %v7313
        %v7345 = vadd.f32 %v7306, %v7313
        %v7346 = vadd.f32 %v7307, %v7313
        %v7347 = vld [vmem:[%s312] sm:$0xff]
        %v7348 = vld [vmem:[%s312 + $0x8] sm:$0xff]
        %v7349 = vld [vmem:[%s312 + $0x10] sm:$0xff]
        %v7350 = vld [vmem:[%s312 + $0x18] sm:$0xff]
        %v7351 = vld [vmem:[%s312 + $0x20] sm:$0xff]
        %v7352 = vld [vmem:[%s312 + $0x28] sm:$0xff]
        %v7353 = vld [vmem:[%s312 + $0x30] sm:$0xff]
        %v7354 = vld [vmem:[%s312 + $0x38] sm:$0xff]
        %v7355 = vld [vmem:[%s312 + $0x40] sm:$0xff]
        %v7356 = vld [vmem:[%s312 + $0x48] sm:$0xff]
        %v7357 = vld [vmem:[%s312 + $0x50] sm:$0xff]
        %v7358 = vld [vmem:[%s312 + $0x58] sm:$0xff]
        %v7359 = vld [vmem:[%s312 + $0x60] sm:$0xff]
        %v7360 = vld [vmem:[%s312 + $0x68] sm:$0xff]
        %v7361 = vld [vmem:[%s312 + $0x70] sm:$0xff]
        %v7362 = vld [vmem:[%s312 + $0x78] sm:$0xff]
        %v7363 = vld [vmem:[%s312 + $0x80] sm:$0xff]
        %v7364 = vld [vmem:[%s312 + $0x88] sm:$0xff]
        %v7365 = vld [vmem:[%s312 + $0x90] sm:$0xff]
        %v7366 = vld [vmem:[%s312 + $0x98] sm:$0xff]
        %v7367 = vld [vmem:[%s312 + $0xa0] sm:$0xff]
        %v7368 = vld [vmem:[%s312 + $0xa8] sm:$0xff]
        %v7369 = vld [vmem:[%s312 + $0xb0] sm:$0xff]
        %v7370 = vld [vmem:[%s312 + $0xb8] sm:$0xff]
        %v7371 = vld [vmem:[%s312 + $0xc0] sm:$0xff]
        %v7372 = vld [vmem:[%s312 + $0xc8] sm:$0xff]
        %v7373 = vld [vmem:[%s312 + $0xd0] sm:$0xff]
        %v7374 = vld [vmem:[%s312 + $0xd8] sm:$0xff]
        %v7375 = vld [vmem:[%s312 + $0xe0] sm:$0xff]
        %v7376 = vld [vmem:[%s312 + $0xe8] sm:$0xff]
        %v7377 = vld [vmem:[%s312 + $0xf0] sm:$0xff]
        %v7378 = vld [vmem:[%s312 + $0xf8] sm:$0xff]
        %v7379 = vadd.f32 %v7347, %v7315
        %v7380 = vadd.f32 %v7348, %v7316
        %v7381 = vadd.f32 %v7349, %v7317
        %v7382 = vadd.f32 %v7350, %v7318
        %v7383 = vadd.f32 %v7351, %v7319
        %v7384 = vadd.f32 %v7352, %v7320
        %v7385 = vadd.f32 %v7353, %v7321
        %v7386 = vadd.f32 %v7354, %v7322
        %v7387 = vadd.f32 %v7355, %v7323
        %v7388 = vadd.f32 %v7356, %v7324
        %v7389 = vadd.f32 %v7357, %v7325
        %v7390 = vadd.f32 %v7358, %v7326
        %v7391 = vadd.f32 %v7359, %v7327
        %v7392 = vadd.f32 %v7360, %v7328
        %v7393 = vadd.f32 %v7361, %v7329
        %v7394 = vadd.f32 %v7362, %v7330
        %v7395 = vadd.f32 %v7363, %v7331
        %v7396 = vadd.f32 %v7364, %v7332
        %v7397 = vadd.f32 %v7365, %v7333
        %v7398 = vadd.f32 %v7366, %v7334
        %v7399 = vadd.f32 %v7367, %v7335
        %v7400 = vadd.f32 %v7368, %v7336
        %v7401 = vadd.f32 %v7369, %v7337
        %v7402 = vadd.f32 %v7370, %v7338
        %v7403 = vadd.f32 %v7371, %v7339
        %v7404 = vadd.f32 %v7372, %v7340
        %v7405 = vadd.f32 %v7373, %v7341
        %v7406 = vadd.f32 %v7374, %v7342
        %v7407 = vadd.f32 %v7375, %v7343
        %v7408 = vadd.f32 %v7376, %v7344
        %v7409 = vadd.f32 %v7377, %v7345
        %v7410 = vadd.f32 %v7378, %v7346
        %7411 = vst [vmem:[%s352] sm:$0xff] %v7379
        %7412 = vst [vmem:[%s352 + $0x8] sm:$0xff] %v7380
        %7413 = vst [vmem:[%s352 + $0x10] sm:$0xff] %v7381
        %7414 = vst [vmem:[%s352 + $0x18] sm:$0xff] %v7382
        %7415 = vst [vmem:[%s352 + $0x20] sm:$0xff] %v7383
        %7416 = vst [vmem:[%s352 + $0x28] sm:$0xff] %v7384
        %7417 = vst [vmem:[%s352 + $0x30] sm:$0xff] %v7385
        %7418 = vst [vmem:[%s352 + $0x38] sm:$0xff] %v7386
        %7419 = vst [vmem:[%s352 + $0x40] sm:$0xff] %v7387
        %7420 = vst [vmem:[%s352 + $0x48] sm:$0xff] %v7388
        %7421 = vst [vmem:[%s352 + $0x50] sm:$0xff] %v7389
        %7422 = vst [vmem:[%s352 + $0x58] sm:$0xff] %v7390
        %7423 = vst [vmem:[%s352 + $0x60] sm:$0xff] %v7391
        %7424 = vst [vmem:[%s352 + $0x68] sm:$0xff] %v7392
        %7425 = vst [vmem:[%s352 + $0x70] sm:$0xff] %v7393
        %7426 = vst [vmem:[%s352 + $0x78] sm:$0xff] %v7394
        %7427 = vst [vmem:[%s352 + $0x80] sm:$0xff] %v7395
        %7428 = vst [vmem:[%s352 + $0x88] sm:$0xff] %v7396
        %7429 = vst [vmem:[%s352 + $0x90] sm:$0xff] %v7397
        %7430 = vst [vmem:[%s352 + $0x98] sm:$0xff] %v7398
        %7431 = vst [vmem:[%s352 + $0xa0] sm:$0xff] %v7399
        %7432 = vst [vmem:[%s352 + $0xa8] sm:$0xff] %v7400
        %7433 = vst [vmem:[%s352 + $0xb0] sm:$0xff] %v7401
        %7434 = vst [vmem:[%s352 + $0xb8] sm:$0xff] %v7402
        %7435 = vst [vmem:[%s352 + $0xc0] sm:$0xff] %v7403
        %7436 = vst [vmem:[%s352 + $0xc8] sm:$0xff] %v7404
        %7437 = vst [vmem:[%s352 + $0xd0] sm:$0xff] %v7405
        %7438 = vst [vmem:[%s352 + $0xd8] sm:$0xff] %v7406
        %7439 = vst [vmem:[%s352 + $0xe0] sm:$0xff] %v7407
        %7440 = vst [vmem:[%s352 + $0xe8] sm:$0xff] %v7408
        %7441 = vst [vmem:[%s352 + $0xf0] sm:$0xff] %v7409
        %7442 = vst [vmem:[%s352 + $0xf8] sm:$0xff] %v7410
        %s7443 = sand.u32 %s207, 1
        %s7444 = scalar_lea.sflag [#allocation6], %s7443
        %s7445 = sand.u32 %s207, 1
        %s7446 = smul.addr %s7445, 256
        %s7447 = scalar_lea.vmem [#allocation10], %s7446
        // Predicated region
        $region65: #{tpu_custom_call.1} parent=51 // pred_check
          %p7448 = pneg %p217
        $region66: #{tpu_custom_call.1} parent=51 // pred_check_branch
          %7450 = sbr.rel (%p7448) target = $region68
        $region67: #{tpu_custom_call.1} parent=51 // pred_region
          %s7452 = ssub.s32 4096, 4096
          %7453 = vsyncadd %s7444, %s7452
          %s7454 = smul.addr %s26, 32
          %s7455 = smul.addr %s7454, 128
          %s7456 = scalar_lea.hbm %s8, %s7455
          %s7457 = sshll.u32 %s7447, 4
          %s7458 = int_to_ptr.vmem [resolvable:$true] %s7457
          %7463 = dma.vmem_to_hbm [thread:$0]  %s7458, 4096, %s7456, %s7444, 128, 128, 8
        $region68: #{tpu_custom_call.1} parent=51 // pred_fallthru
          _
      $region52: #{tpu_custom_call.1} parent=5 // pred_fallthru
        _
      %p7464 = scmp.le.s32.totalorder 2, %s21
      // Predicated region
      $region69: #{tpu_custom_call.1} parent=5 // pred_check
        %p7465 = pneg %p7464
      $region70: #{tpu_custom_call.1} parent=5 // pred_check_branch
        %7467 = sbr.rel (%p7465) target = $region72
      $region71: #{tpu_custom_call.1} parent=5 // pred_region
        %s7468 = ssub.s32 %s21, 2
        // Predicated region
        $region73: #{tpu_custom_call.1} parent=71 // pred_check
          %p7469 = pneg %p223
        $region74: #{tpu_custom_call.1} parent=71 // pred_check_branch
          %7471 = sbr.rel (%p7469) target = $region76
        $region75: #{tpu_custom_call.1} parent=71 // pred_region
          %s7472 = sand.u32 %s208, 1
          %s7473 = scalar_lea.sflag [#allocation6], %s7472
          %s7474 = sand.u32 %s208, 1
          %s7475 = smul.addr %s7474, 256
          %s7476 = scalar_lea.vmem [#allocation10], %s7475
          %7477 = dma.done %s7473, 4096
        $region76: #{tpu_custom_call.1} parent=71 // pred_fallthru
          _
      $region72: #{tpu_custom_call.1} parent=5 // pred_fallthru
        _
    $region6: #{tpu_custom_call.1} parent=1 // loop_footer
      %s25 = sadd.s32 1, %s21
    $region7: #{tpu_custom_call.1} parent=1 // loop_footer_branch
      %20 = sbr.rel target = $region3
    $region8: #{tpu_custom_call.1} parent=1 // loop_exit
      _
    %7478 = vsyncpa [#allocation5], 1
    %s7479 = scalar_lea.sflag [#allocation5], 1
    %7480 = vsyncpa %s7479, 1
    %7481 = vsyncpa [#allocation8], 1
    %7482 = vsyncpa [#allocation6], 1
    %s7483 = scalar_lea.sflag [#allocation6], 1
    %7484 = vsyncpa %s7483, 1

</llo_original>
